<compile_context>
chip_gen: v6e
topology: v6e:2x2x1
jax: 0.10.0
libtpu: 0.0.40
codegen_flags: <defaults>
</compile_context>

<pallas_src>
import jax
import jax.numpy as jnp
from jax.experimental import pallas as pl
from jax.experimental.pallas import tpu as pltpu

_BN_EPS = 1e-5
_VMEM_LIMIT = 32 * 1024 * 1024   # fits v5e/v6e (128 MiB) and v7x (64 MiB physical)
_POINT_TILE_TARGET = 1024        # rows per tile; (TN,1024) f32 intermediate = 4 MiB


def _choose_tiling(n, target=_POINT_TILE_TARGET):
    """Returns (tile, padded_n); tile is a multiple of 8 and tile*num_tiles = padded_n >= n."""
    if n <= target:
        tn = max(8, ((n + 7) // 8) * 8)
        return tn, tn
    nt = (n + target - 1) // target
    per = (n + nt - 1) // nt
    tn = ((per + 7) // 8) * 8
    return tn, tn * nt


def _const_spec(shape):
    """BlockSpec for a weight/bias that stays VMEM-resident across the whole grid."""
    return pl.BlockSpec(shape, lambda b, n: (0,) * len(shape))


# --------------------------- kernel 1: STN3d (fused) ------------------------ #

def _stn_fused_kernel(x_ref, w1_ref, b1_ref, w2_ref, b2_ref, w3_ref, b3_ref,
                      w4_ref, b4_ref, w5_ref, b5_ref, w6_ref, b6_ref,
                      o_ref, g_sc):
    n_id = pl.program_id(1)

    @pl.when(n_id == 0)
    def _():
        g_sc[...] = jnp.full(g_sc.shape, -jnp.inf, jnp.float32)

    x = x_ref[0]                       # (TN, 3) f32
    w1 = w1_ref[...]                   # (3, 64) f32
    # conv1 (Cin=3): VPU broadcast-FMA -> no lane-wasting K=3 MXU matmul.
    h = (x[:, 0:1] * w1[0:1, :] + x[:, 1:2] * w1[1:2, :] + x[:, 2:3] * w1[2:3, :])
    h = jnp.maximum(h + b1_ref[...], 0.0)                                   # (TN, 64)
    h = jnp.dot(h.astype(jnp.bfloat16), w2_ref[...],
                preferred_element_type=jnp.float32)
    h = jnp.maximum(h + b2_ref[...], 0.0)                                   # (TN, 128)
    h = jnp.dot(h.astype(jnp.bfloat16), w3_ref[...],
                preferred_element_type=jnp.float32)
    h = jnp.maximum(h + b3_ref[...], 0.0)                                   # (TN, 1024)

    # running max over the points axis (accumulator lives in VMEM scratch)
    g_sc[...] = jnp.maximum(g_sc[...], jnp.max(h, axis=0, keepdims=True))

    @pl.when(n_id == pl.num_programs(1) - 1)
    def _():
        g = g_sc[...]                                                       # (1, 1024)
        f = jnp.dot(g.astype(jnp.bfloat16), w4_ref[...],
                    preferred_element_type=jnp.float32)
        f = jnp.maximum(f + b4_ref[...], 0.0)                               # (1, 512)
        f = jnp.dot(f.astype(jnp.bfloat16), w5_ref[...],
                    preferred_element_type=jnp.float32)
        f = jnp.maximum(f + b5_ref[...], 0.0)                               # (1, 256)
        f = jnp.dot(f.astype(jnp.bfloat16), w6_ref[...],
                    preferred_element_type=jnp.float32)
        o_ref[0] = f + b6_ref[...]     # identity matrix already folded into b6


def stn3d_fused(x_bnc, p, tn):
    """x_bnc (B, NP, 3) -> 3x3 input transform (B, 3, 3)."""
    B, NP, _ = x_bnc.shape
    nt = NP // tn
    out = pl.pallas_call(
        _stn_fused_kernel,
        out_shape=jax.ShapeDtypeStruct((B, 1, 9), jnp.float32),
        grid_spec=pltpu.PrefetchScalarGridSpec(
            num_scalar_prefetch=0,
            grid=(B, nt),
            in_specs=[
                pl.BlockSpec((1, tn, 3), lambda b, n: (b, n, 0)),
                _const_spec((3, 64)), _const_spec((1, 64)),
                _const_spec((64, 128)), _const_spec((1, 128)),
                _const_spec((128, 1024)), _const_spec((1, 1024)),
                _const_spec((1024, 512)), _const_spec((1, 512)),
                _const_spec((512, 256)), _const_spec((1, 256)),
                _const_spec((256, 9)), _const_spec((1, 9)),
            ],
            out_specs=pl.BlockSpec((1, 1, 9), lambda b, n: (b, 0, 0)),
            scratch_shapes=[pltpu.VMEM((1, 1024), jnp.float32)],
        ),
        compiler_params=pltpu.CompilerParams(
            dimension_semantics=("parallel", "arbitrary"),
            vmem_limit_bytes=_VMEM_LIMIT),
    )(x_bnc,
      p[0]["w"], p[0]["b"], p[1]["w"], p[1]["b"], p[2]["w"], p[2]["b"],
      p[3]["w"], p[3]["b"], p[4]["w"], p[4]["b"], p[5]["w"], p[5]["b"])
    return out.reshape(B, 3, 3)


# ------------------- kernel 2: PointNetfeat conv chain (fused) --------------- #

def _feat_fused_kernel(x_ref, t_ref, w1_ref, b1_ref, w2_ref, b2_ref,
                       w3_ref, b3_ref, wg_ref, bg_ref,
                       xt_ref, gterm_ref, g_sc):
    n_id = pl.program_id(1)

    @pl.when(n_id == 0)
    def _():
        g_sc[...] = jnp.full(g_sc.shape, -jnp.inf, jnp.float32)

    x = x_ref[0]                       # (TN, 3)
    t = t_ref[0]                       # (3, 3) per-batch STN transform
    # torch.bmm(x, trans): fused 3x3 transform on the VPU
    xt = (x[:, 0:1] * t[0:1, :] + x[:, 1:2] * t[1:2, :] + x[:, 2:3] * t[2:3, :])
    xt_ref[0] = xt                     # returned as `trans` (transformed points)

    w1 = w1_ref[...]                   # (3, 64) f32
    h1 = (xt[:, 0:1] * w1[0:1, :] + xt[:, 1:2] * w1[1:2, :] + xt[:, 2:3] * w1[2:3, :])
    h1 = jnp.maximum(h1 + b1_ref[...], 0.0)                                 # (TN, 64)

    h2 = jnp.dot(h1.astype(jnp.bfloat16), w2_ref[...],
                 preferred_element_type=jnp.float32)
    h2 = jnp.maximum(h2 + b2_ref[...], 0.0)                                 # (TN, 128)
    h3 = jnp.dot(h2.astype(jnp.bfloat16), w3_ref[...],
                 preferred_element_type=jnp.float32)
    h3 = h3 + b3_ref[...]              # no ReLU before the max (matches reference)

    g_sc[...] = jnp.maximum(g_sc[...], jnp.max(h3, axis=0, keepdims=True))

    @pl.when(n_id == pl.num_programs(1) - 1)
    def _():
        # per-batch global term of the dense head's first layer:
        #   feats @ W1 == g @ W1[:1024] + pointfeat @ W1[1024:]
        g = g_sc[...]                                                       # (1, 1024)
        gterm_ref[0] = (jnp.dot(g.astype(jnp.bfloat16), wg_ref[...],
                                preferred_element_type=jnp.float32) + bg_ref[...])


def feat_fused(x_bnc, trans3, f, wg, bg, tn):
    """Returns (x_t (B,NP,3), gterm (B,1,512))."""
    B, NP, _ = x_bnc.shape
    nt = NP // tn
    return pl.pallas_call(
        _feat_fused_kernel,
        out_shape=(
            jax.ShapeDtypeStruct((B, NP, 3), jnp.float32),
            jax.ShapeDtypeStruct((B, 1, 512), jnp.float32),
        ),
        grid_spec=pltpu.PrefetchScalarGridSpec(
            num_scalar_prefetch=0,
            grid=(B, nt),
            in_specs=[
                pl.BlockSpec((1, tn, 3), lambda b, n: (b, n, 0)),
                pl.BlockSpec((1, 3, 3), lambda b, n: (b, 0, 0)),
                _const_spec((3, 64)), _const_spec((1, 64)),
                _const_spec((64, 128)), _const_spec((1, 128)),
                _const_spec((128, 1024)), _const_spec((1, 1024)),
                _const_spec((1024, 512)), _const_spec((1, 512)),
            ],
            out_specs=[
                pl.BlockSpec((1, tn, 3), lambda b, n: (b, n, 0)),
                pl.BlockSpec((1, 1, 512), lambda b, n: (b, 0, 0)),
            ],
            scratch_shapes=[pltpu.VMEM((1, 1024), jnp.float32)],
        ),
        compiler_params=pltpu.CompilerParams(
            dimension_semantics=("parallel", "arbitrary"),
            vmem_limit_bytes=_VMEM_LIMIT),
    )(x_bnc, trans3,
      f[0]["w"], f[0]["b"], f[1]["w"], f[1]["b"], f[2]["w"], f[2]["b"], wg, bg)


# ------------------ kernel 3: dense segmentation head (fused) ---------------- #

def _head_fused_kernel(xt_ref, gterm_ref, w1_ref, b1_ref, wpf_ref,
                       w2_ref, b2_ref, w3_ref, b3_ref, w4_ref, b4_ref, o_ref):
    xt = xt_ref[0]                     # (TN, 3) transformed points
    gt = gterm_ref[0]                  # (1, 512) = g @ W1[:1024] + bias (per batch)

    # Recompute the 64-ch pointfeat from the 3-ch transformed points (3 VPU
    # FMAs) instead of round-tripping a (B,N,64) f32 tensor through HBM.
    w1 = w1_ref[...]                   # (3, 64) f32 (feat conv1, BN folded)
    pf = (xt[:, 0:1] * w1[0:1, :] + xt[:, 1:2] * w1[1:2, :] + xt[:, 2:3] * w1[2:3, :])
    pf = jnp.maximum(pf + b1_ref[...], 0.0)                                 # (TN, 64)

    h = jnp.dot(pf.astype(jnp.bfloat16), wpf_ref[...],
                preferred_element_type=jnp.float32)
    h = jnp.maximum(h + gt, 0.0)                                            # (TN, 512)
    h = jnp.dot(h.astype(jnp.bfloat16), w2_ref[...],
                preferred_element_type=jnp.float32)
    h = jnp.maximum(h + b2_ref[...], 0.0)                                   # (TN, 256)
    h = jnp.dot(h.astype(jnp.bfloat16), w3_ref[...],
                preferred_element_type=jnp.float32)
    h = jnp.maximum(h + b3_ref[...], 0.0)                                   # (TN, 128)
    logits = jnp.dot(h.astype(jnp.bfloat16), w4_ref[...],
                     preferred_element_type=jnp.float32) + b4_ref[...]      # (TN, k)
    m = jnp.max(logits, axis=-1, keepdims=True)
    s = logits - m
    lse = jnp.log(jnp.sum(jnp.exp(s), axis=-1, keepdims=True))
    o_ref[0] = s - lse


def head_fused(x_t, gterm, feat_p, hp, k, tn):
    B, NP, _ = x_t.shape
    nt = NP // tn
    return pl.pallas_call(
        _head_fused_kernel,
        out_shape=jax.ShapeDtypeStruct((B, NP, k), jnp.float32),
        grid_spec=pltpu.PrefetchScalarGridSpec(
            num_scalar_prefetch=0,
            grid=(B, nt),
            in_specs=[
                pl.BlockSpec((1, tn, 3), lambda b, n: (b, n, 0)),
                pl.BlockSpec((1, 1, 512), lambda b, n: (b, 0, 0)),
                _const_spec((3, 64)), _const_spec((1, 64)),
                _const_spec((64, 512)),
                _const_spec((512, 256)), _const_spec((1, 256)),
                _const_spec((256, 128)), _const_spec((1, 128)),
                _const_spec((128, k)), _const_spec((1, k)),
            ],
            out_specs=pl.BlockSpec((1, tn, k), lambda b, n: (b, n, 0)),
        ),
        compiler_params=pltpu.CompilerParams(
            dimension_semantics=("parallel", "parallel"),
            vmem_limit_bytes=_VMEM_LIMIT),
    )(x_t, gterm,
      feat_p[0]["w"], feat_p[0]["b"],
      hp["wpf"], hp["w2"], hp["b2"], hp["w3"], hp["b3"], hp["w4"], hp["b4"])


# ------------------------- deterministic parameters ------------------------- #

def _layer(key, cin, cout, *, bn=True, w_dtype=jnp.bfloat16):
    # TODO(synk): BatchNorm folded in eval mode (running stats); train-mode
    # batch-statistics normalization is not reproduced.
    kw, kb, kg, kbe, km = jax.random.split(key, 5)
    w = 0.1 * jax.random.normal(kw, (cin, cout), jnp.float32)
    b = 0.05 * jax.random.normal(kb, (cout,), jnp.float32)
    if bn:
        gamma = 1.0 + 0.1 * jax.random.normal(kg, (cout,), jnp.float32)
        beta = 0.05 * jax.random.normal(kbe, (cout,), jnp.float32)
        mean = 0.02 * jax.random.normal(km, (cout,), jnp.float32)
        var = jnp.ones((cout,), jnp.float32)
        scale = gamma / jnp.sqrt(var + _BN_EPS)
        bias = (b - mean) * scale + beta
        w = w * scale[None, :]                 # fold BN scale into weight columns
    else:
        bias = b
    return {"w": w.astype(w_dtype), "b": bias.reshape(1, cout).astype(jnp.float32)}


def init_params(key, k=2):
    keys = jax.random.split(key, 13)
    stn = [
        _layer(keys[0], 3, 64, w_dtype=jnp.float32),   # Cin=3 -> VPU path, keep f32
        _layer(keys[1], 64, 128),
        _layer(keys[2], 128, 1024),
        _layer(keys[3], 1024, 512),
        _layer(keys[4], 512, 256),
        _layer(keys[5], 256, 9, bn=False),
    ]
    # fold the identity transform (x = fc3(h) + iden) into the fc3 bias
    iden = jnp.array([1, 0, 0, 0, 1, 0, 0, 0, 1], jnp.float32).reshape(1, 9)
    stn[5]["b"] = stn[5]["b"] + iden

    feat = [
        _layer(keys[6], 3, 64, w_dtype=jnp.float32),
        _layer(keys[7], 64, 128),
        _layer(keys[8], 128, 1024),
    ]

    h1 = _layer(keys[9], 1088, 512)      # dense-head conv1+bn1, split global/pointfeat
    h2 = _layer(keys[10], 512, 256)
    h3 = _layer(keys[11], 256, 128)
    h4 = _layer(keys[12], 128, k, bn=False)
    head = {
        "wg": h1["w"][:1024, :],         # multiplies the repeated global feature
        "bg": h1["b"],                   # folded conv1+bn1 bias (goes into gterm)
        "wpf": h1["w"][1024:, :],        # multiplies the per-point feature
        "w2": h2["w"], "b2": h2["b"],
        "w3": h3["w"], "b3": h3["b"],
        "w4": h4["w"], "b4": h4["b"],
    }
    return {"stn": stn, "feat": feat, "head": head}


# --------------------------------- forward ----------------------------------- #

def pointnet_densecls_forward(x_bcn, params, *, k=2):
    B, C, N = x_bcn.shape
    assert C == 3
    x_bnc = jnp.transpose(x_bcn, (0, 2, 1)).astype(jnp.float32)      # (B, N, 3)

    # Pad the points axis (edge-replicated rows) so every tile is a multiple of
    # 8; duplicated rows do not change the global max, and per-point outputs
    # are sliced back to N below.
    TN, NP = _choose_tiling(N)
    if NP != N:
        x_bnc = jnp.pad(x_bnc, ((0, 0), (0, NP - N), (0, 0)), mode="edge")

    trans3 = stn3d_fused(x_bnc, params["stn"], TN)                   # (B, 3, 3)
    x_t, gterm = feat_fused(
        x_bnc, trans3, params["feat"],
        params["head"]["wg"], params["head"]["bg"], TN)

    # TODO(synk): PointNetfeat's trailing fc1/fc2/bn4/bn5/dropout branch and its
    # 5-tuple return are shape-inconsistent in the reference (Linear(1024,512) on
    # a length-N axis; 4-way unpack of a 5-tuple), so the dense head consumes the
    # canonical 1088-channel per-point concat (split algebraically, never
    # materialized).
    logp = head_fused(x_t, gterm, params["feat"], params["head"], k, TN)

    if NP != N:
        x_t = x_t[:, :N]
        logp = logp[:, :N]

    trans = x_t          # reference returns the transformed points as `trans`
    trans_feat = None    # feature_transform=False
    return logp, trans, trans_feat


if __name__ == "__main__":
    B, N, K_CLS = 2, 16, 2
    key = jax.random.PRNGKey(0)
    kx, kp = jax.random.split(key)
    x = jax.random.normal(kx, (B, 3, N), jnp.float32)   # PyTorch layout (B, C=3, n_pts)
    params = init_params(kp, k=K_CLS)

    fwd = jax.jit(pointnet_densecls_forward, static_argnames=("k",))
    logp, trans, trans_feat = fwd(x, params, k=K_CLS)
    jax.block_until_ready((logp, trans))

    assert logp.shape == (B, N, K_CLS)
    assert trans.shape == (B, N, 3)
    assert bool(jnp.all(jnp.isfinite(logp)))
    assert bool(jnp.allclose(jnp.exp(logp).sum(-1), 1.0, atol=1e-3))
    print("KERNEL_OK")
</pallas_src>

<mosaic_0001>
module attributes {stable_mosaic.version = 11 : i64} {
  func.func @_stn_fused_kernel(%arg0: i32, %arg1: i32, %arg2: memref<1x16x3xf32, #tpu.memory_space<vmem>>, %arg3: memref<3x64xf32, #tpu.memory_space<vmem>>, %arg4: memref<1x64xf32, #tpu.memory_space<vmem>>, %arg5: memref<64x128xbf16, #tpu.memory_space<vmem>>, %arg6: memref<1x128xf32, #tpu.memory_space<vmem>>, %arg7: memref<128x1024xbf16, #tpu.memory_space<vmem>>, %arg8: memref<1x1024xf32, #tpu.memory_space<vmem>>, %arg9: memref<1024x512xbf16, #tpu.memory_space<vmem>>, %arg10: memref<1x512xf32, #tpu.memory_space<vmem>>, %arg11: memref<512x256xbf16, #tpu.memory_space<vmem>>, %arg12: memref<1x256xf32, #tpu.memory_space<vmem>>, %arg13: memref<256x9xbf16, #tpu.memory_space<vmem>>, %arg14: memref<1x9xf32, #tpu.memory_space<vmem>>, %arg15: memref<1x1x9xf32, #tpu.memory_space<vmem>>, %arg16: memref<1x1024xf32, #tpu.memory_space<vmem>>) attributes {dimension_semantics = [#tpu.dimension_semantics<parallel>, #tpu.dimension_semantics<arbitrary>], iteration_bounds = array<i64: 2, 1>, scalar_prefetch = 0 : i64, scratch_operands = 1 : i64, tpu.core_type = #tpu.core_type<tc>, window_params = [{transform_indices = @transform_0, window_bounds = array<i64: 1, 16, 3>}, {pipeline_mode = #tpu.pipeline_mode<synchronous>, transform_indices = @transform_1, window_bounds = array<i64: 3, 64>}, {pipeline_mode = #tpu.pipeline_mode<synchronous>, transform_indices = @transform_2, window_bounds = array<i64: 1, 64>}, {pipeline_mode = #tpu.pipeline_mode<synchronous>, transform_indices = @transform_3, window_bounds = array<i64: 64, 128>}, {pipeline_mode = #tpu.pipeline_mode<synchronous>, transform_indices = @transform_4, window_bounds = array<i64: 1, 128>}, {pipeline_mode = #tpu.pipeline_mode<synchronous>, transform_indices = @transform_5, window_bounds = array<i64: 128, 1024>}, {pipeline_mode = #tpu.pipeline_mode<synchronous>, transform_indices = @transform_6, window_bounds = array<i64: 1, 1024>}, {pipeline_mode = #tpu.pipeline_mode<synchronous>, transform_indices = @transform_7, window_bounds = array<i64: 1024, 512>}, {pipeline_mode = #tpu.pipeline_mode<synchronous>, transform_indices = @transform_8, window_bounds = array<i64: 1, 512>}, {pipeline_mode = #tpu.pipeline_mode<synchronous>, transform_indices = @transform_9, window_bounds = array<i64: 512, 256>}, {pipeline_mode = #tpu.pipeline_mode<synchronous>, transform_indices = @transform_10, window_bounds = array<i64: 1, 256>}, {pipeline_mode = #tpu.pipeline_mode<synchronous>, transform_indices = @transform_11, window_bounds = array<i64: 256, 9>}, {pipeline_mode = #tpu.pipeline_mode<synchronous>, transform_indices = @transform_12, window_bounds = array<i64: 1, 9>}, {transform_indices = @transform_13, window_bounds = array<i64: 1, 1, 9>}]} {
    %c0_i32 = arith.constant 0 : i32
    %0 = arith.cmpi eq, %arg1, %c0_i32 : i32
    %1 = arith.extui %0 : i1 to i32
    %c0_i32_0 = arith.constant 0 : i32
    %2 = arith.cmpi ne, %1, %c0_i32_0 : i32
    scf.if %2 {
      %cst_26 = arith.constant 0xFF800000 : f32
      %52 = vector.broadcast %cst_26 : f32 to vector<1x1024xf32>
      %c0_27 = arith.constant 0 : index
      %c0_28 = arith.constant 0 : index
      %53 = vector.load %arg16[%c0_27, %c0_28] : memref<1x1024xf32, #tpu.memory_space<vmem>>, vector<1x1024xf32>
      tpu.vector_store %arg16[%c0_27, %c0_28], %52 {strides = array<i32>} : memref<1x1024xf32, #tpu.memory_space<vmem>>, vector<1x1024xf32>,
    } else {
    }
    %c0 = arith.constant 0 : index
    %c0_1 = arith.constant 0 : index
    %c0_2 = arith.constant 0 : index
    %3 = vector.load %arg2[%c0, %c0_1, %c0_2] : memref<1x16x3xf32, #tpu.memory_space<vmem>>, vector<1x16x3xf32>
    %4 = vector.shape_cast %3 : vector<1x16x3xf32> to vector<16x3xf32>
    %c0_3 = arith.constant 0 : index
    %c0_4 = arith.constant 0 : index
    %5 = vector.load %arg3[%c0_3, %c0_4] : memref<3x64xf32, #tpu.memory_space<vmem>>, vector<3x64xf32>
    %6 = vector.extract_strided_slice %4 {offsets = [0, 0], sizes = [16, 1], strides = [1, 1]} : vector<16x3xf32> to vector<16x1xf32>
    %7 = vector.extract_strided_slice %5 {offsets = [0, 0], sizes = [1, 64], strides = [1, 1]} : vector<3x64xf32> to vector<1x64xf32>
    %8 = vector.broadcast %6 : vector<16x1xf32> to vector<16x64xf32>
    %9 = vector.broadcast %7 : vector<1x64xf32> to vector<16x64xf32>
    %10 = arith.mulf %8, %9 : vector<16x64xf32>
    %11 = vector.extract_strided_slice %4 {offsets = [0, 1], sizes = [16, 1], strides = [1, 1]} : vector<16x3xf32> to vector<16x1xf32>
    %12 = vector.extract_strided_slice %5 {offsets = [1, 0], sizes = [1, 64], strides = [1, 1]} : vector<3x64xf32> to vector<1x64xf32>
    %13 = vector.broadcast %11 : vector<16x1xf32> to vector<16x64xf32>
    %14 = vector.broadcast %12 : vector<1x64xf32> to vector<16x64xf32>
    %15 = arith.mulf %13, %14 : vector<16x64xf32>
    %16 = arith.addf %10, %15 : vector<16x64xf32>
    %17 = vector.extract_strided_slice %4 {offsets = [0, 2], sizes = [16, 1], strides = [1, 1]} : vector<16x3xf32> to vector<16x1xf32>
    %18 = vector.extract_strided_slice %5 {offsets = [2, 0], sizes = [1, 64], strides = [1, 1]} : vector<3x64xf32> to vector<1x64xf32>
    %19 = vector.broadcast %17 : vector<16x1xf32> to vector<16x64xf32>
    %20 = vector.broadcast %18 : vector<1x64xf32> to vector<16x64xf32>
    %21 = arith.mulf %19, %20 : vector<16x64xf32>
    %22 = arith.addf %16, %21 : vector<16x64xf32>
    %c0_5 = arith.constant 0 : index
    %c0_6 = arith.constant 0 : index
    %23 = vector.load %arg4[%c0_5, %c0_6] : memref<1x64xf32, #tpu.memory_space<vmem>>, vector<1x64xf32>
    %24 = vector.broadcast %23 : vector<1x64xf32> to vector<16x64xf32>
    %25 = arith.addf %22, %24 : vector<16x64xf32>
    %cst = arith.constant 0.000000e+00 : f32
    %26 = vector.broadcast %cst : f32 to vector<16x64xf32>
    %27 = arith.maximumf %25, %26 : vector<16x64xf32>
    %28 = arith.truncf %27 : vector<16x64xf32> to vector<16x64xbf16>
    %c0_7 = arith.constant 0 : index
    %c0_8 = arith.constant 0 : index
    %29 = vector.load %arg5[%c0_7, %c0_8] : memref<64x128xbf16, #tpu.memory_space<vmem>>, vector<64x128xbf16>
    %cst_9 = arith.constant dense<0.000000e+00> : vector<16x128xf32>
    %30 = tpu.matmul %28, %29, %cst_9 {dimension_numbers = #tpu.dot_dimension_numbers<[1], [0], [0], [1], [0, 0, 1, 1], [], []>} : vector<16x64xbf16>, vector<64x128xbf16>, vector<16x128xf32> -> vector<16x128xf32>
    %c0_10 = arith.constant 0 : index
    %c0_11 = arith.constant 0 : index
    %31 = vector.load %arg6[%c0_10, %c0_11] : memref<1x128xf32, #tpu.memory_space<vmem>>, vector<1x128xf32>
    %32 = vector.broadcast %31 : vector<1x128xf32> to vector<16x128xf32>
    %33 = arith.addf %30, %32 : vector<16x128xf32>
    %cst_12 = arith.constant 0.000000e+00 : f32
    %34 = vector.broadcast %cst_12 : f32 to vector<16x128xf32>
    %35 = arith.maximumf %33, %34 : vector<16x128xf32>
    %36 = arith.truncf %35 : vector<16x128xf32> to vector<16x128xbf16>
    %c0_13 = arith.constant 0 : index
    %c0_14 = arith.constant 0 : index
    %37 = vector.load %arg7[%c0_13, %c0_14] : memref<128x1024xbf16, #tpu.memory_space<vmem>>, vector<128x1024xbf16>
    %cst_15 = arith.constant dense<0.000000e+00> : vector<16x1024xf32>
    %38 = tpu.matmul %36, %37, %cst_15 {dimension_numbers = #tpu.dot_dimension_numbers<[1], [0], [0], [1], [0, 0, 1, 1], [], []>} : vector<16x128xbf16>, vector<128x1024xbf16>, vector<16x1024xf32> -> vector<16x1024xf32>
    %c0_16 = arith.constant 0 : index
    %c0_17 = arith.constant 0 : index
    %39 = vector.load %arg8[%c0_16, %c0_17] : memref<1x1024xf32, #tpu.memory_space<vmem>>, vector<1x1024xf32>
    %40 = vector.broadcast %39 : vector<1x1024xf32> to vector<16x1024xf32>
    %41 = arith.addf %38, %40 : vector<16x1024xf32>
    %cst_18 = arith.constant 0.000000e+00 : f32
    %42 = vector.broadcast %cst_18 : f32 to vector<16x1024xf32>
    %43 = arith.maximumf %41, %42 : vector<16x1024xf32>
    %c0_19 = arith.constant 0 : index
    %c0_20 = arith.constant 0 : index
    %44 = vector.load %arg16[%c0_19, %c0_20] : memref<1x1024xf32, #tpu.memory_space<vmem>>, vector<1x1024xf32>
    %cst_21 = arith.constant dense<0xFF800000> : vector<1024xf32>
    %45 = vector.multi_reduction <maximumf>, %43, %cst_21 [0] : vector<16x1024xf32> to vector<1024xf32>
    %46 = vector.shape_cast %45 : vector<1024xf32> to vector<1x1024xf32>
    %47 = arith.maximumf %44, %46 : vector<1x1024xf32>
    %c0_22 = arith.constant 0 : index
    %c0_23 = arith.constant 0 : index
    %48 = vector.load %arg16[%c0_22, %c0_23] : memref<1x1024xf32, #tpu.memory_space<vmem>>, vector<1x1024xf32>
    tpu.vector_store %arg16[%c0_22, %c0_23], %47 {strides = array<i32>} : memref<1x1024xf32, #tpu.memory_space<vmem>>, vector<1x1024xf32>,
    %c0_i32_24 = arith.constant 0 : i32
    %49 = arith.cmpi eq, %arg1, %c0_i32_24 : i32
    %50 = arith.extui %49 : i1 to i32
    %c0_i32_25 = arith.constant 0 : i32
    %51 = arith.cmpi ne, %50, %c0_i32_25 : i32
    scf.if %51 {
      %c0_26 = arith.constant 0 : index
      %c0_27 = arith.constant 0 : index
      %52 = vector.load %arg16[%c0_26, %c0_27] : memref<1x1024xf32, #tpu.memory_space<vmem>>, vector<1x1024xf32>
      %53 = arith.truncf %52 : vector<1x1024xf32> to vector<1x1024xbf16>
      %c0_28 = arith.constant 0 : index
      %c0_29 = arith.constant 0 : index
      %54 = vector.load %arg9[%c0_28, %c0_29] : memref<1024x512xbf16, #tpu.memory_space<vmem>>, vector<1024x512xbf16>
      %cst_30 = arith.constant dense<0.000000e+00> : vector<1x512xf32>
      %55 = tpu.matmul %53, %54, %cst_30 {dimension_numbers = #tpu.dot_dimension_numbers<[1], [0], [0], [1], [0, 0, 1, 1], [], []>} : vector<1x1024xbf16>, vector<1024x512xbf16>, vector<1x512xf32> -> vector<1x512xf32>
      %c0_31 = arith.constant 0 : index
      %c0_32 = arith.constant 0 : index
      %56 = vector.load %arg10[%c0_31, %c0_32] : memref<1x512xf32, #tpu.memory_space<vmem>>, vector<1x512xf32>
      %57 = arith.addf %55, %56 : vector<1x512xf32>
      %cst_33 = arith.constant 0.000000e+00 : f32
      %58 = vector.broadcast %cst_33 : f32 to vector<1x512xf32>
      %59 = arith.maximumf %57, %58 : vector<1x512xf32>
      %60 = arith.truncf %59 : vector<1x512xf32> to vector<1x512xbf16>
      %c0_34 = arith.constant 0 : index
      %c0_35 = arith.constant 0 : index
      %61 = vector.load %arg11[%c0_34, %c0_35] : memref<512x256xbf16, #tpu.memory_space<vmem>>, vector<512x256xbf16>
      %cst_36 = arith.constant dense<0.000000e+00> : vector<1x256xf32>
      %62 = tpu.matmul %60, %61, %cst_36 {dimension_numbers = #tpu.dot_dimension_numbers<[1], [0], [0], [1], [0, 0, 1, 1], [], []>} : vector<1x512xbf16>, vector<512x256xbf16>, vector<1x256xf32> -> vector<1x256xf32>
      %c0_37 = arith.constant 0 : index
      %c0_38 = arith.constant 0 : index
      %63 = vector.load %arg12[%c0_37, %c0_38] : memref<1x256xf32, #tpu.memory_space<vmem>>, vector<1x256xf32>
      %64 = arith.addf %62, %63 : vector<1x256xf32>
      %cst_39 = arith.constant 0.000000e+00 : f32
      %65 = vector.broadcast %cst_39 : f32 to vector<1x256xf32>
      %66 = arith.maximumf %64, %65 : vector<1x256xf32>
      %67 = arith.truncf %66 : vector<1x256xf32> to vector<1x256xbf16>
      %c0_40 = arith.constant 0 : index
      %c0_41 = arith.constant 0 : index
      %68 = vector.load %arg13[%c0_40, %c0_41] : memref<256x9xbf16, #tpu.memory_space<vmem>>, vector<256x9xbf16>
      %cst_42 = arith.constant dense<0.000000e+00> : vector<1x9xf32>
      %69 = tpu.matmul %67, %68, %cst_42 {dimension_numbers = #tpu.dot_dimension_numbers<[1], [0], [0], [1], [0, 0, 1, 1], [], []>} : vector<1x256xbf16>, vector<256x9xbf16>, vector<1x9xf32> -> vector<1x9xf32>
      %c0_43 = arith.constant 0 : index
      %c0_44 = arith.constant 0 : index
      %70 = vector.load %arg14[%c0_43, %c0_44] : memref<1x9xf32, #tpu.memory_space<vmem>>, vector<1x9xf32>
      %71 = arith.addf %69, %70 : vector<1x9xf32>
      %c0_45 = arith.constant 0 : index
      %c0_46 = arith.constant 0 : index
      %c0_47 = arith.constant 0 : index
      %72 = vector.load %arg15[%c0_45, %c0_46, %c0_47] : memref<1x1x9xf32, #tpu.memory_space<vmem>>, vector<1x1x9xf32>
      %73 = vector.shape_cast %72 : vector<1x1x9xf32> to vector<1x9xf32>
      %74 = vector.shape_cast %71 : vector<1x9xf32> to vector<1x1x9xf32>
      tpu.vector_store %arg15[%c0_45, %c0_46, %c0_47], %74 {strides = array<i32>} : memref<1x1x9xf32, #tpu.memory_space<vmem>>, vector<1x1x9xf32>,
    } else {
    }
    return
  }
  func.func @transform_0(%arg0: i32, %arg1: i32) -> (i32, i32, i32) {
    %c0_i32 = arith.constant 0 : i32
    %c0_i32_0 = arith.constant 0 : i32
    return %arg0, %arg1, %c0_i32 : i32, i32, i32
  }
  func.func @transform_1(%arg0: i32, %arg1: i32) -> (i32, i32) {
    %c0_i32 = arith.constant 0 : i32
    %c0_i32_0 = arith.constant 0 : i32
    %c0_i32_1 = arith.constant 0 : i32
    return %c0_i32, %c0_i32_0 : i32, i32
  }
  func.func @transform_2(%arg0: i32, %arg1: i32) -> (i32, i32) {
    %c0_i32 = arith.constant 0 : i32
    %c0_i32_0 = arith.constant 0 : i32
    %c0_i32_1 = arith.constant 0 : i32
    return %c0_i32, %c0_i32_0 : i32, i32
  }
  func.func @transform_3(%arg0: i32, %arg1: i32) -> (i32, i32) {
    %c0_i32 = arith.constant 0 : i32
    %c0_i32_0 = arith.constant 0 : i32
    %c0_i32_1 = arith.constant 0 : i32
    return %c0_i32, %c0_i32_0 : i32, i32
  }
  func.func @transform_4(%arg0: i32, %arg1: i32) -> (i32, i32) {
    %c0_i32 = arith.constant 0 : i32
    %c0_i32_0 = arith.constant 0 : i32
    %c0_i32_1 = arith.constant 0 : i32
    return %c0_i32, %c0_i32_0 : i32, i32
  }
  func.func @transform_5(%arg0: i32, %arg1: i32) -> (i32, i32) {
    %c0_i32 = arith.constant 0 : i32
    %c0_i32_0 = arith.constant 0 : i32
    %c0_i32_1 = arith.constant 0 : i32
    return %c0_i32, %c0_i32_0 : i32, i32
  }
  func.func @transform_6(%arg0: i32, %arg1: i32) -> (i32, i32) {
    %c0_i32 = arith.constant 0 : i32
    %c0_i32_0 = arith.constant 0 : i32
    %c0_i32_1 = arith.constant 0 : i32
    return %c0_i32, %c0_i32_0 : i32, i32
  }
  func.func @transform_7(%arg0: i32, %arg1: i32) -> (i32, i32) {
    %c0_i32 = arith.constant 0 : i32
    %c0_i32_0 = arith.constant 0 : i32
    %c0_i32_1 = arith.constant 0 : i32
    return %c0_i32, %c0_i32_0 : i32, i32
  }
  func.func @transform_8(%arg0: i32, %arg1: i32) -> (i32, i32) {
    %c0_i32 = arith.constant 0 : i32
    %c0_i32_0 = arith.constant 0 : i32
    %c0_i32_1 = arith.constant 0 : i32
    return %c0_i32, %c0_i32_0 : i32, i32
  }
  func.func @transform_9(%arg0: i32, %arg1: i32) -> (i32, i32) {
    %c0_i32 = arith.constant 0 : i32
    %c0_i32_0 = arith.constant 0 : i32
    %c0_i32_1 = arith.constant 0 : i32
    return %c0_i32, %c0_i32_0 : i32, i32
  }
  func.func @transform_10(%arg0: i32, %arg1: i32) -> (i32, i32) {
    %c0_i32 = arith.constant 0 : i32
    %c0_i32_0 = arith.constant 0 : i32
    %c0_i32_1 = arith.constant 0 : i32
    return %c0_i32, %c0_i32_0 : i32, i32
  }
  func.func @transform_11(%arg0: i32, %arg1: i32) -> (i32, i32) {
    %c0_i32 = arith.constant 0 : i32
    %c0_i32_0 = arith.constant 0 : i32
    %c0_i32_1 = arith.constant 0 : i32
    return %c0_i32, %c0_i32_0 : i32, i32
  }
  func.func @transform_12(%arg0: i32, %arg1: i32) -> (i32, i32) {
    %c0_i32 = arith.constant 0 : i32
    %c0_i32_0 = arith.constant 0 : i32
    %c0_i32_1 = arith.constant 0 : i32
    return %c0_i32, %c0_i32_0 : i32, i32
  }
  func.func @transform_13(%arg0: i32, %arg1: i32) -> (i32, i32, i32) {
    %c0_i32 = arith.constant 0 : i32
    %c0_i32_0 = arith.constant 0 : i32
    %c0_i32_1 = arith.constant 0 : i32
    return %arg0, %c0_i32, %c0_i32_0 : i32, i32, i32
  }
}

module attributes {stable_mosaic.version = 11 : i64} {
  func.func @_feat_fused_kernel(%arg0: i32, %arg1: i32, %arg2: memref<1x16x3xf32, #tpu.memory_space<vmem>>, %arg3: memref<1x3x3xf32, #tpu.memory_space<vmem>>, %arg4: memref<3x64xf32, #tpu.memory_space<vmem>>, %arg5: memref<1x64xf32, #tpu.memory_space<vmem>>, %arg6: memref<64x128xbf16, #tpu.memory_space<vmem>>, %arg7: memref<1x128xf32, #tpu.memory_space<vmem>>, %arg8: memref<128x1024xbf16, #tpu.memory_space<vmem>>, %arg9: memref<1x1024xf32, #tpu.memory_space<vmem>>, %arg10: memref<1024x512xbf16, #tpu.memory_space<vmem>>, %arg11: memref<1x512xf32, #tpu.memory_space<vmem>>, %arg12: memref<1x16x3xf32, #tpu.memory_space<vmem>>, %arg13: memref<1x1x512xf32, #tpu.memory_space<vmem>>, %arg14: memref<1x1024xf32, #tpu.memory_space<vmem>>) attributes {dimension_semantics = [#tpu.dimension_semantics<parallel>, #tpu.dimension_semantics<arbitrary>], iteration_bounds = array<i64: 2, 1>, scalar_prefetch = 0 : i64, scratch_operands = 1 : i64, tpu.core_type = #tpu.core_type<tc>, window_params = [{transform_indices = @transform_0, window_bounds = array<i64: 1, 16, 3>}, {transform_indices = @transform_1, window_bounds = array<i64: 1, 3, 3>}, {pipeline_mode = #tpu.pipeline_mode<synchronous>, transform_indices = @transform_2, window_bounds = array<i64: 3, 64>}, {pipeline_mode = #tpu.pipeline_mode<synchronous>, transform_indices = @transform_3, window_bounds = array<i64: 1, 64>}, {pipeline_mode = #tpu.pipeline_mode<synchronous>, transform_indices = @transform_4, window_bounds = array<i64: 64, 128>}, {pipeline_mode = #tpu.pipeline_mode<synchronous>, transform_indices = @transform_5, window_bounds = array<i64: 1, 128>}, {pipeline_mode = #tpu.pipeline_mode<synchronous>, transform_indices = @transform_6, window_bounds = array<i64: 128, 1024>}, {pipeline_mode = #tpu.pipeline_mode<synchronous>, transform_indices = @transform_7, window_bounds = array<i64: 1, 1024>}, {pipeline_mode = #tpu.pipeline_mode<synchronous>, transform_indices = @transform_8, window_bounds = array<i64: 1024, 512>}, {pipeline_mode = #tpu.pipeline_mode<synchronous>, transform_indices = @transform_9, window_bounds = array<i64: 1, 512>}, {transform_indices = @transform_10, window_bounds = array<i64: 1, 16, 3>}, {transform_indices = @transform_11, window_bounds = array<i64: 1, 1, 512>}]} {
    %c0_i32 = arith.constant 0 : i32
    %0 = arith.cmpi eq, %arg1, %c0_i32 : i32
    %1 = arith.extui %0 : i1 to i32
    %c0_i32_0 = arith.constant 0 : i32
    %2 = arith.cmpi ne, %1, %c0_i32_0 : i32
    scf.if %2 {
      %cst_31 = arith.constant 0xFF800000 : f32
      %72 = vector.broadcast %cst_31 : f32 to vector<1x1024xf32>
      %c0_32 = arith.constant 0 : index
      %c0_33 = arith.constant 0 : index
      %73 = vector.load %arg14[%c0_32, %c0_33] : memref<1x1024xf32, #tpu.memory_space<vmem>>, vector<1x1024xf32>
      tpu.vector_store %arg14[%c0_32, %c0_33], %72 {strides = array<i32>} : memref<1x1024xf32, #tpu.memory_space<vmem>>, vector<1x1024xf32>,
    } else {
    }
    %c0 = arith.constant 0 : index
    %c0_1 = arith.constant 0 : index
    %c0_2 = arith.constant 0 : index
    %3 = vector.load %arg2[%c0, %c0_1, %c0_2] : memref<1x16x3xf32, #tpu.memory_space<vmem>>, vector<1x16x3xf32>
    %4 = vector.shape_cast %3 : vector<1x16x3xf32> to vector<16x3xf32>
    %c0_3 = arith.constant 0 : index
    %c0_4 = arith.constant 0 : index
    %c0_5 = arith.constant 0 : index
    %5 = vector.load %arg3[%c0_3, %c0_4, %c0_5] : memref<1x3x3xf32, #tpu.memory_space<vmem>>, vector<1x3x3xf32>
    %6 = vector.shape_cast %5 : vector<1x3x3xf32> to vector<3x3xf32>
    %7 = vector.extract_strided_slice %4 {offsets = [0, 0], sizes = [16, 1], strides = [1, 1]} : vector<16x3xf32> to vector<16x1xf32>
    %8 = vector.extract_strided_slice %6 {offsets = [0, 0], sizes = [1, 3], strides = [1, 1]} : vector<3x3xf32> to vector<1x3xf32>
    %9 = vector.broadcast %7 : vector<16x1xf32> to vector<16x3xf32>
    %10 = vector.broadcast %8 : vector<1x3xf32> to vector<16x3xf32>
    %11 = arith.mulf %9, %10 : vector<16x3xf32>
    %12 = vector.extract_strided_slice %4 {offsets = [0, 1], sizes = [16, 1], strides = [1, 1]} : vector<16x3xf32> to vector<16x1xf32>
    %13 = vector.extract_strided_slice %6 {offsets = [1, 0], sizes = [1, 3], strides = [1, 1]} : vector<3x3xf32> to vector<1x3xf32>
    %14 = vector.broadcast %12 : vector<16x1xf32> to vector<16x3xf32>
    %15 = vector.broadcast %13 : vector<1x3xf32> to vector<16x3xf32>
    %16 = arith.mulf %14, %15 : vector<16x3xf32>
    %17 = arith.addf %11, %16 : vector<16x3xf32>
    %18 = vector.extract_strided_slice %4 {offsets = [0, 2], sizes = [16, 1], strides = [1, 1]} : vector<16x3xf32> to vector<16x1xf32>
    %19 = vector.extract_strided_slice %6 {offsets = [2, 0], sizes = [1, 3], strides = [1, 1]} : vector<3x3xf32> to vector<1x3xf32>
    %20 = vector.broadcast %18 : vector<16x1xf32> to vector<16x3xf32>
    %21 = vector.broadcast %19 : vector<1x3xf32> to vector<16x3xf32>
    %22 = arith.mulf %20, %21 : vector<16x3xf32>
    %23 = arith.addf %17, %22 : vector<16x3xf32>
    %c0_6 = arith.constant 0 : index
    %c0_7 = arith.constant 0 : index
    %c0_8 = arith.constant 0 : index
    %24 = vector.load %arg12[%c0_6, %c0_7, %c0_8] : memref<1x16x3xf32, #tpu.memory_space<vmem>>, vector<1x16x3xf32>
    %25 = vector.shape_cast %24 : vector<1x16x3xf32> to vector<16x3xf32>
    %26 = vector.shape_cast %23 : vector<16x3xf32> to vector<1x16x3xf32>
    tpu.vector_store %arg12[%c0_6, %c0_7, %c0_8], %26 {strides = array<i32>} : memref<1x16x3xf32, #tpu.memory_space<vmem>>, vector<1x16x3xf32>,
    %c0_9 = arith.constant 0 : index
    %c0_10 = arith.constant 0 : index
    %27 = vector.load %arg4[%c0_9, %c0_10] : memref<3x64xf32, #tpu.memory_space<vmem>>, vector<3x64xf32>
    %28 = vector.extract_strided_slice %23 {offsets = [0, 0], sizes = [16, 1], strides = [1, 1]} : vector<16x3xf32> to vector<16x1xf32>
    %29 = vector.extract_strided_slice %27 {offsets = [0, 0], sizes = [1, 64], strides = [1, 1]} : vector<3x64xf32> to vector<1x64xf32>
    %30 = vector.broadcast %28 : vector<16x1xf32> to vector<16x64xf32>
    %31 = vector.broadcast %29 : vector<1x64xf32> to vector<16x64xf32>
    %32 = arith.mulf %30, %31 : vector<16x64xf32>
    %33 = vector.extract_strided_slice %23 {offsets = [0, 1], sizes = [16, 1], strides = [1, 1]} : vector<16x3xf32> to vector<16x1xf32>
    %34 = vector.extract_strided_slice %27 {offsets = [1, 0], sizes = [1, 64], strides = [1, 1]} : vector<3x64xf32> to vector<1x64xf32>
    %35 = vector.broadcast %33 : vector<16x1xf32> to vector<16x64xf32>
    %36 = vector.broadcast %34 : vector<1x64xf32> to vector<16x64xf32>
    %37 = arith.mulf %35, %36 : vector<16x64xf32>
    %38 = arith.addf %32, %37 : vector<16x64xf32>
    %39 = vector.extract_strided_slice %23 {offsets = [0, 2], sizes = [16, 1], strides = [1, 1]} : vector<16x3xf32> to vector<16x1xf32>
    %40 = vector.extract_strided_slice %27 {offsets = [2, 0], sizes = [1, 64], strides = [1, 1]} : vector<3x64xf32> to vector<1x64xf32>
    %41 = vector.broadcast %39 : vector<16x1xf32> to vector<16x64xf32>
    %42 = vector.broadcast %40 : vector<1x64xf32> to vector<16x64xf32>
    %43 = arith.mulf %41, %42 : vector<16x64xf32>
    %44 = arith.addf %38, %43 : vector<16x64xf32>
    %c0_11 = arith.constant 0 : index
    %c0_12 = arith.constant 0 : index
    %45 = vector.load %arg5[%c0_11, %c0_12] : memref<1x64xf32, #tpu.memory_space<vmem>>, vector<1x64xf32>
    %46 = vector.broadcast %45 : vector<1x64xf32> to vector<16x64xf32>
    %47 = arith.addf %44, %46 : vector<16x64xf32>
    %cst = arith.constant 0.000000e+00 : f32
    %48 = vector.broadcast %cst : f32 to vector<16x64xf32>
    %49 = arith.maximumf %47, %48 : vector<16x64xf32>
    %50 = arith.truncf %49 : vector<16x64xf32> to vector<16x64xbf16>
    %c0_13 = arith.constant 0 : index
    %c0_14 = arith.constant 0 : index
    %51 = vector.load %arg6[%c0_13, %c0_14] : memref<64x128xbf16, #tpu.memory_space<vmem>>, vector<64x128xbf16>
    %cst_15 = arith.constant dense<0.000000e+00> : vector<16x128xf32>
    %52 = tpu.matmul %50, %51, %cst_15 {dimension_numbers = #tpu.dot_dimension_numbers<[1], [0], [0], [1], [0, 0, 1, 1], [], []>} : vector<16x64xbf16>, vector<64x128xbf16>, vector<16x128xf32> -> vector<16x128xf32>
    %c0_16 = arith.constant 0 : index
    %c0_17 = arith.constant 0 : index
    %53 = vector.load %arg7[%c0_16, %c0_17] : memref<1x128xf32, #tpu.memory_space<vmem>>, vector<1x128xf32>
    %54 = vector.broadcast %53 : vector<1x128xf32> to vector<16x128xf32>
    %55 = arith.addf %52, %54 : vector<16x128xf32>
    %cst_18 = arith.constant 0.000000e+00 : f32
    %56 = vector.broadcast %cst_18 : f32 to vector<16x128xf32>
    %57 = arith.maximumf %55, %56 : vector<16x128xf32>
    %58 = arith.truncf %57 : vector<16x128xf32> to vector<16x128xbf16>
    %c0_19 = arith.constant 0 : index
    %c0_20 = arith.constant 0 : index
    %59 = vector.load %arg8[%c0_19, %c0_20] : memref<128x1024xbf16, #tpu.memory_space<vmem>>, vector<128x1024xbf16>
    %cst_21 = arith.constant dense<0.000000e+00> : vector<16x1024xf32>
    %60 = tpu.matmul %58, %59, %cst_21 {dimension_numbers = #tpu.dot_dimension_numbers<[1], [0], [0], [1], [0, 0, 1, 1], [], []>} : vector<16x128xbf16>, vector<128x1024xbf16>, vector<16x1024xf32> -> vector<16x1024xf32>
    %c0_22 = arith.constant 0 : index
    %c0_23 = arith.constant 0 : index
    %61 = vector.load %arg9[%c0_22, %c0_23] : memref<1x1024xf32, #tpu.memory_space<vmem>>, vector<1x1024xf32>
    %62 = vector.broadcast %61 : vector<1x1024xf32> to vector<16x1024xf32>
    %63 = arith.addf %60, %62 : vector<16x1024xf32>
    %c0_24 = arith.constant 0 : index
    %c0_25 = arith.constant 0 : index
    %64 = vector.load %arg14[%c0_24, %c0_25] : memref<1x1024xf32, #tpu.memory_space<vmem>>, vector<1x1024xf32>
    %cst_26 = arith.constant dense<0xFF800000> : vector<1024xf32>
    %65 = vector.multi_reduction <maximumf>, %63, %cst_26 [0] : vector<16x1024xf32> to vector<1024xf32>
    %66 = vector.shape_cast %65 : vector<1024xf32> to vector<1x1024xf32>
    %67 = arith.maximumf %64, %66 : vector<1x1024xf32>
    %c0_27 = arith.constant 0 : index
    %c0_28 = arith.constant 0 : index
    %68 = vector.load %arg14[%c0_27, %c0_28] : memref<1x1024xf32, #tpu.memory_space<vmem>>, vector<1x1024xf32>
    tpu.vector_store %arg14[%c0_27, %c0_28], %67 {strides = array<i32>} : memref<1x1024xf32, #tpu.memory_space<vmem>>, vector<1x1024xf32>,
    %c0_i32_29 = arith.constant 0 : i32
    %69 = arith.cmpi eq, %arg1, %c0_i32_29 : i32
    %70 = arith.extui %69 : i1 to i32
    %c0_i32_30 = arith.constant 0 : i32
    %71 = arith.cmpi ne, %70, %c0_i32_30 : i32
    scf.if %71 {
      %c0_31 = arith.constant 0 : index
      %c0_32 = arith.constant 0 : index
      %72 = vector.load %arg14[%c0_31, %c0_32] : memref<1x1024xf32, #tpu.memory_space<vmem>>, vector<1x1024xf32>
      %73 = arith.truncf %72 : vector<1x1024xf32> to vector<1x1024xbf16>
      %c0_33 = arith.constant 0 : index
      %c0_34 = arith.constant 0 : index
      %74 = vector.load %arg10[%c0_33, %c0_34] : memref<1024x512xbf16, #tpu.memory_space<vmem>>, vector<1024x512xbf16>
      %cst_35 = arith.constant dense<0.000000e+00> : vector<1x512xf32>
      %75 = tpu.matmul %73, %74, %cst_35 {dimension_numbers = #tpu.dot_dimension_numbers<[1], [0], [0], [1], [0, 0, 1, 1], [], []>} : vector<1x1024xbf16>, vector<1024x512xbf16>, vector<1x512xf32> -> vector<1x512xf32>
      %c0_36 = arith.constant 0 : index
      %c0_37 = arith.constant 0 : index
      %76 = vector.load %arg11[%c0_36, %c0_37] : memref<1x512xf32, #tpu.memory_space<vmem>>, vector<1x512xf32>
      %77 = arith.addf %75, %76 : vector<1x512xf32>
      %c0_38 = arith.constant 0 : index
      %c0_39 = arith.constant 0 : index
      %c0_40 = arith.constant 0 : index
      %78 = vector.load %arg13[%c0_38, %c0_39, %c0_40] : memref<1x1x512xf32, #tpu.memory_space<vmem>>, vector<1x1x512xf32>
      %79 = vector.shape_cast %78 : vector<1x1x512xf32> to vector<1x512xf32>
      %80 = vector.shape_cast %77 : vector<1x512xf32> to vector<1x1x512xf32>
      tpu.vector_store %arg13[%c0_38, %c0_39, %c0_40], %80 {strides = array<i32>} : memref<1x1x512xf32, #tpu.memory_space<vmem>>, vector<1x1x512xf32>,
    } else {
    }
    return
  }
  func.func @transform_0(%arg0: i32, %arg1: i32) -> (i32, i32, i32) {
    %c0_i32 = arith.constant 0 : i32
    %c0_i32_0 = arith.constant 0 : i32
    return %arg0, %arg1, %c0_i32 : i32, i32, i32
  }
  func.func @transform_1(%arg0: i32, %arg1: i32) -> (i32, i32, i32) {
    %c0_i32 = arith.constant 0 : i32
    %c0_i32_0 = arith.constant 0 : i32
    %c0_i32_1 = arith.constant 0 : i32
    return %arg0, %c0_i32, %c0_i32_0 : i32, i32, i32
  }
  func.func @transform_2(%arg0: i32, %arg1: i32) -> (i32, i32) {
    %c0_i32 = arith.constant 0 : i32
    %c0_i32_0 = arith.constant 0 : i32
    %c0_i32_1 = arith.constant 0 : i32
    return %c0_i32, %c0_i32_0 : i32, i32
  }
  func.func @transform_3(%arg0: i32, %arg1: i32) -> (i32, i32) {
    %c0_i32 = arith.constant 0 : i32
    %c0_i32_0 = arith.constant 0 : i32
    %c0_i32_1 = arith.constant 0 : i32
    return %c0_i32, %c0_i32_0 : i32, i32
  }
  func.func @transform_4(%arg0: i32, %arg1: i32) -> (i32, i32) {
    %c0_i32 = arith.constant 0 : i32
    %c0_i32_0 = arith.constant 0 : i32
    %c0_i32_1 = arith.constant 0 : i32
    return %c0_i32, %c0_i32_0 : i32, i32
  }
  func.func @transform_5(%arg0: i32, %arg1: i32) -> (i32, i32) {
    %c0_i32 = arith.constant 0 : i32
    %c0_i32_0 = arith.constant 0 : i32
    %c0_i32_1 = arith.constant 0 : i32
    return %c0_i32, %c0_i32_0 : i32, i32
  }
  func.func @transform_6(%arg0: i32, %arg1: i32) -> (i32, i32) {
    %c0_i32 = arith.constant 0 : i32
    %c0_i32_0 = arith.constant 0 : i32
    %c0_i32_1 = arith.constant 0 : i32
    return %c0_i32, %c0_i32_0 : i32, i32
  }
  func.func @transform_7(%arg0: i32, %arg1: i32) -> (i32, i32) {
    %c0_i32 = arith.constant 0 : i32
    %c0_i32_0 = arith.constant 0 : i32
    %c0_i32_1 = arith.constant 0 : i32
    return %c0_i32, %c0_i32_0 : i32, i32
  }
  func.func @transform_8(%arg0: i32, %arg1: i32) -> (i32, i32) {
    %c0_i32 = arith.constant 0 : i32
    %c0_i32_0 = arith.constant 0 : i32
    %c0_i32_1 = arith.constant 0 : i32
    return %c0_i32, %c0_i32_0 : i32, i32
  }
  func.func @transform_9(%arg0: i32, %arg1: i32) -> (i32, i32) {
    %c0_i32 = arith.constant 0 : i32
    %c0_i32_0 = arith.constant 0 : i32
    %c0_i32_1 = arith.constant 0 : i32
    return %c0_i32, %c0_i32_0 : i32, i32
  }
  func.func @transform_10(%arg0: i32, %arg1: i32) -> (i32, i32, i32) {
    %c0_i32 = arith.constant 0 : i32
    %c0_i32_0 = arith.constant 0 : i32
    return %arg0, %arg1, %c0_i32 : i32, i32, i32
  }
  func.func @transform_11(%arg0: i32, %arg1: i32) -> (i32, i32, i32) {
    %c0_i32 = arith.constant 0 : i32
    %c0_i32_0 = arith.constant 0 : i32
    %c0_i32_1 = arith.constant 0 : i32
    return %arg0, %c0_i32, %c0_i32_0 : i32, i32, i32
  }
}

module attributes {stable_mosaic.version = 11 : i64} {
  func.func @_head_fused_kernel(%arg0: i32, %arg1: i32, %arg2: memref<1x16x3xf32, #tpu.memory_space<vmem>>, %arg3: memref<1x1x512xf32, #tpu.memory_space<vmem>>, %arg4: memref<3x64xf32, #tpu.memory_space<vmem>>, %arg5: memref<1x64xf32, #tpu.memory_space<vmem>>, %arg6: memref<64x512xbf16, #tpu.memory_space<vmem>>, %arg7: memref<512x256xbf16, #tpu.memory_space<vmem>>, %arg8: memref<1x256xf32, #tpu.memory_space<vmem>>, %arg9: memref<256x128xbf16, #tpu.memory_space<vmem>>, %arg10: memref<1x128xf32, #tpu.memory_space<vmem>>, %arg11: memref<128x2xbf16, #tpu.memory_space<vmem>>, %arg12: memref<1x2xf32, #tpu.memory_space<vmem>>, %arg13: memref<1x16x2xf32, #tpu.memory_space<vmem>>) attributes {dimension_semantics = [#tpu.dimension_semantics<parallel>, #tpu.dimension_semantics<parallel>], iteration_bounds = array<i64: 2, 1>, scalar_prefetch = 0 : i64, scratch_operands = 0 : i64, tpu.core_type = #tpu.core_type<tc>, window_params = [{transform_indices = @transform_0, window_bounds = array<i64: 1, 16, 3>}, {transform_indices = @transform_1, window_bounds = array<i64: 1, 1, 512>}, {pipeline_mode = #tpu.pipeline_mode<synchronous>, transform_indices = @transform_2, window_bounds = array<i64: 3, 64>}, {pipeline_mode = #tpu.pipeline_mode<synchronous>, transform_indices = @transform_3, window_bounds = array<i64: 1, 64>}, {pipeline_mode = #tpu.pipeline_mode<synchronous>, transform_indices = @transform_4, window_bounds = array<i64: 64, 512>}, {pipeline_mode = #tpu.pipeline_mode<synchronous>, transform_indices = @transform_5, window_bounds = array<i64: 512, 256>}, {pipeline_mode = #tpu.pipeline_mode<synchronous>, transform_indices = @transform_6, window_bounds = array<i64: 1, 256>}, {pipeline_mode = #tpu.pipeline_mode<synchronous>, transform_indices = @transform_7, window_bounds = array<i64: 256, 128>}, {pipeline_mode = #tpu.pipeline_mode<synchronous>, transform_indices = @transform_8, window_bounds = array<i64: 1, 128>}, {pipeline_mode = #tpu.pipeline_mode<synchronous>, transform_indices = @transform_9, window_bounds = array<i64: 128, 2>}, {pipeline_mode = #tpu.pipeline_mode<synchronous>, transform_indices = @transform_10, window_bounds = array<i64: 1, 2>}, {transform_indices = @transform_11, window_bounds = array<i64: 1, 16, 2>}]} {
    %c0 = arith.constant 0 : index
    %c0_0 = arith.constant 0 : index
    %c0_1 = arith.constant 0 : index
    %0 = vector.load %arg2[%c0, %c0_0, %c0_1] : memref<1x16x3xf32, #tpu.memory_space<vmem>>, vector<1x16x3xf32>
    %1 = vector.shape_cast %0 : vector<1x16x3xf32> to vector<16x3xf32>
    %c0_2 = arith.constant 0 : index
    %c0_3 = arith.constant 0 : index
    %c0_4 = arith.constant 0 : index
    %2 = vector.load %arg3[%c0_2, %c0_3, %c0_4] : memref<1x1x512xf32, #tpu.memory_space<vmem>>, vector<1x1x512xf32>
    %3 = vector.shape_cast %2 : vector<1x1x512xf32> to vector<1x512xf32>
    %c0_5 = arith.constant 0 : index
    %c0_6 = arith.constant 0 : index
    %4 = vector.load %arg4[%c0_5, %c0_6] : memref<3x64xf32, #tpu.memory_space<vmem>>, vector<3x64xf32>
    %5 = vector.extract_strided_slice %1 {offsets = [0, 0], sizes = [16, 1], strides = [1, 1]} : vector<16x3xf32> to vector<16x1xf32>
    %6 = vector.extract_strided_slice %4 {offsets = [0, 0], sizes = [1, 64], strides = [1, 1]} : vector<3x64xf32> to vector<1x64xf32>
    %7 = vector.broadcast %5 : vector<16x1xf32> to vector<16x64xf32>
    %8 = vector.broadcast %6 : vector<1x64xf32> to vector<16x64xf32>
    %9 = arith.mulf %7, %8 : vector<16x64xf32>
    %10 = vector.extract_strided_slice %1 {offsets = [0, 1], sizes = [16, 1], strides = [1, 1]} : vector<16x3xf32> to vector<16x1xf32>
    %11 = vector.extract_strided_slice %4 {offsets = [1, 0], sizes = [1, 64], strides = [1, 1]} : vector<3x64xf32> to vector<1x64xf32>
    %12 = vector.broadcast %10 : vector<16x1xf32> to vector<16x64xf32>
    %13 = vector.broadcast %11 : vector<1x64xf32> to vector<16x64xf32>
    %14 = arith.mulf %12, %13 : vector<16x64xf32>
    %15 = arith.addf %9, %14 : vector<16x64xf32>
    %16 = vector.extract_strided_slice %1 {offsets = [0, 2], sizes = [16, 1], strides = [1, 1]} : vector<16x3xf32> to vector<16x1xf32>
    %17 = vector.extract_strided_slice %4 {offsets = [2, 0], sizes = [1, 64], strides = [1, 1]} : vector<3x64xf32> to vector<1x64xf32>
    %18 = vector.broadcast %16 : vector<16x1xf32> to vector<16x64xf32>
    %19 = vector.broadcast %17 : vector<1x64xf32> to vector<16x64xf32>
    %20 = arith.mulf %18, %19 : vector<16x64xf32>
    %21 = arith.addf %15, %20 : vector<16x64xf32>
    %c0_7 = arith.constant 0 : index
    %c0_8 = arith.constant 0 : index
    %22 = vector.load %arg5[%c0_7, %c0_8] : memref<1x64xf32, #tpu.memory_space<vmem>>, vector<1x64xf32>
    %23 = vector.broadcast %22 : vector<1x64xf32> to vector<16x64xf32>
    %24 = arith.addf %21, %23 : vector<16x64xf32>
    %cst = arith.constant 0.000000e+00 : f32
    %25 = vector.broadcast %cst : f32 to vector<16x64xf32>
    %26 = arith.maximumf %24, %25 : vector<16x64xf32>
    %27 = arith.truncf %26 : vector<16x64xf32> to vector<16x64xbf16>
    %c0_9 = arith.constant 0 : index
    %c0_10 = arith.constant 0 : index
    %28 = vector.load %arg6[%c0_9, %c0_10] : memref<64x512xbf16, #tpu.memory_space<vmem>>, vector<64x512xbf16>
    %cst_11 = arith.constant dense<0.000000e+00> : vector<16x512xf32>
    %29 = tpu.matmul %27, %28, %cst_11 {dimension_numbers = #tpu.dot_dimension_numbers<[1], [0], [0], [1], [0, 0, 1, 1], [], []>} : vector<16x64xbf16>, vector<64x512xbf16>, vector<16x512xf32> -> vector<16x512xf32>
    %30 = vector.broadcast %3 : vector<1x512xf32> to vector<16x512xf32>
    %31 = arith.addf %29, %30 : vector<16x512xf32>
    %cst_12 = arith.constant 0.000000e+00 : f32
    %32 = vector.broadcast %cst_12 : f32 to vector<16x512xf32>
    %33 = arith.maximumf %31, %32 : vector<16x512xf32>
    %34 = arith.truncf %33 : vector<16x512xf32> to vector<16x512xbf16>
    %c0_13 = arith.constant 0 : index
    %c0_14 = arith.constant 0 : index
    %35 = vector.load %arg7[%c0_13, %c0_14] : memref<512x256xbf16, #tpu.memory_space<vmem>>, vector<512x256xbf16>
    %cst_15 = arith.constant dense<0.000000e+00> : vector<16x256xf32>
    %36 = tpu.matmul %34, %35, %cst_15 {dimension_numbers = #tpu.dot_dimension_numbers<[1], [0], [0], [1], [0, 0, 1, 1], [], []>} : vector<16x512xbf16>, vector<512x256xbf16>, vector<16x256xf32> -> vector<16x256xf32>
    %c0_16 = arith.constant 0 : index
    %c0_17 = arith.constant 0 : index
    %37 = vector.load %arg8[%c0_16, %c0_17] : memref<1x256xf32, #tpu.memory_space<vmem>>, vector<1x256xf32>
    %38 = vector.broadcast %37 : vector<1x256xf32> to vector<16x256xf32>
    %39 = arith.addf %36, %38 : vector<16x256xf32>
    %cst_18 = arith.constant 0.000000e+00 : f32
    %40 = vector.broadcast %cst_18 : f32 to vector<16x256xf32>
    %41 = arith.maximumf %39, %40 : vector<16x256xf32>
    %42 = arith.truncf %41 : vector<16x256xf32> to vector<16x256xbf16>
    %c0_19 = arith.constant 0 : index
    %c0_20 = arith.constant 0 : index
    %43 = vector.load %arg9[%c0_19, %c0_20] : memref<256x128xbf16, #tpu.memory_space<vmem>>, vector<256x128xbf16>
    %cst_21 = arith.constant dense<0.000000e+00> : vector<16x128xf32>
    %44 = tpu.matmul %42, %43, %cst_21 {dimension_numbers = #tpu.dot_dimension_numbers<[1], [0], [0], [1], [0, 0, 1, 1], [], []>} : vector<16x256xbf16>, vector<256x128xbf16>, vector<16x128xf32> -> vector<16x128xf32>
    %c0_22 = arith.constant 0 : index
    %c0_23 = arith.constant 0 : index
    %45 = vector.load %arg10[%c0_22, %c0_23] : memref<1x128xf32, #tpu.memory_space<vmem>>, vector<1x128xf32>
    %46 = vector.broadcast %45 : vector<1x128xf32> to vector<16x128xf32>
    %47 = arith.addf %44, %46 : vector<16x128xf32>
    %cst_24 = arith.constant 0.000000e+00 : f32
    %48 = vector.broadcast %cst_24 : f32 to vector<16x128xf32>
    %49 = arith.maximumf %47, %48 : vector<16x128xf32>
    %50 = arith.truncf %49 : vector<16x128xf32> to vector<16x128xbf16>
    %c0_25 = arith.constant 0 : index
    %c0_26 = arith.constant 0 : index
    %51 = vector.load %arg11[%c0_25, %c0_26] : memref<128x2xbf16, #tpu.memory_space<vmem>>, vector<128x2xbf16>
    %cst_27 = arith.constant dense<0.000000e+00> : vector<16x2xf32>
    %52 = tpu.matmul %50, %51, %cst_27 {dimension_numbers = #tpu.dot_dimension_numbers<[1], [0], [0], [1], [0, 0, 1, 1], [], []>} : vector<16x128xbf16>, vector<128x2xbf16>, vector<16x2xf32> -> vector<16x2xf32>
    %c0_28 = arith.constant 0 : index
    %c0_29 = arith.constant 0 : index
    %53 = vector.load %arg12[%c0_28, %c0_29] : memref<1x2xf32, #tpu.memory_space<vmem>>, vector<1x2xf32>
    %54 = vector.broadcast %53 : vector<1x2xf32> to vector<16x2xf32>
    %55 = arith.addf %52, %54 : vector<16x2xf32>
    %cst_30 = arith.constant dense<0xFF800000> : vector<16xf32>
    %56 = vector.multi_reduction <maximumf>, %55, %cst_30 [1] : vector<16x2xf32> to vector<16xf32>
    %57 = vector.shape_cast %56 : vector<16xf32> to vector<16x1xf32>
    %58 = vector.broadcast %57 : vector<16x1xf32> to vector<16x2xf32>
    %59 = arith.subf %55, %58 : vector<16x2xf32>
    %60 = math.exp %59 : vector<16x2xf32>
    %cst_31 = arith.constant dense<0.000000e+00> : vector<16xf32>
    %61 = vector.multi_reduction <add>, %60, %cst_31 [1] : vector<16x2xf32> to vector<16xf32>
    %62 = vector.shape_cast %61 : vector<16xf32> to vector<16x1xf32>
    %63 = math.log %62 : vector<16x1xf32>
    %64 = vector.broadcast %63 : vector<16x1xf32> to vector<16x2xf32>
    %65 = arith.subf %59, %64 : vector<16x2xf32>
    %c0_32 = arith.constant 0 : index
    %c0_33 = arith.constant 0 : index
    %c0_34 = arith.constant 0 : index
    %66 = vector.load %arg13[%c0_32, %c0_33, %c0_34] : memref<1x16x2xf32, #tpu.memory_space<vmem>>, vector<1x16x2xf32>
    %67 = vector.shape_cast %66 : vector<1x16x2xf32> to vector<16x2xf32>
    %68 = vector.shape_cast %65 : vector<16x2xf32> to vector<1x16x2xf32>
    tpu.vector_store %arg13[%c0_32, %c0_33, %c0_34], %68 {strides = array<i32>} : memref<1x16x2xf32, #tpu.memory_space<vmem>>, vector<1x16x2xf32>,
    return
  }
  func.func @transform_0(%arg0: i32, %arg1: i32) -> (i32, i32, i32) {
    %c0_i32 = arith.constant 0 : i32
    %c0_i32_0 = arith.constant 0 : i32
    return %arg0, %arg1, %c0_i32 : i32, i32, i32
  }
  func.func @transform_1(%arg0: i32, %arg1: i32) -> (i32, i32, i32) {
    %c0_i32 = arith.constant 0 : i32
    %c0_i32_0 = arith.constant 0 : i32
    %c0_i32_1 = arith.constant 0 : i32
    return %arg0, %c0_i32, %c0_i32_0 : i32, i32, i32
  }
  func.func @transform_2(%arg0: i32, %arg1: i32) -> (i32, i32) {
    %c0_i32 = arith.constant 0 : i32
    %c0_i32_0 = arith.constant 0 : i32
    %c0_i32_1 = arith.constant 0 : i32
    return %c0_i32, %c0_i32_0 : i32, i32
  }
  func.func @transform_3(%arg0: i32, %arg1: i32) -> (i32, i32) {
    %c0_i32 = arith.constant 0 : i32
    %c0_i32_0 = arith.constant 0 : i32
    %c0_i32_1 = arith.constant 0 : i32
    return %c0_i32, %c0_i32_0 : i32, i32
  }
  func.func @transform_4(%arg0: i32, %arg1: i32) -> (i32, i32) {
    %c0_i32 = arith.constant 0 : i32
    %c0_i32_0 = arith.constant 0 : i32
    %c0_i32_1 = arith.constant 0 : i32
    return %c0_i32, %c0_i32_0 : i32, i32
  }
  func.func @transform_5(%arg0: i32, %arg1: i32) -> (i32, i32) {
    %c0_i32 = arith.constant 0 : i32
    %c0_i32_0 = arith.constant 0 : i32
    %c0_i32_1 = arith.constant 0 : i32
    return %c0_i32, %c0_i32_0 : i32, i32
  }
  func.func @transform_6(%arg0: i32, %arg1: i32) -> (i32, i32) {
    %c0_i32 = arith.constant 0 : i32
    %c0_i32_0 = arith.constant 0 : i32
    %c0_i32_1 = arith.constant 0 : i32
    return %c0_i32, %c0_i32_0 : i32, i32
  }
  func.func @transform_7(%arg0: i32, %arg1: i32) -> (i32, i32) {
    %c0_i32 = arith.constant 0 : i32
    %c0_i32_0 = arith.constant 0 : i32
    %c0_i32_1 = arith.constant 0 : i32
    return %c0_i32, %c0_i32_0 : i32, i32
  }
  func.func @transform_8(%arg0: i32, %arg1: i32) -> (i32, i32) {
    %c0_i32 = arith.constant 0 : i32
    %c0_i32_0 = arith.constant 0 : i32
    %c0_i32_1 = arith.constant 0 : i32
    return %c0_i32, %c0_i32_0 : i32, i32
  }
  func.func @transform_9(%arg0: i32, %arg1: i32) -> (i32, i32) {
    %c0_i32 = arith.constant 0 : i32
    %c0_i32_0 = arith.constant 0 : i32
    %c0_i32_1 = arith.constant 0 : i32
    return %c0_i32, %c0_i32_0 : i32, i32
  }
  func.func @transform_10(%arg0: i32, %arg1: i32) -> (i32, i32) {
    %c0_i32 = arith.constant 0 : i32
    %c0_i32_0 = arith.constant 0 : i32
    %c0_i32_1 = arith.constant 0 : i32
    return %c0_i32, %c0_i32_0 : i32, i32
  }
  func.func @transform_11(%arg0: i32, %arg1: i32) -> (i32, i32, i32) {
    %c0_i32 = arith.constant 0 : i32
    %c0_i32_0 = arith.constant 0 : i32
    return %arg0, %arg1, %c0_i32 : i32, i32, i32
  }
}

</mosaic_0001>

<llo_original>
// kernel: pointnet_densecls_forward.5
$region0: #{pointnet_densecls_forward.5}
  #allocation0 [shape = 'u32[]', space=smem, size = 0x4, offset = 0x4, fixed_abs, tag = 'smem constant byte address 0x4 - core index']
  #allocation1 [shape = 'u32[144,128]{1,0:T(1,128)}', space=vmem, size = 0x12000, scoped, tag = 'internal scratch']
  %s0 = inlined_call_operand.vmem [shape: f32[2,16,3], index: 0, kind: input, shape index: {}]
  %s1 = inlined_call_operand.vmem [shape: f32[2,1,512], index: 1, kind: input, shape index: {}]
  %s2 = inlined_call_operand.vmem [shape: f32[3,64], index: 2, kind: input, shape index: {}]
  %s3 = inlined_call_operand.vmem [shape: f32[1,64], index: 3, kind: input, shape index: {}]
  %s4 = inlined_call_operand.vmem [shape: bf16[64,512], index: 4, kind: input, shape index: {}]
  %s5 = inlined_call_operand.vmem [shape: bf16[512,256], index: 5, kind: input, shape index: {}]
  %s6 = inlined_call_operand.vmem [shape: f32[1,256], index: 6, kind: input, shape index: {}]
  %s7 = inlined_call_operand.vmem [shape: bf16[256,128], index: 7, kind: input, shape index: {}]
  %s8 = inlined_call_operand.vmem [shape: f32[1,128], index: 8, kind: input, shape index: {}]
  %s9 = inlined_call_operand.vmem [shape: bf16[128,2], index: 9, kind: input, shape index: {}]
  %s10 = inlined_call_operand.vmem [shape: f32[1,2], index: 10, kind: input, shape index: {}]
  %s11 = inlined_call_operand.vmem [shape: f32[2,16,2], index: 11, kind: output, shape index: {}]
  %s12 = sld [smem:[#allocation0]]
  $region77: #{pointnet_densecls_forward.5} parent=0
    _
  %s14 = ssub.s32 1, %s12
  %s15 = scalar_select 0, %s14, %s12
  loop: start=0, step=1, limit=4
  $region2: #{pointnet_densecls_forward.5} parent=0 // loop_pre_header
    _
  $region3: #{pointnet_densecls_forward.5} parent=0 // loop_header
    %s17 = sphi 0, %s21
    %p18 = scmp.ge.s32.totalorder %s17, 4
    %s24 = sphi 0, %s36
    %s25 = sphi 0, %s32
    %s26 = sphi 0, %s24
    %s27 = sphi 0, %s25
    %s28 = sphi 0, %s26
    %s29 = sphi 0, %s27
    %s41 = sphi 0, %s43
    %s44 = sphi 0, %s41
    %s45 = sphi 0, %s44
    %s61 = sphi 0, %s45
    %s67 = sphi 0, %s69
    %s70 = sphi 0, %s67
    %s71 = sphi 0, %s70
    %s87 = sphi 0, %s71
    %s91 = sphi 0, %s91
    %s93 = sphi 0, %s91
    %s94 = sphi 0, %s93
    %s108 = sphi 0, %s94
    %s112 = sphi 0, %s112
    %s114 = sphi 0, %s112
    %s115 = sphi 0, %s114
    %s129 = sphi 0, %s115
    %s133 = sphi 0, %s133
    %s135 = sphi 0, %s133
    %s136 = sphi 0, %s135
    %s150 = sphi 0, %s136
    %s154 = sphi 0, %s154
    %s156 = sphi 0, %s154
    %s157 = sphi 0, %s156
    %s171 = sphi 0, %s157
    %s175 = sphi 0, %s175
    %s177 = sphi 0, %s175
    %s178 = sphi 0, %s177
    %s192 = sphi 0, %s178
    %s196 = sphi 0, %s196
    %s198 = sphi 0, %s196
    %s199 = sphi 0, %s198
    %s213 = sphi 0, %s199
    %s217 = sphi 0, %s217
    %s219 = sphi 0, %s217
    %s220 = sphi 0, %s219
    %s234 = sphi 0, %s220
    %s238 = sphi 0, %s238
    %s240 = sphi 0, %s238
    %s241 = sphi 0, %s240
    %s255 = sphi 0, %s241
    %s259 = sphi 0, %s259
    %s261 = sphi 0, %s259
    %s262 = sphi 0, %s261
    %s276 = sphi 0, %s262
    %s284 = sphi 0, %s286
    %s287 = sphi 0, %s284
    %s288 = sphi 0, %s287
    %s304 = sphi 0, %s288
  $region4: #{pointnet_densecls_forward.5} parent=0 // loop_header_branch
    %20 = sbr.rel (%p18) target = $region8
  $region5: #{pointnet_densecls_forward.5} parent=0 // loop_body
    %s22 = ssub.s32 %s17, 1
    %s23 = ssub.s32 %s17, 2
    %s30 = sadd.s32 1, %s25
    %p31 = scmp.ge.s32.totalorder %s30, 1
    %s32 = scalar_select %p31, 0, %s30
    %s33 = sadd.s32 1, %s24
    %s34 = scalar_select %p31, %s33, %s24
    %p35 = scmp.ge.s32.totalorder %s34, 2
    %s36 = scalar_select %p35, 0, %s34
    %s37 = ssub.s32 %s24, %s36
    %s38 = ssub.s32 %s25, %s32
    %s39 = sor.u32 %s37, %s38
    %p40 = scmp.eq.s32.totalorder %s39, 0
    %s42 = sadd.s32 %s41, 1
    %s43 = scalar_select %p40, %s41, %s42
    %p46 = pneg %p40
    %p47 = scmp.eq.s32.totalorder %s17, 1
    %p48 = por %p46, %p47
    %p49 = scmp.ne.s32.totalorder %s41, %s44
    %p50 = scmp.eq.s32.totalorder %s17, 0
    %p51 = por %p49, %p50
    %p52 = scmp.ne.s32.totalorder %s41, %s44
    %p53 = scmp.eq.s32.totalorder %s22, 1
    %p54 = por %p52, %p53
    %p55 = scmp.ne.s32.totalorder %s44, %s45
    %p56 = scmp.eq.s32.totalorder %s22, 0
    %p57 = por %p55, %p56
    %p58 = scmp.ne.s32.totalorder %s44, %s45
    %p59 = scmp.eq.s32.totalorder %s23, 1
    %p60 = por %p58, %p59
    %p62 = scmp.ne.s32.totalorder %s45, %s61
    %p63 = scmp.eq.s32.totalorder %s23, 0
    %p64 = por %p62, %p63
    %s65 = ssub.s32 %s24, %s36
    %p66 = scmp.eq.s32.totalorder %s65, 0
    %s68 = sadd.s32 %s67, 1
    %s69 = scalar_select %p66, %s67, %s68
    %p72 = pneg %p66
    %p73 = scmp.eq.s32.totalorder %s17, 1
    %p74 = por %p72, %p73
    %p75 = scmp.ne.s32.totalorder %s67, %s70
    %p76 = scmp.eq.s32.totalorder %s17, 0
    %p77 = por %p75, %p76
    %p78 = scmp.ne.s32.totalorder %s67, %s70
    %p79 = scmp.eq.s32.totalorder %s22, 1
    %p80 = por %p78, %p79
    %p81 = scmp.ne.s32.totalorder %s70, %s71
    %p82 = scmp.eq.s32.totalorder %s22, 0
    %p83 = por %p81, %p82
    %p84 = scmp.ne.s32.totalorder %s70, %s71
    %p85 = scmp.eq.s32.totalorder %s23, 1
    %p86 = por %p84, %p85
    %p88 = scmp.ne.s32.totalorder %s71, %s87
    %p89 = scmp.eq.s32.totalorder %s23, 0
    %p90 = por %p88, %p89
    %s92 = sadd.s32 %s91, 1
    %p95 = scmp.eq.s32.totalorder %s17, 1
    %p96 = scmp.ne.s32.totalorder %s91, %s93
    %p97 = scmp.eq.s32.totalorder %s17, 0
    %p98 = por %p96, %p97
    %p99 = scmp.ne.s32.totalorder %s91, %s93
    %p100 = scmp.eq.s32.totalorder %s22, 1
    %p101 = por %p99, %p100
    %p102 = scmp.ne.s32.totalorder %s93, %s94
    %p103 = scmp.eq.s32.totalorder %s22, 0
    %p104 = por %p102, %p103
    %p105 = scmp.ne.s32.totalorder %s93, %s94
    %p106 = scmp.eq.s32.totalorder %s23, 1
    %p107 = por %p105, %p106
    %p109 = scmp.ne.s32.totalorder %s94, %s108
    %p110 = scmp.eq.s32.totalorder %s23, 0
    %p111 = por %p109, %p110
    %s113 = sadd.s32 %s112, 1
    %p116 = scmp.eq.s32.totalorder %s17, 1
    %p117 = scmp.ne.s32.totalorder %s112, %s114
    %p118 = scmp.eq.s32.totalorder %s17, 0
    %p119 = por %p117, %p118
    %p120 = scmp.ne.s32.totalorder %s112, %s114
    %p121 = scmp.eq.s32.totalorder %s22, 1
    %p122 = por %p120, %p121
    %p123 = scmp.ne.s32.totalorder %s114, %s115
    %p124 = scmp.eq.s32.totalorder %s22, 0
    %p125 = por %p123, %p124
    %p126 = scmp.ne.s32.totalorder %s114, %s115
    %p127 = scmp.eq.s32.totalorder %s23, 1
    %p128 = por %p126, %p127
    %p130 = scmp.ne.s32.totalorder %s115, %s129
    %p131 = scmp.eq.s32.totalorder %s23, 0
    %p132 = por %p130, %p131
    %s134 = sadd.s32 %s133, 1
    %p137 = scmp.eq.s32.totalorder %s17, 1
    %p138 = scmp.ne.s32.totalorder %s133, %s135
    %p139 = scmp.eq.s32.totalorder %s17, 0
    %p140 = por %p138, %p139
    %p141 = scmp.ne.s32.totalorder %s133, %s135
    %p142 = scmp.eq.s32.totalorder %s22, 1
    %p143 = por %p141, %p142
    %p144 = scmp.ne.s32.totalorder %s135, %s136
    %p145 = scmp.eq.s32.totalorder %s22, 0
    %p146 = por %p144, %p145
    %p147 = scmp.ne.s32.totalorder %s135, %s136
    %p148 = scmp.eq.s32.totalorder %s23, 1
    %p149 = por %p147, %p148
    %p151 = scmp.ne.s32.totalorder %s136, %s150
    %p152 = scmp.eq.s32.totalorder %s23, 0
    %p153 = por %p151, %p152
    %s155 = sadd.s32 %s154, 1
    %p158 = scmp.eq.s32.totalorder %s17, 1
    %p159 = scmp.ne.s32.totalorder %s154, %s156
    %p160 = scmp.eq.s32.totalorder %s17, 0
    %p161 = por %p159, %p160
    %p162 = scmp.ne.s32.totalorder %s154, %s156
    %p163 = scmp.eq.s32.totalorder %s22, 1
    %p164 = por %p162, %p163
    %p165 = scmp.ne.s32.totalorder %s156, %s157
    %p166 = scmp.eq.s32.totalorder %s22, 0
    %p167 = por %p165, %p166
    %p168 = scmp.ne.s32.totalorder %s156, %s157
    %p169 = scmp.eq.s32.totalorder %s23, 1
    %p170 = por %p168, %p169
    %p172 = scmp.ne.s32.totalorder %s157, %s171
    %p173 = scmp.eq.s32.totalorder %s23, 0
    %p174 = por %p172, %p173
    %s176 = sadd.s32 %s175, 1
    %p179 = scmp.eq.s32.totalorder %s17, 1
    %p180 = scmp.ne.s32.totalorder %s175, %s177
    %p181 = scmp.eq.s32.totalorder %s17, 0
    %p182 = por %p180, %p181
    %p183 = scmp.ne.s32.totalorder %s175, %s177
    %p184 = scmp.eq.s32.totalorder %s22, 1
    %p185 = por %p183, %p184
    %p186 = scmp.ne.s32.totalorder %s177, %s178
    %p187 = scmp.eq.s32.totalorder %s22, 0
    %p188 = por %p186, %p187
    %p189 = scmp.ne.s32.totalorder %s177, %s178
    %p190 = scmp.eq.s32.totalorder %s23, 1
    %p191 = por %p189, %p190
    %p193 = scmp.ne.s32.totalorder %s178, %s192
    %p194 = scmp.eq.s32.totalorder %s23, 0
    %p195 = por %p193, %p194
    %s197 = sadd.s32 %s196, 1
    %p200 = scmp.eq.s32.totalorder %s17, 1
    %p201 = scmp.ne.s32.totalorder %s196, %s198
    %p202 = scmp.eq.s32.totalorder %s17, 0
    %p203 = por %p201, %p202
    %p204 = scmp.ne.s32.totalorder %s196, %s198
    %p205 = scmp.eq.s32.totalorder %s22, 1
    %p206 = por %p204, %p205
    %p207 = scmp.ne.s32.totalorder %s198, %s199
    %p208 = scmp.eq.s32.totalorder %s22, 0
    %p209 = por %p207, %p208
    %p210 = scmp.ne.s32.totalorder %s198, %s199
    %p211 = scmp.eq.s32.totalorder %s23, 1
    %p212 = por %p210, %p211
    %p214 = scmp.ne.s32.totalorder %s199, %s213
    %p215 = scmp.eq.s32.totalorder %s23, 0
    %p216 = por %p214, %p215
    %s218 = sadd.s32 %s217, 1
    %p221 = scmp.eq.s32.totalorder %s17, 1
    %p222 = scmp.ne.s32.totalorder %s217, %s219
    %p223 = scmp.eq.s32.totalorder %s17, 0
    %p224 = por %p222, %p223
    %p225 = scmp.ne.s32.totalorder %s217, %s219
    %p226 = scmp.eq.s32.totalorder %s22, 1
    %p227 = por %p225, %p226
    %p228 = scmp.ne.s32.totalorder %s219, %s220
    %p229 = scmp.eq.s32.totalorder %s22, 0
    %p230 = por %p228, %p229
    %p231 = scmp.ne.s32.totalorder %s219, %s220
    %p232 = scmp.eq.s32.totalorder %s23, 1
    %p233 = por %p231, %p232
    %p235 = scmp.ne.s32.totalorder %s220, %s234
    %p236 = scmp.eq.s32.totalorder %s23, 0
    %p237 = por %p235, %p236
    %s239 = sadd.s32 %s238, 1
    %p242 = scmp.eq.s32.totalorder %s17, 1
    %p243 = scmp.ne.s32.totalorder %s238, %s240
    %p244 = scmp.eq.s32.totalorder %s17, 0
    %p245 = por %p243, %p244
    %p246 = scmp.ne.s32.totalorder %s238, %s240
    %p247 = scmp.eq.s32.totalorder %s22, 1
    %p248 = por %p246, %p247
    %p249 = scmp.ne.s32.totalorder %s240, %s241
    %p250 = scmp.eq.s32.totalorder %s22, 0
    %p251 = por %p249, %p250
    %p252 = scmp.ne.s32.totalorder %s240, %s241
    %p253 = scmp.eq.s32.totalorder %s23, 1
    %p254 = por %p252, %p253
    %p256 = scmp.ne.s32.totalorder %s241, %s255
    %p257 = scmp.eq.s32.totalorder %s23, 0
    %p258 = por %p256, %p257
    %s260 = sadd.s32 %s259, 1
    %p263 = scmp.eq.s32.totalorder %s17, 1
    %p264 = scmp.ne.s32.totalorder %s259, %s261
    %p265 = scmp.eq.s32.totalorder %s17, 0
    %p266 = por %p264, %p265
    %p267 = scmp.ne.s32.totalorder %s259, %s261
    %p268 = scmp.eq.s32.totalorder %s22, 1
    %p269 = por %p267, %p268
    %p270 = scmp.ne.s32.totalorder %s261, %s262
    %p271 = scmp.eq.s32.totalorder %s22, 0
    %p272 = por %p270, %p271
    %p273 = scmp.ne.s32.totalorder %s261, %s262
    %p274 = scmp.eq.s32.totalorder %s23, 1
    %p275 = por %p273, %p274
    %p277 = scmp.ne.s32.totalorder %s262, %s276
    %p278 = scmp.eq.s32.totalorder %s23, 0
    %p279 = por %p277, %p278
    %s280 = ssub.s32 %s24, %s36
    %s281 = ssub.s32 %s25, %s32
    %s282 = sor.u32 %s280, %s281
    %p283 = scmp.eq.s32.totalorder %s282, 0
    %s285 = sadd.s32 %s284, 1
    %s286 = scalar_select %p283, %s284, %s285
    %p289 = pneg %p283
    %p290 = scmp.eq.s32.totalorder %s17, 1
    %p291 = por %p289, %p290
    %p292 = scmp.ne.s32.totalorder %s284, %s287
    %p293 = scmp.eq.s32.totalorder %s17, 0
    %p294 = por %p292, %p293
    %p295 = scmp.ne.s32.totalorder %s284, %s287
    %p296 = scmp.eq.s32.totalorder %s22, 1
    %p297 = por %p295, %p296
    %p298 = scmp.ne.s32.totalorder %s287, %s288
    %p299 = scmp.eq.s32.totalorder %s22, 0
    %p300 = por %p298, %p299
    %p301 = scmp.ne.s32.totalorder %s287, %s288
    %p302 = scmp.eq.s32.totalorder %s23, 1
    %p303 = por %p301, %p302
    %p305 = scmp.ne.s32.totalorder %s288, %s304
    %p306 = scmp.eq.s32.totalorder %s23, 0
    %p307 = por %p305, %p306
    %p308 = scmp.le.s32.totalorder 1, %s17
    %p309 = scmp.lt.s32.totalorder %s17, 3
    %p310 = pnand %p308, %p309
    %p311 = pneg %p310
    // Predicated region
    $region9: #{pointnet_densecls_forward.5} parent=5 // pred_check
      _
    $region10: #{pointnet_densecls_forward.5} parent=5 // pred_check_branch
      %313 = sbr.rel (%p310) target = $region12
    $region11: #{pointnet_densecls_forward.5} parent=5 // pred_region
      %s314 = ssub.s32 %s17, 1
      // Predicated region
      $region13: #{pointnet_densecls_forward.5} parent=11 // pred_check
        %p315 = pneg %p104
      $region14: #{pointnet_densecls_forward.5} parent=11 // pred_check_branch
        %317 = sbr.rel (%p315) target = $region16
      $region15: #{pointnet_densecls_forward.5} parent=11 // pred_region
        _
      $region16: #{pointnet_densecls_forward.5} parent=11 // pred_fallthru
        _
      // Predicated region
      $region17: #{pointnet_densecls_forward.5} parent=11 // pred_check
        %p318 = pneg %p125
      $region18: #{pointnet_densecls_forward.5} parent=11 // pred_check_branch
        %320 = sbr.rel (%p318) target = $region20
      $region19: #{pointnet_densecls_forward.5} parent=11 // pred_region
        _
      $region20: #{pointnet_densecls_forward.5} parent=11 // pred_fallthru
        _
      // Predicated region
      $region21: #{pointnet_densecls_forward.5} parent=11 // pred_check
        %p321 = pneg %p146
      $region22: #{pointnet_densecls_forward.5} parent=11 // pred_check_branch
        %323 = sbr.rel (%p321) target = $region24
      $region23: #{pointnet_densecls_forward.5} parent=11 // pred_region
        _
      $region24: #{pointnet_densecls_forward.5} parent=11 // pred_fallthru
        _
      // Predicated region
      $region25: #{pointnet_densecls_forward.5} parent=11 // pred_check
        %p324 = pneg %p167
      $region26: #{pointnet_densecls_forward.5} parent=11 // pred_check_branch
        %326 = sbr.rel (%p324) target = $region28
      $region27: #{pointnet_densecls_forward.5} parent=11 // pred_region
        _
      $region28: #{pointnet_densecls_forward.5} parent=11 // pred_fallthru
        _
      // Predicated region
      $region29: #{pointnet_densecls_forward.5} parent=11 // pred_check
        %p327 = pneg %p188
      $region30: #{pointnet_densecls_forward.5} parent=11 // pred_check_branch
        %329 = sbr.rel (%p327) target = $region32
      $region31: #{pointnet_densecls_forward.5} parent=11 // pred_region
        _
      $region32: #{pointnet_densecls_forward.5} parent=11 // pred_fallthru
        _
      // Predicated region
      $region33: #{pointnet_densecls_forward.5} parent=11 // pred_check
        %p330 = pneg %p209
      $region34: #{pointnet_densecls_forward.5} parent=11 // pred_check_branch
        %332 = sbr.rel (%p330) target = $region36
      $region35: #{pointnet_densecls_forward.5} parent=11 // pred_region
        _
      $region36: #{pointnet_densecls_forward.5} parent=11 // pred_fallthru
        _
      // Predicated region
      $region37: #{pointnet_densecls_forward.5} parent=11 // pred_check
        %p333 = pneg %p230
      $region38: #{pointnet_densecls_forward.5} parent=11 // pred_check_branch
        %335 = sbr.rel (%p333) target = $region40
      $region39: #{pointnet_densecls_forward.5} parent=11 // pred_region
        _
      $region40: #{pointnet_densecls_forward.5} parent=11 // pred_fallthru
        _
      // Predicated region
      $region41: #{pointnet_densecls_forward.5} parent=11 // pred_check
        %p336 = pneg %p251
      $region42: #{pointnet_densecls_forward.5} parent=11 // pred_check_branch
        %338 = sbr.rel (%p336) target = $region44
      $region43: #{pointnet_densecls_forward.5} parent=11 // pred_region
        _
      $region44: #{pointnet_densecls_forward.5} parent=11 // pred_fallthru
        _
      // Predicated region
      $region45: #{pointnet_densecls_forward.5} parent=11 // pred_check
        %p339 = pneg %p272
      $region46: #{pointnet_densecls_forward.5} parent=11 // pred_check_branch
        %341 = sbr.rel (%p339) target = $region48
      $region47: #{pointnet_densecls_forward.5} parent=11 // pred_region
        _
      $region48: #{pointnet_densecls_forward.5} parent=11 // pred_fallthru
        _
    $region12: #{pointnet_densecls_forward.5} parent=5 // pred_fallthru
      _
    %p342 = scmp.lt.s32.totalorder %s17, 2
    // Predicated region
    $region49: #{pointnet_densecls_forward.5} parent=5 // pred_check
      %p343 = pneg %p342
    $region50: #{pointnet_densecls_forward.5} parent=5 // pred_check_branch
      %345 = sbr.rel (%p343) target = $region52
    $region51: #{pointnet_densecls_forward.5} parent=5 // pred_region
      // Predicated region
      $region53: #{pointnet_densecls_forward.5} parent=51 // pred_check
        %p346 = pneg %p51
      $region54: #{pointnet_densecls_forward.5} parent=51 // pred_check_branch
        %348 = sbr.rel (%p346) target = $region56
      $region55: #{pointnet_densecls_forward.5} parent=51 // pred_region
        %s349 = smul.u32 2, %s25
        %p350 = scmp.lt.s32.totalorder %s24, 1
        %s351 = scalar_select %p350, %s24, 1
        %p352 = scmp.lt.s32.totalorder %s349, 1
        %s353 = scalar_select %p352, %s349, 1
        %s354 = smul.addr %s351, 2
        %s355 = sadd.s32 %s353, %s354
        %s356 = smul.addr %s355, 8
        %s357 = scalar_lea.vmem %s0, %s356
        %s358 = smul.u32 2, %s25
      $region56: #{pointnet_densecls_forward.5} parent=51 // pred_fallthru
        _
      // Predicated region
      $region57: #{pointnet_densecls_forward.5} parent=51 // pred_check
        %p359 = pneg %p77
      $region58: #{pointnet_densecls_forward.5} parent=51 // pred_check_branch
        %361 = sbr.rel (%p359) target = $region60
      $region59: #{pointnet_densecls_forward.5} parent=51 // pred_region
        %p362 = scmp.lt.s32.totalorder %s24, 1
        %s363 = scalar_select %p362, %s24, 1
        %s364 = smul.addr %s363, 4
        %s365 = scalar_lea.vmem %s1, %s364
      $region60: #{pointnet_densecls_forward.5} parent=51 // pred_fallthru
        _
    $region52: #{pointnet_densecls_forward.5} parent=5 // pred_fallthru
      _
    %p366 = scmp.le.s32.totalorder 1, %s17
    %p367 = scmp.lt.s32.totalorder %s17, 3
    %p368 = pnand %p366, %p367
    %p369 = pneg %p368
    // Predicated region
    $region61: #{pointnet_densecls_forward.5} parent=5 // pred_check
      _
    $region62: #{pointnet_densecls_forward.5} parent=5 // pred_check_branch
      %371 = sbr.rel (%p368) target = $region64
    $region63: #{pointnet_densecls_forward.5} parent=5 // pred_region
      %s372 = ssub.s32 %s17, 1
      %s373 = smul.u32 2, %s27
      %p374 = scmp.lt.s32.totalorder %s26, 1
      %s375 = scalar_select %p374, %s26, 1
      %p376 = scmp.lt.s32.totalorder %s373, 1
      %s377 = scalar_select %p376, %s373, 1
      %s378 = smul.addr %s375, 2
      %s379 = sadd.s32 %s377, %s378
      %s380 = smul.addr %s379, 8
      %s381 = scalar_lea.vmem %s0, %s380
      %p382 = pneg %p57
      %p383 = pneg %p54
      %p384 = scmp.lt.s32.totalorder %s26, 1
      %s385 = scalar_select %p384, %s26, 1
      %s386 = smul.addr %s385, 4
      %s387 = scalar_lea.vmem %s1, %s386
      %p388 = pneg %p83
      %p389 = pneg %p80
      %p390 = pneg %p104
      %p391 = pneg %p101
      %p392 = pneg %p125
      %p393 = pneg %p122
      %p394 = pneg %p146
      %p395 = pneg %p143
      %p396 = pneg %p167
      %p397 = pneg %p164
      %p398 = pneg %p188
      %p399 = pneg %p185
      %p400 = pneg %p209
      %p401 = pneg %p206
      %p402 = pneg %p230
      %p403 = pneg %p227
      %p404 = pneg %p251
      %p405 = pneg %p248
      %p406 = pneg %p272
      %p407 = pneg %p269
      %p408 = pneg %p300
      %p409 = pneg %p297
      %s410 = smul.u32 2, %s27
      %p411 = scmp.lt.s32.totalorder %s26, 1
      %s412 = scalar_select %p411, %s26, 1
      %p413 = scmp.lt.s32.totalorder %s410, 1
      %s414 = scalar_select %p413, %s410, 1
      %s415 = smul.addr %s412, 2
      %s416 = sadd.s32 %s414, %s415
      %s417 = smul.addr %s416, 8
      %s418 = scalar_lea.vmem %s11, %s417
      %s419 = smul.u32 2, %s27
      %p420 = scmp.lt.s32.totalorder %s26, 1
      %s421 = scalar_select %p420, %s26, 1
      %p422 = scmp.lt.s32.totalorder %s419, 1
      %s423 = scalar_select %p422, %s419, 1
      %s424 = smul.addr %s421, 2
      %s425 = sadd.s32 %s423, %s424
      %s426 = smul.addr %s425, 8
      %s427 = scalar_lea.vmem %s0, %s426
      %s428 = smul.u32 2, %s27
      %p429 = scmp.lt.s32.totalorder %s26, 1
      %s430 = scalar_select %p429, %s26, 1
      %s431 = smul.addr %s430, 4
      %s432 = scalar_lea.vmem %s1, %s431
      %s433 = smul.u32 2, %s27
      %p434 = scmp.lt.s32.totalorder %s26, 1
      %s435 = scalar_select %p434, %s26, 1
      %p436 = scmp.lt.s32.totalorder %s433, 1
      %s437 = scalar_select %p436, %s433, 1
      %s438 = smul.addr %s435, 2
      %s439 = sadd.s32 %s437, %s438
      %s440 = smul.addr %s439, 8
      %s441 = scalar_lea.vmem %s11, %s440
      %s442 = smul.u32 2, %s27
      %v444 = vld [vmem:[%s427] sm:$0xff]
      %v445 = vld [vmem:[%s427 + $0x8] sm:$0xff]
      %v446 = vld [vmem:[%s432] sm:$0xf]
      %v447 = vld [vmem:[%s2] sm:$0x7]
      %449 = vset.pattern.permute.xlu0 0
      %450 = vperm.xlu0 %449, %v444
      %v451 = vpop.permute.xlu0 %450
      %454 = vset.pattern.permute.xlu0 0
      %455 = vperm.xlu0 %454, %v445
      %v456 = vpop.permute.xlu0 %455
      %v458 = vlaneseq
      %v459 = vshrl.u32 %v458, 7
      %v460 = vsub.s32 0, %v459
      %v461 = vrot.slane %v447, %v460
      %v462 = vmul.f32 %v451, %v461
      %v463 = vmul.f32 %v456, %v461
      %464 = vset.pattern.permute.xlu0 1
      %465 = vperm.xlu0 %464, %v444
      %v466 = vpop.permute.xlu0 %465
      %468 = vset.pattern.permute.xlu0 1
      %469 = vperm.xlu0 %468, %v445
      %v470 = vpop.permute.xlu0 %469
      %v472 = vlaneseq
      %v473 = vshrl.u32 %v472, 7
      %v474 = vsub.s32 1, %v473
      %v475 = vrot.slane %v447, %v474
      %v476 = vmul.f32 %v466, %v475
      %v477 = vmul.f32 %v470, %v475
      %v478 = vadd.f32 %v462, %v476
      %v479 = vadd.f32 %v463, %v477
      %480 = vset.pattern.permute.xlu0 2
      %481 = vperm.xlu0 %480, %v444
      %v482 = vpop.permute.xlu0 %481
      %484 = vset.pattern.permute.xlu0 2
      %485 = vperm.xlu0 %484, %v445
      %v486 = vpop.permute.xlu0 %485
      %v488 = vlaneseq
      %v489 = vshrl.u32 %v488, 7
      %v490 = vsub.s32 2, %v489
      %v491 = vrot.slane %v447, %v490
      %v492 = vmul.f32 %v482, %v491
      %v493 = vmul.f32 %v486, %v491
      %v494 = vadd.f32 %v478, %v492
      %v495 = vadd.f32 %v479, %v493
      %v496 = vld [vmem:[%s3] sm:$0x1]
      %v498 = vlaneseq
      %v499 = vshrl.u32 %v498, 7
      %v500 = vsub.s32 0, %v499
      %v501 = vrot.slane %v496, %v500
      %v503 = vadd.f32 %v494, %v501
      %v504 = vadd.f32 %v495, %v501
      %v505 = vmax.f32 %v503, 0.0
      %v506 = vmax.f32 %v504, 0.0
      %v507 = vpack.c.bf16 %v506, %v505
      %v508 = vld [vmem:[%s4] sm:$0xff]
      %v509 = vld [vmem:[%s4 + $0x8] sm:$0xff]
      %v510 = vld [vmem:[%s4 + $0x10] sm:$0xff]
      %v511 = vld [vmem:[%s4 + $0x18] sm:$0xff]
      %v512 = vld [vmem:[%s4 + $0x20] sm:$0xff]
      %v513 = vld [vmem:[%s4 + $0x28] sm:$0xff]
      %v514 = vld [vmem:[%s4 + $0x30] sm:$0xff]
      %v515 = vld [vmem:[%s4 + $0x38] sm:$0xff]
      %v516 = vld [vmem:[%s4 + $0x40] sm:$0xff]
      %v517 = vld [vmem:[%s4 + $0x48] sm:$0xff]
      %v518 = vld [vmem:[%s4 + $0x50] sm:$0xff]
      %v519 = vld [vmem:[%s4 + $0x58] sm:$0xff]
      %v520 = vld [vmem:[%s4 + $0x60] sm:$0xff]
      %v521 = vld [vmem:[%s4 + $0x68] sm:$0xff]
      %v522 = vld [vmem:[%s4 + $0x70] sm:$0xff]
      %v523 = vld [vmem:[%s4 + $0x78] sm:$0xff]
      %v525 = vlaneseq
      %v526 = vshrl.u32 %v525, 7
      %v527 = vsub.s32 0, %v526
      %v528 = vrot.slane %v446, %v527
      %v529 = vlaneseq
      %v530 = vshrl.u32 %v529, 7
      %v531 = vsub.s32 1, %v530
      %v532 = vrot.slane %v446, %v531
      %v533 = vlaneseq
      %v534 = vshrl.u32 %v533, 7
      %v535 = vsub.s32 2, %v534
      %v536 = vrot.slane %v446, %v535
      %v537 = vlaneseq
      %v538 = vshrl.u32 %v537, 7
      %v539 = vsub.s32 3, %v538
      %v540 = vrot.slane %v446, %v539
      %v561 = vunpack.c.l.b16 %v508
      %v562 = vunpack.c.h.b16 %v508
      %v563 = vunpack.c.l.b16 %v509
      %v564 = vunpack.c.h.b16 %v509
      %v565 = vunpack.c.l.b16 %v510
      %v566 = vunpack.c.h.b16 %v510
      %v567 = vunpack.c.l.b16 %v511
      %v568 = vunpack.c.h.b16 %v511
      %v569 = vunpack.c.l.b16 %v512
      %v570 = vunpack.c.h.b16 %v512
      %v571 = vunpack.c.l.b16 %v513
      %v572 = vunpack.c.h.b16 %v513
      %v573 = vunpack.c.l.b16 %v514
      %v574 = vunpack.c.h.b16 %v514
      %v575 = vunpack.c.l.b16 %v515
      %v576 = vunpack.c.h.b16 %v515
      %v577 = vunpack.c.l.b16 %v516
      %v578 = vunpack.c.h.b16 %v516
      %v579 = vunpack.c.l.b16 %v517
      %v580 = vunpack.c.h.b16 %v517
      %v581 = vunpack.c.l.b16 %v518
      %v582 = vunpack.c.h.b16 %v518
      %v583 = vunpack.c.l.b16 %v519
      %v584 = vunpack.c.h.b16 %v519
      %v585 = vunpack.c.l.b16 %v520
      %v586 = vunpack.c.h.b16 %v520
      %v587 = vunpack.c.l.b16 %v521
      %v588 = vunpack.c.h.b16 %v521
      %v589 = vunpack.c.l.b16 %v522
      %v590 = vunpack.c.h.b16 %v522
      %v591 = vunpack.c.l.b16 %v523
      %v592 = vunpack.c.h.b16 %v523
      %v593 = vpack.c.b16 %v565, %v561
      %v594 = vpack.c.b16 %v566, %v562
      %v595 = vpack.c.b16 %v567, %v563
      %v596 = vpack.c.b16 %v568, %v564
      %v597 = vpack.c.b16 %v573, %v569
      %v598 = vpack.c.b16 %v574, %v570
      %v599 = vpack.c.b16 %v575, %v571
      %v600 = vpack.c.b16 %v576, %v572
      %v601 = vpack.c.b16 %v581, %v577
      %v602 = vpack.c.b16 %v582, %v578
      %v603 = vpack.c.b16 %v583, %v579
      %v604 = vpack.c.b16 %v584, %v580
      %v605 = vpack.c.b16 %v589, %v585
      %v606 = vpack.c.b16 %v590, %v586
      %v607 = vpack.c.b16 %v591, %v587
      %v608 = vpack.c.b16 %v592, %v588
      %vm625 = vcmask 523264
      %v627 = vsel %vm625, %v507, 0
      %629 = vmatprep.subr.bf16.mxu0 0
      %630 = vmatpush1.bf16.msra.mxu0 0
      %631 = vmatprep.subr.bf16.mxu0 0
      %632 = vmatpush1.bf16.msra.mxu0 0
      %633 = vmatprep.subr.bf16.mxu0 0
      %634 = vmatpush1.bf16.msra.mxu0 0
      %635 = vmatprep.subr.bf16.mxu0 0
      %636 = vmatpush1.bf16.msra.mxu0 0
      %637 = vmatprep.subr.bf16.mxu0 %v606
      %638 = vmatpush1.bf16.msra.mxu0 %v605
      %639 = vmatprep.subr.bf16.mxu0 %v602
      %640 = vmatpush1.bf16.msra.mxu0 %v601
      %641 = vmatprep.subr.bf16.mxu0 %v598
      %642 = vmatpush1.bf16.msra.mxu0 %v597
      %643 = vmatprep.subr.bf16.mxu0 %v594
      %644 = vmatpush1.bf16.msra.mxu0 %v593
      %645 = vmatprep.subr.bf16.mxu0 0
      %646 = vmatpush2.bf16.msra.mxu0 0
      %647 = vmatprep.subr.bf16.mxu0 0
      %648 = vmatpush2.bf16.msra.mxu0 0
      %649 = vmatprep.subr.bf16.mxu0 0
      %650 = vmatpush2.bf16.msra.mxu0 0
      %651 = vmatprep.subr.bf16.mxu0 0
      %652 = vmatpush2.bf16.msra.mxu0 0
      %653 = vmatprep.subr.bf16.mxu0 0
      %654 = vmatpush2.bf16.msra.mxu0 0
      %655 = vmatprep.subr.bf16.mxu0 0
      %656 = vmatpush2.bf16.msra.mxu0 0
      %657 = vmatprep.subr.bf16.mxu0 0
      %658 = vmatpush2.bf16.msra.mxu0 0
      %659 = vmatprep.subr.bf16.mxu0 0
      %660 = vmatpush2.bf16.msra.mxu0 0
      %661 = vmatprep.mubr.bf16.mxu0 0
      %662 = vmatmul.mubr.bf16.gmra.mxu0 %v627
      %v663 = vpop.f32.mrf.mxu0
      %v664 = vadd.f32 %v528, %v663
      %v665 = vpop.f32.mrf.mxu0
      %v666 = vadd.f32 %v532, %v665
      %v667 = vpop.f32.mrf.mxu0
      %v668 = vadd.f32 %v528, %v667
      %v669 = vpop.f32.mrf.mxu0
      %v670 = vadd.f32 %v532, %v669
      %671 = vdwg.mxu0
      %672 = vmatprep.subr.bf16.mxu0 0
      %673 = vmatpush1.bf16.msra.mxu0 0
      %674 = vmatprep.subr.bf16.mxu0 0
      %675 = vmatpush1.bf16.msra.mxu0 0
      %676 = vmatprep.subr.bf16.mxu0 0
      %677 = vmatpush1.bf16.msra.mxu0 0
      %678 = vmatprep.subr.bf16.mxu0 0
      %679 = vmatpush1.bf16.msra.mxu0 0
      %680 = vmatprep.subr.bf16.mxu0 %v608
      %681 = vmatpush1.bf16.msra.mxu0 %v607
      %682 = vmatprep.subr.bf16.mxu0 %v604
      %683 = vmatpush1.bf16.msra.mxu0 %v603
      %684 = vmatprep.subr.bf16.mxu0 %v600
      %685 = vmatpush1.bf16.msra.mxu0 %v599
      %686 = vmatprep.subr.bf16.mxu0 %v596
      %687 = vmatpush1.bf16.msra.mxu0 %v595
      %688 = vmatprep.subr.bf16.mxu0 0
      %689 = vmatpush2.bf16.msra.mxu0 0
      %690 = vmatprep.subr.bf16.mxu0 0
      %691 = vmatpush2.bf16.msra.mxu0 0
      %692 = vmatprep.subr.bf16.mxu0 0
      %693 = vmatpush2.bf16.msra.mxu0 0
      %694 = vmatprep.subr.bf16.mxu0 0
      %695 = vmatpush2.bf16.msra.mxu0 0
      %696 = vmatprep.subr.bf16.mxu0 0
      %697 = vmatpush2.bf16.msra.mxu0 0
      %698 = vmatprep.subr.bf16.mxu0 0
      %699 = vmatpush2.bf16.msra.mxu0 0
      %700 = vmatprep.subr.bf16.mxu0 0
      %701 = vmatpush2.bf16.msra.mxu0 0
      %702 = vmatprep.subr.bf16.mxu0 0
      %703 = vmatpush2.bf16.msra.mxu0 0
      %704 = vmatprep.mubr.bf16.mxu0 0
      %705 = vmatmul.mubr.bf16.gmra.mxu0 %v627
      %v706 = vpop.f32.mrf.mxu0
      %v707 = vadd.f32 %v536, %v706
      %v708 = vpop.f32.mrf.mxu0
      %v709 = vadd.f32 %v540, %v708
      %v710 = vpop.f32.mrf.mxu0
      %v711 = vadd.f32 %v536, %v710
      %v712 = vpop.f32.mrf.mxu0
      %v713 = vadd.f32 %v540, %v712
      %714 = vdwg.mxu0
      %v715 = vmax.f32 %v664, 0.0
      %v716 = vmax.f32 %v666, 0.0
      %v717 = vmax.f32 %v707, 0.0
      %v718 = vmax.f32 %v709, 0.0
      %v719 = vmax.f32 %v668, 0.0
      %v720 = vmax.f32 %v670, 0.0
      %v721 = vmax.f32 %v711, 0.0
      %v722 = vmax.f32 %v713, 0.0
      %v723 = vpack.c.bf16 %v719, %v715
      %v724 = vpack.c.bf16 %v720, %v716
      %v725 = vpack.c.bf16 %v721, %v717
      %v726 = vpack.c.bf16 %v722, %v718
      %v727 = vld [vmem:[%s5] sm:$0xff]
      %v728 = vld [vmem:[%s5 + $0x8] sm:$0xff]
      %v729 = vld [vmem:[%s5 + $0x10] sm:$0xff]
      %v730 = vld [vmem:[%s5 + $0x18] sm:$0xff]
      %v731 = vld [vmem:[%s5 + $0x20] sm:$0xff]
      %v732 = vld [vmem:[%s5 + $0x28] sm:$0xff]
      %v733 = vld [vmem:[%s5 + $0x30] sm:$0xff]
      %v734 = vld [vmem:[%s5 + $0x38] sm:$0xff]
      %v735 = vld [vmem:[%s5 + $0x40] sm:$0xff]
      %v736 = vld [vmem:[%s5 + $0x48] sm:$0xff]
      %v737 = vld [vmem:[%s5 + $0x50] sm:$0xff]
      %v738 = vld [vmem:[%s5 + $0x58] sm:$0xff]
      %v739 = vld [vmem:[%s5 + $0x60] sm:$0xff]
      %v740 = vld [vmem:[%s5 + $0x68] sm:$0xff]
      %v741 = vld [vmem:[%s5 + $0x70] sm:$0xff]
      %v742 = vld [vmem:[%s5 + $0x78] sm:$0xff]
      %v743 = vld [vmem:[%s5 + $0x80] sm:$0xff]
      %v744 = vld [vmem:[%s5 + $0x88] sm:$0xff]
      %v745 = vld [vmem:[%s5 + $0x90] sm:$0xff]
      %v746 = vld [vmem:[%s5 + $0x98] sm:$0xff]
      %v747 = vld [vmem:[%s5 + $0xa0] sm:$0xff]
      %v748 = vld [vmem:[%s5 + $0xa8] sm:$0xff]
      %v749 = vld [vmem:[%s5 + $0xb0] sm:$0xff]
      %v750 = vld [vmem:[%s5 + $0xb8] sm:$0xff]
      %v751 = vld [vmem:[%s5 + $0xc0] sm:$0xff]
      %v752 = vld [vmem:[%s5 + $0xc8] sm:$0xff]
      %v753 = vld [vmem:[%s5 + $0xd0] sm:$0xff]
      %v754 = vld [vmem:[%s5 + $0xd8] sm:$0xff]
      %v755 = vld [vmem:[%s5 + $0xe0] sm:$0xff]
      %v756 = vld [vmem:[%s5 + $0xe8] sm:$0xff]
      %v757 = vld [vmem:[%s5 + $0xf0] sm:$0xff]
      %v758 = vld [vmem:[%s5 + $0xf8] sm:$0xff]
      %v759 = vld [vmem:[%s5 + $0x100] sm:$0xff]
      %v760 = vld [vmem:[%s5 + $0x108] sm:$0xff]
      %v761 = vld [vmem:[%s5 + $0x110] sm:$0xff]
      %v762 = vld [vmem:[%s5 + $0x118] sm:$0xff]
      %v763 = vld [vmem:[%s5 + $0x120] sm:$0xff]
      %v764 = vld [vmem:[%s5 + $0x128] sm:$0xff]
      %v765 = vld [vmem:[%s5 + $0x130] sm:$0xff]
      %v766 = vld [vmem:[%s5 + $0x138] sm:$0xff]
      %v767 = vld [vmem:[%s5 + $0x140] sm:$0xff]
      %v768 = vld [vmem:[%s5 + $0x148] sm:$0xff]
      %v769 = vld [vmem:[%s5 + $0x150] sm:$0xff]
      %v770 = vld [vmem:[%s5 + $0x158] sm:$0xff]
      %v771 = vld [vmem:[%s5 + $0x160] sm:$0xff]
      %v772 = vld [vmem:[%s5 + $0x168] sm:$0xff]
      %v773 = vld [vmem:[%s5 + $0x170] sm:$0xff]
      %v774 = vld [vmem:[%s5 + $0x178] sm:$0xff]
      %v775 = vld [vmem:[%s5 + $0x180] sm:$0xff]
      %v776 = vld [vmem:[%s5 + $0x188] sm:$0xff]
      %v777 = vld [vmem:[%s5 + $0x190] sm:$0xff]
      %v778 = vld [vmem:[%s5 + $0x198] sm:$0xff]
      %v779 = vld [vmem:[%s5 + $0x1a0] sm:$0xff]
      %v780 = vld [vmem:[%s5 + $0x1a8] sm:$0xff]
      %v781 = vld [vmem:[%s5 + $0x1b0] sm:$0xff]
      %v782 = vld [vmem:[%s5 + $0x1b8] sm:$0xff]
      %v783 = vld [vmem:[%s5 + $0x1c0] sm:$0xff]
      %v784 = vld [vmem:[%s5 + $0x1c8] sm:$0xff]
      %v785 = vld [vmem:[%s5 + $0x1d0] sm:$0xff]
      %v786 = vld [vmem:[%s5 + $0x1d8] sm:$0xff]
      %v787 = vld [vmem:[%s5 + $0x1e0] sm:$0xff]
      %v788 = vld [vmem:[%s5 + $0x1e8] sm:$0xff]
      %v789 = vld [vmem:[%s5 + $0x1f0] sm:$0xff]
      %v790 = vld [vmem:[%s5 + $0x1f8] sm:$0xff]
      %v791 = vld [vmem:[%s6] sm:$0x3]
      %v793 = vlaneseq
      %v794 = vshrl.u32 %v793, 7
      %v795 = vsub.s32 0, %v794
      %v796 = vrot.slane %v791, %v795
      %v797 = vlaneseq
      %v798 = vshrl.u32 %v797, 7
      %v799 = vsub.s32 1, %v798
      %v800 = vrot.slane %v791, %v799
      %v867 = vunpack.c.l.b16 %v727
      %v868 = vunpack.c.h.b16 %v727
      %v869 = vunpack.c.l.b16 %v728
      %v870 = vunpack.c.h.b16 %v728
      %v871 = vunpack.c.l.b16 %v729
      %v872 = vunpack.c.h.b16 %v729
      %v873 = vunpack.c.l.b16 %v730
      %v874 = vunpack.c.h.b16 %v730
      %v875 = vunpack.c.l.b16 %v731
      %v876 = vunpack.c.h.b16 %v731
      %v877 = vunpack.c.l.b16 %v732
      %v878 = vunpack.c.h.b16 %v732
      %v879 = vunpack.c.l.b16 %v733
      %v880 = vunpack.c.h.b16 %v733
      %v881 = vunpack.c.l.b16 %v734
      %v882 = vunpack.c.h.b16 %v734
      %v883 = vunpack.c.l.b16 %v735
      %v884 = vunpack.c.h.b16 %v735
      %v885 = vunpack.c.l.b16 %v736
      %v886 = vunpack.c.h.b16 %v736
      %v887 = vunpack.c.l.b16 %v737
      %v888 = vunpack.c.h.b16 %v737
      %v889 = vunpack.c.l.b16 %v738
      %v890 = vunpack.c.h.b16 %v738
      %v891 = vunpack.c.l.b16 %v739
      %v892 = vunpack.c.h.b16 %v739
      %v893 = vunpack.c.l.b16 %v740
      %v894 = vunpack.c.h.b16 %v740
      %v895 = vunpack.c.l.b16 %v741
      %v896 = vunpack.c.h.b16 %v741
      %v897 = vunpack.c.l.b16 %v742
      %v898 = vunpack.c.h.b16 %v742
      %v899 = vunpack.c.l.b16 %v743
      %v900 = vunpack.c.h.b16 %v743
      %v901 = vunpack.c.l.b16 %v744
      %v902 = vunpack.c.h.b16 %v744
      %v903 = vunpack.c.l.b16 %v745
      %v904 = vunpack.c.h.b16 %v745
      %v905 = vunpack.c.l.b16 %v746
      %v906 = vunpack.c.h.b16 %v746
      %v907 = vunpack.c.l.b16 %v747
      %v908 = vunpack.c.h.b16 %v747
      %v909 = vunpack.c.l.b16 %v748
      %v910 = vunpack.c.h.b16 %v748
      %v911 = vunpack.c.l.b16 %v749
      %v912 = vunpack.c.h.b16 %v749
      %v913 = vunpack.c.l.b16 %v750
      %v914 = vunpack.c.h.b16 %v750
      %v915 = vunpack.c.l.b16 %v751
      %v916 = vunpack.c.h.b16 %v751
      %v917 = vunpack.c.l.b16 %v752
      %v918 = vunpack.c.h.b16 %v752
      %v919 = vunpack.c.l.b16 %v753
      %v920 = vunpack.c.h.b16 %v753
      %v921 = vunpack.c.l.b16 %v754
      %v922 = vunpack.c.h.b16 %v754
      %v923 = vunpack.c.l.b16 %v755
      %v924 = vunpack.c.h.b16 %v755
      %v925 = vunpack.c.l.b16 %v756
      %v926 = vunpack.c.h.b16 %v756
      %v927 = vunpack.c.l.b16 %v757
      %v928 = vunpack.c.h.b16 %v757
      %v929 = vunpack.c.l.b16 %v758
      %v930 = vunpack.c.h.b16 %v758
      %v931 = vunpack.c.l.b16 %v759
      %v932 = vunpack.c.h.b16 %v759
      %v933 = vunpack.c.l.b16 %v760
      %v934 = vunpack.c.h.b16 %v760
      %v935 = vunpack.c.l.b16 %v761
      %v936 = vunpack.c.h.b16 %v761
      %v937 = vunpack.c.l.b16 %v762
      %v938 = vunpack.c.h.b16 %v762
      %v939 = vunpack.c.l.b16 %v763
      %v940 = vunpack.c.h.b16 %v763
      %v941 = vunpack.c.l.b16 %v764
      %v942 = vunpack.c.h.b16 %v764
      %v943 = vunpack.c.l.b16 %v765
      %v944 = vunpack.c.h.b16 %v765
      %v945 = vunpack.c.l.b16 %v766
      %v946 = vunpack.c.h.b16 %v766
      %v947 = vunpack.c.l.b16 %v767
      %v948 = vunpack.c.h.b16 %v767
      %v949 = vunpack.c.l.b16 %v768
      %v950 = vunpack.c.h.b16 %v768
      %v951 = vunpack.c.l.b16 %v769
      %v952 = vunpack.c.h.b16 %v769
      %v953 = vunpack.c.l.b16 %v770
      %v954 = vunpack.c.h.b16 %v770
      %v955 = vunpack.c.l.b16 %v771
      %v956 = vunpack.c.h.b16 %v771
      %v957 = vunpack.c.l.b16 %v772
      %v958 = vunpack.c.h.b16 %v772
      %v959 = vunpack.c.l.b16 %v773
      %v960 = vunpack.c.h.b16 %v773
      %v961 = vunpack.c.l.b16 %v774
      %v962 = vunpack.c.h.b16 %v774
      %v963 = vunpack.c.l.b16 %v775
      %v964 = vunpack.c.h.b16 %v775
      %v965 = vunpack.c.l.b16 %v776
      %v966 = vunpack.c.h.b16 %v776
      %v967 = vunpack.c.l.b16 %v777
      %v968 = vunpack.c.h.b16 %v777
      %v969 = vunpack.c.l.b16 %v778
      %v970 = vunpack.c.h.b16 %v778
      %v971 = vunpack.c.l.b16 %v779
      %v972 = vunpack.c.h.b16 %v779
      %v973 = vunpack.c.l.b16 %v780
      %v974 = vunpack.c.h.b16 %v780
      %v975 = vunpack.c.l.b16 %v781
      %v976 = vunpack.c.h.b16 %v781
      %v977 = vunpack.c.l.b16 %v782
      %v978 = vunpack.c.h.b16 %v782
      %v979 = vunpack.c.l.b16 %v783
      %v980 = vunpack.c.h.b16 %v783
      %v981 = vunpack.c.l.b16 %v784
      %v982 = vunpack.c.h.b16 %v784
      %v983 = vunpack.c.l.b16 %v785
      %v984 = vunpack.c.h.b16 %v785
      %v985 = vunpack.c.l.b16 %v786
      %v986 = vunpack.c.h.b16 %v786
      %v987 = vunpack.c.l.b16 %v787
      %v988 = vunpack.c.h.b16 %v787
      %v989 = vunpack.c.l.b16 %v788
      %v990 = vunpack.c.h.b16 %v788
      %v991 = vunpack.c.l.b16 %v789
      %v992 = vunpack.c.h.b16 %v789
      %v993 = vunpack.c.l.b16 %v790
      %v994 = vunpack.c.h.b16 %v790
      %v995 = vpack.c.b16 %v869, %v867
      %v996 = vpack.c.b16 %v870, %v868
      %v997 = vpack.c.b16 %v873, %v871
      %v998 = vpack.c.b16 %v874, %v872
      %v999 = vpack.c.b16 %v877, %v875
      %v1000 = vpack.c.b16 %v878, %v876
      %v1001 = vpack.c.b16 %v881, %v879
      %v1002 = vpack.c.b16 %v882, %v880
      %v1003 = vpack.c.b16 %v885, %v883
      %v1004 = vpack.c.b16 %v886, %v884
      %v1005 = vpack.c.b16 %v889, %v887
      %v1006 = vpack.c.b16 %v890, %v888
      %v1007 = vpack.c.b16 %v893, %v891
      %v1008 = vpack.c.b16 %v894, %v892
      %v1009 = vpack.c.b16 %v897, %v895
      %v1010 = vpack.c.b16 %v898, %v896
      %v1011 = vpack.c.b16 %v901, %v899
      %v1012 = vpack.c.b16 %v902, %v900
      %v1013 = vpack.c.b16 %v905, %v903
      %v1014 = vpack.c.b16 %v906, %v904
      %v1015 = vpack.c.b16 %v909, %v907
      %v1016 = vpack.c.b16 %v910, %v908
      %v1017 = vpack.c.b16 %v913, %v911
      %v1018 = vpack.c.b16 %v914, %v912
      %v1019 = vpack.c.b16 %v917, %v915
      %v1020 = vpack.c.b16 %v918, %v916
      %v1021 = vpack.c.b16 %v921, %v919
      %v1022 = vpack.c.b16 %v922, %v920
      %v1023 = vpack.c.b16 %v925, %v923
      %v1024 = vpack.c.b16 %v926, %v924
      %v1025 = vpack.c.b16 %v929, %v927
      %v1026 = vpack.c.b16 %v930, %v928
      %v1027 = vpack.c.b16 %v933, %v931
      %v1028 = vpack.c.b16 %v934, %v932
      %v1029 = vpack.c.b16 %v937, %v935
      %v1030 = vpack.c.b16 %v938, %v936
      %v1031 = vpack.c.b16 %v941, %v939
      %v1032 = vpack.c.b16 %v942, %v940
      %v1033 = vpack.c.b16 %v945, %v943
      %v1034 = vpack.c.b16 %v946, %v944
      %v1035 = vpack.c.b16 %v949, %v947
      %v1036 = vpack.c.b16 %v950, %v948
      %v1037 = vpack.c.b16 %v953, %v951
      %v1038 = vpack.c.b16 %v954, %v952
      %v1039 = vpack.c.b16 %v957, %v955
      %v1040 = vpack.c.b16 %v958, %v956
      %v1041 = vpack.c.b16 %v961, %v959
      %v1042 = vpack.c.b16 %v962, %v960
      %v1043 = vpack.c.b16 %v965, %v963
      %v1044 = vpack.c.b16 %v966, %v964
      %v1045 = vpack.c.b16 %v969, %v967
      %v1046 = vpack.c.b16 %v970, %v968
      %v1047 = vpack.c.b16 %v973, %v971
      %v1048 = vpack.c.b16 %v974, %v972
      %v1049 = vpack.c.b16 %v977, %v975
      %v1050 = vpack.c.b16 %v978, %v976
      %v1051 = vpack.c.b16 %v981, %v979
      %v1052 = vpack.c.b16 %v982, %v980
      %v1053 = vpack.c.b16 %v985, %v983
      %v1054 = vpack.c.b16 %v986, %v984
      %v1055 = vpack.c.b16 %v989, %v987
      %v1056 = vpack.c.b16 %v990, %v988
      %v1057 = vpack.c.b16 %v993, %v991
      %v1058 = vpack.c.b16 %v994, %v992
      %1123 = vmatprep.subr.bf16.mxu0 %v1010
      %1124 = vmatpush1.bf16.msra.mxu0 %v1009
      %1125 = vmatprep.subr.bf16.mxu0 %v1008
      %1126 = vmatpush1.bf16.msra.mxu0 %v1007
      %1127 = vmatprep.subr.bf16.mxu0 %v1006
      %1128 = vmatpush1.bf16.msra.mxu0 %v1005
      %1129 = vmatprep.subr.bf16.mxu0 %v1004
      %1130 = vmatpush1.bf16.msra.mxu0 %v1003
      %1131 = vmatprep.subr.bf16.mxu0 %v1002
      %1132 = vmatpush1.bf16.msra.mxu0 %v1001
      %1133 = vmatprep.subr.bf16.mxu0 %v1000
      %1134 = vmatpush1.bf16.msra.mxu0 %v999
      %1135 = vmatprep.subr.bf16.mxu0 %v998
      %1136 = vmatpush1.bf16.msra.mxu0 %v997
      %1137 = vmatprep.subr.bf16.mxu0 %v996
      %1138 = vmatpush1.bf16.msra.mxu0 %v995
      %1139 = vmatprep.subr.bf16.mxu0 %v1026
      %1140 = vmatpush2.bf16.msra.mxu0 %v1025
      %1141 = vmatprep.subr.bf16.mxu0 %v1024
      %1142 = vmatpush2.bf16.msra.mxu0 %v1023
      %1143 = vmatprep.subr.bf16.mxu0 %v1022
      %1144 = vmatpush2.bf16.msra.mxu0 %v1021
      %1145 = vmatprep.subr.bf16.mxu0 %v1020
      %1146 = vmatpush2.bf16.msra.mxu0 %v1019
      %1147 = vmatprep.subr.bf16.mxu0 %v1018
      %1148 = vmatpush2.bf16.msra.mxu0 %v1017
      %1149 = vmatprep.subr.bf16.mxu0 %v1016
      %1150 = vmatpush2.bf16.msra.mxu0 %v1015
      %1151 = vmatprep.subr.bf16.mxu0 %v1014
      %1152 = vmatpush2.bf16.msra.mxu0 %v1013
      %1153 = vmatprep.subr.bf16.mxu0 %v1012
      %1154 = vmatpush2.bf16.msra.mxu0 %v1011
      %1155 = vmatprep.mubr.bf16.mxu0 %v724
      %1156 = vmatmul.mubr.bf16.gmra.mxu0 %v723
      %v1157 = vpop.f32.mrf.mxu0
      %v1158 = vadd.f32 %v796, %v1157
      %v1159 = vpop.f32.mrf.mxu0
      %v1160 = vadd.f32 %v800, %v1159
      %v1161 = vpop.f32.mrf.mxu0
      %v1162 = vadd.f32 %v796, %v1161
      %v1163 = vpop.f32.mrf.mxu0
      %v1164 = vadd.f32 %v800, %v1163
      %1165 = vdwg.mxu0
      %1166 = vmatprep.subr.bf16.mxu0 %v1042
      %1167 = vmatpush1.bf16.msra.mxu0 %v1041
      %1168 = vmatprep.subr.bf16.mxu0 %v1040
      %1169 = vmatpush1.bf16.msra.mxu0 %v1039
      %1170 = vmatprep.subr.bf16.mxu0 %v1038
      %1171 = vmatpush1.bf16.msra.mxu0 %v1037
      %1172 = vmatprep.subr.bf16.mxu0 %v1036
      %1173 = vmatpush1.bf16.msra.mxu0 %v1035
      %1174 = vmatprep.subr.bf16.mxu0 %v1034
      %1175 = vmatpush1.bf16.msra.mxu0 %v1033
      %1176 = vmatprep.subr.bf16.mxu0 %v1032
      %1177 = vmatpush1.bf16.msra.mxu0 %v1031
      %1178 = vmatprep.subr.bf16.mxu0 %v1030
      %1179 = vmatpush1.bf16.msra.mxu0 %v1029
      %1180 = vmatprep.subr.bf16.mxu0 %v1028
      %1181 = vmatpush1.bf16.msra.mxu0 %v1027
      %1182 = vmatprep.subr.bf16.mxu0 %v1058
      %1183 = vmatpush2.bf16.msra.mxu0 %v1057
      %1184 = vmatprep.subr.bf16.mxu0 %v1056
      %1185 = vmatpush2.bf16.msra.mxu0 %v1055
      %1186 = vmatprep.subr.bf16.mxu0 %v1054
      %1187 = vmatpush2.bf16.msra.mxu0 %v1053
      %1188 = vmatprep.subr.bf16.mxu0 %v1052
      %1189 = vmatpush2.bf16.msra.mxu0 %v1051
      %1190 = vmatprep.subr.bf16.mxu0 %v1050
      %1191 = vmatpush2.bf16.msra.mxu0 %v1049
      %1192 = vmatprep.subr.bf16.mxu0 %v1048
      %1193 = vmatpush2.bf16.msra.mxu0 %v1047
      %1194 = vmatprep.subr.bf16.mxu0 %v1046
      %1195 = vmatpush2.bf16.msra.mxu0 %v1045
      %1196 = vmatprep.subr.bf16.mxu0 %v1044
      %1197 = vmatpush2.bf16.msra.mxu0 %v1043
      %1198 = vmatprep.mubr.bf16.mxu0 %v726
      %1199 = vmatmul.mubr.bf16.gmra.mxu0 %v725
      %v1200 = vpop.f32.mrf.mxu0
      %v1201 = vadd.f32 %v1158, %v1200
      %v1202 = vpop.f32.mrf.mxu0
      %v1203 = vadd.f32 %v1160, %v1202
      %v1204 = vpop.f32.mrf.mxu0
      %v1205 = vadd.f32 %v1162, %v1204
      %v1206 = vpop.f32.mrf.mxu0
      %v1207 = vadd.f32 %v1164, %v1206
      %1208 = vdwg.mxu0
      %v1209 = vmax.f32 %v1201, 0.0
      %v1210 = vmax.f32 %v1203, 0.0
      %v1211 = vmax.f32 %v1205, 0.0
      %v1212 = vmax.f32 %v1207, 0.0
      %v1213 = vpack.c.bf16 %v1211, %v1209
      %v1214 = vpack.c.bf16 %v1212, %v1210
      %v1215 = vld [vmem:[%s7] sm:$0xf]
      %v1216 = vld [vmem:[%s7 + $0x4] sm:$0xf]
      %v1217 = vld [vmem:[%s7 + $0x8] sm:$0xf]
      %v1218 = vld [vmem:[%s7 + $0xc] sm:$0xf]
      %v1219 = vld [vmem:[%s7 + $0x10] sm:$0xf]
      %v1220 = vld [vmem:[%s7 + $0x14] sm:$0xf]
      %v1221 = vld [vmem:[%s7 + $0x18] sm:$0xf]
      %v1222 = vld [vmem:[%s7 + $0x1c] sm:$0xf]
      %v1223 = vld [vmem:[%s7 + $0x20] sm:$0xf]
      %v1224 = vld [vmem:[%s7 + $0x24] sm:$0xf]
      %v1225 = vld [vmem:[%s7 + $0x28] sm:$0xf]
      %v1226 = vld [vmem:[%s7 + $0x2c] sm:$0xf]
      %v1227 = vld [vmem:[%s7 + $0x30] sm:$0xf]
      %v1228 = vld [vmem:[%s7 + $0x34] sm:$0xf]
      %v1229 = vld [vmem:[%s7 + $0x38] sm:$0xf]
      %v1230 = vld [vmem:[%s7 + $0x3c] sm:$0xf]
      %v1231 = vld [vmem:[%s7 + $0x40] sm:$0xf]
      %v1232 = vld [vmem:[%s7 + $0x44] sm:$0xf]
      %v1233 = vld [vmem:[%s7 + $0x48] sm:$0xf]
      %v1234 = vld [vmem:[%s7 + $0x4c] sm:$0xf]
      %v1235 = vld [vmem:[%s7 + $0x50] sm:$0xf]
      %v1236 = vld [vmem:[%s7 + $0x54] sm:$0xf]
      %v1237 = vld [vmem:[%s7 + $0x58] sm:$0xf]
      %v1238 = vld [vmem:[%s7 + $0x5c] sm:$0xf]
      %v1239 = vld [vmem:[%s7 + $0x60] sm:$0xf]
      %v1240 = vld [vmem:[%s7 + $0x64] sm:$0xf]
      %v1241 = vld [vmem:[%s7 + $0x68] sm:$0xf]
      %v1242 = vld [vmem:[%s7 + $0x6c] sm:$0xf]
      %v1243 = vld [vmem:[%s7 + $0x70] sm:$0xf]
      %v1244 = vld [vmem:[%s7 + $0x74] sm:$0xf]
      %v1245 = vld [vmem:[%s7 + $0x78] sm:$0xf]
      %v1246 = vld [vmem:[%s7 + $0x7c] sm:$0xf]
      %v1247 = vld [vmem:[%s8] sm:$0x1]
      %v1249 = vlaneseq
      %v1250 = vshrl.u32 %v1249, 7
      %v1251 = vsub.s32 0, %v1250
      %v1252 = vrot.slane %v1247, %v1251
      %v1286 = vunpack.c.l.b16 %v1215
      %v1287 = vunpack.c.l.b16 %v1216
      %v1288 = vunpack.c.l.b16 %v1217
      %v1289 = vunpack.c.l.b16 %v1218
      %v1290 = vunpack.c.l.b16 %v1219
      %v1291 = vunpack.c.l.b16 %v1220
      %v1292 = vunpack.c.l.b16 %v1221
      %v1293 = vunpack.c.l.b16 %v1222
      %v1294 = vunpack.c.l.b16 %v1223
      %v1295 = vunpack.c.l.b16 %v1224
      %v1296 = vunpack.c.l.b16 %v1225
      %v1297 = vunpack.c.l.b16 %v1226
      %v1298 = vunpack.c.l.b16 %v1227
      %v1299 = vunpack.c.l.b16 %v1228
      %v1300 = vunpack.c.l.b16 %v1229
      %v1301 = vunpack.c.l.b16 %v1230
      %v1302 = vunpack.c.l.b16 %v1231
      %v1303 = vunpack.c.l.b16 %v1232
      %v1304 = vunpack.c.l.b16 %v1233
      %v1305 = vunpack.c.l.b16 %v1234
      %v1306 = vunpack.c.l.b16 %v1235
      %v1307 = vunpack.c.l.b16 %v1236
      %v1308 = vunpack.c.l.b16 %v1237
      %v1309 = vunpack.c.l.b16 %v1238
      %v1310 = vunpack.c.l.b16 %v1239
      %v1311 = vunpack.c.l.b16 %v1240
      %v1312 = vunpack.c.l.b16 %v1241
      %v1313 = vunpack.c.l.b16 %v1242
      %v1314 = vunpack.c.l.b16 %v1243
      %v1315 = vunpack.c.l.b16 %v1244
      %v1316 = vunpack.c.l.b16 %v1245
      %v1317 = vunpack.c.l.b16 %v1246
      %v1318 = vpack.c.b16 %v1287, %v1286
      %v1319 = vpack.c.b16 %v1289, %v1288
      %v1320 = vpack.c.b16 %v1291, %v1290
      %v1321 = vpack.c.b16 %v1293, %v1292
      %v1322 = vpack.c.b16 %v1295, %v1294
      %v1323 = vpack.c.b16 %v1297, %v1296
      %v1324 = vpack.c.b16 %v1299, %v1298
      %v1325 = vpack.c.b16 %v1301, %v1300
      %v1326 = vpack.c.b16 %v1303, %v1302
      %v1327 = vpack.c.b16 %v1305, %v1304
      %v1328 = vpack.c.b16 %v1307, %v1306
      %v1329 = vpack.c.b16 %v1309, %v1308
      %v1330 = vpack.c.b16 %v1311, %v1310
      %v1331 = vpack.c.b16 %v1313, %v1312
      %v1332 = vpack.c.b16 %v1315, %v1314
      %v1333 = vpack.c.b16 %v1317, %v1316
      %1350 = vmatprep.subr.bf16.mxu0 0
      %1351 = vmatpush1.bf16.msra.mxu0 %v1325
      %1352 = vmatprep.subr.bf16.mxu0 0
      %1353 = vmatpush1.bf16.msra.mxu0 %v1324
      %1354 = vmatprep.subr.bf16.mxu0 0
      %1355 = vmatpush1.bf16.msra.mxu0 %v1323
      %1356 = vmatprep.subr.bf16.mxu0 0
      %1357 = vmatpush1.bf16.msra.mxu0 %v1322
      %1358 = vmatprep.subr.bf16.mxu0 0
      %1359 = vmatpush1.bf16.msra.mxu0 %v1321
      %1360 = vmatprep.subr.bf16.mxu0 0
      %1361 = vmatpush1.bf16.msra.mxu0 %v1320
      %1362 = vmatprep.subr.bf16.mxu0 0
      %1363 = vmatpush1.bf16.msra.mxu0 %v1319
      %1364 = vmatprep.subr.bf16.mxu0 0
      %1365 = vmatpush1.bf16.msra.mxu0 %v1318
      %1366 = vmatprep.subr.bf16.mxu0 0
      %1367 = vmatpush2.bf16.msra.mxu0 %v1333
      %1368 = vmatprep.subr.bf16.mxu0 0
      %1369 = vmatpush2.bf16.msra.mxu0 %v1332
      %1370 = vmatprep.subr.bf16.mxu0 0
      %1371 = vmatpush2.bf16.msra.mxu0 %v1331
      %1372 = vmatprep.subr.bf16.mxu0 0
      %1373 = vmatpush2.bf16.msra.mxu0 %v1330
      %1374 = vmatprep.subr.bf16.mxu0 0
      %1375 = vmatpush2.bf16.msra.mxu0 %v1329
      %1376 = vmatprep.subr.bf16.mxu0 0
      %1377 = vmatpush2.bf16.msra.mxu0 %v1328
      %1378 = vmatprep.subr.bf16.mxu0 0
      %1379 = vmatpush2.bf16.msra.mxu0 %v1327
      %1380 = vmatprep.subr.bf16.mxu0 0
      %1381 = vmatpush2.bf16.msra.mxu0 %v1326
      %1382 = vmatprep.mubr.bf16.mxu0 %v1214
      %1383 = vmatmul.mubr.bf16.gmra.mxu0 %v1213
      %v1384 = vpop.f32.mrf.mxu0
      %v1385 = vadd.f32 %v1252, %v1384
      %v1386 = vpop.f32.mrf.mxu0
      %v1387 = vpop.f32.mrf.mxu0
      %v1388 = vadd.f32 %v1252, %v1387
      %v1389 = vpop.f32.mrf.mxu0
      %1390 = vdwg.mxu0
      %v1391 = vmax.f32 %v1385, 0.0
      %v1392 = vmax.f32 %v1388, 0.0
      %v1393 = vpack.c.bf16 %v1392, %v1391
      %v1394 = vld [vmem:[%s9] sm:$0xf]
      %v1395 = vld [vmem:[%s9 + $0x4] sm:$0xf]
      %v1396 = vld [vmem:[%s9 + $0x8] sm:$0xf]
      %v1397 = vld [vmem:[%s9 + $0xc] sm:$0xf]
      %v1398 = vld [vmem:[%s9 + $0x10] sm:$0xf]
      %v1399 = vld [vmem:[%s9 + $0x14] sm:$0xf]
      %v1400 = vld [vmem:[%s9 + $0x18] sm:$0xf]
      %v1401 = vld [vmem:[%s9 + $0x1c] sm:$0xf]
      %v1402 = vld [vmem:[%s9 + $0x20] sm:$0xf]
      %v1403 = vld [vmem:[%s9 + $0x24] sm:$0xf]
      %v1404 = vld [vmem:[%s9 + $0x28] sm:$0xf]
      %v1405 = vld [vmem:[%s9 + $0x2c] sm:$0xf]
      %v1406 = vld [vmem:[%s9 + $0x30] sm:$0xf]
      %v1407 = vld [vmem:[%s9 + $0x34] sm:$0xf]
      %v1408 = vld [vmem:[%s9 + $0x38] sm:$0xf]
      %v1409 = vld [vmem:[%s9 + $0x3c] sm:$0xf]
      %v1410 = vld [vmem:[%s10] sm:$0x1]
      %v1412 = vlaneseq
      %v1413 = vshrl.u32 %v1412, 7
      %v1414 = vsub.s32 0, %v1413
      %v1415 = vrot.slane %v1410, %v1414
      %v1433 = vunpack.c.l.b16 %v1394
      %v1434 = vunpack.c.l.b16 %v1395
      %v1435 = vunpack.c.l.b16 %v1396
      %v1436 = vunpack.c.l.b16 %v1397
      %v1437 = vunpack.c.l.b16 %v1398
      %v1438 = vunpack.c.l.b16 %v1399
      %v1439 = vunpack.c.l.b16 %v1400
      %v1440 = vunpack.c.l.b16 %v1401
      %v1441 = vunpack.c.l.b16 %v1402
      %v1442 = vunpack.c.l.b16 %v1403
      %v1443 = vunpack.c.l.b16 %v1404
      %v1444 = vunpack.c.l.b16 %v1405
      %v1445 = vunpack.c.l.b16 %v1406
      %v1446 = vunpack.c.l.b16 %v1407
      %v1447 = vunpack.c.l.b16 %v1408
      %v1448 = vunpack.c.l.b16 %v1409
      %v1449 = vpack.c.b16 %v1434, %v1433
      %v1450 = vpack.c.b16 %v1436, %v1435
      %v1451 = vpack.c.b16 %v1438, %v1437
      %v1452 = vpack.c.b16 %v1440, %v1439
      %v1453 = vpack.c.b16 %v1442, %v1441
      %v1454 = vpack.c.b16 %v1444, %v1443
      %v1455 = vpack.c.b16 %v1446, %v1445
      %v1456 = vpack.c.b16 %v1448, %v1447
      %1465 = vmatprep.subr.bf16.mxu0 0
      %1466 = vmatpush1.bf16.msra.mxu0 %v1456
      %1467 = vmatprep.subr.bf16.mxu0 0
      %1468 = vmatpush1.bf16.msra.mxu0 %v1455
      %1469 = vmatprep.subr.bf16.mxu0 0
      %1470 = vmatpush1.bf16.msra.mxu0 %v1454
      %1471 = vmatprep.subr.bf16.mxu0 0
      %1472 = vmatpush1.bf16.msra.mxu0 %v1453
      %1473 = vmatprep.subr.bf16.mxu0 0
      %1474 = vmatpush1.bf16.msra.mxu0 %v1452
      %1475 = vmatprep.subr.bf16.mxu0 0
      %1476 = vmatpush1.bf16.msra.mxu0 %v1451
      %1477 = vmatprep.subr.bf16.mxu0 0
      %1478 = vmatpush1.bf16.msra.mxu0 %v1450
      %1479 = vmatprep.subr.bf16.mxu0 0
      %1480 = vmatpush1.bf16.msra.mxu0 %v1449
      %1481 = vmatprep.subr.bf16.mxu0 0
      %1482 = vmatpush2.bf16.msra.mxu0 0
      %1483 = vmatprep.subr.bf16.mxu0 0
      %1484 = vmatpush2.bf16.msra.mxu0 0
      %1485 = vmatprep.subr.bf16.mxu0 0
      %1486 = vmatpush2.bf16.msra.mxu0 0
      %1487 = vmatprep.subr.bf16.mxu0 0
      %1488 = vmatpush2.bf16.msra.mxu0 0
      %1489 = vmatprep.subr.bf16.mxu0 0
      %1490 = vmatpush2.bf16.msra.mxu0 0
      %1491 = vmatprep.subr.bf16.mxu0 0
      %1492 = vmatpush2.bf16.msra.mxu0 0
      %1493 = vmatprep.subr.bf16.mxu0 0
      %1494 = vmatpush2.bf16.msra.mxu0 0
      %1495 = vmatprep.subr.bf16.mxu0 0
      %1496 = vmatpush2.bf16.msra.mxu0 0
      %1497 = vmatprep.mubr.bf16.mxu0 0
      %1498 = vmatmul.mubr.bf16.gmra.mxu0 %v1393
      %v1499 = vpop.f32.mrf.mxu0
      %v1500 = vadd.f32 %v1415, %v1499
      %v1501 = vpop.f32.mrf.mxu0
      %v1502 = vpop.f32.mrf.mxu0
      %v1503 = vadd.f32 %v1415, %v1502
      %v1504 = vpop.f32.mrf.mxu0
      %1505 = vdwg.mxu0
      %vm1506 = vcmask 15360
      %v1507 = vsel %vm1506, %v1500, -inf
      %1508 = vmax.xlane.f32.xlu0 %v1507
      %v1509 = vpop.xlane.xlu0 %1508
      %v1510 = vsel %vm1506, %v1503, -inf
      %1511 = vmax.xlane.f32.xlu0 %v1510
      %v1512 = vpop.xlane.xlu0 %1511
      %v1513 = vsub.f32 %v1500, %v1509
      %v1514 = vsub.f32 %v1503, %v1512
      %v1515 = vmul.f32 %v1513, 1.442695
      %v1516 = vpow.pop %v1515
      %v1517 = vmul.f32 %v1514, 1.442695
      %v1518 = vpow.pop %v1517
      %v1519 = vsel %vm1506, %v1516, 0.0
      %1520 = vadd.xlane.f32.xlu0 %v1519
      %v1521 = vpop.xlane.xlu0 %1520
      %v1522 = vsel %vm1506, %v1518, 0.0
      %1523 = vadd.xlane.f32.xlu0 %v1522
      %v1524 = vpop.xlane.xlu0 %1523
      %v1525 = vlog2.pop %v1521
      %v1526 = vmul.f32 %v1525, 0.6931472
      %v1527 = vlog2.pop %v1524
      %v1528 = vmul.f32 %v1527, 0.6931472
      %v1529 = vsub.f32 %v1513, %v1526
      %v1530 = vsub.f32 %v1514, %v1528
      %1531 = vst.msk [vmem:[%s441] sm:$0xff] %vm1506, %v1529
      %1532 = vst.msk [vmem:[%s441 + $0x8] sm:$0xff] %vm1506, %v1530
      %s1533 = smul.u32 2, %s27
      %p1534 = scmp.lt.s32.totalorder %s26, 1
      %s1535 = scalar_select %p1534, %s26, 1
      %p1536 = scmp.lt.s32.totalorder %s1533, 1
      %s1537 = scalar_select %p1536, %s1533, 1
      %s1538 = smul.addr %s1535, 2
      %s1539 = sadd.s32 %s1537, %s1538
      %s1540 = smul.addr %s1539, 8
      %s1541 = scalar_lea.vmem %s11, %s1540
      // Predicated region
      $region65: #{pointnet_densecls_forward.5} parent=63 // pred_check
        %p1542 = pneg %p297
      $region66: #{pointnet_densecls_forward.5} parent=63 // pred_check_branch
        %1544 = sbr.rel (%p1542) target = $region68
      $region67: #{pointnet_densecls_forward.5} parent=63 // pred_region
        %s1545 = smul.u32 2, %s27
      $region68: #{pointnet_densecls_forward.5} parent=63 // pred_fallthru
        _
    $region64: #{pointnet_densecls_forward.5} parent=5 // pred_fallthru
      _
    %p1546 = scmp.le.s32.totalorder 2, %s17
    // Predicated region
    $region69: #{pointnet_densecls_forward.5} parent=5 // pred_check
      %p1547 = pneg %p1546
    $region70: #{pointnet_densecls_forward.5} parent=5 // pred_check_branch
      %1549 = sbr.rel (%p1547) target = $region72
    $region71: #{pointnet_densecls_forward.5} parent=5 // pred_region
      %s1550 = ssub.s32 %s17, 2
      // Predicated region
      $region73: #{pointnet_densecls_forward.5} parent=71 // pred_check
        %p1551 = pneg %p303
      $region74: #{pointnet_densecls_forward.5} parent=71 // pred_check_branch
        %1553 = sbr.rel (%p1551) target = $region76
      $region75: #{pointnet_densecls_forward.5} parent=71 // pred_region
        %s1554 = smul.u32 2, %s29
        %p1555 = scmp.lt.s32.totalorder %s28, 1
        %s1556 = scalar_select %p1555, %s28, 1
        %p1557 = scmp.lt.s32.totalorder %s1554, 1
        %s1558 = scalar_select %p1557, %s1554, 1
        %s1559 = smul.addr %s1556, 2
        %s1560 = sadd.s32 %s1558, %s1559
        %s1561 = smul.addr %s1560, 8
        %s1562 = scalar_lea.vmem %s11, %s1561
      $region76: #{pointnet_densecls_forward.5} parent=71 // pred_fallthru
        _
    $region72: #{pointnet_densecls_forward.5} parent=5 // pred_fallthru
      _
  $region6: #{pointnet_densecls_forward.5} parent=0 // loop_footer
    %s21 = sadd.s32 1, %s17
  $region7: #{pointnet_densecls_forward.5} parent=0 // loop_footer_branch
    %16 = sbr.rel target = $region3
  $region8: #{pointnet_densecls_forward.5} parent=0 // loop_exit
    _

// kernel: pointnet_densecls_forward.3
$region0: #{pointnet_densecls_forward.3}
  #allocation0 [shape = 'u32[]', space=smem, size = 0x4, offset = 0x4, fixed_abs, tag = 'smem constant byte address 0x4 - core index']
  #allocation1 [shape = 'u32[144,128]{1,0:T(1,128)}', space=vmem, size = 0x12000, scoped, tag = 'internal scratch']
  #allocation2 [shape = 'f32[1,1024]{1,0:T(1,128)}', space=vmem, size = 0x1000, scoped, tag = 'scratch operand']
  %s0 = inlined_call_operand.vmem [shape: f32[2,16,3], index: 0, kind: input, shape index: {}]
  %s1 = inlined_call_operand.vmem [shape: f32[3,64], index: 1, kind: input, shape index: {}]
  %s2 = inlined_call_operand.vmem [shape: f32[1,64], index: 2, kind: input, shape index: {}]
  %s3 = inlined_call_operand.vmem [shape: bf16[64,128], index: 3, kind: input, shape index: {}]
  %s4 = inlined_call_operand.vmem [shape: f32[1,128], index: 4, kind: input, shape index: {}]
  %s5 = inlined_call_operand.hbm [shape: bf16[128,1024], index: 5, kind: input, shape index: {}]
  %s6 = inlined_call_operand.vmem [shape: f32[1,1024], index: 6, kind: input, shape index: {}]
  %s7 = inlined_call_operand.hbm [shape: bf16[1024,512], index: 7, kind: input, shape index: {}]
  %s8 = inlined_call_operand.vmem [shape: f32[1,512], index: 8, kind: input, shape index: {}]
  %s9 = inlined_call_operand.hbm [shape: bf16[512,256], index: 9, kind: input, shape index: {}]
  %s10 = inlined_call_operand.vmem [shape: f32[1,256], index: 10, kind: input, shape index: {}]
  %s11 = inlined_call_operand.vmem [shape: bf16[256,9], index: 11, kind: input, shape index: {}]
  %s12 = inlined_call_operand.vmem [shape: f32[1,9], index: 12, kind: input, shape index: {}]
  %s13 = inlined_call_operand.vmem [shape: f32[2,1,9], index: 13, kind: output, shape index: {}]
  %s14 = sld [smem:[#allocation0]]
  $region105: #{pointnet_densecls_forward.3} parent=0
    _
  %s16 = ssub.s32 1, %s14
  %s17 = scalar_select 0, %s16, %s14
  $region1: #{pointnet_densecls_forward.3} parent=0
    #allocation3 [shape = 'u8[262144]{0}', space=vmem, size = 0x40000, scoped, tag = 'input window, operand 5, single buffered']
    #allocation4 [shape = 's32[2]{0}', space=sflag, size = 0x8, scoped, tag = 'scoped memory for pointnet_densecls_forward.3']
    #allocation5 [shape = 'u8[1048576]{0}', space=vmem, size = 0x100000, scoped, tag = 'input window, operand 7, single buffered']
    #allocation6 [shape = 's32[1]{0}', space=sflag, size = 0x4, scoped, tag = 'scoped memory for pointnet_densecls_forward.3']
    #allocation7 [shape = 'u8[262144]{0}', space=vmem, size = 0x40000, scoped, tag = 'input window, operand 9, single buffered']
    %18 = vsyncpa [#allocation4], 0
    %19 = vsyncpa [#allocation6], 0
    loop: start=0, step=1, limit=4
    $region2: #{pointnet_densecls_forward.3} parent=1 // loop_pre_header
      _
    $region3: #{pointnet_densecls_forward.3} parent=1 // loop_header
      %s21 = sphi 0, %s25
      %p22 = scmp.ge.s32.totalorder %s21, 4
      %s28 = sphi 0, %s40
      %s29 = sphi 0, %s36
      %s30 = sphi 0, %s28
      %s31 = sphi 0, %s29
      %s32 = sphi 0, %s30
      %s33 = sphi 0, %s31
      %s45 = sphi 0, %s47
      %s48 = sphi 0, %s45
      %s49 = sphi 0, %s48
      %s65 = sphi 0, %s49
      %s69 = sphi 0, %s69
      %s71 = sphi 0, %s69
      %s72 = sphi 0, %s71
      %s86 = sphi 0, %s72
      %s90 = sphi 0, %s90
      %s92 = sphi 0, %s90
      %s93 = sphi 0, %s92
      %s107 = sphi 0, %s93
      %s111 = sphi 0, %s111
      %s113 = sphi 0, %s111
      %s114 = sphi 0, %s113
      %s128 = sphi 0, %s114
      %s132 = sphi 0, %s132
      %s134 = sphi 0, %s132
      %s135 = sphi 0, %s134
      %s149 = sphi 0, %s135
      %s153 = sphi 0, %s153
      %s155 = sphi 0, %s153
      %s156 = sphi 0, %s155
      %s170 = sphi 0, %s156
      %s174 = sphi 0, %s174
      %s176 = sphi 0, %s174
      %s177 = sphi 0, %s176
      %s191 = sphi 0, %s177
      %s195 = sphi 0, %s195
      %s197 = sphi 0, %s195
      %s198 = sphi 0, %s197
      %s212 = sphi 0, %s198
      %s216 = sphi 0, %s216
      %s218 = sphi 0, %s216
      %s219 = sphi 0, %s218
      %s233 = sphi 0, %s219
      %s237 = sphi 0, %s237
      %s239 = sphi 0, %s237
      %s240 = sphi 0, %s239
      %s254 = sphi 0, %s240
      %s258 = sphi 0, %s258
      %s260 = sphi 0, %s258
      %s261 = sphi 0, %s260
      %s275 = sphi 0, %s261
      %s279 = sphi 0, %s279
      %s281 = sphi 0, %s279
      %s282 = sphi 0, %s281
      %s296 = sphi 0, %s282
      %s300 = sphi 0, %s300
      %s302 = sphi 0, %s300
      %s303 = sphi 0, %s302
      %s317 = sphi 0, %s303
      %s323 = sphi 0, %s325
      %s326 = sphi 0, %s323
      %s327 = sphi 0, %s326
      %s343 = sphi 0, %s327
    $region4: #{pointnet_densecls_forward.3} parent=1 // loop_header_branch
      %24 = sbr.rel (%p22) target = $region8
    $region5: #{pointnet_densecls_forward.3} parent=1 // loop_body
      %s26 = ssub.s32 %s21, 1
      %s27 = ssub.s32 %s21, 2
      %s34 = sadd.s32 1, %s29
      %p35 = scmp.ge.s32.totalorder %s34, 1
      %s36 = scalar_select %p35, 0, %s34
      %s37 = sadd.s32 1, %s28
      %s38 = scalar_select %p35, %s37, %s28
      %p39 = scmp.ge.s32.totalorder %s38, 2
      %s40 = scalar_select %p39, 0, %s38
      %s41 = ssub.s32 %s28, %s40
      %s42 = ssub.s32 %s29, %s36
      %s43 = sor.u32 %s41, %s42
      %p44 = scmp.eq.s32.totalorder %s43, 0
      %s46 = sadd.s32 %s45, 1
      %s47 = scalar_select %p44, %s45, %s46
      %p50 = pneg %p44
      %p51 = scmp.eq.s32.totalorder %s21, 1
      %p52 = por %p50, %p51
      %p53 = scmp.ne.s32.totalorder %s45, %s48
      %p54 = scmp.eq.s32.totalorder %s21, 0
      %p55 = por %p53, %p54
      %p56 = scmp.ne.s32.totalorder %s45, %s48
      %p57 = scmp.eq.s32.totalorder %s26, 1
      %p58 = por %p56, %p57
      %p59 = scmp.ne.s32.totalorder %s48, %s49
      %p60 = scmp.eq.s32.totalorder %s26, 0
      %p61 = por %p59, %p60
      %p62 = scmp.ne.s32.totalorder %s48, %s49
      %p63 = scmp.eq.s32.totalorder %s27, 1
      %p64 = por %p62, %p63
      %p66 = scmp.ne.s32.totalorder %s49, %s65
      %p67 = scmp.eq.s32.totalorder %s27, 0
      %p68 = por %p66, %p67
      %s70 = sadd.s32 %s69, 1
      %p73 = scmp.eq.s32.totalorder %s21, 1
      %p74 = scmp.ne.s32.totalorder %s69, %s71
      %p75 = scmp.eq.s32.totalorder %s21, 0
      %p76 = por %p74, %p75
      %p77 = scmp.ne.s32.totalorder %s69, %s71
      %p78 = scmp.eq.s32.totalorder %s26, 1
      %p79 = por %p77, %p78
      %p80 = scmp.ne.s32.totalorder %s71, %s72
      %p81 = scmp.eq.s32.totalorder %s26, 0
      %p82 = por %p80, %p81
      %p83 = scmp.ne.s32.totalorder %s71, %s72
      %p84 = scmp.eq.s32.totalorder %s27, 1
      %p85 = por %p83, %p84
      %p87 = scmp.ne.s32.totalorder %s72, %s86
      %p88 = scmp.eq.s32.totalorder %s27, 0
      %p89 = por %p87, %p88
      %s91 = sadd.s32 %s90, 1
      %p94 = scmp.eq.s32.totalorder %s21, 1
      %p95 = scmp.ne.s32.totalorder %s90, %s92
      %p96 = scmp.eq.s32.totalorder %s21, 0
      %p97 = por %p95, %p96
      %p98 = scmp.ne.s32.totalorder %s90, %s92
      %p99 = scmp.eq.s32.totalorder %s26, 1
      %p100 = por %p98, %p99
      %p101 = scmp.ne.s32.totalorder %s92, %s93
      %p102 = scmp.eq.s32.totalorder %s26, 0
      %p103 = por %p101, %p102
      %p104 = scmp.ne.s32.totalorder %s92, %s93
      %p105 = scmp.eq.s32.totalorder %s27, 1
      %p106 = por %p104, %p105
      %p108 = scmp.ne.s32.totalorder %s93, %s107
      %p109 = scmp.eq.s32.totalorder %s27, 0
      %p110 = por %p108, %p109
      %s112 = sadd.s32 %s111, 1
      %p115 = scmp.eq.s32.totalorder %s21, 1
      %p116 = scmp.ne.s32.totalorder %s111, %s113
      %p117 = scmp.eq.s32.totalorder %s21, 0
      %p118 = por %p116, %p117
      %p119 = scmp.ne.s32.totalorder %s111, %s113
      %p120 = scmp.eq.s32.totalorder %s26, 1
      %p121 = por %p119, %p120
      %p122 = scmp.ne.s32.totalorder %s113, %s114
      %p123 = scmp.eq.s32.totalorder %s26, 0
      %p124 = por %p122, %p123
      %p125 = scmp.ne.s32.totalorder %s113, %s114
      %p126 = scmp.eq.s32.totalorder %s27, 1
      %p127 = por %p125, %p126
      %p129 = scmp.ne.s32.totalorder %s114, %s128
      %p130 = scmp.eq.s32.totalorder %s27, 0
      %p131 = por %p129, %p130
      %s133 = sadd.s32 %s132, 1
      %p136 = scmp.eq.s32.totalorder %s21, 1
      %p137 = scmp.ne.s32.totalorder %s132, %s134
      %p138 = scmp.eq.s32.totalorder %s21, 0
      %p139 = por %p137, %p138
      %p140 = scmp.ne.s32.totalorder %s132, %s134
      %p141 = scmp.eq.s32.totalorder %s26, 1
      %p142 = por %p140, %p141
      %p143 = scmp.ne.s32.totalorder %s134, %s135
      %p144 = scmp.eq.s32.totalorder %s26, 0
      %p145 = por %p143, %p144
      %p146 = scmp.ne.s32.totalorder %s134, %s135
      %p147 = scmp.eq.s32.totalorder %s27, 1
      %p148 = por %p146, %p147
      %p150 = scmp.ne.s32.totalorder %s135, %s149
      %p151 = scmp.eq.s32.totalorder %s27, 0
      %p152 = por %p150, %p151
      %s154 = sadd.s32 %s153, 1
      %p157 = scmp.eq.s32.totalorder %s21, 1
      %p158 = scmp.ne.s32.totalorder %s153, %s155
      %p159 = scmp.eq.s32.totalorder %s21, 0
      %p160 = por %p158, %p159
      %p161 = scmp.ne.s32.totalorder %s153, %s155
      %p162 = scmp.eq.s32.totalorder %s26, 1
      %p163 = por %p161, %p162
      %p164 = scmp.ne.s32.totalorder %s155, %s156
      %p165 = scmp.eq.s32.totalorder %s26, 0
      %p166 = por %p164, %p165
      %p167 = scmp.ne.s32.totalorder %s155, %s156
      %p168 = scmp.eq.s32.totalorder %s27, 1
      %p169 = por %p167, %p168
      %p171 = scmp.ne.s32.totalorder %s156, %s170
      %p172 = scmp.eq.s32.totalorder %s27, 0
      %p173 = por %p171, %p172
      %s175 = sadd.s32 %s174, 1
      %p178 = scmp.eq.s32.totalorder %s21, 1
      %p179 = scmp.ne.s32.totalorder %s174, %s176
      %p180 = scmp.eq.s32.totalorder %s21, 0
      %p181 = por %p179, %p180
      %p182 = scmp.ne.s32.totalorder %s174, %s176
      %p183 = scmp.eq.s32.totalorder %s26, 1
      %p184 = por %p182, %p183
      %p185 = scmp.ne.s32.totalorder %s176, %s177
      %p186 = scmp.eq.s32.totalorder %s26, 0
      %p187 = por %p185, %p186
      %p188 = scmp.ne.s32.totalorder %s176, %s177
      %p189 = scmp.eq.s32.totalorder %s27, 1
      %p190 = por %p188, %p189
      %p192 = scmp.ne.s32.totalorder %s177, %s191
      %p193 = scmp.eq.s32.totalorder %s27, 0
      %p194 = por %p192, %p193
      %s196 = sadd.s32 %s195, 1
      %p199 = scmp.eq.s32.totalorder %s21, 1
      %p200 = scmp.ne.s32.totalorder %s195, %s197
      %p201 = scmp.eq.s32.totalorder %s21, 0
      %p202 = por %p200, %p201
      %p203 = scmp.ne.s32.totalorder %s195, %s197
      %p204 = scmp.eq.s32.totalorder %s26, 1
      %p205 = por %p203, %p204
      %p206 = scmp.ne.s32.totalorder %s197, %s198
      %p207 = scmp.eq.s32.totalorder %s26, 0
      %p208 = por %p206, %p207
      %p209 = scmp.ne.s32.totalorder %s197, %s198
      %p210 = scmp.eq.s32.totalorder %s27, 1
      %p211 = por %p209, %p210
      %p213 = scmp.ne.s32.totalorder %s198, %s212
      %p214 = scmp.eq.s32.totalorder %s27, 0
      %p215 = por %p213, %p214
      %s217 = sadd.s32 %s216, 1
      %p220 = scmp.eq.s32.totalorder %s21, 1
      %p221 = scmp.ne.s32.totalorder %s216, %s218
      %p222 = scmp.eq.s32.totalorder %s21, 0
      %p223 = por %p221, %p222
      %p224 = scmp.ne.s32.totalorder %s216, %s218
      %p225 = scmp.eq.s32.totalorder %s26, 1
      %p226 = por %p224, %p225
      %p227 = scmp.ne.s32.totalorder %s218, %s219
      %p228 = scmp.eq.s32.totalorder %s26, 0
      %p229 = por %p227, %p228
      %p230 = scmp.ne.s32.totalorder %s218, %s219
      %p231 = scmp.eq.s32.totalorder %s27, 1
      %p232 = por %p230, %p231
      %p234 = scmp.ne.s32.totalorder %s219, %s233
      %p235 = scmp.eq.s32.totalorder %s27, 0
      %p236 = por %p234, %p235
      %s238 = sadd.s32 %s237, 1
      %p241 = scmp.eq.s32.totalorder %s21, 1
      %p242 = scmp.ne.s32.totalorder %s237, %s239
      %p243 = scmp.eq.s32.totalorder %s21, 0
      %p244 = por %p242, %p243
      %p245 = scmp.ne.s32.totalorder %s237, %s239
      %p246 = scmp.eq.s32.totalorder %s26, 1
      %p247 = por %p245, %p246
      %p248 = scmp.ne.s32.totalorder %s239, %s240
      %p249 = scmp.eq.s32.totalorder %s26, 0
      %p250 = por %p248, %p249
      %p251 = scmp.ne.s32.totalorder %s239, %s240
      %p252 = scmp.eq.s32.totalorder %s27, 1
      %p253 = por %p251, %p252
      %p255 = scmp.ne.s32.totalorder %s240, %s254
      %p256 = scmp.eq.s32.totalorder %s27, 0
      %p257 = por %p255, %p256
      %s259 = sadd.s32 %s258, 1
      %p262 = scmp.eq.s32.totalorder %s21, 1
      %p263 = scmp.ne.s32.totalorder %s258, %s260
      %p264 = scmp.eq.s32.totalorder %s21, 0
      %p265 = por %p263, %p264
      %p266 = scmp.ne.s32.totalorder %s258, %s260
      %p267 = scmp.eq.s32.totalorder %s26, 1
      %p268 = por %p266, %p267
      %p269 = scmp.ne.s32.totalorder %s260, %s261
      %p270 = scmp.eq.s32.totalorder %s26, 0
      %p271 = por %p269, %p270
      %p272 = scmp.ne.s32.totalorder %s260, %s261
      %p273 = scmp.eq.s32.totalorder %s27, 1
      %p274 = por %p272, %p273
      %p276 = scmp.ne.s32.totalorder %s261, %s275
      %p277 = scmp.eq.s32.totalorder %s27, 0
      %p278 = por %p276, %p277
      %s280 = sadd.s32 %s279, 1
      %p283 = scmp.eq.s32.totalorder %s21, 1
      %p284 = scmp.ne.s32.totalorder %s279, %s281
      %p285 = scmp.eq.s32.totalorder %s21, 0
      %p286 = por %p284, %p285
      %p287 = scmp.ne.s32.totalorder %s279, %s281
      %p288 = scmp.eq.s32.totalorder %s26, 1
      %p289 = por %p287, %p288
      %p290 = scmp.ne.s32.totalorder %s281, %s282
      %p291 = scmp.eq.s32.totalorder %s26, 0
      %p292 = por %p290, %p291
      %p293 = scmp.ne.s32.totalorder %s281, %s282
      %p294 = scmp.eq.s32.totalorder %s27, 1
      %p295 = por %p293, %p294
      %p297 = scmp.ne.s32.totalorder %s282, %s296
      %p298 = scmp.eq.s32.totalorder %s27, 0
      %p299 = por %p297, %p298
      %s301 = sadd.s32 %s300, 1
      %p304 = scmp.eq.s32.totalorder %s21, 1
      %p305 = scmp.ne.s32.totalorder %s300, %s302
      %p306 = scmp.eq.s32.totalorder %s21, 0
      %p307 = por %p305, %p306
      %p308 = scmp.ne.s32.totalorder %s300, %s302
      %p309 = scmp.eq.s32.totalorder %s26, 1
      %p310 = por %p308, %p309
      %p311 = scmp.ne.s32.totalorder %s302, %s303
      %p312 = scmp.eq.s32.totalorder %s26, 0
      %p313 = por %p311, %p312
      %p314 = scmp.ne.s32.totalorder %s302, %s303
      %p315 = scmp.eq.s32.totalorder %s27, 1
      %p316 = por %p314, %p315
      %p318 = scmp.ne.s32.totalorder %s303, %s317
      %p319 = scmp.eq.s32.totalorder %s27, 0
      %p320 = por %p318, %p319
      %s321 = ssub.s32 %s28, %s40
      %p322 = scmp.eq.s32.totalorder %s321, 0
      %s324 = sadd.s32 %s323, 1
      %s325 = scalar_select %p322, %s323, %s324
      %p328 = pneg %p322
      %p329 = scmp.eq.s32.totalorder %s21, 1
      %p330 = por %p328, %p329
      %p331 = scmp.ne.s32.totalorder %s323, %s326
      %p332 = scmp.eq.s32.totalorder %s21, 0
      %p333 = por %p331, %p332
      %p334 = scmp.ne.s32.totalorder %s323, %s326
      %p335 = scmp.eq.s32.totalorder %s26, 1
      %p336 = por %p334, %p335
      %p337 = scmp.ne.s32.totalorder %s326, %s327
      %p338 = scmp.eq.s32.totalorder %s26, 0
      %p339 = por %p337, %p338
      %p340 = scmp.ne.s32.totalorder %s326, %s327
      %p341 = scmp.eq.s32.totalorder %s27, 1
      %p342 = por %p340, %p341
      %p344 = scmp.ne.s32.totalorder %s327, %s343
      %p345 = scmp.eq.s32.totalorder %s27, 0
      %p346 = por %p344, %p345
      %p347 = scmp.le.s32.totalorder 1, %s21
      %p348 = scmp.lt.s32.totalorder %s21, 3
      %p349 = pnand %p347, %p348
      %p350 = pneg %p349
      // Predicated region
      $region9: #{pointnet_densecls_forward.3} parent=5 // pred_check
        _
      $region10: #{pointnet_densecls_forward.3} parent=5 // pred_check_branch
        %352 = sbr.rel (%p349) target = $region12
      $region11: #{pointnet_densecls_forward.3} parent=5 // pred_region
        %s353 = ssub.s32 %s21, 1
        // Predicated region
        $region13: #{pointnet_densecls_forward.3} parent=11 // pred_check
          %p354 = pneg %p82
        $region14: #{pointnet_densecls_forward.3} parent=11 // pred_check_branch
          %356 = sbr.rel (%p354) target = $region16
        $region15: #{pointnet_densecls_forward.3} parent=11 // pred_region
          _
        $region16: #{pointnet_densecls_forward.3} parent=11 // pred_fallthru
          _
        // Predicated region
        $region17: #{pointnet_densecls_forward.3} parent=11 // pred_check
          %p357 = pneg %p103
        $region18: #{pointnet_densecls_forward.3} parent=11 // pred_check_branch
          %359 = sbr.rel (%p357) target = $region20
        $region19: #{pointnet_densecls_forward.3} parent=11 // pred_region
          _
        $region20: #{pointnet_densecls_forward.3} parent=11 // pred_fallthru
          _
        // Predicated region
        $region21: #{pointnet_densecls_forward.3} parent=11 // pred_check
          %p360 = pneg %p124
        $region22: #{pointnet_densecls_forward.3} parent=11 // pred_check_branch
          %362 = sbr.rel (%p360) target = $region24
        $region23: #{pointnet_densecls_forward.3} parent=11 // pred_region
          _
        $region24: #{pointnet_densecls_forward.3} parent=11 // pred_fallthru
          _
        // Predicated region
        $region25: #{pointnet_densecls_forward.3} parent=11 // pred_check
          %p363 = pneg %p145
        $region26: #{pointnet_densecls_forward.3} parent=11 // pred_check_branch
          %365 = sbr.rel (%p363) target = $region28
        $region27: #{pointnet_densecls_forward.3} parent=11 // pred_region
          _
        $region28: #{pointnet_densecls_forward.3} parent=11 // pred_fallthru
          _
        // Predicated region
        $region29: #{pointnet_densecls_forward.3} parent=11 // pred_check
          %p366 = pneg %p166
        $region30: #{pointnet_densecls_forward.3} parent=11 // pred_check_branch
          %368 = sbr.rel (%p366) target = $region32
        $region31: #{pointnet_densecls_forward.3} parent=11 // pred_region
          %s370 = ssub.s32 8192, 8192
          %371 = vsyncadd [#allocation4], %s370
          %s372 = sshll.u32 [#allocation3], 4
          %s373 = int_to_ptr.vmem [resolvable:$true] %s372
          %378 = dma.hbm_to_vmem [thread:$0]  %s5, 8192, %s373, [#allocation4], 512, 512, 32
        $region32: #{pointnet_densecls_forward.3} parent=11 // pred_fallthru
          _
        // Predicated region
        $region33: #{pointnet_densecls_forward.3} parent=11 // pred_check
          %p379 = pneg %p187
        $region34: #{pointnet_densecls_forward.3} parent=11 // pred_check_branch
          %381 = sbr.rel (%p379) target = $region36
        $region35: #{pointnet_densecls_forward.3} parent=11 // pred_region
          _
        $region36: #{pointnet_densecls_forward.3} parent=11 // pred_fallthru
          _
        // Predicated region
        $region37: #{pointnet_densecls_forward.3} parent=11 // pred_check
          %p382 = pneg %p208
        $region38: #{pointnet_densecls_forward.3} parent=11 // pred_check_branch
          %384 = sbr.rel (%p382) target = $region40
        $region39: #{pointnet_densecls_forward.3} parent=11 // pred_region
          %s386 = ssub.s32 32768, 32768
          %387 = vsyncadd [#allocation6], %s386
          %s388 = sshll.u32 [#allocation5], 4
          %s389 = int_to_ptr.vmem [resolvable:$true] %s388
          %394 = dma.hbm_to_vmem [thread:$0]  %s7, 32768, %s389, [#allocation6], 256, 256, 16
        $region40: #{pointnet_densecls_forward.3} parent=11 // pred_fallthru
          _
        // Predicated region
        $region41: #{pointnet_densecls_forward.3} parent=11 // pred_check
          %p395 = pneg %p229
        $region42: #{pointnet_densecls_forward.3} parent=11 // pred_check_branch
          %397 = sbr.rel (%p395) target = $region44
        $region43: #{pointnet_densecls_forward.3} parent=11 // pred_region
          _
        $region44: #{pointnet_densecls_forward.3} parent=11 // pred_fallthru
          _
        // Predicated region
        $region45: #{pointnet_densecls_forward.3} parent=11 // pred_check
          %p398 = pneg %p250
        $region46: #{pointnet_densecls_forward.3} parent=11 // pred_check_branch
          %400 = sbr.rel (%p398) target = $region48
        $region47: #{pointnet_densecls_forward.3} parent=11 // pred_region
          %s402 = ssub.s32 8192, 8192
          %403 = vsyncadd [#allocation6], %s402
          %s404 = sshll.u32 [#allocation7], 4
          %s405 = int_to_ptr.vmem [resolvable:$true] %s404
          %410 = dma.hbm_to_vmem [thread:$0]  %s9, 8192, %s405, [#allocation6], 128, 128, 8
        $region48: #{pointnet_densecls_forward.3} parent=11 // pred_fallthru
          _
        // Predicated region
        $region49: #{pointnet_densecls_forward.3} parent=11 // pred_check
          %p411 = pneg %p271
        $region50: #{pointnet_densecls_forward.3} parent=11 // pred_check_branch
          %413 = sbr.rel (%p411) target = $region52
        $region51: #{pointnet_densecls_forward.3} parent=11 // pred_region
          _
        $region52: #{pointnet_densecls_forward.3} parent=11 // pred_fallthru
          _
        // Predicated region
        $region53: #{pointnet_densecls_forward.3} parent=11 // pred_check
          %p414 = pneg %p292
        $region54: #{pointnet_densecls_forward.3} parent=11 // pred_check_branch
          %416 = sbr.rel (%p414) target = $region56
        $region55: #{pointnet_densecls_forward.3} parent=11 // pred_region
          _
        $region56: #{pointnet_densecls_forward.3} parent=11 // pred_fallthru
          _
        // Predicated region
        $region57: #{pointnet_densecls_forward.3} parent=11 // pred_check
          %p417 = pneg %p313
        $region58: #{pointnet_densecls_forward.3} parent=11 // pred_check_branch
          %419 = sbr.rel (%p417) target = $region60
        $region59: #{pointnet_densecls_forward.3} parent=11 // pred_region
          _
        $region60: #{pointnet_densecls_forward.3} parent=11 // pred_fallthru
          _
      $region12: #{pointnet_densecls_forward.3} parent=5 // pred_fallthru
        _
      %p420 = scmp.lt.s32.totalorder %s21, 2
      // Predicated region
      $region61: #{pointnet_densecls_forward.3} parent=5 // pred_check
        %p421 = pneg %p420
      $region62: #{pointnet_densecls_forward.3} parent=5 // pred_check_branch
        %423 = sbr.rel (%p421) target = $region64
      $region63: #{pointnet_densecls_forward.3} parent=5 // pred_region
        // Predicated region
        $region65: #{pointnet_densecls_forward.3} parent=63 // pred_check
          %p424 = pneg %p55
        $region66: #{pointnet_densecls_forward.3} parent=63 // pred_check_branch
          %426 = sbr.rel (%p424) target = $region68
        $region67: #{pointnet_densecls_forward.3} parent=63 // pred_region
          %s427 = smul.u32 2, %s29
          %p428 = scmp.lt.s32.totalorder %s28, 1
          %s429 = scalar_select %p428, %s28, 1
          %p430 = scmp.lt.s32.totalorder %s427, 1
          %s431 = scalar_select %p430, %s427, 1
          %s432 = smul.addr %s429, 2
          %s433 = sadd.s32 %s431, %s432
          %s434 = smul.addr %s433, 8
          %s435 = scalar_lea.vmem %s0, %s434
          %s436 = smul.u32 2, %s29
        $region68: #{pointnet_densecls_forward.3} parent=63 // pred_fallthru
          _
      $region64: #{pointnet_densecls_forward.3} parent=5 // pred_fallthru
        _
      %p437 = scmp.le.s32.totalorder 1, %s21
      %p438 = scmp.lt.s32.totalorder %s21, 3
      %p439 = pnand %p437, %p438
      %p440 = pneg %p439
      // Predicated region
      $region69: #{pointnet_densecls_forward.3} parent=5 // pred_check
        _
      $region70: #{pointnet_densecls_forward.3} parent=5 // pred_check_branch
        %442 = sbr.rel (%p439) target = $region72
      $region71: #{pointnet_densecls_forward.3} parent=5 // pred_region
        %s443 = ssub.s32 %s21, 1
        // Predicated region
        $region73: #{pointnet_densecls_forward.3} parent=71 // pred_check
          %p444 = pneg %p166
        $region74: #{pointnet_densecls_forward.3} parent=71 // pred_check_branch
          %446 = sbr.rel (%p444) target = $region76
        $region75: #{pointnet_densecls_forward.3} parent=71 // pred_region
          %447 = dma.done [#allocation4], 8192
        $region76: #{pointnet_densecls_forward.3} parent=71 // pred_fallthru
          _
        // Predicated region
        $region77: #{pointnet_densecls_forward.3} parent=71 // pred_check
          %p448 = pneg %p208
        $region78: #{pointnet_densecls_forward.3} parent=71 // pred_check_branch
          %450 = sbr.rel (%p448) target = $region80
        $region79: #{pointnet_densecls_forward.3} parent=71 // pred_region
          %451 = dma.done [#allocation6], 32768
        $region80: #{pointnet_densecls_forward.3} parent=71 // pred_fallthru
          _
        // Predicated region
        $region81: #{pointnet_densecls_forward.3} parent=71 // pred_check
          %p452 = pneg %p250
        $region82: #{pointnet_densecls_forward.3} parent=71 // pred_check_branch
          %454 = sbr.rel (%p452) target = $region84
        $region83: #{pointnet_densecls_forward.3} parent=71 // pred_region
          %455 = dma.done [#allocation6], 8192
        $region84: #{pointnet_densecls_forward.3} parent=71 // pred_fallthru
          _
        %s456 = smul.u32 2, %s31
        %p457 = scmp.lt.s32.totalorder %s30, 1
        %s458 = scalar_select %p457, %s30, 1
        %p459 = scmp.lt.s32.totalorder %s456, 1
        %s460 = scalar_select %p459, %s456, 1
        %s461 = smul.addr %s458, 2
        %s462 = sadd.s32 %s460, %s461
        %s463 = smul.addr %s462, 8
        %s464 = scalar_lea.vmem %s0, %s463
        %p465 = pneg %p61
        %p466 = pneg %p58
        %p467 = pneg %p82
        %p468 = pneg %p79
        %p469 = pneg %p103
        %p470 = pneg %p100
        %p471 = pneg %p124
        %p472 = pneg %p121
        %p473 = pneg %p145
        %p474 = pneg %p142
        %p475 = pneg %p166
        %p476 = pneg %p163
        %p477 = pneg %p187
        %p478 = pneg %p184
        %p479 = pneg %p208
        %p480 = pneg %p205
        %p481 = pneg %p229
        %p482 = pneg %p226
        %p483 = pneg %p250
        %p484 = pneg %p247
        %p485 = pneg %p271
        %p486 = pneg %p268
        %p487 = pneg %p292
        %p488 = pneg %p289
        %p489 = pneg %p313
        %p490 = pneg %p310
        %p491 = pneg %p339
        %p492 = pneg %p336
        %p493 = scmp.lt.s32.totalorder %s30, 1
        %s494 = scalar_select %p493, %s30, 1
        %s495 = scalar_lea.vmem %s13, %s494
        %s496 = smul.u32 2, %s31
        %p497 = scmp.lt.s32.totalorder %s30, 1
        %s498 = scalar_select %p497, %s30, 1
        %p499 = scmp.lt.s32.totalorder %s496, 1
        %s500 = scalar_select %p499, %s496, 1
        %s501 = smul.addr %s498, 2
        %s502 = sadd.s32 %s500, %s501
        %s503 = smul.addr %s502, 8
        %s504 = scalar_lea.vmem %s0, %s503
        %s505 = smul.u32 2, %s31
        %p506 = scmp.lt.s32.totalorder %s30, 1
        %s507 = scalar_select %p506, %s30, 1
        %s508 = scalar_lea.vmem %s13, %s507
        %p510 = scmp.eq.s32.totalorder %s31, 0
        // Predicated region
        $region85: #{pointnet_densecls_forward.3} parent=71 // pred_check
          %p511 = pneg %p510
        $region86: #{pointnet_densecls_forward.3} parent=71 // pred_check_branch
          %513 = sbr.rel (%p511) target = $region88
        $region87: #{pointnet_densecls_forward.3} parent=71 // pred_region
          %514 = vst [vmem:[#allocation2] sm:$0xff] -inf
        $region88: #{pointnet_densecls_forward.3} parent=71 // pred_fallthru
          _
        %v515 = vld [vmem:[%s504] sm:$0xff]
        %v516 = vld [vmem:[%s504 + $0x8] sm:$0xff]
        %v517 = vld [vmem:[%s1] sm:$0x7]
        %519 = vset.pattern.permute.xlu0 0
        %520 = vperm.xlu0 %519, %v515
        %v521 = vpop.permute.xlu0 %520
        %524 = vset.pattern.permute.xlu0 0
        %525 = vperm.xlu0 %524, %v516
        %v526 = vpop.permute.xlu0 %525
        %v528 = vlaneseq
        %v529 = vshrl.u32 %v528, 7
        %v530 = vsub.s32 0, %v529
        %v531 = vrot.slane %v517, %v530
        %v532 = vmul.f32 %v521, %v531
        %v533 = vmul.f32 %v526, %v531
        %534 = vset.pattern.permute.xlu0 1
        %535 = vperm.xlu0 %534, %v515
        %v536 = vpop.permute.xlu0 %535
        %538 = vset.pattern.permute.xlu0 1
        %539 = vperm.xlu0 %538, %v516
        %v540 = vpop.permute.xlu0 %539
        %v542 = vlaneseq
        %v543 = vshrl.u32 %v542, 7
        %v544 = vsub.s32 1, %v543
        %v545 = vrot.slane %v517, %v544
        %v546 = vmul.f32 %v536, %v545
        %v547 = vmul.f32 %v540, %v545
        %v548 = vadd.f32 %v532, %v546
        %v549 = vadd.f32 %v533, %v547
        %550 = vset.pattern.permute.xlu0 2
        %551 = vperm.xlu0 %550, %v515
        %v552 = vpop.permute.xlu0 %551
        %554 = vset.pattern.permute.xlu0 2
        %555 = vperm.xlu0 %554, %v516
        %v556 = vpop.permute.xlu0 %555
        %v558 = vlaneseq
        %v559 = vshrl.u32 %v558, 7
        %v560 = vsub.s32 2, %v559
        %v561 = vrot.slane %v517, %v560
        %v562 = vmul.f32 %v552, %v561
        %v563 = vmul.f32 %v556, %v561
        %v564 = vadd.f32 %v548, %v562
        %v565 = vadd.f32 %v549, %v563
        %v566 = vld [vmem:[%s2] sm:$0x1]
        %v568 = vlaneseq
        %v569 = vshrl.u32 %v568, 7
        %v570 = vsub.s32 0, %v569
        %v571 = vrot.slane %v566, %v570
        %v573 = vadd.f32 %v564, %v571
        %v574 = vadd.f32 %v565, %v571
        %v575 = vmax.f32 %v573, 0.0
        %v576 = vmax.f32 %v574, 0.0
        %v577 = vpack.c.bf16 %v576, %v575
        %v578 = vld [vmem:[%s3] sm:$0xf]
        %v579 = vld [vmem:[%s3 + $0x4] sm:$0xf]
        %v580 = vld [vmem:[%s3 + $0x8] sm:$0xf]
        %v581 = vld [vmem:[%s3 + $0xc] sm:$0xf]
        %v582 = vld [vmem:[%s3 + $0x10] sm:$0xf]
        %v583 = vld [vmem:[%s3 + $0x14] sm:$0xf]
        %v584 = vld [vmem:[%s3 + $0x18] sm:$0xf]
        %v585 = vld [vmem:[%s3 + $0x1c] sm:$0xf]
        %v586 = vld [vmem:[%s4] sm:$0x1]
        %v588 = vlaneseq
        %v589 = vshrl.u32 %v588, 7
        %v590 = vsub.s32 0, %v589
        %v591 = vrot.slane %v586, %v590
        %v601 = vunpack.c.l.b16 %v578
        %v602 = vunpack.c.l.b16 %v579
        %v603 = vunpack.c.l.b16 %v580
        %v604 = vunpack.c.l.b16 %v581
        %v605 = vunpack.c.l.b16 %v582
        %v606 = vunpack.c.l.b16 %v583
        %v607 = vunpack.c.l.b16 %v584
        %v608 = vunpack.c.l.b16 %v585
        %v609 = vpack.c.b16 %v602, %v601
        %v610 = vpack.c.b16 %v604, %v603
        %v611 = vpack.c.b16 %v606, %v605
        %v612 = vpack.c.b16 %v608, %v607
        %vm617 = vcmask 523264
        %v619 = vsel %vm617, %v577, 0
        %621 = vmatprep.subr.bf16.mxu0 0
        %622 = vmatpush1.bf16.msra.mxu0 0
        %623 = vmatprep.subr.bf16.mxu0 0
        %624 = vmatpush1.bf16.msra.mxu0 0
        %625 = vmatprep.subr.bf16.mxu0 0
        %626 = vmatpush1.bf16.msra.mxu0 0
        %627 = vmatprep.subr.bf16.mxu0 0
        %628 = vmatpush1.bf16.msra.mxu0 0
        %629 = vmatprep.subr.bf16.mxu0 0
        %630 = vmatpush1.bf16.msra.mxu0 %v612
        %631 = vmatprep.subr.bf16.mxu0 0
        %632 = vmatpush1.bf16.msra.mxu0 %v611
        %633 = vmatprep.subr.bf16.mxu0 0
        %634 = vmatpush1.bf16.msra.mxu0 %v610
        %635 = vmatprep.subr.bf16.mxu0 0
        %636 = vmatpush1.bf16.msra.mxu0 %v609
        %637 = vmatprep.subr.bf16.mxu0 0
        %638 = vmatpush2.bf16.msra.mxu0 0
        %639 = vmatprep.subr.bf16.mxu0 0
        %640 = vmatpush2.bf16.msra.mxu0 0
        %641 = vmatprep.subr.bf16.mxu0 0
        %642 = vmatpush2.bf16.msra.mxu0 0
        %643 = vmatprep.subr.bf16.mxu0 0
        %644 = vmatpush2.bf16.msra.mxu0 0
        %645 = vmatprep.subr.bf16.mxu0 0
        %646 = vmatpush2.bf16.msra.mxu0 0
        %647 = vmatprep.subr.bf16.mxu0 0
        %648 = vmatpush2.bf16.msra.mxu0 0
        %649 = vmatprep.subr.bf16.mxu0 0
        %650 = vmatpush2.bf16.msra.mxu0 0
        %651 = vmatprep.subr.bf16.mxu0 0
        %652 = vmatpush2.bf16.msra.mxu0 0
        %653 = vmatprep.mubr.bf16.mxu0 0
        %654 = vmatmul.mubr.bf16.gmra.mxu0 %v619
        %v655 = vpop.f32.mrf.mxu0
        %v656 = vadd.f32 %v591, %v655
        %v657 = vpop.f32.mrf.mxu0
        %v658 = vpop.f32.mrf.mxu0
        %v659 = vadd.f32 %v591, %v658
        %v660 = vpop.f32.mrf.mxu0
        %661 = vdwg.mxu0
        %v662 = vmax.f32 %v656, 0.0
        %v663 = vmax.f32 %v659, 0.0
        %v664 = vpack.c.bf16 %v663, %v662
        %v665 = vld [vmem:[#allocation3] sm:$0xff]
        %v666 = vld [vmem:[#allocation3 + $0x8] sm:$0xff]
        %v667 = vld [vmem:[#allocation3 + $0x10] sm:$0xff]
        %v668 = vld [vmem:[#allocation3 + $0x18] sm:$0xff]
        %v669 = vld [vmem:[#allocation3 + $0x20] sm:$0xff]
        %v670 = vld [vmem:[#allocation3 + $0x28] sm:$0xff]
        %v671 = vld [vmem:[#allocation3 + $0x30] sm:$0xff]
        %v672 = vld [vmem:[#allocation3 + $0x38] sm:$0xff]
        %v673 = vld [vmem:[#allocation3 + $0x40] sm:$0xff]
        %v674 = vld [vmem:[#allocation3 + $0x48] sm:$0xff]
        %v675 = vld [vmem:[#allocation3 + $0x50] sm:$0xff]
        %v676 = vld [vmem:[#allocation3 + $0x58] sm:$0xff]
        %v677 = vld [vmem:[#allocation3 + $0x60] sm:$0xff]
        %v678 = vld [vmem:[#allocation3 + $0x68] sm:$0xff]
        %v679 = vld [vmem:[#allocation3 + $0x70] sm:$0xff]
        %v680 = vld [vmem:[#allocation3 + $0x78] sm:$0xff]
        %v681 = vld [vmem:[#allocation3 + $0x80] sm:$0xff]
        %v682 = vld [vmem:[#allocation3 + $0x88] sm:$0xff]
        %v683 = vld [vmem:[#allocation3 + $0x90] sm:$0xff]
        %v684 = vld [vmem:[#allocation3 + $0x98] sm:$0xff]
        %v685 = vld [vmem:[#allocation3 + $0xa0] sm:$0xff]
        %v686 = vld [vmem:[#allocation3 + $0xa8] sm:$0xff]
        %v687 = vld [vmem:[#allocation3 + $0xb0] sm:$0xff]
        %v688 = vld [vmem:[#allocation3 + $0xb8] sm:$0xff]
        %v689 = vld [vmem:[#allocation3 + $0xc0] sm:$0xff]
        %v690 = vld [vmem:[#allocation3 + $0xc8] sm:$0xff]
        %v691 = vld [vmem:[#allocation3 + $0xd0] sm:$0xff]
        %v692 = vld [vmem:[#allocation3 + $0xd8] sm:$0xff]
        %v693 = vld [vmem:[#allocation3 + $0xe0] sm:$0xff]
        %v694 = vld [vmem:[#allocation3 + $0xe8] sm:$0xff]
        %v695 = vld [vmem:[#allocation3 + $0xf0] sm:$0xff]
        %v696 = vld [vmem:[#allocation3 + $0xf8] sm:$0xff]
        %v697 = vld [vmem:[#allocation3 + $0x100] sm:$0xff]
        %v698 = vld [vmem:[#allocation3 + $0x108] sm:$0xff]
        %v699 = vld [vmem:[#allocation3 + $0x110] sm:$0xff]
        %v700 = vld [vmem:[#allocation3 + $0x118] sm:$0xff]
        %v701 = vld [vmem:[#allocation3 + $0x120] sm:$0xff]
        %v702 = vld [vmem:[#allocation3 + $0x128] sm:$0xff]
        %v703 = vld [vmem:[#allocation3 + $0x130] sm:$0xff]
        %v704 = vld [vmem:[#allocation3 + $0x138] sm:$0xff]
        %v705 = vld [vmem:[#allocation3 + $0x140] sm:$0xff]
        %v706 = vld [vmem:[#allocation3 + $0x148] sm:$0xff]
        %v707 = vld [vmem:[#allocation3 + $0x150] sm:$0xff]
        %v708 = vld [vmem:[#allocation3 + $0x158] sm:$0xff]
        %v709 = vld [vmem:[#allocation3 + $0x160] sm:$0xff]
        %v710 = vld [vmem:[#allocation3 + $0x168] sm:$0xff]
        %v711 = vld [vmem:[#allocation3 + $0x170] sm:$0xff]
        %v712 = vld [vmem:[#allocation3 + $0x178] sm:$0xff]
        %v713 = vld [vmem:[#allocation3 + $0x180] sm:$0xff]
        %v714 = vld [vmem:[#allocation3 + $0x188] sm:$0xff]
        %v715 = vld [vmem:[#allocation3 + $0x190] sm:$0xff]
        %v716 = vld [vmem:[#allocation3 + $0x198] sm:$0xff]
        %v717 = vld [vmem:[#allocation3 + $0x1a0] sm:$0xff]
        %v718 = vld [vmem:[#allocation3 + $0x1a8] sm:$0xff]
        %v719 = vld [vmem:[#allocation3 + $0x1b0] sm:$0xff]
        %v720 = vld [vmem:[#allocation3 + $0x1b8] sm:$0xff]
        %v721 = vld [vmem:[#allocation3 + $0x1c0] sm:$0xff]
        %v722 = vld [vmem:[#allocation3 + $0x1c8] sm:$0xff]
        %v723 = vld [vmem:[#allocation3 + $0x1d0] sm:$0xff]
        %v724 = vld [vmem:[#allocation3 + $0x1d8] sm:$0xff]
        %v725 = vld [vmem:[#allocation3 + $0x1e0] sm:$0xff]
        %v726 = vld [vmem:[#allocation3 + $0x1e8] sm:$0xff]
        %v727 = vld [vmem:[#allocation3 + $0x1f0] sm:$0xff]
        %v728 = vld [vmem:[#allocation3 + $0x1f8] sm:$0xff]
        %v729 = vld [vmem:[%s6] sm:$0xff]
        %v731 = vlaneseq
        %v732 = vshrl.u32 %v731, 7
        %v733 = vsub.s32 0, %v732
        %v734 = vrot.slane %v729, %v733
        %v735 = vlaneseq
        %v736 = vshrl.u32 %v735, 7
        %v737 = vsub.s32 1, %v736
        %v738 = vrot.slane %v729, %v737
        %v739 = vlaneseq
        %v740 = vshrl.u32 %v739, 7
        %v741 = vsub.s32 2, %v740
        %v742 = vrot.slane %v729, %v741
        %v743 = vlaneseq
        %v744 = vshrl.u32 %v743, 7
        %v745 = vsub.s32 3, %v744
        %v746 = vrot.slane %v729, %v745
        %v747 = vlaneseq
        %v748 = vshrl.u32 %v747, 7
        %v749 = vsub.s32 4, %v748
        %v750 = vrot.slane %v729, %v749
        %v751 = vlaneseq
        %v752 = vshrl.u32 %v751, 7
        %v753 = vsub.s32 5, %v752
        %v754 = vrot.slane %v729, %v753
        %v755 = vlaneseq
        %v756 = vshrl.u32 %v755, 7
        %v757 = vsub.s32 6, %v756
        %v758 = vrot.slane %v729, %v757
        %v759 = vlaneseq
        %v760 = vshrl.u32 %v759, 7
        %v761 = vsub.s32 7, %v760
        %v762 = vrot.slane %v729, %v761
        %v835 = vunpack.c.l.b16 %v665
        %v836 = vunpack.c.h.b16 %v665
        %v837 = vunpack.c.l.b16 %v666
        %v838 = vunpack.c.h.b16 %v666
        %v839 = vunpack.c.l.b16 %v667
        %v840 = vunpack.c.h.b16 %v667
        %v841 = vunpack.c.l.b16 %v668
        %v842 = vunpack.c.h.b16 %v668
        %v843 = vunpack.c.l.b16 %v669
        %v844 = vunpack.c.h.b16 %v669
        %v845 = vunpack.c.l.b16 %v670
        %v846 = vunpack.c.h.b16 %v670
        %v847 = vunpack.c.l.b16 %v671
        %v848 = vunpack.c.h.b16 %v671
        %v849 = vunpack.c.l.b16 %v672
        %v850 = vunpack.c.h.b16 %v672
        %v851 = vunpack.c.l.b16 %v673
        %v852 = vunpack.c.h.b16 %v673
        %v853 = vunpack.c.l.b16 %v674
        %v854 = vunpack.c.h.b16 %v674
        %v855 = vunpack.c.l.b16 %v675
        %v856 = vunpack.c.h.b16 %v675
        %v857 = vunpack.c.l.b16 %v676
        %v858 = vunpack.c.h.b16 %v676
        %v859 = vunpack.c.l.b16 %v677
        %v860 = vunpack.c.h.b16 %v677
        %v861 = vunpack.c.l.b16 %v678
        %v862 = vunpack.c.h.b16 %v678
        %v863 = vunpack.c.l.b16 %v679
        %v864 = vunpack.c.h.b16 %v679
        %v865 = vunpack.c.l.b16 %v680
        %v866 = vunpack.c.h.b16 %v680
        %v867 = vunpack.c.l.b16 %v681
        %v868 = vunpack.c.h.b16 %v681
        %v869 = vunpack.c.l.b16 %v682
        %v870 = vunpack.c.h.b16 %v682
        %v871 = vunpack.c.l.b16 %v683
        %v872 = vunpack.c.h.b16 %v683
        %v873 = vunpack.c.l.b16 %v684
        %v874 = vunpack.c.h.b16 %v684
        %v875 = vunpack.c.l.b16 %v685
        %v876 = vunpack.c.h.b16 %v685
        %v877 = vunpack.c.l.b16 %v686
        %v878 = vunpack.c.h.b16 %v686
        %v879 = vunpack.c.l.b16 %v687
        %v880 = vunpack.c.h.b16 %v687
        %v881 = vunpack.c.l.b16 %v688
        %v882 = vunpack.c.h.b16 %v688
        %v883 = vunpack.c.l.b16 %v689
        %v884 = vunpack.c.h.b16 %v689
        %v885 = vunpack.c.l.b16 %v690
        %v886 = vunpack.c.h.b16 %v690
        %v887 = vunpack.c.l.b16 %v691
        %v888 = vunpack.c.h.b16 %v691
        %v889 = vunpack.c.l.b16 %v692
        %v890 = vunpack.c.h.b16 %v692
        %v891 = vunpack.c.l.b16 %v693
        %v892 = vunpack.c.h.b16 %v693
        %v893 = vunpack.c.l.b16 %v694
        %v894 = vunpack.c.h.b16 %v694
        %v895 = vunpack.c.l.b16 %v695
        %v896 = vunpack.c.h.b16 %v695
        %v897 = vunpack.c.l.b16 %v696
        %v898 = vunpack.c.h.b16 %v696
        %v899 = vunpack.c.l.b16 %v697
        %v900 = vunpack.c.h.b16 %v697
        %v901 = vunpack.c.l.b16 %v698
        %v902 = vunpack.c.h.b16 %v698
        %v903 = vunpack.c.l.b16 %v699
        %v904 = vunpack.c.h.b16 %v699
        %v905 = vunpack.c.l.b16 %v700
        %v906 = vunpack.c.h.b16 %v700
        %v907 = vunpack.c.l.b16 %v701
        %v908 = vunpack.c.h.b16 %v701
        %v909 = vunpack.c.l.b16 %v702
        %v910 = vunpack.c.h.b16 %v702
        %v911 = vunpack.c.l.b16 %v703
        %v912 = vunpack.c.h.b16 %v703
        %v913 = vunpack.c.l.b16 %v704
        %v914 = vunpack.c.h.b16 %v704
        %v915 = vunpack.c.l.b16 %v705
        %v916 = vunpack.c.h.b16 %v705
        %v917 = vunpack.c.l.b16 %v706
        %v918 = vunpack.c.h.b16 %v706
        %v919 = vunpack.c.l.b16 %v707
        %v920 = vunpack.c.h.b16 %v707
        %v921 = vunpack.c.l.b16 %v708
        %v922 = vunpack.c.h.b16 %v708
        %v923 = vunpack.c.l.b16 %v709
        %v924 = vunpack.c.h.b16 %v709
        %v925 = vunpack.c.l.b16 %v710
        %v926 = vunpack.c.h.b16 %v710
        %v927 = vunpack.c.l.b16 %v711
        %v928 = vunpack.c.h.b16 %v711
        %v929 = vunpack.c.l.b16 %v712
        %v930 = vunpack.c.h.b16 %v712
        %v931 = vunpack.c.l.b16 %v713
        %v932 = vunpack.c.h.b16 %v713
        %v933 = vunpack.c.l.b16 %v714
        %v934 = vunpack.c.h.b16 %v714
        %v935 = vunpack.c.l.b16 %v715
        %v936 = vunpack.c.h.b16 %v715
        %v937 = vunpack.c.l.b16 %v716
        %v938 = vunpack.c.h.b16 %v716
        %v939 = vunpack.c.l.b16 %v717
        %v940 = vunpack.c.h.b16 %v717
        %v941 = vunpack.c.l.b16 %v718
        %v942 = vunpack.c.h.b16 %v718
        %v943 = vunpack.c.l.b16 %v719
        %v944 = vunpack.c.h.b16 %v719
        %v945 = vunpack.c.l.b16 %v720
        %v946 = vunpack.c.h.b16 %v720
        %v947 = vunpack.c.l.b16 %v721
        %v948 = vunpack.c.h.b16 %v721
        %v949 = vunpack.c.l.b16 %v722
        %v950 = vunpack.c.h.b16 %v722
        %v951 = vunpack.c.l.b16 %v723
        %v952 = vunpack.c.h.b16 %v723
        %v953 = vunpack.c.l.b16 %v724
        %v954 = vunpack.c.h.b16 %v724
        %v955 = vunpack.c.l.b16 %v725
        %v956 = vunpack.c.h.b16 %v725
        %v957 = vunpack.c.l.b16 %v726
        %v958 = vunpack.c.h.b16 %v726
        %v959 = vunpack.c.l.b16 %v727
        %v960 = vunpack.c.h.b16 %v727
        %v961 = vunpack.c.l.b16 %v728
        %v962 = vunpack.c.h.b16 %v728
        %v963 = vpack.c.b16 %v843, %v835
        %v964 = vpack.c.b16 %v844, %v836
        %v965 = vpack.c.b16 %v845, %v837
        %v966 = vpack.c.b16 %v846, %v838
        %v967 = vpack.c.b16 %v847, %v839
        %v968 = vpack.c.b16 %v848, %v840
        %v969 = vpack.c.b16 %v849, %v841
        %v970 = vpack.c.b16 %v850, %v842
        %v971 = vpack.c.b16 %v859, %v851
        %v972 = vpack.c.b16 %v860, %v852
        %v973 = vpack.c.b16 %v861, %v853
        %v974 = vpack.c.b16 %v862, %v854
        %v975 = vpack.c.b16 %v863, %v855
        %v976 = vpack.c.b16 %v864, %v856
        %v977 = vpack.c.b16 %v865, %v857
        %v978 = vpack.c.b16 %v866, %v858
        %v979 = vpack.c.b16 %v875, %v867
        %v980 = vpack.c.b16 %v876, %v868
        %v981 = vpack.c.b16 %v877, %v869
        %v982 = vpack.c.b16 %v878, %v870
        %v983 = vpack.c.b16 %v879, %v871
        %v984 = vpack.c.b16 %v880, %v872
        %v985 = vpack.c.b16 %v881, %v873
        %v986 = vpack.c.b16 %v882, %v874
        %v987 = vpack.c.b16 %v891, %v883
        %v988 = vpack.c.b16 %v892, %v884
        %v989 = vpack.c.b16 %v893, %v885
        %v990 = vpack.c.b16 %v894, %v886
        %v991 = vpack.c.b16 %v895, %v887
        %v992 = vpack.c.b16 %v896, %v888
        %v993 = vpack.c.b16 %v897, %v889
        %v994 = vpack.c.b16 %v898, %v890
        %v995 = vpack.c.b16 %v907, %v899
        %v996 = vpack.c.b16 %v908, %v900
        %v997 = vpack.c.b16 %v909, %v901
        %v998 = vpack.c.b16 %v910, %v902
        %v999 = vpack.c.b16 %v911, %v903
        %v1000 = vpack.c.b16 %v912, %v904
        %v1001 = vpack.c.b16 %v913, %v905
        %v1002 = vpack.c.b16 %v914, %v906
        %v1003 = vpack.c.b16 %v923, %v915
        %v1004 = vpack.c.b16 %v924, %v916
        %v1005 = vpack.c.b16 %v925, %v917
        %v1006 = vpack.c.b16 %v926, %v918
        %v1007 = vpack.c.b16 %v927, %v919
        %v1008 = vpack.c.b16 %v928, %v920
        %v1009 = vpack.c.b16 %v929, %v921
        %v1010 = vpack.c.b16 %v930, %v922
        %v1011 = vpack.c.b16 %v939, %v931
        %v1012 = vpack.c.b16 %v940, %v932
        %v1013 = vpack.c.b16 %v941, %v933
        %v1014 = vpack.c.b16 %v942, %v934
        %v1015 = vpack.c.b16 %v943, %v935
        %v1016 = vpack.c.b16 %v944, %v936
        %v1017 = vpack.c.b16 %v945, %v937
        %v1018 = vpack.c.b16 %v946, %v938
        %v1019 = vpack.c.b16 %v955, %v947
        %v1020 = vpack.c.b16 %v956, %v948
        %v1021 = vpack.c.b16 %v957, %v949
        %v1022 = vpack.c.b16 %v958, %v950
        %v1023 = vpack.c.b16 %v959, %v951
        %v1024 = vpack.c.b16 %v960, %v952
        %v1025 = vpack.c.b16 %v961, %v953
        %v1026 = vpack.c.b16 %v962, %v954
        %1091 = vmatprep.subr.bf16.mxu0 %v1020
        %1092 = vmatpush1.bf16.msra.mxu0 %v1019
        %1093 = vmatprep.subr.bf16.mxu0 %v1012
        %1094 = vmatpush1.bf16.msra.mxu0 %v1011
        %1095 = vmatprep.subr.bf16.mxu0 %v1004
        %1096 = vmatpush1.bf16.msra.mxu0 %v1003
        %1097 = vmatprep.subr.bf16.mxu0 %v996
        %1098 = vmatpush1.bf16.msra.mxu0 %v995
        %1099 = vmatprep.subr.bf16.mxu0 %v988
        %1100 = vmatpush1.bf16.msra.mxu0 %v987
        %1101 = vmatprep.subr.bf16.mxu0 %v980
        %1102 = vmatpush1.bf16.msra.mxu0 %v979
        %1103 = vmatprep.subr.bf16.mxu0 %v972
        %1104 = vmatpush1.bf16.msra.mxu0 %v971
        %1105 = vmatprep.subr.bf16.mxu0 %v964
        %1106 = vmatpush1.bf16.msra.mxu0 %v963
        %1107 = vmatprep.subr.bf16.mxu0 0
        %1108 = vmatpush2.bf16.msra.mxu0 0
        %1109 = vmatprep.subr.bf16.mxu0 0
        %1110 = vmatpush2.bf16.msra.mxu0 0
        %1111 = vmatprep.subr.bf16.mxu0 0
        %1112 = vmatpush2.bf16.msra.mxu0 0
        %1113 = vmatprep.subr.bf16.mxu0 0
        %1114 = vmatpush2.bf16.msra.mxu0 0
        %1115 = vmatprep.subr.bf16.mxu0 0
        %1116 = vmatpush2.bf16.msra.mxu0 0
        %1117 = vmatprep.subr.bf16.mxu0 0
        %1118 = vmatpush2.bf16.msra.mxu0 0
        %1119 = vmatprep.subr.bf16.mxu0 0
        %1120 = vmatpush2.bf16.msra.mxu0 0
        %1121 = vmatprep.subr.bf16.mxu0 0
        %1122 = vmatpush2.bf16.msra.mxu0 0
        %1123 = vmatprep.mubr.bf16.mxu0 0
        %1124 = vmatmul.mubr.bf16.gmra.mxu0 %v664
        %v1125 = vpop.f32.mrf.mxu0
        %v1126 = vadd.f32 %v734, %v1125
        %v1127 = vpop.f32.mrf.mxu0
        %v1128 = vadd.f32 %v738, %v1127
        %v1129 = vpop.f32.mrf.mxu0
        %v1130 = vadd.f32 %v734, %v1129
        %v1131 = vpop.f32.mrf.mxu0
        %v1132 = vadd.f32 %v738, %v1131
        %1133 = vdwg.mxu0
        %1134 = vmatprep.subr.bf16.mxu0 %v1022
        %1135 = vmatpush1.bf16.msra.mxu0 %v1021
        %1136 = vmatprep.subr.bf16.mxu0 %v1014
        %1137 = vmatpush1.bf16.msra.mxu0 %v1013
        %1138 = vmatprep.subr.bf16.mxu0 %v1006
        %1139 = vmatpush1.bf16.msra.mxu0 %v1005
        %1140 = vmatprep.subr.bf16.mxu0 %v998
        %1141 = vmatpush1.bf16.msra.mxu0 %v997
        %1142 = vmatprep.subr.bf16.mxu0 %v990
        %1143 = vmatpush1.bf16.msra.mxu0 %v989
        %1144 = vmatprep.subr.bf16.mxu0 %v982
        %1145 = vmatpush1.bf16.msra.mxu0 %v981
        %1146 = vmatprep.subr.bf16.mxu0 %v974
        %1147 = vmatpush1.bf16.msra.mxu0 %v973
        %1148 = vmatprep.subr.bf16.mxu0 %v966
        %1149 = vmatpush1.bf16.msra.mxu0 %v965
        %1150 = vmatprep.subr.bf16.mxu0 0
        %1151 = vmatpush2.bf16.msra.mxu0 0
        %1152 = vmatprep.subr.bf16.mxu0 0
        %1153 = vmatpush2.bf16.msra.mxu0 0
        %1154 = vmatprep.subr.bf16.mxu0 0
        %1155 = vmatpush2.bf16.msra.mxu0 0
        %1156 = vmatprep.subr.bf16.mxu0 0
        %1157 = vmatpush2.bf16.msra.mxu0 0
        %1158 = vmatprep.subr.bf16.mxu0 0
        %1159 = vmatpush2.bf16.msra.mxu0 0
        %1160 = vmatprep.subr.bf16.mxu0 0
        %1161 = vmatpush2.bf16.msra.mxu0 0
        %1162 = vmatprep.subr.bf16.mxu0 0
        %1163 = vmatpush2.bf16.msra.mxu0 0
        %1164 = vmatprep.subr.bf16.mxu0 0
        %1165 = vmatpush2.bf16.msra.mxu0 0
        %1166 = vmatprep.mubr.bf16.mxu0 0
        %1167 = vmatmul.mubr.bf16.gmra.mxu0 %v664
        %v1168 = vpop.f32.mrf.mxu0
        %v1169 = vadd.f32 %v742, %v1168
        %v1170 = vpop.f32.mrf.mxu0
        %v1171 = vadd.f32 %v746, %v1170
        %v1172 = vpop.f32.mrf.mxu0
        %v1173 = vadd.f32 %v742, %v1172
        %v1174 = vpop.f32.mrf.mxu0
        %v1175 = vadd.f32 %v746, %v1174
        %1176 = vdwg.mxu0
        %1177 = vmatprep.subr.bf16.mxu0 %v1024
        %1178 = vmatpush1.bf16.msra.mxu0 %v1023
        %1179 = vmatprep.subr.bf16.mxu0 %v1016
        %1180 = vmatpush1.bf16.msra.mxu0 %v1015
        %1181 = vmatprep.subr.bf16.mxu0 %v1008
        %1182 = vmatpush1.bf16.msra.mxu0 %v1007
        %1183 = vmatprep.subr.bf16.mxu0 %v1000
        %1184 = vmatpush1.bf16.msra.mxu0 %v999
        %1185 = vmatprep.subr.bf16.mxu0 %v992
        %1186 = vmatpush1.bf16.msra.mxu0 %v991
        %1187 = vmatprep.subr.bf16.mxu0 %v984
        %1188 = vmatpush1.bf16.msra.mxu0 %v983
        %1189 = vmatprep.subr.bf16.mxu0 %v976
        %1190 = vmatpush1.bf16.msra.mxu0 %v975
        %1191 = vmatprep.subr.bf16.mxu0 %v968
        %1192 = vmatpush1.bf16.msra.mxu0 %v967
        %1193 = vmatprep.subr.bf16.mxu0 0
        %1194 = vmatpush2.bf16.msra.mxu0 0
        %1195 = vmatprep.subr.bf16.mxu0 0
        %1196 = vmatpush2.bf16.msra.mxu0 0
        %1197 = vmatprep.subr.bf16.mxu0 0
        %1198 = vmatpush2.bf16.msra.mxu0 0
        %1199 = vmatprep.subr.bf16.mxu0 0
        %1200 = vmatpush2.bf16.msra.mxu0 0
        %1201 = vmatprep.subr.bf16.mxu0 0
        %1202 = vmatpush2.bf16.msra.mxu0 0
        %1203 = vmatprep.subr.bf16.mxu0 0
        %1204 = vmatpush2.bf16.msra.mxu0 0
        %1205 = vmatprep.subr.bf16.mxu0 0
        %1206 = vmatpush2.bf16.msra.mxu0 0
        %1207 = vmatprep.subr.bf16.mxu0 0
        %1208 = vmatpush2.bf16.msra.mxu0 0
        %1209 = vmatprep.mubr.bf16.mxu0 0
        %1210 = vmatmul.mubr.bf16.gmra.mxu0 %v664
        %v1211 = vpop.f32.mrf.mxu0
        %v1212 = vadd.f32 %v750, %v1211
        %v1213 = vpop.f32.mrf.mxu0
        %v1214 = vadd.f32 %v754, %v1213
        %v1215 = vpop.f32.mrf.mxu0
        %v1216 = vadd.f32 %v750, %v1215
        %v1217 = vpop.f32.mrf.mxu0
        %v1218 = vadd.f32 %v754, %v1217
        %1219 = vdwg.mxu0
        %1220 = vmatprep.subr.bf16.mxu0 %v1026
        %1221 = vmatpush1.bf16.msra.mxu0 %v1025
        %1222 = vmatprep.subr.bf16.mxu0 %v1018
        %1223 = vmatpush1.bf16.msra.mxu0 %v1017
        %1224 = vmatprep.subr.bf16.mxu0 %v1010
        %1225 = vmatpush1.bf16.msra.mxu0 %v1009
        %1226 = vmatprep.subr.bf16.mxu0 %v1002
        %1227 = vmatpush1.bf16.msra.mxu0 %v1001
        %1228 = vmatprep.subr.bf16.mxu0 %v994
        %1229 = vmatpush1.bf16.msra.mxu0 %v993
        %1230 = vmatprep.subr.bf16.mxu0 %v986
        %1231 = vmatpush1.bf16.msra.mxu0 %v985
        %1232 = vmatprep.subr.bf16.mxu0 %v978
        %1233 = vmatpush1.bf16.msra.mxu0 %v977
        %1234 = vmatprep.subr.bf16.mxu0 %v970
        %1235 = vmatpush1.bf16.msra.mxu0 %v969
        %1236 = vmatprep.subr.bf16.mxu0 0
        %1237 = vmatpush2.bf16.msra.mxu0 0
        %1238 = vmatprep.subr.bf16.mxu0 0
        %1239 = vmatpush2.bf16.msra.mxu0 0
        %1240 = vmatprep.subr.bf16.mxu0 0
        %1241 = vmatpush2.bf16.msra.mxu0 0
        %1242 = vmatprep.subr.bf16.mxu0 0
        %1243 = vmatpush2.bf16.msra.mxu0 0
        %1244 = vmatprep.subr.bf16.mxu0 0
        %1245 = vmatpush2.bf16.msra.mxu0 0
        %1246 = vmatprep.subr.bf16.mxu0 0
        %1247 = vmatpush2.bf16.msra.mxu0 0
        %1248 = vmatprep.subr.bf16.mxu0 0
        %1249 = vmatpush2.bf16.msra.mxu0 0
        %1250 = vmatprep.subr.bf16.mxu0 0
        %1251 = vmatpush2.bf16.msra.mxu0 0
        %1252 = vmatprep.mubr.bf16.mxu0 0
        %1253 = vmatmul.mubr.bf16.gmra.mxu0 %v664
        %v1254 = vpop.f32.mrf.mxu0
        %v1255 = vadd.f32 %v758, %v1254
        %v1256 = vpop.f32.mrf.mxu0
        %v1257 = vadd.f32 %v762, %v1256
        %v1258 = vpop.f32.mrf.mxu0
        %v1259 = vadd.f32 %v758, %v1258
        %v1260 = vpop.f32.mrf.mxu0
        %v1261 = vadd.f32 %v762, %v1260
        %1262 = vdwg.mxu0
        %v1263 = vmax.f32 %v1126, 0.0
        %v1264 = vmax.f32 %v1128, 0.0
        %v1265 = vmax.f32 %v1169, 0.0
        %v1266 = vmax.f32 %v1171, 0.0
        %v1267 = vmax.f32 %v1212, 0.0
        %v1268 = vmax.f32 %v1214, 0.0
        %v1269 = vmax.f32 %v1255, 0.0
        %v1270 = vmax.f32 %v1257, 0.0
        %v1271 = vmax.f32 %v1130, 0.0
        %v1272 = vmax.f32 %v1132, 0.0
        %v1273 = vmax.f32 %v1173, 0.0
        %v1274 = vmax.f32 %v1175, 0.0
        %v1275 = vmax.f32 %v1216, 0.0
        %v1276 = vmax.f32 %v1218, 0.0
        %v1277 = vmax.f32 %v1259, 0.0
        %v1278 = vmax.f32 %v1261, 0.0
        %v1279 = vld [vmem:[#allocation2] sm:$0xff]
        %v1280 = vmax.f32 %v1263, %v1271
        %v1281 = vrot.slane %v1280, 4
        %v1282 = vmax.f32 %v1280, %v1281
        %v1283 = vrot.slane %v1282, 2
        %v1284 = vmax.f32 %v1282, %v1283
        %v1285 = vrot.slane %v1284, 1
        %v1286 = vmax.f32 %v1284, %v1285
        %v1287 = vmax.f32 %v1264, %v1272
        %v1288 = vrot.slane %v1287, 4
        %v1289 = vmax.f32 %v1287, %v1288
        %v1290 = vrot.slane %v1289, 2
        %v1291 = vmax.f32 %v1289, %v1290
        %v1292 = vrot.slane %v1291, 1
        %v1293 = vmax.f32 %v1291, %v1292
        %v1294 = vmax.f32 %v1265, %v1273
        %v1295 = vrot.slane %v1294, 4
        %v1296 = vmax.f32 %v1294, %v1295
        %v1297 = vrot.slane %v1296, 2
        %v1298 = vmax.f32 %v1296, %v1297
        %v1299 = vrot.slane %v1298, 1
        %v1300 = vmax.f32 %v1298, %v1299
        %v1301 = vmax.f32 %v1266, %v1274
        %v1302 = vrot.slane %v1301, 4
        %v1303 = vmax.f32 %v1301, %v1302
        %v1304 = vrot.slane %v1303, 2
        %v1305 = vmax.f32 %v1303, %v1304
        %v1306 = vrot.slane %v1305, 1
        %v1307 = vmax.f32 %v1305, %v1306
        %v1308 = vmax.f32 %v1267, %v1275
        %v1309 = vrot.slane %v1308, 4
        %v1310 = vmax.f32 %v1308, %v1309
        %v1311 = vrot.slane %v1310, 2
        %v1312 = vmax.f32 %v1310, %v1311
        %v1313 = vrot.slane %v1312, 1
        %v1314 = vmax.f32 %v1312, %v1313
        %v1315 = vmax.f32 %v1268, %v1276
        %v1316 = vrot.slane %v1315, 4
        %v1317 = vmax.f32 %v1315, %v1316
        %v1318 = vrot.slane %v1317, 2
        %v1319 = vmax.f32 %v1317, %v1318
        %v1320 = vrot.slane %v1319, 1
        %v1321 = vmax.f32 %v1319, %v1320
        %v1322 = vmax.f32 %v1269, %v1277
        %v1323 = vrot.slane %v1322, 4
        %v1324 = vmax.f32 %v1322, %v1323
        %v1325 = vrot.slane %v1324, 2
        %v1326 = vmax.f32 %v1324, %v1325
        %v1327 = vrot.slane %v1326, 1
        %v1328 = vmax.f32 %v1326, %v1327
        %v1329 = vmax.f32 %v1270, %v1278
        %v1330 = vrot.slane %v1329, 4
        %v1331 = vmax.f32 %v1329, %v1330
        %v1332 = vrot.slane %v1331, 2
        %v1333 = vmax.f32 %v1331, %v1332
        %v1334 = vrot.slane %v1333, 1
        %v1335 = vmax.f32 %v1333, %v1334
        %v1344 = vcombine.low %v1286, %v1293
        %v1345 = vcombine.low %v1300, %v1307
        %v1346 = vcombine.low %v1314, %v1321
        %v1347 = vcombine.low %v1328, %v1335
        %v1349 = vunpack.c.l.s4 1966171168
        %v1350 = vunpack.c.0.s8 %v1349
        %v1351 = vlaneseq
        %v1352 = vshrl.u32 %v1351, 7
        %v1353 = vsub.s32 %v1350, %v1352
        %v1354 = vrot.slane %v1344, %v1353
        %v1356 = vunpack.c.l.s4 1966171168
        %v1357 = vunpack.c.0.s8 %v1356
        %v1358 = vlaneseq
        %v1359 = vshrl.u32 %v1358, 7
        %v1360 = vsub.s32 %v1357, %v1359
        %v1361 = vrot.slane %v1345, %v1360
        %v1363 = vunpack.c.l.s4 1966171168
        %v1364 = vunpack.c.0.s8 %v1363
        %v1365 = vlaneseq
        %v1366 = vshrl.u32 %v1365, 7
        %v1367 = vsub.s32 %v1364, %v1366
        %v1368 = vrot.slane %v1346, %v1367
        %v1370 = vunpack.c.l.s4 1966171168
        %v1371 = vunpack.c.0.s8 %v1370
        %v1372 = vlaneseq
        %v1373 = vshrl.u32 %v1372, 7
        %v1374 = vsub.s32 %v1371, %v1373
        %v1375 = vrot.slane %v1347, %v1374
        %v1376 = vcombine.low %v1354, %v1361
        %v1377 = vcombine.low %v1368, %v1375
        %v1379 = vunpack.c.l.s4 1966171168
        %v1380 = vunpack.c.0.s8 %v1379
        %v1381 = vlaneseq
        %v1382 = vshrl.u32 %v1381, 7
        %v1383 = vsub.s32 %v1380, %v1382
        %v1384 = vrot.slane %v1376, %v1383
        %v1386 = vunpack.c.l.s4 1966171168
        %v1387 = vunpack.c.0.s8 %v1386
        %v1388 = vlaneseq
        %v1389 = vshrl.u32 %v1388, 7
        %v1390 = vsub.s32 %v1387, %v1389
        %v1391 = vrot.slane %v1377, %v1390
        %v1392 = vcombine.low %v1384, %v1391
        %v1394 = vmax.f32 %v1279, %v1392
        %1395 = vst [vmem:[#allocation2] sm:$0xff] %v1394
        // Predicated region
        $region89: #{pointnet_densecls_forward.3} parent=71 // pred_check
          %p1396 = pneg %p510
        $region90: #{pointnet_densecls_forward.3} parent=71 // pred_check_branch
          %1398 = sbr.rel (%p1396) target = $region92
        $region91: #{pointnet_densecls_forward.3} parent=71 // pred_region
          %v1399 = vld [vmem:[#allocation2] sm:$0xff]
          %v1401 = vlaneseq
          %v1402 = vshrl.u32 %v1401, 7
          %v1403 = vsub.s32 0, %v1402
          %v1404 = vrot.slane %v1399, %v1403
          %v1405 = vlaneseq
          %v1406 = vshrl.u32 %v1405, 7
          %v1407 = vsub.s32 1, %v1406
          %v1408 = vrot.slane %v1399, %v1407
          %v1409 = vlaneseq
          %v1410 = vshrl.u32 %v1409, 7
          %v1411 = vsub.s32 2, %v1410
          %v1412 = vrot.slane %v1399, %v1411
          %v1413 = vlaneseq
          %v1414 = vshrl.u32 %v1413, 7
          %v1415 = vsub.s32 3, %v1414
          %v1416 = vrot.slane %v1399, %v1415
          %v1417 = vlaneseq
          %v1418 = vshrl.u32 %v1417, 7
          %v1419 = vsub.s32 4, %v1418
          %v1420 = vrot.slane %v1399, %v1419
          %v1421 = vlaneseq
          %v1422 = vshrl.u32 %v1421, 7
          %v1423 = vsub.s32 5, %v1422
          %v1424 = vrot.slane %v1399, %v1423
          %v1425 = vlaneseq
          %v1426 = vshrl.u32 %v1425, 7
          %v1427 = vsub.s32 6, %v1426
          %v1428 = vrot.slane %v1399, %v1427
          %v1429 = vlaneseq
          %v1430 = vshrl.u32 %v1429, 7
          %v1431 = vsub.s32 7, %v1430
          %v1432 = vrot.slane %v1399, %v1431
          %v1441 = vpack.c.bf16 %v1404, %v1404
          %v1442 = vpack.c.bf16 %v1408, %v1408
          %v1443 = vpack.c.bf16 %v1412, %v1412
          %v1444 = vpack.c.bf16 %v1416, %v1416
          %v1445 = vpack.c.bf16 %v1420, %v1420
          %v1446 = vpack.c.bf16 %v1424, %v1424
          %v1447 = vpack.c.bf16 %v1428, %v1428
          %v1448 = vpack.c.bf16 %v1432, %v1432
          %v1449 = vld [vmem:[#allocation5] sm:$0xff]
          %v1450 = vld [vmem:[#allocation5 + $0x8] sm:$0xff]
          %v1451 = vld [vmem:[#allocation5 + $0x10] sm:$0xff]
          %v1452 = vld [vmem:[#allocation5 + $0x18] sm:$0xff]
          %v1453 = vld [vmem:[#allocation5 + $0x20] sm:$0xff]
          %v1454 = vld [vmem:[#allocation5 + $0x28] sm:$0xff]
          %v1455 = vld [vmem:[#allocation5 + $0x30] sm:$0xff]
          %v1456 = vld [vmem:[#allocation5 + $0x38] sm:$0xff]
          %v1457 = vld [vmem:[#allocation5 + $0x40] sm:$0xff]
          %v1458 = vld [vmem:[#allocation5 + $0x48] sm:$0xff]
          %v1459 = vld [vmem:[#allocation5 + $0x50] sm:$0xff]
          %v1460 = vld [vmem:[#allocation5 + $0x58] sm:$0xff]
          %v1461 = vld [vmem:[#allocation5 + $0x60] sm:$0xff]
          %v1462 = vld [vmem:[#allocation5 + $0x68] sm:$0xff]
          %v1463 = vld [vmem:[#allocation5 + $0x70] sm:$0xff]
          %v1464 = vld [vmem:[#allocation5 + $0x78] sm:$0xff]
          %v1465 = vld [vmem:[#allocation5 + $0x80] sm:$0xff]
          %v1466 = vld [vmem:[#allocation5 + $0x88] sm:$0xff]
          %v1467 = vld [vmem:[#allocation5 + $0x90] sm:$0xff]
          %v1468 = vld [vmem:[#allocation5 + $0x98] sm:$0xff]
          %v1469 = vld [vmem:[#allocation5 + $0xa0] sm:$0xff]
          %v1470 = vld [vmem:[#allocation5 + $0xa8] sm:$0xff]
          %v1471 = vld [vmem:[#allocation5 + $0xb0] sm:$0xff]
          %v1472 = vld [vmem:[#allocation5 + $0xb8] sm:$0xff]
          %v1473 = vld [vmem:[#allocation5 + $0xc0] sm:$0xff]
          %v1474 = vld [vmem:[#allocation5 + $0xc8] sm:$0xff]
          %v1475 = vld [vmem:[#allocation5 + $0xd0] sm:$0xff]
          %v1476 = vld [vmem:[#allocation5 + $0xd8] sm:$0xff]
          %v1477 = vld [vmem:[#allocation5 + $0xe0] sm:$0xff]
          %v1478 = vld [vmem:[#allocation5 + $0xe8] sm:$0xff]
          %v1479 = vld [vmem:[#allocation5 + $0xf0] sm:$0xff]
          %v1480 = vld [vmem:[#allocation5 + $0xf8] sm:$0xff]
          %v1481 = vld [vmem:[#allocation5 + $0x100] sm:$0xff]
          %v1482 = vld [vmem:[#allocation5 + $0x108] sm:$0xff]
          %v1483 = vld [vmem:[#allocation5 + $0x110] sm:$0xff]
          %v1484 = vld [vmem:[#allocation5 + $0x118] sm:$0xff]
          %v1485 = vld [vmem:[#allocation5 + $0x120] sm:$0xff]
          %v1486 = vld [vmem:[#allocation5 + $0x128] sm:$0xff]
          %v1487 = vld [vmem:[#allocation5 + $0x130] sm:$0xff]
          %v1488 = vld [vmem:[#allocation5 + $0x138] sm:$0xff]
          %v1489 = vld [vmem:[#allocation5 + $0x140] sm:$0xff]
          %v1490 = vld [vmem:[#allocation5 + $0x148] sm:$0xff]
          %v1491 = vld [vmem:[#allocation5 + $0x150] sm:$0xff]
          %v1492 = vld [vmem:[#allocation5 + $0x158] sm:$0xff]
          %v1493 = vld [vmem:[#allocation5 + $0x160] sm:$0xff]
          %v1494 = vld [vmem:[#allocation5 + $0x168] sm:$0xff]
          %v1495 = vld [vmem:[#allocation5 + $0x170] sm:$0xff]
          %v1496 = vld [vmem:[#allocation5 + $0x178] sm:$0xff]
          %v1497 = vld [vmem:[#allocation5 + $0x180] sm:$0xff]
          %v1498 = vld [vmem:[#allocation5 + $0x188] sm:$0xff]
          %v1499 = vld [vmem:[#allocation5 + $0x190] sm:$0xff]
          %v1500 = vld [vmem:[#allocation5 + $0x198] sm:$0xff]
          %v1501 = vld [vmem:[#allocation5 + $0x1a0] sm:$0xff]
          %v1502 = vld [vmem:[#allocation5 + $0x1a8] sm:$0xff]
          %v1503 = vld [vmem:[#allocation5 + $0x1b0] sm:$0xff]
          %v1504 = vld [vmem:[#allocation5 + $0x1b8] sm:$0xff]
          %v1505 = vld [vmem:[#allocation5 + $0x1c0] sm:$0xff]
          %v1506 = vld [vmem:[#allocation5 + $0x1c8] sm:$0xff]
          %v1507 = vld [vmem:[#allocation5 + $0x1d0] sm:$0xff]
          %v1508 = vld [vmem:[#allocation5 + $0x1d8] sm:$0xff]
          %v1509 = vld [vmem:[#allocation5 + $0x1e0] sm:$0xff]
          %v1510 = vld [vmem:[#allocation5 + $0x1e8] sm:$0xff]
          %v1511 = vld [vmem:[#allocation5 + $0x1f0] sm:$0xff]
          %v1512 = vld [vmem:[#allocation5 + $0x1f8] sm:$0xff]
          %v1513 = vld [vmem:[#allocation5 + $0x200] sm:$0xff]
          %v1514 = vld [vmem:[#allocation5 + $0x208] sm:$0xff]
          %v1515 = vld [vmem:[#allocation5 + $0x210] sm:$0xff]
          %v1516 = vld [vmem:[#allocation5 + $0x218] sm:$0xff]
          %v1517 = vld [vmem:[#allocation5 + $0x220] sm:$0xff]
          %v1518 = vld [vmem:[#allocation5 + $0x228] sm:$0xff]
          %v1519 = vld [vmem:[#allocation5 + $0x230] sm:$0xff]
          %v1520 = vld [vmem:[#allocation5 + $0x238] sm:$0xff]
          %v1521 = vld [vmem:[#allocation5 + $0x240] sm:$0xff]
          %v1522 = vld [vmem:[#allocation5 + $0x248] sm:$0xff]
          %v1523 = vld [vmem:[#allocation5 + $0x250] sm:$0xff]
          %v1524 = vld [vmem:[#allocation5 + $0x258] sm:$0xff]
          %v1525 = vld [vmem:[#allocation5 + $0x260] sm:$0xff]
          %v1526 = vld [vmem:[#allocation5 + $0x268] sm:$0xff]
          %v1527 = vld [vmem:[#allocation5 + $0x270] sm:$0xff]
          %v1528 = vld [vmem:[#allocation5 + $0x278] sm:$0xff]
          %v1529 = vld [vmem:[#allocation5 + $0x280] sm:$0xff]
          %v1530 = vld [vmem:[#allocation5 + $0x288] sm:$0xff]
          %v1531 = vld [vmem:[#allocation5 + $0x290] sm:$0xff]
          %v1532 = vld [vmem:[#allocation5 + $0x298] sm:$0xff]
          %v1533 = vld [vmem:[#allocation5 + $0x2a0] sm:$0xff]
          %v1534 = vld [vmem:[#allocation5 + $0x2a8] sm:$0xff]
          %v1535 = vld [vmem:[#allocation5 + $0x2b0] sm:$0xff]
          %v1536 = vld [vmem:[#allocation5 + $0x2b8] sm:$0xff]
          %v1537 = vld [vmem:[#allocation5 + $0x2c0] sm:$0xff]
          %v1538 = vld [vmem:[#allocation5 + $0x2c8] sm:$0xff]
          %v1539 = vld [vmem:[#allocation5 + $0x2d0] sm:$0xff]
          %v1540 = vld [vmem:[#allocation5 + $0x2d8] sm:$0xff]
          %v1541 = vld [vmem:[#allocation5 + $0x2e0] sm:$0xff]
          %v1542 = vld [vmem:[#allocation5 + $0x2e8] sm:$0xff]
          %v1543 = vld [vmem:[#allocation5 + $0x2f0] sm:$0xff]
          %v1544 = vld [vmem:[#allocation5 + $0x2f8] sm:$0xff]
          %v1545 = vld [vmem:[#allocation5 + $0x300] sm:$0xff]
          %v1546 = vld [vmem:[#allocation5 + $0x308] sm:$0xff]
          %v1547 = vld [vmem:[#allocation5 + $0x310] sm:$0xff]
          %v1548 = vld [vmem:[#allocation5 + $0x318] sm:$0xff]
          %v1549 = vld [vmem:[#allocation5 + $0x320] sm:$0xff]
          %v1550 = vld [vmem:[#allocation5 + $0x328] sm:$0xff]
          %v1551 = vld [vmem:[#allocation5 + $0x330] sm:$0xff]
          %v1552 = vld [vmem:[#allocation5 + $0x338] sm:$0xff]
          %v1553 = vld [vmem:[#allocation5 + $0x340] sm:$0xff]
          %v1554 = vld [vmem:[#allocation5 + $0x348] sm:$0xff]
          %v1555 = vld [vmem:[#allocation5 + $0x350] sm:$0xff]
          %v1556 = vld [vmem:[#allocation5 + $0x358] sm:$0xff]
          %v1557 = vld [vmem:[#allocation5 + $0x360] sm:$0xff]
          %v1558 = vld [vmem:[#allocation5 + $0x368] sm:$0xff]
          %v1559 = vld [vmem:[#allocation5 + $0x370] sm:$0xff]
          %v1560 = vld [vmem:[#allocation5 + $0x378] sm:$0xff]
          %v1561 = vld [vmem:[#allocation5 + $0x380] sm:$0xff]
          %v1562 = vld [vmem:[#allocation5 + $0x388] sm:$0xff]
          %v1563 = vld [vmem:[#allocation5 + $0x390] sm:$0xff]
          %v1564 = vld [vmem:[#allocation5 + $0x398] sm:$0xff]
          %v1565 = vld [vmem:[#allocation5 + $0x3a0] sm:$0xff]
          %v1566 = vld [vmem:[#allocation5 + $0x3a8] sm:$0xff]
          %v1567 = vld [vmem:[#allocation5 + $0x3b0] sm:$0xff]
          %v1568 = vld [vmem:[#allocation5 + $0x3b8] sm:$0xff]
          %v1569 = vld [vmem:[#allocation5 + $0x3c0] sm:$0xff]
          %v1570 = vld [vmem:[#allocation5 + $0x3c8] sm:$0xff]
          %v1571 = vld [vmem:[#allocation5 + $0x3d0] sm:$0xff]
          %v1572 = vld [vmem:[#allocation5 + $0x3d8] sm:$0xff]
          %v1573 = vld [vmem:[#allocation5 + $0x3e0] sm:$0xff]
          %v1574 = vld [vmem:[#allocation5 + $0x3e8] sm:$0xff]
          %v1575 = vld [vmem:[#allocation5 + $0x3f0] sm:$0xff]
          %v1576 = vld [vmem:[#allocation5 + $0x3f8] sm:$0xff]
          %v1577 = vld [vmem:[#allocation5 + $0x400] sm:$0xff]
          %v1578 = vld [vmem:[#allocation5 + $0x408] sm:$0xff]
          %v1579 = vld [vmem:[#allocation5 + $0x410] sm:$0xff]
          %v1580 = vld [vmem:[#allocation5 + $0x418] sm:$0xff]
          %v1581 = vld [vmem:[#allocation5 + $0x420] sm:$0xff]
          %v1582 = vld [vmem:[#allocation5 + $0x428] sm:$0xff]
          %v1583 = vld [vmem:[#allocation5 + $0x430] sm:$0xff]
          %v1584 = vld [vmem:[#allocation5 + $0x438] sm:$0xff]
          %v1585 = vld [vmem:[#allocation5 + $0x440] sm:$0xff]
          %v1586 = vld [vmem:[#allocation5 + $0x448] sm:$0xff]
          %v1587 = vld [vmem:[#allocation5 + $0x450] sm:$0xff]
          %v1588 = vld [vmem:[#allocation5 + $0x458] sm:$0xff]
          %v1589 = vld [vmem:[#allocation5 + $0x460] sm:$0xff]
          %v1590 = vld [vmem:[#allocation5 + $0x468] sm:$0xff]
          %v1591 = vld [vmem:[#allocation5 + $0x470] sm:$0xff]
          %v1592 = vld [vmem:[#allocation5 + $0x478] sm:$0xff]
          %v1593 = vld [vmem:[#allocation5 + $0x480] sm:$0xff]
          %v1594 = vld [vmem:[#allocation5 + $0x488] sm:$0xff]
          %v1595 = vld [vmem:[#allocation5 + $0x490] sm:$0xff]
          %v1596 = vld [vmem:[#allocation5 + $0x498] sm:$0xff]
          %v1597 = vld [vmem:[#allocation5 + $0x4a0] sm:$0xff]
          %v1598 = vld [vmem:[#allocation5 + $0x4a8] sm:$0xff]
          %v1599 = vld [vmem:[#allocation5 + $0x4b0] sm:$0xff]
          %v1600 = vld [vmem:[#allocation5 + $0x4b8] sm:$0xff]
          %v1601 = vld [vmem:[#allocation5 + $0x4c0] sm:$0xff]
          %v1602 = vld [vmem:[#allocation5 + $0x4c8] sm:$0xff]
          %v1603 = vld [vmem:[#allocation5 + $0x4d0] sm:$0xff]
          %v1604 = vld [vmem:[#allocation5 + $0x4d8] sm:$0xff]
          %v1605 = vld [vmem:[#allocation5 + $0x4e0] sm:$0xff]
          %v1606 = vld [vmem:[#allocation5 + $0x4e8] sm:$0xff]
          %v1607 = vld [vmem:[#allocation5 + $0x4f0] sm:$0xff]
          %v1608 = vld [vmem:[#allocation5 + $0x4f8] sm:$0xff]
          %v1609 = vld [vmem:[#allocation5 + $0x500] sm:$0xff]
          %v1610 = vld [vmem:[#allocation5 + $0x508] sm:$0xff]
          %v1611 = vld [vmem:[#allocation5 + $0x510] sm:$0xff]
          %v1612 = vld [vmem:[#allocation5 + $0x518] sm:$0xff]
          %v1613 = vld [vmem:[#allocation5 + $0x520] sm:$0xff]
          %v1614 = vld [vmem:[#allocation5 + $0x528] sm:$0xff]
          %v1615 = vld [vmem:[#allocation5 + $0x530] sm:$0xff]
          %v1616 = vld [vmem:[#allocation5 + $0x538] sm:$0xff]
          %v1617 = vld [vmem:[#allocation5 + $0x540] sm:$0xff]
          %v1618 = vld [vmem:[#allocation5 + $0x548] sm:$0xff]
          %v1619 = vld [vmem:[#allocation5 + $0x550] sm:$0xff]
          %v1620 = vld [vmem:[#allocation5 + $0x558] sm:$0xff]
          %v1621 = vld [vmem:[#allocation5 + $0x560] sm:$0xff]
          %v1622 = vld [vmem:[#allocation5 + $0x568] sm:$0xff]
          %v1623 = vld [vmem:[#allocation5 + $0x570] sm:$0xff]
          %v1624 = vld [vmem:[#allocation5 + $0x578] sm:$0xff]
          %v1625 = vld [vmem:[#allocation5 + $0x580] sm:$0xff]
          %v1626 = vld [vmem:[#allocation5 + $0x588] sm:$0xff]
          %v1627 = vld [vmem:[#allocation5 + $0x590] sm:$0xff]
          %v1628 = vld [vmem:[#allocation5 + $0x598] sm:$0xff]
          %v1629 = vld [vmem:[#allocation5 + $0x5a0] sm:$0xff]
          %v1630 = vld [vmem:[#allocation5 + $0x5a8] sm:$0xff]
          %v1631 = vld [vmem:[#allocation5 + $0x5b0] sm:$0xff]
          %v1632 = vld [vmem:[#allocation5 + $0x5b8] sm:$0xff]
          %v1633 = vld [vmem:[#allocation5 + $0x5c0] sm:$0xff]
          %v1634 = vld [vmem:[#allocation5 + $0x5c8] sm:$0xff]
          %v1635 = vld [vmem:[#allocation5 + $0x5d0] sm:$0xff]
          %v1636 = vld [vmem:[#allocation5 + $0x5d8] sm:$0xff]
          %v1637 = vld [vmem:[#allocation5 + $0x5e0] sm:$0xff]
          %v1638 = vld [vmem:[#allocation5 + $0x5e8] sm:$0xff]
          %v1639 = vld [vmem:[#allocation5 + $0x5f0] sm:$0xff]
          %v1640 = vld [vmem:[#allocation5 + $0x5f8] sm:$0xff]
          %v1641 = vld [vmem:[#allocation5 + $0x600] sm:$0xff]
          %v1642 = vld [vmem:[#allocation5 + $0x608] sm:$0xff]
          %v1643 = vld [vmem:[#allocation5 + $0x610] sm:$0xff]
          %v1644 = vld [vmem:[#allocation5 + $0x618] sm:$0xff]
          %v1645 = vld [vmem:[#allocation5 + $0x620] sm:$0xff]
          %v1646 = vld [vmem:[#allocation5 + $0x628] sm:$0xff]
          %v1647 = vld [vmem:[#allocation5 + $0x630] sm:$0xff]
          %v1648 = vld [vmem:[#allocation5 + $0x638] sm:$0xff]
          %v1649 = vld [vmem:[#allocation5 + $0x640] sm:$0xff]
          %v1650 = vld [vmem:[#allocation5 + $0x648] sm:$0xff]
          %v1651 = vld [vmem:[#allocation5 + $0x650] sm:$0xff]
          %v1652 = vld [vmem:[#allocation5 + $0x658] sm:$0xff]
          %v1653 = vld [vmem:[#allocation5 + $0x660] sm:$0xff]
          %v1654 = vld [vmem:[#allocation5 + $0x668] sm:$0xff]
          %v1655 = vld [vmem:[#allocation5 + $0x670] sm:$0xff]
          %v1656 = vld [vmem:[#allocation5 + $0x678] sm:$0xff]
          %v1657 = vld [vmem:[#allocation5 + $0x680] sm:$0xff]
          %v1658 = vld [vmem:[#allocation5 + $0x688] sm:$0xff]
          %v1659 = vld [vmem:[#allocation5 + $0x690] sm:$0xff]
          %v1660 = vld [vmem:[#allocation5 + $0x698] sm:$0xff]
          %v1661 = vld [vmem:[#allocation5 + $0x6a0] sm:$0xff]
          %v1662 = vld [vmem:[#allocation5 + $0x6a8] sm:$0xff]
          %v1663 = vld [vmem:[#allocation5 + $0x6b0] sm:$0xff]
          %v1664 = vld [vmem:[#allocation5 + $0x6b8] sm:$0xff]
          %v1665 = vld [vmem:[#allocation5 + $0x6c0] sm:$0xff]
          %v1666 = vld [vmem:[#allocation5 + $0x6c8] sm:$0xff]
          %v1667 = vld [vmem:[#allocation5 + $0x6d0] sm:$0xff]
          %v1668 = vld [vmem:[#allocation5 + $0x6d8] sm:$0xff]
          %v1669 = vld [vmem:[#allocation5 + $0x6e0] sm:$0xff]
          %v1670 = vld [vmem:[#allocation5 + $0x6e8] sm:$0xff]
          %v1671 = vld [vmem:[#allocation5 + $0x6f0] sm:$0xff]
          %v1672 = vld [vmem:[#allocation5 + $0x6f8] sm:$0xff]
          %v1673 = vld [vmem:[#allocation5 + $0x700] sm:$0xff]
          %v1674 = vld [vmem:[#allocation5 + $0x708] sm:$0xff]
          %v1675 = vld [vmem:[#allocation5 + $0x710] sm:$0xff]
          %v1676 = vld [vmem:[#allocation5 + $0x718] sm:$0xff]
          %v1677 = vld [vmem:[#allocation5 + $0x720] sm:$0xff]
          %v1678 = vld [vmem:[#allocation5 + $0x728] sm:$0xff]
          %v1679 = vld [vmem:[#allocation5 + $0x730] sm:$0xff]
          %v1680 = vld [vmem:[#allocation5 + $0x738] sm:$0xff]
          %v1681 = vld [vmem:[#allocation5 + $0x740] sm:$0xff]
          %v1682 = vld [vmem:[#allocation5 + $0x748] sm:$0xff]
          %v1683 = vld [vmem:[#allocation5 + $0x750] sm:$0xff]
          %v1684 = vld [vmem:[#allocation5 + $0x758] sm:$0xff]
          %v1685 = vld [vmem:[#allocation5 + $0x760] sm:$0xff]
          %v1686 = vld [vmem:[#allocation5 + $0x768] sm:$0xff]
          %v1687 = vld [vmem:[#allocation5 + $0x770] sm:$0xff]
          %v1688 = vld [vmem:[#allocation5 + $0x778] sm:$0xff]
          %v1689 = vld [vmem:[#allocation5 + $0x780] sm:$0xff]
          %v1690 = vld [vmem:[#allocation5 + $0x788] sm:$0xff]
          %v1691 = vld [vmem:[#allocation5 + $0x790] sm:$0xff]
          %v1692 = vld [vmem:[#allocation5 + $0x798] sm:$0xff]
          %v1693 = vld [vmem:[#allocation5 + $0x7a0] sm:$0xff]
          %v1694 = vld [vmem:[#allocation5 + $0x7a8] sm:$0xff]
          %v1695 = vld [vmem:[#allocation5 + $0x7b0] sm:$0xff]
          %v1696 = vld [vmem:[#allocation5 + $0x7b8] sm:$0xff]
          %v1697 = vld [vmem:[#allocation5 + $0x7c0] sm:$0xff]
          %v1698 = vld [vmem:[#allocation5 + $0x7c8] sm:$0xff]
          %v1699 = vld [vmem:[#allocation5 + $0x7d0] sm:$0xff]
          %v1700 = vld [vmem:[#allocation5 + $0x7d8] sm:$0xff]
          %v1701 = vld [vmem:[#allocation5 + $0x7e0] sm:$0xff]
          %v1702 = vld [vmem:[#allocation5 + $0x7e8] sm:$0xff]
          %v1703 = vld [vmem:[#allocation5 + $0x7f0] sm:$0xff]
          %v1704 = vld [vmem:[#allocation5 + $0x7f8] sm:$0xff]
          %v1705 = vld [vmem:[%s8] sm:$0xf]
          %v1962 = vunpack.c.l.b16 %v1449
          %v1963 = vunpack.c.h.b16 %v1449
          %v1964 = vunpack.c.l.b16 %v1450
          %v1965 = vunpack.c.h.b16 %v1450
          %v1966 = vunpack.c.l.b16 %v1451
          %v1967 = vunpack.c.h.b16 %v1451
          %v1968 = vunpack.c.l.b16 %v1452
          %v1969 = vunpack.c.h.b16 %v1452
          %v1970 = vunpack.c.l.b16 %v1453
          %v1971 = vunpack.c.h.b16 %v1453
          %v1972 = vunpack.c.l.b16 %v1454
          %v1973 = vunpack.c.h.b16 %v1454
          %v1974 = vunpack.c.l.b16 %v1455
          %v1975 = vunpack.c.h.b16 %v1455
          %v1976 = vunpack.c.l.b16 %v1456
          %v1977 = vunpack.c.h.b16 %v1456
          %v1978 = vunpack.c.l.b16 %v1457
          %v1979 = vunpack.c.h.b16 %v1457
          %v1980 = vunpack.c.l.b16 %v1458
          %v1981 = vunpack.c.h.b16 %v1458
          %v1982 = vunpack.c.l.b16 %v1459
          %v1983 = vunpack.c.h.b16 %v1459
          %v1984 = vunpack.c.l.b16 %v1460
          %v1985 = vunpack.c.h.b16 %v1460
          %v1986 = vunpack.c.l.b16 %v1461
          %v1987 = vunpack.c.h.b16 %v1461
          %v1988 = vunpack.c.l.b16 %v1462
          %v1989 = vunpack.c.h.b16 %v1462
          %v1990 = vunpack.c.l.b16 %v1463
          %v1991 = vunpack.c.h.b16 %v1463
          %v1992 = vunpack.c.l.b16 %v1464
          %v1993 = vunpack.c.h.b16 %v1464
          %v1994 = vunpack.c.l.b16 %v1465
          %v1995 = vunpack.c.h.b16 %v1465
          %v1996 = vunpack.c.l.b16 %v1466
          %v1997 = vunpack.c.h.b16 %v1466
          %v1998 = vunpack.c.l.b16 %v1467
          %v1999 = vunpack.c.h.b16 %v1467
          %v2000 = vunpack.c.l.b16 %v1468
          %v2001 = vunpack.c.h.b16 %v1468
          %v2002 = vunpack.c.l.b16 %v1469
          %v2003 = vunpack.c.h.b16 %v1469
          %v2004 = vunpack.c.l.b16 %v1470
          %v2005 = vunpack.c.h.b16 %v1470
          %v2006 = vunpack.c.l.b16 %v1471
          %v2007 = vunpack.c.h.b16 %v1471
          %v2008 = vunpack.c.l.b16 %v1472
          %v2009 = vunpack.c.h.b16 %v1472
          %v2010 = vunpack.c.l.b16 %v1473
          %v2011 = vunpack.c.h.b16 %v1473
          %v2012 = vunpack.c.l.b16 %v1474
          %v2013 = vunpack.c.h.b16 %v1474
          %v2014 = vunpack.c.l.b16 %v1475
          %v2015 = vunpack.c.h.b16 %v1475
          %v2016 = vunpack.c.l.b16 %v1476
          %v2017 = vunpack.c.h.b16 %v1476
          %v2018 = vunpack.c.l.b16 %v1477
          %v2019 = vunpack.c.h.b16 %v1477
          %v2020 = vunpack.c.l.b16 %v1478
          %v2021 = vunpack.c.h.b16 %v1478
          %v2022 = vunpack.c.l.b16 %v1479
          %v2023 = vunpack.c.h.b16 %v1479
          %v2024 = vunpack.c.l.b16 %v1480
          %v2025 = vunpack.c.h.b16 %v1480
          %v2026 = vunpack.c.l.b16 %v1481
          %v2027 = vunpack.c.h.b16 %v1481
          %v2028 = vunpack.c.l.b16 %v1482
          %v2029 = vunpack.c.h.b16 %v1482
          %v2030 = vunpack.c.l.b16 %v1483
          %v2031 = vunpack.c.h.b16 %v1483
          %v2032 = vunpack.c.l.b16 %v1484
          %v2033 = vunpack.c.h.b16 %v1484
          %v2034 = vunpack.c.l.b16 %v1485
          %v2035 = vunpack.c.h.b16 %v1485
          %v2036 = vunpack.c.l.b16 %v1486
          %v2037 = vunpack.c.h.b16 %v1486
          %v2038 = vunpack.c.l.b16 %v1487
          %v2039 = vunpack.c.h.b16 %v1487
          %v2040 = vunpack.c.l.b16 %v1488
          %v2041 = vunpack.c.h.b16 %v1488
          %v2042 = vunpack.c.l.b16 %v1489
          %v2043 = vunpack.c.h.b16 %v1489
          %v2044 = vunpack.c.l.b16 %v1490
          %v2045 = vunpack.c.h.b16 %v1490
          %v2046 = vunpack.c.l.b16 %v1491
          %v2047 = vunpack.c.h.b16 %v1491
          %v2048 = vunpack.c.l.b16 %v1492
          %v2049 = vunpack.c.h.b16 %v1492
          %v2050 = vunpack.c.l.b16 %v1493
          %v2051 = vunpack.c.h.b16 %v1493
          %v2052 = vunpack.c.l.b16 %v1494
          %v2053 = vunpack.c.h.b16 %v1494
          %v2054 = vunpack.c.l.b16 %v1495
          %v2055 = vunpack.c.h.b16 %v1495
          %v2056 = vunpack.c.l.b16 %v1496
          %v2057 = vunpack.c.h.b16 %v1496
          %v2058 = vunpack.c.l.b16 %v1497
          %v2059 = vunpack.c.h.b16 %v1497
          %v2060 = vunpack.c.l.b16 %v1498
          %v2061 = vunpack.c.h.b16 %v1498
          %v2062 = vunpack.c.l.b16 %v1499
          %v2063 = vunpack.c.h.b16 %v1499
          %v2064 = vunpack.c.l.b16 %v1500
          %v2065 = vunpack.c.h.b16 %v1500
          %v2066 = vunpack.c.l.b16 %v1501
          %v2067 = vunpack.c.h.b16 %v1501
          %v2068 = vunpack.c.l.b16 %v1502
          %v2069 = vunpack.c.h.b16 %v1502
          %v2070 = vunpack.c.l.b16 %v1503
          %v2071 = vunpack.c.h.b16 %v1503
          %v2072 = vunpack.c.l.b16 %v1504
          %v2073 = vunpack.c.h.b16 %v1504
          %v2074 = vunpack.c.l.b16 %v1505
          %v2075 = vunpack.c.h.b16 %v1505
          %v2076 = vunpack.c.l.b16 %v1506
          %v2077 = vunpack.c.h.b16 %v1506
          %v2078 = vunpack.c.l.b16 %v1507
          %v2079 = vunpack.c.h.b16 %v1507
          %v2080 = vunpack.c.l.b16 %v1508
          %v2081 = vunpack.c.h.b16 %v1508
          %v2082 = vunpack.c.l.b16 %v1509
          %v2083 = vunpack.c.h.b16 %v1509
          %v2084 = vunpack.c.l.b16 %v1510
          %v2085 = vunpack.c.h.b16 %v1510
          %v2086 = vunpack.c.l.b16 %v1511
          %v2087 = vunpack.c.h.b16 %v1511
          %v2088 = vunpack.c.l.b16 %v1512
          %v2089 = vunpack.c.h.b16 %v1512
          %v2090 = vunpack.c.l.b16 %v1513
          %v2091 = vunpack.c.h.b16 %v1513
          %v2092 = vunpack.c.l.b16 %v1514
          %v2093 = vunpack.c.h.b16 %v1514
          %v2094 = vunpack.c.l.b16 %v1515
          %v2095 = vunpack.c.h.b16 %v1515
          %v2096 = vunpack.c.l.b16 %v1516
          %v2097 = vunpack.c.h.b16 %v1516
          %v2098 = vunpack.c.l.b16 %v1517
          %v2099 = vunpack.c.h.b16 %v1517
          %v2100 = vunpack.c.l.b16 %v1518
          %v2101 = vunpack.c.h.b16 %v1518
          %v2102 = vunpack.c.l.b16 %v1519
          %v2103 = vunpack.c.h.b16 %v1519
          %v2104 = vunpack.c.l.b16 %v1520
          %v2105 = vunpack.c.h.b16 %v1520
          %v2106 = vunpack.c.l.b16 %v1521
          %v2107 = vunpack.c.h.b16 %v1521
          %v2108 = vunpack.c.l.b16 %v1522
          %v2109 = vunpack.c.h.b16 %v1522
          %v2110 = vunpack.c.l.b16 %v1523
          %v2111 = vunpack.c.h.b16 %v1523
          %v2112 = vunpack.c.l.b16 %v1524
          %v2113 = vunpack.c.h.b16 %v1524
          %v2114 = vunpack.c.l.b16 %v1525
          %v2115 = vunpack.c.h.b16 %v1525
          %v2116 = vunpack.c.l.b16 %v1526
          %v2117 = vunpack.c.h.b16 %v1526
          %v2118 = vunpack.c.l.b16 %v1527
          %v2119 = vunpack.c.h.b16 %v1527
          %v2120 = vunpack.c.l.b16 %v1528
          %v2121 = vunpack.c.h.b16 %v1528
          %v2122 = vunpack.c.l.b16 %v1529
          %v2123 = vunpack.c.h.b16 %v1529
          %v2124 = vunpack.c.l.b16 %v1530
          %v2125 = vunpack.c.h.b16 %v1530
          %v2126 = vunpack.c.l.b16 %v1531
          %v2127 = vunpack.c.h.b16 %v1531
          %v2128 = vunpack.c.l.b16 %v1532
          %v2129 = vunpack.c.h.b16 %v1532
          %v2130 = vunpack.c.l.b16 %v1533
          %v2131 = vunpack.c.h.b16 %v1533
          %v2132 = vunpack.c.l.b16 %v1534
          %v2133 = vunpack.c.h.b16 %v1534
          %v2134 = vunpack.c.l.b16 %v1535
          %v2135 = vunpack.c.h.b16 %v1535
          %v2136 = vunpack.c.l.b16 %v1536
          %v2137 = vunpack.c.h.b16 %v1536
          %v2138 = vunpack.c.l.b16 %v1537
          %v2139 = vunpack.c.h.b16 %v1537
          %v2140 = vunpack.c.l.b16 %v1538
          %v2141 = vunpack.c.h.b16 %v1538
          %v2142 = vunpack.c.l.b16 %v1539
          %v2143 = vunpack.c.h.b16 %v1539
          %v2144 = vunpack.c.l.b16 %v1540
          %v2145 = vunpack.c.h.b16 %v1540
          %v2146 = vunpack.c.l.b16 %v1541
          %v2147 = vunpack.c.h.b16 %v1541
          %v2148 = vunpack.c.l.b16 %v1542
          %v2149 = vunpack.c.h.b16 %v1542
          %v2150 = vunpack.c.l.b16 %v1543
          %v2151 = vunpack.c.h.b16 %v1543
          %v2152 = vunpack.c.l.b16 %v1544
          %v2153 = vunpack.c.h.b16 %v1544
          %v2154 = vunpack.c.l.b16 %v1545
          %v2155 = vunpack.c.h.b16 %v1545
          %v2156 = vunpack.c.l.b16 %v1546
          %v2157 = vunpack.c.h.b16 %v1546
          %v2158 = vunpack.c.l.b16 %v1547
          %v2159 = vunpack.c.h.b16 %v1547
          %v2160 = vunpack.c.l.b16 %v1548
          %v2161 = vunpack.c.h.b16 %v1548
          %v2162 = vunpack.c.l.b16 %v1549
          %v2163 = vunpack.c.h.b16 %v1549
          %v2164 = vunpack.c.l.b16 %v1550
          %v2165 = vunpack.c.h.b16 %v1550
          %v2166 = vunpack.c.l.b16 %v1551
          %v2167 = vunpack.c.h.b16 %v1551
          %v2168 = vunpack.c.l.b16 %v1552
          %v2169 = vunpack.c.h.b16 %v1552
          %v2170 = vunpack.c.l.b16 %v1553
          %v2171 = vunpack.c.h.b16 %v1553
          %v2172 = vunpack.c.l.b16 %v1554
          %v2173 = vunpack.c.h.b16 %v1554
          %v2174 = vunpack.c.l.b16 %v1555
          %v2175 = vunpack.c.h.b16 %v1555
          %v2176 = vunpack.c.l.b16 %v1556
          %v2177 = vunpack.c.h.b16 %v1556
          %v2178 = vunpack.c.l.b16 %v1557
          %v2179 = vunpack.c.h.b16 %v1557
          %v2180 = vunpack.c.l.b16 %v1558
          %v2181 = vunpack.c.h.b16 %v1558
          %v2182 = vunpack.c.l.b16 %v1559
          %v2183 = vunpack.c.h.b16 %v1559
          %v2184 = vunpack.c.l.b16 %v1560
          %v2185 = vunpack.c.h.b16 %v1560
          %v2186 = vunpack.c.l.b16 %v1561
          %v2187 = vunpack.c.h.b16 %v1561
          %v2188 = vunpack.c.l.b16 %v1562
          %v2189 = vunpack.c.h.b16 %v1562
          %v2190 = vunpack.c.l.b16 %v1563
          %v2191 = vunpack.c.h.b16 %v1563
          %v2192 = vunpack.c.l.b16 %v1564
          %v2193 = vunpack.c.h.b16 %v1564
          %v2194 = vunpack.c.l.b16 %v1565
          %v2195 = vunpack.c.h.b16 %v1565
          %v2196 = vunpack.c.l.b16 %v1566
          %v2197 = vunpack.c.h.b16 %v1566
          %v2198 = vunpack.c.l.b16 %v1567
          %v2199 = vunpack.c.h.b16 %v1567
          %v2200 = vunpack.c.l.b16 %v1568
          %v2201 = vunpack.c.h.b16 %v1568
          %v2202 = vunpack.c.l.b16 %v1569
          %v2203 = vunpack.c.h.b16 %v1569
          %v2204 = vunpack.c.l.b16 %v1570
          %v2205 = vunpack.c.h.b16 %v1570
          %v2206 = vunpack.c.l.b16 %v1571
          %v2207 = vunpack.c.h.b16 %v1571
          %v2208 = vunpack.c.l.b16 %v1572
          %v2209 = vunpack.c.h.b16 %v1572
          %v2210 = vunpack.c.l.b16 %v1573
          %v2211 = vunpack.c.h.b16 %v1573
          %v2212 = vunpack.c.l.b16 %v1574
          %v2213 = vunpack.c.h.b16 %v1574
          %v2214 = vunpack.c.l.b16 %v1575
          %v2215 = vunpack.c.h.b16 %v1575
          %v2216 = vunpack.c.l.b16 %v1576
          %v2217 = vunpack.c.h.b16 %v1576
          %v2218 = vunpack.c.l.b16 %v1577
          %v2219 = vunpack.c.h.b16 %v1577
          %v2220 = vunpack.c.l.b16 %v1578
          %v2221 = vunpack.c.h.b16 %v1578
          %v2222 = vunpack.c.l.b16 %v1579
          %v2223 = vunpack.c.h.b16 %v1579
          %v2224 = vunpack.c.l.b16 %v1580
          %v2225 = vunpack.c.h.b16 %v1580
          %v2226 = vunpack.c.l.b16 %v1581
          %v2227 = vunpack.c.h.b16 %v1581
          %v2228 = vunpack.c.l.b16 %v1582
          %v2229 = vunpack.c.h.b16 %v1582
          %v2230 = vunpack.c.l.b16 %v1583
          %v2231 = vunpack.c.h.b16 %v1583
          %v2232 = vunpack.c.l.b16 %v1584
          %v2233 = vunpack.c.h.b16 %v1584
          %v2234 = vunpack.c.l.b16 %v1585
          %v2235 = vunpack.c.h.b16 %v1585
          %v2236 = vunpack.c.l.b16 %v1586
          %v2237 = vunpack.c.h.b16 %v1586
          %v2238 = vunpack.c.l.b16 %v1587
          %v2239 = vunpack.c.h.b16 %v1587
          %v2240 = vunpack.c.l.b16 %v1588
          %v2241 = vunpack.c.h.b16 %v1588
          %v2242 = vunpack.c.l.b16 %v1589
          %v2243 = vunpack.c.h.b16 %v1589
          %v2244 = vunpack.c.l.b16 %v1590
          %v2245 = vunpack.c.h.b16 %v1590
          %v2246 = vunpack.c.l.b16 %v1591
          %v2247 = vunpack.c.h.b16 %v1591
          %v2248 = vunpack.c.l.b16 %v1592
          %v2249 = vunpack.c.h.b16 %v1592
          %v2250 = vunpack.c.l.b16 %v1593
          %v2251 = vunpack.c.h.b16 %v1593
          %v2252 = vunpack.c.l.b16 %v1594
          %v2253 = vunpack.c.h.b16 %v1594
          %v2254 = vunpack.c.l.b16 %v1595
          %v2255 = vunpack.c.h.b16 %v1595
          %v2256 = vunpack.c.l.b16 %v1596
          %v2257 = vunpack.c.h.b16 %v1596
          %v2258 = vunpack.c.l.b16 %v1597
          %v2259 = vunpack.c.h.b16 %v1597
          %v2260 = vunpack.c.l.b16 %v1598
          %v2261 = vunpack.c.h.b16 %v1598
          %v2262 = vunpack.c.l.b16 %v1599
          %v2263 = vunpack.c.h.b16 %v1599
          %v2264 = vunpack.c.l.b16 %v1600
          %v2265 = vunpack.c.h.b16 %v1600
          %v2266 = vunpack.c.l.b16 %v1601
          %v2267 = vunpack.c.h.b16 %v1601
          %v2268 = vunpack.c.l.b16 %v1602
          %v2269 = vunpack.c.h.b16 %v1602
          %v2270 = vunpack.c.l.b16 %v1603
          %v2271 = vunpack.c.h.b16 %v1603
          %v2272 = vunpack.c.l.b16 %v1604
          %v2273 = vunpack.c.h.b16 %v1604
          %v2274 = vunpack.c.l.b16 %v1605
          %v2275 = vunpack.c.h.b16 %v1605
          %v2276 = vunpack.c.l.b16 %v1606
          %v2277 = vunpack.c.h.b16 %v1606
          %v2278 = vunpack.c.l.b16 %v1607
          %v2279 = vunpack.c.h.b16 %v1607
          %v2280 = vunpack.c.l.b16 %v1608
          %v2281 = vunpack.c.h.b16 %v1608
          %v2282 = vunpack.c.l.b16 %v1609
          %v2283 = vunpack.c.h.b16 %v1609
          %v2284 = vunpack.c.l.b16 %v1610
          %v2285 = vunpack.c.h.b16 %v1610
          %v2286 = vunpack.c.l.b16 %v1611
          %v2287 = vunpack.c.h.b16 %v1611
          %v2288 = vunpack.c.l.b16 %v1612
          %v2289 = vunpack.c.h.b16 %v1612
          %v2290 = vunpack.c.l.b16 %v1613
          %v2291 = vunpack.c.h.b16 %v1613
          %v2292 = vunpack.c.l.b16 %v1614
          %v2293 = vunpack.c.h.b16 %v1614
          %v2294 = vunpack.c.l.b16 %v1615
          %v2295 = vunpack.c.h.b16 %v1615
          %v2296 = vunpack.c.l.b16 %v1616
          %v2297 = vunpack.c.h.b16 %v1616
          %v2298 = vunpack.c.l.b16 %v1617
          %v2299 = vunpack.c.h.b16 %v1617
          %v2300 = vunpack.c.l.b16 %v1618
          %v2301 = vunpack.c.h.b16 %v1618
          %v2302 = vunpack.c.l.b16 %v1619
          %v2303 = vunpack.c.h.b16 %v1619
          %v2304 = vunpack.c.l.b16 %v1620
          %v2305 = vunpack.c.h.b16 %v1620
          %v2306 = vunpack.c.l.b16 %v1621
          %v2307 = vunpack.c.h.b16 %v1621
          %v2308 = vunpack.c.l.b16 %v1622
          %v2309 = vunpack.c.h.b16 %v1622
          %v2310 = vunpack.c.l.b16 %v1623
          %v2311 = vunpack.c.h.b16 %v1623
          %v2312 = vunpack.c.l.b16 %v1624
          %v2313 = vunpack.c.h.b16 %v1624
          %v2314 = vunpack.c.l.b16 %v1625
          %v2315 = vunpack.c.h.b16 %v1625
          %v2316 = vunpack.c.l.b16 %v1626
          %v2317 = vunpack.c.h.b16 %v1626
          %v2318 = vunpack.c.l.b16 %v1627
          %v2319 = vunpack.c.h.b16 %v1627
          %v2320 = vunpack.c.l.b16 %v1628
          %v2321 = vunpack.c.h.b16 %v1628
          %v2322 = vunpack.c.l.b16 %v1629
          %v2323 = vunpack.c.h.b16 %v1629
          %v2324 = vunpack.c.l.b16 %v1630
          %v2325 = vunpack.c.h.b16 %v1630
          %v2326 = vunpack.c.l.b16 %v1631
          %v2327 = vunpack.c.h.b16 %v1631
          %v2328 = vunpack.c.l.b16 %v1632
          %v2329 = vunpack.c.h.b16 %v1632
          %v2330 = vunpack.c.l.b16 %v1633
          %v2331 = vunpack.c.h.b16 %v1633
          %v2332 = vunpack.c.l.b16 %v1634
          %v2333 = vunpack.c.h.b16 %v1634
          %v2334 = vunpack.c.l.b16 %v1635
          %v2335 = vunpack.c.h.b16 %v1635
          %v2336 = vunpack.c.l.b16 %v1636
          %v2337 = vunpack.c.h.b16 %v1636
          %v2338 = vunpack.c.l.b16 %v1637
          %v2339 = vunpack.c.h.b16 %v1637
          %v2340 = vunpack.c.l.b16 %v1638
          %v2341 = vunpack.c.h.b16 %v1638
          %v2342 = vunpack.c.l.b16 %v1639
          %v2343 = vunpack.c.h.b16 %v1639
          %v2344 = vunpack.c.l.b16 %v1640
          %v2345 = vunpack.c.h.b16 %v1640
          %v2346 = vunpack.c.l.b16 %v1641
          %v2347 = vunpack.c.h.b16 %v1641
          %v2348 = vunpack.c.l.b16 %v1642
          %v2349 = vunpack.c.h.b16 %v1642
          %v2350 = vunpack.c.l.b16 %v1643
          %v2351 = vunpack.c.h.b16 %v1643
          %v2352 = vunpack.c.l.b16 %v1644
          %v2353 = vunpack.c.h.b16 %v1644
          %v2354 = vunpack.c.l.b16 %v1645
          %v2355 = vunpack.c.h.b16 %v1645
          %v2356 = vunpack.c.l.b16 %v1646
          %v2357 = vunpack.c.h.b16 %v1646
          %v2358 = vunpack.c.l.b16 %v1647
          %v2359 = vunpack.c.h.b16 %v1647
          %v2360 = vunpack.c.l.b16 %v1648
          %v2361 = vunpack.c.h.b16 %v1648
          %v2362 = vunpack.c.l.b16 %v1649
          %v2363 = vunpack.c.h.b16 %v1649
          %v2364 = vunpack.c.l.b16 %v1650
          %v2365 = vunpack.c.h.b16 %v1650
          %v2366 = vunpack.c.l.b16 %v1651
          %v2367 = vunpack.c.h.b16 %v1651
          %v2368 = vunpack.c.l.b16 %v1652
          %v2369 = vunpack.c.h.b16 %v1652
          %v2370 = vunpack.c.l.b16 %v1653
          %v2371 = vunpack.c.h.b16 %v1653
          %v2372 = vunpack.c.l.b16 %v1654
          %v2373 = vunpack.c.h.b16 %v1654
          %v2374 = vunpack.c.l.b16 %v1655
          %v2375 = vunpack.c.h.b16 %v1655
          %v2376 = vunpack.c.l.b16 %v1656
          %v2377 = vunpack.c.h.b16 %v1656
          %v2378 = vunpack.c.l.b16 %v1657
          %v2379 = vunpack.c.h.b16 %v1657
          %v2380 = vunpack.c.l.b16 %v1658
          %v2381 = vunpack.c.h.b16 %v1658
          %v2382 = vunpack.c.l.b16 %v1659
          %v2383 = vunpack.c.h.b16 %v1659
          %v2384 = vunpack.c.l.b16 %v1660
          %v2385 = vunpack.c.h.b16 %v1660
          %v2386 = vunpack.c.l.b16 %v1661
          %v2387 = vunpack.c.h.b16 %v1661
          %v2388 = vunpack.c.l.b16 %v1662
          %v2389 = vunpack.c.h.b16 %v1662
          %v2390 = vunpack.c.l.b16 %v1663
          %v2391 = vunpack.c.h.b16 %v1663
          %v2392 = vunpack.c.l.b16 %v1664
          %v2393 = vunpack.c.h.b16 %v1664
          %v2394 = vunpack.c.l.b16 %v1665
          %v2395 = vunpack.c.h.b16 %v1665
          %v2396 = vunpack.c.l.b16 %v1666
          %v2397 = vunpack.c.h.b16 %v1666
          %v2398 = vunpack.c.l.b16 %v1667
          %v2399 = vunpack.c.h.b16 %v1667
          %v2400 = vunpack.c.l.b16 %v1668
          %v2401 = vunpack.c.h.b16 %v1668
          %v2402 = vunpack.c.l.b16 %v1669
          %v2403 = vunpack.c.h.b16 %v1669
          %v2404 = vunpack.c.l.b16 %v1670
          %v2405 = vunpack.c.h.b16 %v1670
          %v2406 = vunpack.c.l.b16 %v1671
          %v2407 = vunpack.c.h.b16 %v1671
          %v2408 = vunpack.c.l.b16 %v1672
          %v2409 = vunpack.c.h.b16 %v1672
          %v2410 = vunpack.c.l.b16 %v1673
          %v2411 = vunpack.c.h.b16 %v1673
          %v2412 = vunpack.c.l.b16 %v1674
          %v2413 = vunpack.c.h.b16 %v1674
          %v2414 = vunpack.c.l.b16 %v1675
          %v2415 = vunpack.c.h.b16 %v1675
          %v2416 = vunpack.c.l.b16 %v1676
          %v2417 = vunpack.c.h.b16 %v1676
          %v2418 = vunpack.c.l.b16 %v1677
          %v2419 = vunpack.c.h.b16 %v1677
          %v2420 = vunpack.c.l.b16 %v1678
          %v2421 = vunpack.c.h.b16 %v1678
          %v2422 = vunpack.c.l.b16 %v1679
          %v2423 = vunpack.c.h.b16 %v1679
          %v2424 = vunpack.c.l.b16 %v1680
          %v2425 = vunpack.c.h.b16 %v1680
          %v2426 = vunpack.c.l.b16 %v1681
          %v2427 = vunpack.c.h.b16 %v1681
          %v2428 = vunpack.c.l.b16 %v1682
          %v2429 = vunpack.c.h.b16 %v1682
          %v2430 = vunpack.c.l.b16 %v1683
          %v2431 = vunpack.c.h.b16 %v1683
          %v2432 = vunpack.c.l.b16 %v1684
          %v2433 = vunpack.c.h.b16 %v1684
          %v2434 = vunpack.c.l.b16 %v1685
          %v2435 = vunpack.c.h.b16 %v1685
          %v2436 = vunpack.c.l.b16 %v1686
          %v2437 = vunpack.c.h.b16 %v1686
          %v2438 = vunpack.c.l.b16 %v1687
          %v2439 = vunpack.c.h.b16 %v1687
          %v2440 = vunpack.c.l.b16 %v1688
          %v2441 = vunpack.c.h.b16 %v1688
          %v2442 = vunpack.c.l.b16 %v1689
          %v2443 = vunpack.c.h.b16 %v1689
          %v2444 = vunpack.c.l.b16 %v1690
          %v2445 = vunpack.c.h.b16 %v1690
          %v2446 = vunpack.c.l.b16 %v1691
          %v2447 = vunpack.c.h.b16 %v1691
          %v2448 = vunpack.c.l.b16 %v1692
          %v2449 = vunpack.c.h.b16 %v1692
          %v2450 = vunpack.c.l.b16 %v1693
          %v2451 = vunpack.c.h.b16 %v1693
          %v2452 = vunpack.c.l.b16 %v1694
          %v2453 = vunpack.c.h.b16 %v1694
          %v2454 = vunpack.c.l.b16 %v1695
          %v2455 = vunpack.c.h.b16 %v1695
          %v2456 = vunpack.c.l.b16 %v1696
          %v2457 = vunpack.c.h.b16 %v1696
          %v2458 = vunpack.c.l.b16 %v1697
          %v2459 = vunpack.c.h.b16 %v1697
          %v2460 = vunpack.c.l.b16 %v1698
          %v2461 = vunpack.c.h.b16 %v1698
          %v2462 = vunpack.c.l.b16 %v1699
          %v2463 = vunpack.c.h.b16 %v1699
          %v2464 = vunpack.c.l.b16 %v1700
          %v2465 = vunpack.c.h.b16 %v1700
          %v2466 = vunpack.c.l.b16 %v1701
          %v2467 = vunpack.c.h.b16 %v1701
          %v2468 = vunpack.c.l.b16 %v1702
          %v2469 = vunpack.c.h.b16 %v1702
          %v2470 = vunpack.c.l.b16 %v1703
          %v2471 = vunpack.c.h.b16 %v1703
          %v2472 = vunpack.c.l.b16 %v1704
          %v2473 = vunpack.c.h.b16 %v1704
          %v2474 = vpack.c.b16 %v1966, %v1962
          %v2475 = vpack.c.b16 %v1967, %v1963
          %v2476 = vpack.c.b16 %v1968, %v1964
          %v2477 = vpack.c.b16 %v1969, %v1965
          %v2478 = vpack.c.b16 %v1974, %v1970
          %v2479 = vpack.c.b16 %v1975, %v1971
          %v2480 = vpack.c.b16 %v1976, %v1972
          %v2481 = vpack.c.b16 %v1977, %v1973
          %v2482 = vpack.c.b16 %v1982, %v1978
          %v2483 = vpack.c.b16 %v1983, %v1979
          %v2484 = vpack.c.b16 %v1984, %v1980
          %v2485 = vpack.c.b16 %v1985, %v1981
          %v2486 = vpack.c.b16 %v1990, %v1986
          %v2487 = vpack.c.b16 %v1991, %v1987
          %v2488 = vpack.c.b16 %v1992, %v1988
          %v2489 = vpack.c.b16 %v1993, %v1989
          %v2490 = vpack.c.b16 %v1998, %v1994
          %v2491 = vpack.c.b16 %v1999, %v1995
          %v2492 = vpack.c.b16 %v2000, %v1996
          %v2493 = vpack.c.b16 %v2001, %v1997
          %v2494 = vpack.c.b16 %v2006, %v2002
          %v2495 = vpack.c.b16 %v2007, %v2003
          %v2496 = vpack.c.b16 %v2008, %v2004
          %v2497 = vpack.c.b16 %v2009, %v2005
          %v2498 = vpack.c.b16 %v2014, %v2010
          %v2499 = vpack.c.b16 %v2015, %v2011
          %v2500 = vpack.c.b16 %v2016, %v2012
          %v2501 = vpack.c.b16 %v2017, %v2013
          %v2502 = vpack.c.b16 %v2022, %v2018
          %v2503 = vpack.c.b16 %v2023, %v2019
          %v2504 = vpack.c.b16 %v2024, %v2020
          %v2505 = vpack.c.b16 %v2025, %v2021
          %v2506 = vpack.c.b16 %v2030, %v2026
          %v2507 = vpack.c.b16 %v2031, %v2027
          %v2508 = vpack.c.b16 %v2032, %v2028
          %v2509 = vpack.c.b16 %v2033, %v2029
          %v2510 = vpack.c.b16 %v2038, %v2034
          %v2511 = vpack.c.b16 %v2039, %v2035
          %v2512 = vpack.c.b16 %v2040, %v2036
          %v2513 = vpack.c.b16 %v2041, %v2037
          %v2514 = vpack.c.b16 %v2046, %v2042
          %v2515 = vpack.c.b16 %v2047, %v2043
          %v2516 = vpack.c.b16 %v2048, %v2044
          %v2517 = vpack.c.b16 %v2049, %v2045
          %v2518 = vpack.c.b16 %v2054, %v2050
          %v2519 = vpack.c.b16 %v2055, %v2051
          %v2520 = vpack.c.b16 %v2056, %v2052
          %v2521 = vpack.c.b16 %v2057, %v2053
          %v2522 = vpack.c.b16 %v2062, %v2058
          %v2523 = vpack.c.b16 %v2063, %v2059
          %v2524 = vpack.c.b16 %v2064, %v2060
          %v2525 = vpack.c.b16 %v2065, %v2061
          %v2526 = vpack.c.b16 %v2070, %v2066
          %v2527 = vpack.c.b16 %v2071, %v2067
          %v2528 = vpack.c.b16 %v2072, %v2068
          %v2529 = vpack.c.b16 %v2073, %v2069
          %v2530 = vpack.c.b16 %v2078, %v2074
          %v2531 = vpack.c.b16 %v2079, %v2075
          %v2532 = vpack.c.b16 %v2080, %v2076
          %v2533 = vpack.c.b16 %v2081, %v2077
          %v2534 = vpack.c.b16 %v2086, %v2082
          %v2535 = vpack.c.b16 %v2087, %v2083
          %v2536 = vpack.c.b16 %v2088, %v2084
          %v2537 = vpack.c.b16 %v2089, %v2085
          %v2538 = vpack.c.b16 %v2094, %v2090
          %v2539 = vpack.c.b16 %v2095, %v2091
          %v2540 = vpack.c.b16 %v2096, %v2092
          %v2541 = vpack.c.b16 %v2097, %v2093
          %v2542 = vpack.c.b16 %v2102, %v2098
          %v2543 = vpack.c.b16 %v2103, %v2099
          %v2544 = vpack.c.b16 %v2104, %v2100
          %v2545 = vpack.c.b16 %v2105, %v2101
          %v2546 = vpack.c.b16 %v2110, %v2106
          %v2547 = vpack.c.b16 %v2111, %v2107
          %v2548 = vpack.c.b16 %v2112, %v2108
          %v2549 = vpack.c.b16 %v2113, %v2109
          %v2550 = vpack.c.b16 %v2118, %v2114
          %v2551 = vpack.c.b16 %v2119, %v2115
          %v2552 = vpack.c.b16 %v2120, %v2116
          %v2553 = vpack.c.b16 %v2121, %v2117
          %v2554 = vpack.c.b16 %v2126, %v2122
          %v2555 = vpack.c.b16 %v2127, %v2123
          %v2556 = vpack.c.b16 %v2128, %v2124
          %v2557 = vpack.c.b16 %v2129, %v2125
          %v2558 = vpack.c.b16 %v2134, %v2130
          %v2559 = vpack.c.b16 %v2135, %v2131
          %v2560 = vpack.c.b16 %v2136, %v2132
          %v2561 = vpack.c.b16 %v2137, %v2133
          %v2562 = vpack.c.b16 %v2142, %v2138
          %v2563 = vpack.c.b16 %v2143, %v2139
          %v2564 = vpack.c.b16 %v2144, %v2140
          %v2565 = vpack.c.b16 %v2145, %v2141
          %v2566 = vpack.c.b16 %v2150, %v2146
          %v2567 = vpack.c.b16 %v2151, %v2147
          %v2568 = vpack.c.b16 %v2152, %v2148
          %v2569 = vpack.c.b16 %v2153, %v2149
          %v2570 = vpack.c.b16 %v2158, %v2154
          %v2571 = vpack.c.b16 %v2159, %v2155
          %v2572 = vpack.c.b16 %v2160, %v2156
          %v2573 = vpack.c.b16 %v2161, %v2157
          %v2574 = vpack.c.b16 %v2166, %v2162
          %v2575 = vpack.c.b16 %v2167, %v2163
          %v2576 = vpack.c.b16 %v2168, %v2164
          %v2577 = vpack.c.b16 %v2169, %v2165
          %v2578 = vpack.c.b16 %v2174, %v2170
          %v2579 = vpack.c.b16 %v2175, %v2171
          %v2580 = vpack.c.b16 %v2176, %v2172
          %v2581 = vpack.c.b16 %v2177, %v2173
          %v2582 = vpack.c.b16 %v2182, %v2178
          %v2583 = vpack.c.b16 %v2183, %v2179
          %v2584 = vpack.c.b16 %v2184, %v2180
          %v2585 = vpack.c.b16 %v2185, %v2181
          %v2586 = vpack.c.b16 %v2190, %v2186
          %v2587 = vpack.c.b16 %v2191, %v2187
          %v2588 = vpack.c.b16 %v2192, %v2188
          %v2589 = vpack.c.b16 %v2193, %v2189
          %v2590 = vpack.c.b16 %v2198, %v2194
          %v2591 = vpack.c.b16 %v2199, %v2195
          %v2592 = vpack.c.b16 %v2200, %v2196
          %v2593 = vpack.c.b16 %v2201, %v2197
          %v2594 = vpack.c.b16 %v2206, %v2202
          %v2595 = vpack.c.b16 %v2207, %v2203
          %v2596 = vpack.c.b16 %v2208, %v2204
          %v2597 = vpack.c.b16 %v2209, %v2205
          %v2598 = vpack.c.b16 %v2214, %v2210
          %v2599 = vpack.c.b16 %v2215, %v2211
          %v2600 = vpack.c.b16 %v2216, %v2212
          %v2601 = vpack.c.b16 %v2217, %v2213
          %v2602 = vpack.c.b16 %v2222, %v2218
          %v2603 = vpack.c.b16 %v2223, %v2219
          %v2604 = vpack.c.b16 %v2224, %v2220
          %v2605 = vpack.c.b16 %v2225, %v2221
          %v2606 = vpack.c.b16 %v2230, %v2226
          %v2607 = vpack.c.b16 %v2231, %v2227
          %v2608 = vpack.c.b16 %v2232, %v2228
          %v2609 = vpack.c.b16 %v2233, %v2229
          %v2610 = vpack.c.b16 %v2238, %v2234
          %v2611 = vpack.c.b16 %v2239, %v2235
          %v2612 = vpack.c.b16 %v2240, %v2236
          %v2613 = vpack.c.b16 %v2241, %v2237
          %v2614 = vpack.c.b16 %v2246, %v2242
          %v2615 = vpack.c.b16 %v2247, %v2243
          %v2616 = vpack.c.b16 %v2248, %v2244
          %v2617 = vpack.c.b16 %v2249, %v2245
          %v2618 = vpack.c.b16 %v2254, %v2250
          %v2619 = vpack.c.b16 %v2255, %v2251
          %v2620 = vpack.c.b16 %v2256, %v2252
          %v2621 = vpack.c.b16 %v2257, %v2253
          %v2622 = vpack.c.b16 %v2262, %v2258
          %v2623 = vpack.c.b16 %v2263, %v2259
          %v2624 = vpack.c.b16 %v2264, %v2260
          %v2625 = vpack.c.b16 %v2265, %v2261
          %v2626 = vpack.c.b16 %v2270, %v2266
          %v2627 = vpack.c.b16 %v2271, %v2267
          %v2628 = vpack.c.b16 %v2272, %v2268
          %v2629 = vpack.c.b16 %v2273, %v2269
          %v2630 = vpack.c.b16 %v2278, %v2274
          %v2631 = vpack.c.b16 %v2279, %v2275
          %v2632 = vpack.c.b16 %v2280, %v2276
          %v2633 = vpack.c.b16 %v2281, %v2277
          %v2634 = vpack.c.b16 %v2286, %v2282
          %v2635 = vpack.c.b16 %v2287, %v2283
          %v2636 = vpack.c.b16 %v2288, %v2284
          %v2637 = vpack.c.b16 %v2289, %v2285
          %v2638 = vpack.c.b16 %v2294, %v2290
          %v2639 = vpack.c.b16 %v2295, %v2291
          %v2640 = vpack.c.b16 %v2296, %v2292
          %v2641 = vpack.c.b16 %v2297, %v2293
          %v2642 = vpack.c.b16 %v2302, %v2298
          %v2643 = vpack.c.b16 %v2303, %v2299
          %v2644 = vpack.c.b16 %v2304, %v2300
          %v2645 = vpack.c.b16 %v2305, %v2301
          %v2646 = vpack.c.b16 %v2310, %v2306
          %v2647 = vpack.c.b16 %v2311, %v2307
          %v2648 = vpack.c.b16 %v2312, %v2308
          %v2649 = vpack.c.b16 %v2313, %v2309
          %v2650 = vpack.c.b16 %v2318, %v2314
          %v2651 = vpack.c.b16 %v2319, %v2315
          %v2652 = vpack.c.b16 %v2320, %v2316
          %v2653 = vpack.c.b16 %v2321, %v2317
          %v2654 = vpack.c.b16 %v2326, %v2322
          %v2655 = vpack.c.b16 %v2327, %v2323
          %v2656 = vpack.c.b16 %v2328, %v2324
          %v2657 = vpack.c.b16 %v2329, %v2325
          %v2658 = vpack.c.b16 %v2334, %v2330
          %v2659 = vpack.c.b16 %v2335, %v2331
          %v2660 = vpack.c.b16 %v2336, %v2332
          %v2661 = vpack.c.b16 %v2337, %v2333
          %v2662 = vpack.c.b16 %v2342, %v2338
          %v2663 = vpack.c.b16 %v2343, %v2339
          %v2664 = vpack.c.b16 %v2344, %v2340
          %v2665 = vpack.c.b16 %v2345, %v2341
          %v2666 = vpack.c.b16 %v2350, %v2346
          %v2667 = vpack.c.b16 %v2351, %v2347
          %v2668 = vpack.c.b16 %v2352, %v2348
          %v2669 = vpack.c.b16 %v2353, %v2349
          %v2670 = vpack.c.b16 %v2358, %v2354
          %v2671 = vpack.c.b16 %v2359, %v2355
          %v2672 = vpack.c.b16 %v2360, %v2356
          %v2673 = vpack.c.b16 %v2361, %v2357
          %v2674 = vpack.c.b16 %v2366, %v2362
          %v2675 = vpack.c.b16 %v2367, %v2363
          %v2676 = vpack.c.b16 %v2368, %v2364
          %v2677 = vpack.c.b16 %v2369, %v2365
          %v2678 = vpack.c.b16 %v2374, %v2370
          %v2679 = vpack.c.b16 %v2375, %v2371
          %v2680 = vpack.c.b16 %v2376, %v2372
          %v2681 = vpack.c.b16 %v2377, %v2373
          %v2682 = vpack.c.b16 %v2382, %v2378
          %v2683 = vpack.c.b16 %v2383, %v2379
          %v2684 = vpack.c.b16 %v2384, %v2380
          %v2685 = vpack.c.b16 %v2385, %v2381
          %v2686 = vpack.c.b16 %v2390, %v2386
          %v2687 = vpack.c.b16 %v2391, %v2387
          %v2688 = vpack.c.b16 %v2392, %v2388
          %v2689 = vpack.c.b16 %v2393, %v2389
          %v2690 = vpack.c.b16 %v2398, %v2394
          %v2691 = vpack.c.b16 %v2399, %v2395
          %v2692 = vpack.c.b16 %v2400, %v2396
          %v2693 = vpack.c.b16 %v2401, %v2397
          %v2694 = vpack.c.b16 %v2406, %v2402
          %v2695 = vpack.c.b16 %v2407, %v2403
          %v2696 = vpack.c.b16 %v2408, %v2404
          %v2697 = vpack.c.b16 %v2409, %v2405
          %v2698 = vpack.c.b16 %v2414, %v2410
          %v2699 = vpack.c.b16 %v2415, %v2411
          %v2700 = vpack.c.b16 %v2416, %v2412
          %v2701 = vpack.c.b16 %v2417, %v2413
          %v2702 = vpack.c.b16 %v2422, %v2418
          %v2703 = vpack.c.b16 %v2423, %v2419
          %v2704 = vpack.c.b16 %v2424, %v2420
          %v2705 = vpack.c.b16 %v2425, %v2421
          %v2706 = vpack.c.b16 %v2430, %v2426
          %v2707 = vpack.c.b16 %v2431, %v2427
          %v2708 = vpack.c.b16 %v2432, %v2428
          %v2709 = vpack.c.b16 %v2433, %v2429
          %v2710 = vpack.c.b16 %v2438, %v2434
          %v2711 = vpack.c.b16 %v2439, %v2435
          %v2712 = vpack.c.b16 %v2440, %v2436
          %v2713 = vpack.c.b16 %v2441, %v2437
          %v2714 = vpack.c.b16 %v2446, %v2442
          %v2715 = vpack.c.b16 %v2447, %v2443
          %v2716 = vpack.c.b16 %v2448, %v2444
          %v2717 = vpack.c.b16 %v2449, %v2445
          %v2718 = vpack.c.b16 %v2454, %v2450
          %v2719 = vpack.c.b16 %v2455, %v2451
          %v2720 = vpack.c.b16 %v2456, %v2452
          %v2721 = vpack.c.b16 %v2457, %v2453
          %v2722 = vpack.c.b16 %v2462, %v2458
          %v2723 = vpack.c.b16 %v2463, %v2459
          %v2724 = vpack.c.b16 %v2464, %v2460
          %v2725 = vpack.c.b16 %v2465, %v2461
          %v2726 = vpack.c.b16 %v2470, %v2466
          %v2727 = vpack.c.b16 %v2471, %v2467
          %v2728 = vpack.c.b16 %v2472, %v2468
          %v2729 = vpack.c.b16 %v2473, %v2469
          %v2987 = vlaneseq
          %v2988 = vshrl.u32 %v2987, 7
          %v2989 = vsub.s32 0, %v2988
          %v2990 = vrot.slane %v1705, %v2989
          %v2991 = vlaneseq
          %v2992 = vshrl.u32 %v2991, 7
          %v2993 = vsub.s32 1, %v2992
          %v2994 = vrot.slane %v1705, %v2993
          %v2995 = vlaneseq
          %v2996 = vshrl.u32 %v2995, 7
          %v2997 = vsub.s32 2, %v2996
          %v2998 = vrot.slane %v1705, %v2997
          %v2999 = vlaneseq
          %v3000 = vshrl.u32 %v2999, 7
          %v3001 = vsub.s32 3, %v3000
          %v3002 = vrot.slane %v1705, %v3001
          %3007 = vmatprep.subr.bf16.mxu0 %v2503
          %3008 = vmatpush1.bf16.msra.mxu0 %v2502
          %3009 = vmatprep.subr.bf16.mxu0 %v2499
          %3010 = vmatpush1.bf16.msra.mxu0 %v2498
          %3011 = vmatprep.subr.bf16.mxu0 %v2495
          %3012 = vmatpush1.bf16.msra.mxu0 %v2494
          %3013 = vmatprep.subr.bf16.mxu0 %v2491
          %3014 = vmatpush1.bf16.msra.mxu0 %v2490
          %3015 = vmatprep.subr.bf16.mxu0 %v2487
          %3016 = vmatpush1.bf16.msra.mxu0 %v2486
          %3017 = vmatprep.subr.bf16.mxu0 %v2483
          %3018 = vmatpush1.bf16.msra.mxu0 %v2482
          %3019 = vmatprep.subr.bf16.mxu0 %v2479
          %3020 = vmatpush1.bf16.msra.mxu0 %v2478
          %3021 = vmatprep.subr.bf16.mxu0 %v2475
          %3022 = vmatpush1.bf16.msra.mxu0 %v2474
          %3023 = vmatprep.subr.bf16.mxu0 %v2535
          %3024 = vmatpush2.bf16.msra.mxu0 %v2534
          %3025 = vmatprep.subr.bf16.mxu0 %v2531
          %3026 = vmatpush2.bf16.msra.mxu0 %v2530
          %3027 = vmatprep.subr.bf16.mxu0 %v2527
          %3028 = vmatpush2.bf16.msra.mxu0 %v2526
          %3029 = vmatprep.subr.bf16.mxu0 %v2523
          %3030 = vmatpush2.bf16.msra.mxu0 %v2522
          %3031 = vmatprep.subr.bf16.mxu0 %v2519
          %3032 = vmatpush2.bf16.msra.mxu0 %v2518
          %3033 = vmatprep.subr.bf16.mxu0 %v2515
          %3034 = vmatpush2.bf16.msra.mxu0 %v2514
          %3035 = vmatprep.subr.bf16.mxu0 %v2511
          %3036 = vmatpush2.bf16.msra.mxu0 %v2510
          %3037 = vmatprep.subr.bf16.mxu0 %v2507
          %3038 = vmatpush2.bf16.msra.mxu0 %v2506
          %3039 = vmatprep.mubr.bf16.mxu0 %v1442
          %3040 = vmatmul.mubr.bf16.gmra.mxu0 %v1441
          %v3041 = vpop.f32.mrf.mxu0
          %v3042 = vadd.f32 %v2990, %v3041
          %v3043 = vpop.f32.mrf.mxu0
          %v3044 = vadd.f32 %v2994, %v3043
          %v3045 = vpop.f32.mrf.mxu0
          %v3046 = vpop.f32.mrf.mxu0
          %3047 = vdwg.mxu0
          %3048 = vmatprep.subr.bf16.mxu0 %v2567
          %3049 = vmatpush1.bf16.msra.mxu0 %v2566
          %3050 = vmatprep.subr.bf16.mxu0 %v2563
          %3051 = vmatpush1.bf16.msra.mxu0 %v2562
          %3052 = vmatprep.subr.bf16.mxu0 %v2559
          %3053 = vmatpush1.bf16.msra.mxu0 %v2558
          %3054 = vmatprep.subr.bf16.mxu0 %v2555
          %3055 = vmatpush1.bf16.msra.mxu0 %v2554
          %3056 = vmatprep.subr.bf16.mxu0 %v2551
          %3057 = vmatpush1.bf16.msra.mxu0 %v2550
          %3058 = vmatprep.subr.bf16.mxu0 %v2547
          %3059 = vmatpush1.bf16.msra.mxu0 %v2546
          %3060 = vmatprep.subr.bf16.mxu0 %v2543
          %3061 = vmatpush1.bf16.msra.mxu0 %v2542
          %3062 = vmatprep.subr.bf16.mxu0 %v2539
          %3063 = vmatpush1.bf16.msra.mxu0 %v2538
          %3064 = vmatprep.subr.bf16.mxu0 %v2599
          %3065 = vmatpush2.bf16.msra.mxu0 %v2598
          %3066 = vmatprep.subr.bf16.mxu0 %v2595
          %3067 = vmatpush2.bf16.msra.mxu0 %v2594
          %3068 = vmatprep.subr.bf16.mxu0 %v2591
          %3069 = vmatpush2.bf16.msra.mxu0 %v2590
          %3070 = vmatprep.subr.bf16.mxu0 %v2587
          %3071 = vmatpush2.bf16.msra.mxu0 %v2586
          %3072 = vmatprep.subr.bf16.mxu0 %v2583
          %3073 = vmatpush2.bf16.msra.mxu0 %v2582
          %3074 = vmatprep.subr.bf16.mxu0 %v2579
          %3075 = vmatpush2.bf16.msra.mxu0 %v2578
          %3076 = vmatprep.subr.bf16.mxu0 %v2575
          %3077 = vmatpush2.bf16.msra.mxu0 %v2574
          %3078 = vmatprep.subr.bf16.mxu0 %v2571
          %3079 = vmatpush2.bf16.msra.mxu0 %v2570
          %3080 = vmatprep.mubr.bf16.mxu0 %v1444
          %3081 = vmatmul.mubr.bf16.gmra.mxu0 %v1443
          %v3082 = vpop.f32.mrf.mxu0
          %v3083 = vadd.f32 %v3042, %v3082
          %v3084 = vpop.f32.mrf.mxu0
          %v3085 = vadd.f32 %v3044, %v3084
          %v3086 = vpop.f32.mrf.mxu0
          %v3087 = vpop.f32.mrf.mxu0
          %3088 = vdwg.mxu0
          %3089 = vmatprep.subr.bf16.mxu0 %v2631
          %3090 = vmatpush1.bf16.msra.mxu0 %v2630
          %3091 = vmatprep.subr.bf16.mxu0 %v2627
          %3092 = vmatpush1.bf16.msra.mxu0 %v2626
          %3093 = vmatprep.subr.bf16.mxu0 %v2623
          %3094 = vmatpush1.bf16.msra.mxu0 %v2622
          %3095 = vmatprep.subr.bf16.mxu0 %v2619
          %3096 = vmatpush1.bf16.msra.mxu0 %v2618
          %3097 = vmatprep.subr.bf16.mxu0 %v2615
          %3098 = vmatpush1.bf16.msra.mxu0 %v2614
          %3099 = vmatprep.subr.bf16.mxu0 %v2611
          %3100 = vmatpush1.bf16.msra.mxu0 %v2610
          %3101 = vmatprep.subr.bf16.mxu0 %v2607
          %3102 = vmatpush1.bf16.msra.mxu0 %v2606
          %3103 = vmatprep.subr.bf16.mxu0 %v2603
          %3104 = vmatpush1.bf16.msra.mxu0 %v2602
          %3105 = vmatprep.subr.bf16.mxu0 %v2663
          %3106 = vmatpush2.bf16.msra.mxu0 %v2662
          %3107 = vmatprep.subr.bf16.mxu0 %v2659
          %3108 = vmatpush2.bf16.msra.mxu0 %v2658
          %3109 = vmatprep.subr.bf16.mxu0 %v2655
          %3110 = vmatpush2.bf16.msra.mxu0 %v2654
          %3111 = vmatprep.subr.bf16.mxu0 %v2651
          %3112 = vmatpush2.bf16.msra.mxu0 %v2650
          %3113 = vmatprep.subr.bf16.mxu0 %v2647
          %3114 = vmatpush2.bf16.msra.mxu0 %v2646
          %3115 = vmatprep.subr.bf16.mxu0 %v2643
          %3116 = vmatpush2.bf16.msra.mxu0 %v2642
          %3117 = vmatprep.subr.bf16.mxu0 %v2639
          %3118 = vmatpush2.bf16.msra.mxu0 %v2638
          %3119 = vmatprep.subr.bf16.mxu0 %v2635
          %3120 = vmatpush2.bf16.msra.mxu0 %v2634
          %3121 = vmatprep.mubr.bf16.mxu0 %v1446
          %3122 = vmatmul.mubr.bf16.gmra.mxu0 %v1445
          %v3123 = vpop.f32.mrf.mxu0
          %v3124 = vadd.f32 %v3083, %v3123
          %v3125 = vpop.f32.mrf.mxu0
          %v3126 = vadd.f32 %v3085, %v3125
          %v3127 = vpop.f32.mrf.mxu0
          %v3128 = vpop.f32.mrf.mxu0
          %3129 = vdwg.mxu0
          %3130 = vmatprep.subr.bf16.mxu0 %v2695
          %3131 = vmatpush1.bf16.msra.mxu0 %v2694
          %3132 = vmatprep.subr.bf16.mxu0 %v2691
          %3133 = vmatpush1.bf16.msra.mxu0 %v2690
          %3134 = vmatprep.subr.bf16.mxu0 %v2687
          %3135 = vmatpush1.bf16.msra.mxu0 %v2686
          %3136 = vmatprep.subr.bf16.mxu0 %v2683
          %3137 = vmatpush1.bf16.msra.mxu0 %v2682
          %3138 = vmatprep.subr.bf16.mxu0 %v2679
          %3139 = vmatpush1.bf16.msra.mxu0 %v2678
          %3140 = vmatprep.subr.bf16.mxu0 %v2675
          %3141 = vmatpush1.bf16.msra.mxu0 %v2674
          %3142 = vmatprep.subr.bf16.mxu0 %v2671
          %3143 = vmatpush1.bf16.msra.mxu0 %v2670
          %3144 = vmatprep.subr.bf16.mxu0 %v2667
          %3145 = vmatpush1.bf16.msra.mxu0 %v2666
          %3146 = vmatprep.subr.bf16.mxu0 %v2727
          %3147 = vmatpush2.bf16.msra.mxu0 %v2726
          %3148 = vmatprep.subr.bf16.mxu0 %v2723
          %3149 = vmatpush2.bf16.msra.mxu0 %v2722
          %3150 = vmatprep.subr.bf16.mxu0 %v2719
          %3151 = vmatpush2.bf16.msra.mxu0 %v2718
          %3152 = vmatprep.subr.bf16.mxu0 %v2715
          %3153 = vmatpush2.bf16.msra.mxu0 %v2714
          %3154 = vmatprep.subr.bf16.mxu0 %v2711
          %3155 = vmatpush2.bf16.msra.mxu0 %v2710
          %3156 = vmatprep.subr.bf16.mxu0 %v2707
          %3157 = vmatpush2.bf16.msra.mxu0 %v2706
          %3158 = vmatprep.subr.bf16.mxu0 %v2703
          %3159 = vmatpush2.bf16.msra.mxu0 %v2702
          %3160 = vmatprep.subr.bf16.mxu0 %v2699
          %3161 = vmatpush2.bf16.msra.mxu0 %v2698
          %3162 = vmatprep.mubr.bf16.mxu0 %v1448
          %3163 = vmatmul.mubr.bf16.gmra.mxu0 %v1447
          %v3164 = vpop.f32.mrf.mxu0
          %v3165 = vadd.f32 %v3124, %v3164
          %v3166 = vpop.f32.mrf.mxu0
          %v3167 = vadd.f32 %v3126, %v3166
          %v3168 = vpop.f32.mrf.mxu0
          %v3169 = vpop.f32.mrf.mxu0
          %3170 = vdwg.mxu0
          %3171 = vmatprep.subr.bf16.mxu0 %v2505
          %3172 = vmatpush1.bf16.msra.mxu0 %v2504
          %3173 = vmatprep.subr.bf16.mxu0 %v2501
          %3174 = vmatpush1.bf16.msra.mxu0 %v2500
          %3175 = vmatprep.subr.bf16.mxu0 %v2497
          %3176 = vmatpush1.bf16.msra.mxu0 %v2496
          %3177 = vmatprep.subr.bf16.mxu0 %v2493
          %3178 = vmatpush1.bf16.msra.mxu0 %v2492
          %3179 = vmatprep.subr.bf16.mxu0 %v2489
          %3180 = vmatpush1.bf16.msra.mxu0 %v2488
          %3181 = vmatprep.subr.bf16.mxu0 %v2485
          %3182 = vmatpush1.bf16.msra.mxu0 %v2484
          %3183 = vmatprep.subr.bf16.mxu0 %v2481
          %3184 = vmatpush1.bf16.msra.mxu0 %v2480
          %3185 = vmatprep.subr.bf16.mxu0 %v2477
          %3186 = vmatpush1.bf16.msra.mxu0 %v2476
          %3187 = vmatprep.subr.bf16.mxu0 %v2537
          %3188 = vmatpush2.bf16.msra.mxu0 %v2536
          %3189 = vmatprep.subr.bf16.mxu0 %v2533
          %3190 = vmatpush2.bf16.msra.mxu0 %v2532
          %3191 = vmatprep.subr.bf16.mxu0 %v2529
          %3192 = vmatpush2.bf16.msra.mxu0 %v2528
          %3193 = vmatprep.subr.bf16.mxu0 %v2525
          %3194 = vmatpush2.bf16.msra.mxu0 %v2524
          %3195 = vmatprep.subr.bf16.mxu0 %v2521
          %3196 = vmatpush2.bf16.msra.mxu0 %v2520
          %3197 = vmatprep.subr.bf16.mxu0 %v2517
          %3198 = vmatpush2.bf16.msra.mxu0 %v2516
          %3199 = vmatprep.subr.bf16.mxu0 %v2513
          %3200 = vmatpush2.bf16.msra.mxu0 %v2512
          %3201 = vmatprep.subr.bf16.mxu0 %v2509
          %3202 = vmatpush2.bf16.msra.mxu0 %v2508
          %3203 = vmatprep.mubr.bf16.mxu0 %v1442
          %3204 = vmatmul.mubr.bf16.gmra.mxu0 %v1441
          %v3205 = vpop.f32.mrf.mxu0
          %v3206 = vadd.f32 %v2998, %v3205
          %v3207 = vpop.f32.mrf.mxu0
          %v3208 = vadd.f32 %v3002, %v3207
          %v3209 = vpop.f32.mrf.mxu0
          %v3210 = vpop.f32.mrf.mxu0
          %3211 = vdwg.mxu0
          %3212 = vmatprep.subr.bf16.mxu0 %v2569
          %3213 = vmatpush1.bf16.msra.mxu0 %v2568
          %3214 = vmatprep.subr.bf16.mxu0 %v2565
          %3215 = vmatpush1.bf16.msra.mxu0 %v2564
          %3216 = vmatprep.subr.bf16.mxu0 %v2561
          %3217 = vmatpush1.bf16.msra.mxu0 %v2560
          %3218 = vmatprep.subr.bf16.mxu0 %v2557
          %3219 = vmatpush1.bf16.msra.mxu0 %v2556
          %3220 = vmatprep.subr.bf16.mxu0 %v2553
          %3221 = vmatpush1.bf16.msra.mxu0 %v2552
          %3222 = vmatprep.subr.bf16.mxu0 %v2549
          %3223 = vmatpush1.bf16.msra.mxu0 %v2548
          %3224 = vmatprep.subr.bf16.mxu0 %v2545
          %3225 = vmatpush1.bf16.msra.mxu0 %v2544
          %3226 = vmatprep.subr.bf16.mxu0 %v2541
          %3227 = vmatpush1.bf16.msra.mxu0 %v2540
          %3228 = vmatprep.subr.bf16.mxu0 %v2601
          %3229 = vmatpush2.bf16.msra.mxu0 %v2600
          %3230 = vmatprep.subr.bf16.mxu0 %v2597
          %3231 = vmatpush2.bf16.msra.mxu0 %v2596
          %3232 = vmatprep.subr.bf16.mxu0 %v2593
          %3233 = vmatpush2.bf16.msra.mxu0 %v2592
          %3234 = vmatprep.subr.bf16.mxu0 %v2589
          %3235 = vmatpush2.bf16.msra.mxu0 %v2588
          %3236 = vmatprep.subr.bf16.mxu0 %v2585
          %3237 = vmatpush2.bf16.msra.mxu0 %v2584
          %3238 = vmatprep.subr.bf16.mxu0 %v2581
          %3239 = vmatpush2.bf16.msra.mxu0 %v2580
          %3240 = vmatprep.subr.bf16.mxu0 %v2577
          %3241 = vmatpush2.bf16.msra.mxu0 %v2576
          %3242 = vmatprep.subr.bf16.mxu0 %v2573
          %3243 = vmatpush2.bf16.msra.mxu0 %v2572
          %3244 = vmatprep.mubr.bf16.mxu0 %v1444
          %3245 = vmatmul.mubr.bf16.gmra.mxu0 %v1443
          %v3246 = vpop.f32.mrf.mxu0
          %v3247 = vadd.f32 %v3206, %v3246
          %v3248 = vpop.f32.mrf.mxu0
          %v3249 = vadd.f32 %v3208, %v3248
          %v3250 = vpop.f32.mrf.mxu0
          %v3251 = vpop.f32.mrf.mxu0
          %3252 = vdwg.mxu0
          %3253 = vmatprep.subr.bf16.mxu0 %v2633
          %3254 = vmatpush1.bf16.msra.mxu0 %v2632
          %3255 = vmatprep.subr.bf16.mxu0 %v2629
          %3256 = vmatpush1.bf16.msra.mxu0 %v2628
          %3257 = vmatprep.subr.bf16.mxu0 %v2625
          %3258 = vmatpush1.bf16.msra.mxu0 %v2624
          %3259 = vmatprep.subr.bf16.mxu0 %v2621
          %3260 = vmatpush1.bf16.msra.mxu0 %v2620
          %3261 = vmatprep.subr.bf16.mxu0 %v2617
          %3262 = vmatpush1.bf16.msra.mxu0 %v2616
          %3263 = vmatprep.subr.bf16.mxu0 %v2613
          %3264 = vmatpush1.bf16.msra.mxu0 %v2612
          %3265 = vmatprep.subr.bf16.mxu0 %v2609
          %3266 = vmatpush1.bf16.msra.mxu0 %v2608
          %3267 = vmatprep.subr.bf16.mxu0 %v2605
          %3268 = vmatpush1.bf16.msra.mxu0 %v2604
          %3269 = vmatprep.subr.bf16.mxu0 %v2665
          %3270 = vmatpush2.bf16.msra.mxu0 %v2664
          %3271 = vmatprep.subr.bf16.mxu0 %v2661
          %3272 = vmatpush2.bf16.msra.mxu0 %v2660
          %3273 = vmatprep.subr.bf16.mxu0 %v2657
          %3274 = vmatpush2.bf16.msra.mxu0 %v2656
          %3275 = vmatprep.subr.bf16.mxu0 %v2653
          %3276 = vmatpush2.bf16.msra.mxu0 %v2652
          %3277 = vmatprep.subr.bf16.mxu0 %v2649
          %3278 = vmatpush2.bf16.msra.mxu0 %v2648
          %3279 = vmatprep.subr.bf16.mxu0 %v2645
          %3280 = vmatpush2.bf16.msra.mxu0 %v2644
          %3281 = vmatprep.subr.bf16.mxu0 %v2641
          %3282 = vmatpush2.bf16.msra.mxu0 %v2640
          %3283 = vmatprep.subr.bf16.mxu0 %v2637
          %3284 = vmatpush2.bf16.msra.mxu0 %v2636
          %3285 = vmatprep.mubr.bf16.mxu0 %v1446
          %3286 = vmatmul.mubr.bf16.gmra.mxu0 %v1445
          %v3287 = vpop.f32.mrf.mxu0
          %v3288 = vadd.f32 %v3247, %v3287
          %v3289 = vpop.f32.mrf.mxu0
          %v3290 = vadd.f32 %v3249, %v3289
          %v3291 = vpop.f32.mrf.mxu0
          %v3292 = vpop.f32.mrf.mxu0
          %3293 = vdwg.mxu0
          %3294 = vmatprep.subr.bf16.mxu0 %v2697
          %3295 = vmatpush1.bf16.msra.mxu0 %v2696
          %3296 = vmatprep.subr.bf16.mxu0 %v2693
          %3297 = vmatpush1.bf16.msra.mxu0 %v2692
          %3298 = vmatprep.subr.bf16.mxu0 %v2689
          %3299 = vmatpush1.bf16.msra.mxu0 %v2688
          %3300 = vmatprep.subr.bf16.mxu0 %v2685
          %3301 = vmatpush1.bf16.msra.mxu0 %v2684
          %3302 = vmatprep.subr.bf16.mxu0 %v2681
          %3303 = vmatpush1.bf16.msra.mxu0 %v2680
          %3304 = vmatprep.subr.bf16.mxu0 %v2677
          %3305 = vmatpush1.bf16.msra.mxu0 %v2676
          %3306 = vmatprep.subr.bf16.mxu0 %v2673
          %3307 = vmatpush1.bf16.msra.mxu0 %v2672
          %3308 = vmatprep.subr.bf16.mxu0 %v2669
          %3309 = vmatpush1.bf16.msra.mxu0 %v2668
          %3310 = vmatprep.subr.bf16.mxu0 %v2729
          %3311 = vmatpush2.bf16.msra.mxu0 %v2728
          %3312 = vmatprep.subr.bf16.mxu0 %v2725
          %3313 = vmatpush2.bf16.msra.mxu0 %v2724
          %3314 = vmatprep.subr.bf16.mxu0 %v2721
          %3315 = vmatpush2.bf16.msra.mxu0 %v2720
          %3316 = vmatprep.subr.bf16.mxu0 %v2717
          %3317 = vmatpush2.bf16.msra.mxu0 %v2716
          %3318 = vmatprep.subr.bf16.mxu0 %v2713
          %3319 = vmatpush2.bf16.msra.mxu0 %v2712
          %3320 = vmatprep.subr.bf16.mxu0 %v2709
          %3321 = vmatpush2.bf16.msra.mxu0 %v2708
          %3322 = vmatprep.subr.bf16.mxu0 %v2705
          %3323 = vmatpush2.bf16.msra.mxu0 %v2704
          %3324 = vmatprep.subr.bf16.mxu0 %v2701
          %3325 = vmatpush2.bf16.msra.mxu0 %v2700
          %3326 = vmatprep.mubr.bf16.mxu0 %v1448
          %3327 = vmatmul.mubr.bf16.gmra.mxu0 %v1447
          %v3328 = vpop.f32.mrf.mxu0
          %v3329 = vadd.f32 %v3288, %v3328
          %v3330 = vpop.f32.mrf.mxu0
          %v3331 = vadd.f32 %v3290, %v3330
          %v3332 = vpop.f32.mrf.mxu0
          %v3333 = vpop.f32.mrf.mxu0
          %3334 = vdwg.mxu0
          %v3335 = vmax.f32 %v3165, 0.0
          %v3336 = vmax.f32 %v3167, 0.0
          %v3337 = vmax.f32 %v3329, 0.0
          %v3338 = vmax.f32 %v3331, 0.0
          %v3339 = vpack.c.bf16 %v3335, %v3335
          %v3340 = vpack.c.bf16 %v3336, %v3336
          %v3341 = vpack.c.bf16 %v3337, %v3337
          %v3342 = vpack.c.bf16 %v3338, %v3338
          %v3343 = vld [vmem:[#allocation7] sm:$0xff]
          %v3344 = vld [vmem:[#allocation7 + $0x8] sm:$0xff]
          %v3345 = vld [vmem:[#allocation7 + $0x10] sm:$0xff]
          %v3346 = vld [vmem:[#allocation7 + $0x18] sm:$0xff]
          %v3347 = vld [vmem:[#allocation7 + $0x20] sm:$0xff]
          %v3348 = vld [vmem:[#allocation7 + $0x28] sm:$0xff]
          %v3349 = vld [vmem:[#allocation7 + $0x30] sm:$0xff]
          %v3350 = vld [vmem:[#allocation7 + $0x38] sm:$0xff]
          %v3351 = vld [vmem:[#allocation7 + $0x40] sm:$0xff]
          %v3352 = vld [vmem:[#allocation7 + $0x48] sm:$0xff]
          %v3353 = vld [vmem:[#allocation7 + $0x50] sm:$0xff]
          %v3354 = vld [vmem:[#allocation7 + $0x58] sm:$0xff]
          %v3355 = vld [vmem:[#allocation7 + $0x60] sm:$0xff]
          %v3356 = vld [vmem:[#allocation7 + $0x68] sm:$0xff]
          %v3357 = vld [vmem:[#allocation7 + $0x70] sm:$0xff]
          %v3358 = vld [vmem:[#allocation7 + $0x78] sm:$0xff]
          %v3359 = vld [vmem:[#allocation7 + $0x80] sm:$0xff]
          %v3360 = vld [vmem:[#allocation7 + $0x88] sm:$0xff]
          %v3361 = vld [vmem:[#allocation7 + $0x90] sm:$0xff]
          %v3362 = vld [vmem:[#allocation7 + $0x98] sm:$0xff]
          %v3363 = vld [vmem:[#allocation7 + $0xa0] sm:$0xff]
          %v3364 = vld [vmem:[#allocation7 + $0xa8] sm:$0xff]
          %v3365 = vld [vmem:[#allocation7 + $0xb0] sm:$0xff]
          %v3366 = vld [vmem:[#allocation7 + $0xb8] sm:$0xff]
          %v3367 = vld [vmem:[#allocation7 + $0xc0] sm:$0xff]
          %v3368 = vld [vmem:[#allocation7 + $0xc8] sm:$0xff]
          %v3369 = vld [vmem:[#allocation7 + $0xd0] sm:$0xff]
          %v3370 = vld [vmem:[#allocation7 + $0xd8] sm:$0xff]
          %v3371 = vld [vmem:[#allocation7 + $0xe0] sm:$0xff]
          %v3372 = vld [vmem:[#allocation7 + $0xe8] sm:$0xff]
          %v3373 = vld [vmem:[#allocation7 + $0xf0] sm:$0xff]
          %v3374 = vld [vmem:[#allocation7 + $0xf8] sm:$0xff]
          %v3375 = vld [vmem:[#allocation7 + $0x100] sm:$0xff]
          %v3376 = vld [vmem:[#allocation7 + $0x108] sm:$0xff]
          %v3377 = vld [vmem:[#allocation7 + $0x110] sm:$0xff]
          %v3378 = vld [vmem:[#allocation7 + $0x118] sm:$0xff]
          %v3379 = vld [vmem:[#allocation7 + $0x120] sm:$0xff]
          %v3380 = vld [vmem:[#allocation7 + $0x128] sm:$0xff]
          %v3381 = vld [vmem:[#allocation7 + $0x130] sm:$0xff]
          %v3382 = vld [vmem:[#allocation7 + $0x138] sm:$0xff]
          %v3383 = vld [vmem:[#allocation7 + $0x140] sm:$0xff]
          %v3384 = vld [vmem:[#allocation7 + $0x148] sm:$0xff]
          %v3385 = vld [vmem:[#allocation7 + $0x150] sm:$0xff]
          %v3386 = vld [vmem:[#allocation7 + $0x158] sm:$0xff]
          %v3387 = vld [vmem:[#allocation7 + $0x160] sm:$0xff]
          %v3388 = vld [vmem:[#allocation7 + $0x168] sm:$0xff]
          %v3389 = vld [vmem:[#allocation7 + $0x170] sm:$0xff]
          %v3390 = vld [vmem:[#allocation7 + $0x178] sm:$0xff]
          %v3391 = vld [vmem:[#allocation7 + $0x180] sm:$0xff]
          %v3392 = vld [vmem:[#allocation7 + $0x188] sm:$0xff]
          %v3393 = vld [vmem:[#allocation7 + $0x190] sm:$0xff]
          %v3394 = vld [vmem:[#allocation7 + $0x198] sm:$0xff]
          %v3395 = vld [vmem:[#allocation7 + $0x1a0] sm:$0xff]
          %v3396 = vld [vmem:[#allocation7 + $0x1a8] sm:$0xff]
          %v3397 = vld [vmem:[#allocation7 + $0x1b0] sm:$0xff]
          %v3398 = vld [vmem:[#allocation7 + $0x1b8] sm:$0xff]
          %v3399 = vld [vmem:[#allocation7 + $0x1c0] sm:$0xff]
          %v3400 = vld [vmem:[#allocation7 + $0x1c8] sm:$0xff]
          %v3401 = vld [vmem:[#allocation7 + $0x1d0] sm:$0xff]
          %v3402 = vld [vmem:[#allocation7 + $0x1d8] sm:$0xff]
          %v3403 = vld [vmem:[#allocation7 + $0x1e0] sm:$0xff]
          %v3404 = vld [vmem:[#allocation7 + $0x1e8] sm:$0xff]
          %v3405 = vld [vmem:[#allocation7 + $0x1f0] sm:$0xff]
          %v3406 = vld [vmem:[#allocation7 + $0x1f8] sm:$0xff]
          %v3407 = vld [vmem:[%s10] sm:$0x3]
          %v3472 = vunpack.c.l.b16 %v3343
          %v3473 = vunpack.c.h.b16 %v3343
          %v3474 = vunpack.c.l.b16 %v3344
          %v3475 = vunpack.c.h.b16 %v3344
          %v3476 = vunpack.c.l.b16 %v3345
          %v3477 = vunpack.c.h.b16 %v3345
          %v3478 = vunpack.c.l.b16 %v3346
          %v3479 = vunpack.c.h.b16 %v3346
          %v3480 = vunpack.c.l.b16 %v3347
          %v3481 = vunpack.c.h.b16 %v3347
          %v3482 = vunpack.c.l.b16 %v3348
          %v3483 = vunpack.c.h.b16 %v3348
          %v3484 = vunpack.c.l.b16 %v3349
          %v3485 = vunpack.c.h.b16 %v3349
          %v3486 = vunpack.c.l.b16 %v3350
          %v3487 = vunpack.c.h.b16 %v3350
          %v3488 = vunpack.c.l.b16 %v3351
          %v3489 = vunpack.c.h.b16 %v3351
          %v3490 = vunpack.c.l.b16 %v3352
          %v3491 = vunpack.c.h.b16 %v3352
          %v3492 = vunpack.c.l.b16 %v3353
          %v3493 = vunpack.c.h.b16 %v3353
          %v3494 = vunpack.c.l.b16 %v3354
          %v3495 = vunpack.c.h.b16 %v3354
          %v3496 = vunpack.c.l.b16 %v3355
          %v3497 = vunpack.c.h.b16 %v3355
          %v3498 = vunpack.c.l.b16 %v3356
          %v3499 = vunpack.c.h.b16 %v3356
          %v3500 = vunpack.c.l.b16 %v3357
          %v3501 = vunpack.c.h.b16 %v3357
          %v3502 = vunpack.c.l.b16 %v3358
          %v3503 = vunpack.c.h.b16 %v3358
          %v3504 = vunpack.c.l.b16 %v3359
          %v3505 = vunpack.c.h.b16 %v3359
          %v3506 = vunpack.c.l.b16 %v3360
          %v3507 = vunpack.c.h.b16 %v3360
          %v3508 = vunpack.c.l.b16 %v3361
          %v3509 = vunpack.c.h.b16 %v3361
          %v3510 = vunpack.c.l.b16 %v3362
          %v3511 = vunpack.c.h.b16 %v3362
          %v3512 = vunpack.c.l.b16 %v3363
          %v3513 = vunpack.c.h.b16 %v3363
          %v3514 = vunpack.c.l.b16 %v3364
          %v3515 = vunpack.c.h.b16 %v3364
          %v3516 = vunpack.c.l.b16 %v3365
          %v3517 = vunpack.c.h.b16 %v3365
          %v3518 = vunpack.c.l.b16 %v3366
          %v3519 = vunpack.c.h.b16 %v3366
          %v3520 = vunpack.c.l.b16 %v3367
          %v3521 = vunpack.c.h.b16 %v3367
          %v3522 = vunpack.c.l.b16 %v3368
          %v3523 = vunpack.c.h.b16 %v3368
          %v3524 = vunpack.c.l.b16 %v3369
          %v3525 = vunpack.c.h.b16 %v3369
          %v3526 = vunpack.c.l.b16 %v3370
          %v3527 = vunpack.c.h.b16 %v3370
          %v3528 = vunpack.c.l.b16 %v3371
          %v3529 = vunpack.c.h.b16 %v3371
          %v3530 = vunpack.c.l.b16 %v3372
          %v3531 = vunpack.c.h.b16 %v3372
          %v3532 = vunpack.c.l.b16 %v3373
          %v3533 = vunpack.c.h.b16 %v3373
          %v3534 = vunpack.c.l.b16 %v3374
          %v3535 = vunpack.c.h.b16 %v3374
          %v3536 = vunpack.c.l.b16 %v3375
          %v3537 = vunpack.c.h.b16 %v3375
          %v3538 = vunpack.c.l.b16 %v3376
          %v3539 = vunpack.c.h.b16 %v3376
          %v3540 = vunpack.c.l.b16 %v3377
          %v3541 = vunpack.c.h.b16 %v3377
          %v3542 = vunpack.c.l.b16 %v3378
          %v3543 = vunpack.c.h.b16 %v3378
          %v3544 = vunpack.c.l.b16 %v3379
          %v3545 = vunpack.c.h.b16 %v3379
          %v3546 = vunpack.c.l.b16 %v3380
          %v3547 = vunpack.c.h.b16 %v3380
          %v3548 = vunpack.c.l.b16 %v3381
          %v3549 = vunpack.c.h.b16 %v3381
          %v3550 = vunpack.c.l.b16 %v3382
          %v3551 = vunpack.c.h.b16 %v3382
          %v3552 = vunpack.c.l.b16 %v3383
          %v3553 = vunpack.c.h.b16 %v3383
          %v3554 = vunpack.c.l.b16 %v3384
          %v3555 = vunpack.c.h.b16 %v3384
          %v3556 = vunpack.c.l.b16 %v3385
          %v3557 = vunpack.c.h.b16 %v3385
          %v3558 = vunpack.c.l.b16 %v3386
          %v3559 = vunpack.c.h.b16 %v3386
          %v3560 = vunpack.c.l.b16 %v3387
          %v3561 = vunpack.c.h.b16 %v3387
          %v3562 = vunpack.c.l.b16 %v3388
          %v3563 = vunpack.c.h.b16 %v3388
          %v3564 = vunpack.c.l.b16 %v3389
          %v3565 = vunpack.c.h.b16 %v3389
          %v3566 = vunpack.c.l.b16 %v3390
          %v3567 = vunpack.c.h.b16 %v3390
          %v3568 = vunpack.c.l.b16 %v3391
          %v3569 = vunpack.c.h.b16 %v3391
          %v3570 = vunpack.c.l.b16 %v3392
          %v3571 = vunpack.c.h.b16 %v3392
          %v3572 = vunpack.c.l.b16 %v3393
          %v3573 = vunpack.c.h.b16 %v3393
          %v3574 = vunpack.c.l.b16 %v3394
          %v3575 = vunpack.c.h.b16 %v3394
          %v3576 = vunpack.c.l.b16 %v3395
          %v3577 = vunpack.c.h.b16 %v3395
          %v3578 = vunpack.c.l.b16 %v3396
          %v3579 = vunpack.c.h.b16 %v3396
          %v3580 = vunpack.c.l.b16 %v3397
          %v3581 = vunpack.c.h.b16 %v3397
          %v3582 = vunpack.c.l.b16 %v3398
          %v3583 = vunpack.c.h.b16 %v3398
          %v3584 = vunpack.c.l.b16 %v3399
          %v3585 = vunpack.c.h.b16 %v3399
          %v3586 = vunpack.c.l.b16 %v3400
          %v3587 = vunpack.c.h.b16 %v3400
          %v3588 = vunpack.c.l.b16 %v3401
          %v3589 = vunpack.c.h.b16 %v3401
          %v3590 = vunpack.c.l.b16 %v3402
          %v3591 = vunpack.c.h.b16 %v3402
          %v3592 = vunpack.c.l.b16 %v3403
          %v3593 = vunpack.c.h.b16 %v3403
          %v3594 = vunpack.c.l.b16 %v3404
          %v3595 = vunpack.c.h.b16 %v3404
          %v3596 = vunpack.c.l.b16 %v3405
          %v3597 = vunpack.c.h.b16 %v3405
          %v3598 = vunpack.c.l.b16 %v3406
          %v3599 = vunpack.c.h.b16 %v3406
          %v3600 = vpack.c.b16 %v3474, %v3472
          %v3601 = vpack.c.b16 %v3475, %v3473
          %v3602 = vpack.c.b16 %v3478, %v3476
          %v3603 = vpack.c.b16 %v3479, %v3477
          %v3604 = vpack.c.b16 %v3482, %v3480
          %v3605 = vpack.c.b16 %v3483, %v3481
          %v3606 = vpack.c.b16 %v3486, %v3484
          %v3607 = vpack.c.b16 %v3487, %v3485
          %v3608 = vpack.c.b16 %v3490, %v3488
          %v3609 = vpack.c.b16 %v3491, %v3489
          %v3610 = vpack.c.b16 %v3494, %v3492
          %v3611 = vpack.c.b16 %v3495, %v3493
          %v3612 = vpack.c.b16 %v3498, %v3496
          %v3613 = vpack.c.b16 %v3499, %v3497
          %v3614 = vpack.c.b16 %v3502, %v3500
          %v3615 = vpack.c.b16 %v3503, %v3501
          %v3616 = vpack.c.b16 %v3506, %v3504
          %v3617 = vpack.c.b16 %v3507, %v3505
          %v3618 = vpack.c.b16 %v3510, %v3508
          %v3619 = vpack.c.b16 %v3511, %v3509
          %v3620 = vpack.c.b16 %v3514, %v3512
          %v3621 = vpack.c.b16 %v3515, %v3513
          %v3622 = vpack.c.b16 %v3518, %v3516
          %v3623 = vpack.c.b16 %v3519, %v3517
          %v3624 = vpack.c.b16 %v3522, %v3520
          %v3625 = vpack.c.b16 %v3523, %v3521
          %v3626 = vpack.c.b16 %v3526, %v3524
          %v3627 = vpack.c.b16 %v3527, %v3525
          %v3628 = vpack.c.b16 %v3530, %v3528
          %v3629 = vpack.c.b16 %v3531, %v3529
          %v3630 = vpack.c.b16 %v3534, %v3532
          %v3631 = vpack.c.b16 %v3535, %v3533
          %v3632 = vpack.c.b16 %v3538, %v3536
          %v3633 = vpack.c.b16 %v3539, %v3537
          %v3634 = vpack.c.b16 %v3542, %v3540
          %v3635 = vpack.c.b16 %v3543, %v3541
          %v3636 = vpack.c.b16 %v3546, %v3544
          %v3637 = vpack.c.b16 %v3547, %v3545
          %v3638 = vpack.c.b16 %v3550, %v3548
          %v3639 = vpack.c.b16 %v3551, %v3549
          %v3640 = vpack.c.b16 %v3554, %v3552
          %v3641 = vpack.c.b16 %v3555, %v3553
          %v3642 = vpack.c.b16 %v3558, %v3556
          %v3643 = vpack.c.b16 %v3559, %v3557
          %v3644 = vpack.c.b16 %v3562, %v3560
          %v3645 = vpack.c.b16 %v3563, %v3561
          %v3646 = vpack.c.b16 %v3566, %v3564
          %v3647 = vpack.c.b16 %v3567, %v3565
          %v3648 = vpack.c.b16 %v3570, %v3568
          %v3649 = vpack.c.b16 %v3571, %v3569
          %v3650 = vpack.c.b16 %v3574, %v3572
          %v3651 = vpack.c.b16 %v3575, %v3573
          %v3652 = vpack.c.b16 %v3578, %v3576
          %v3653 = vpack.c.b16 %v3579, %v3577
          %v3654 = vpack.c.b16 %v3582, %v3580
          %v3655 = vpack.c.b16 %v3583, %v3581
          %v3656 = vpack.c.b16 %v3586, %v3584
          %v3657 = vpack.c.b16 %v3587, %v3585
          %v3658 = vpack.c.b16 %v3590, %v3588
          %v3659 = vpack.c.b16 %v3591, %v3589
          %v3660 = vpack.c.b16 %v3594, %v3592
          %v3661 = vpack.c.b16 %v3595, %v3593
          %v3662 = vpack.c.b16 %v3598, %v3596
          %v3663 = vpack.c.b16 %v3599, %v3597
          %v3729 = vlaneseq
          %v3730 = vshrl.u32 %v3729, 7
          %v3731 = vsub.s32 0, %v3730
          %v3732 = vrot.slane %v3407, %v3731
          %v3733 = vlaneseq
          %v3734 = vshrl.u32 %v3733, 7
          %v3735 = vsub.s32 1, %v3734
          %v3736 = vrot.slane %v3407, %v3735
          %3739 = vmatprep.subr.bf16.mxu0 %v3615
          %3740 = vmatpush1.bf16.msra.mxu0 %v3614
          %3741 = vmatprep.subr.bf16.mxu0 %v3613
          %3742 = vmatpush1.bf16.msra.mxu0 %v3612
          %3743 = vmatprep.subr.bf16.mxu0 %v3611
          %3744 = vmatpush1.bf16.msra.mxu0 %v3610
          %3745 = vmatprep.subr.bf16.mxu0 %v3609
          %3746 = vmatpush1.bf16.msra.mxu0 %v3608
          %3747 = vmatprep.subr.bf16.mxu0 %v3607
          %3748 = vmatpush1.bf16.msra.mxu0 %v3606
          %3749 = vmatprep.subr.bf16.mxu0 %v3605
          %3750 = vmatpush1.bf16.msra.mxu0 %v3604
          %3751 = vmatprep.subr.bf16.mxu0 %v3603
          %3752 = vmatpush1.bf16.msra.mxu0 %v3602
          %3753 = vmatprep.subr.bf16.mxu0 %v3601
          %3754 = vmatpush1.bf16.msra.mxu0 %v3600
          %3755 = vmatprep.subr.bf16.mxu0 %v3631
          %3756 = vmatpush2.bf16.msra.mxu0 %v3630
          %3757 = vmatprep.subr.bf16.mxu0 %v3629
          %3758 = vmatpush2.bf16.msra.mxu0 %v3628
          %3759 = vmatprep.subr.bf16.mxu0 %v3627
          %3760 = vmatpush2.bf16.msra.mxu0 %v3626
          %3761 = vmatprep.subr.bf16.mxu0 %v3625
          %3762 = vmatpush2.bf16.msra.mxu0 %v3624
          %3763 = vmatprep.subr.bf16.mxu0 %v3623
          %3764 = vmatpush2.bf16.msra.mxu0 %v3622
          %3765 = vmatprep.subr.bf16.mxu0 %v3621
          %3766 = vmatpush2.bf16.msra.mxu0 %v3620
          %3767 = vmatprep.subr.bf16.mxu0 %v3619
          %3768 = vmatpush2.bf16.msra.mxu0 %v3618
          %3769 = vmatprep.subr.bf16.mxu0 %v3617
          %3770 = vmatpush2.bf16.msra.mxu0 %v3616
          %3771 = vmatprep.mubr.bf16.mxu0 %v3340
          %3772 = vmatmul.mubr.bf16.gmra.mxu0 %v3339
          %v3773 = vpop.f32.mrf.mxu0
          %v3774 = vadd.f32 %v3732, %v3773
          %v3775 = vpop.f32.mrf.mxu0
          %v3776 = vadd.f32 %v3736, %v3775
          %v3777 = vpop.f32.mrf.mxu0
          %v3778 = vpop.f32.mrf.mxu0
          %3779 = vdwg.mxu0
          %3780 = vmatprep.subr.bf16.mxu0 %v3647
          %3781 = vmatpush1.bf16.msra.mxu0 %v3646
          %3782 = vmatprep.subr.bf16.mxu0 %v3645
          %3783 = vmatpush1.bf16.msra.mxu0 %v3644
          %3784 = vmatprep.subr.bf16.mxu0 %v3643
          %3785 = vmatpush1.bf16.msra.mxu0 %v3642
          %3786 = vmatprep.subr.bf16.mxu0 %v3641
          %3787 = vmatpush1.bf16.msra.mxu0 %v3640
          %3788 = vmatprep.subr.bf16.mxu0 %v3639
          %3789 = vmatpush1.bf16.msra.mxu0 %v3638
          %3790 = vmatprep.subr.bf16.mxu0 %v3637
          %3791 = vmatpush1.bf16.msra.mxu0 %v3636
          %3792 = vmatprep.subr.bf16.mxu0 %v3635
          %3793 = vmatpush1.bf16.msra.mxu0 %v3634
          %3794 = vmatprep.subr.bf16.mxu0 %v3633
          %3795 = vmatpush1.bf16.msra.mxu0 %v3632
          %3796 = vmatprep.subr.bf16.mxu0 %v3663
          %3797 = vmatpush2.bf16.msra.mxu0 %v3662
          %3798 = vmatprep.subr.bf16.mxu0 %v3661
          %3799 = vmatpush2.bf16.msra.mxu0 %v3660
          %3800 = vmatprep.subr.bf16.mxu0 %v3659
          %3801 = vmatpush2.bf16.msra.mxu0 %v3658
          %3802 = vmatprep.subr.bf16.mxu0 %v3657
          %3803 = vmatpush2.bf16.msra.mxu0 %v3656
          %3804 = vmatprep.subr.bf16.mxu0 %v3655
          %3805 = vmatpush2.bf16.msra.mxu0 %v3654
          %3806 = vmatprep.subr.bf16.mxu0 %v3653
          %3807 = vmatpush2.bf16.msra.mxu0 %v3652
          %3808 = vmatprep.subr.bf16.mxu0 %v3651
          %3809 = vmatpush2.bf16.msra.mxu0 %v3650
          %3810 = vmatprep.subr.bf16.mxu0 %v3649
          %3811 = vmatpush2.bf16.msra.mxu0 %v3648
          %3812 = vmatprep.mubr.bf16.mxu0 %v3342
          %3813 = vmatmul.mubr.bf16.gmra.mxu0 %v3341
          %v3814 = vpop.f32.mrf.mxu0
          %v3815 = vadd.f32 %v3774, %v3814
          %v3816 = vpop.f32.mrf.mxu0
          %v3817 = vadd.f32 %v3776, %v3816
          %v3818 = vpop.f32.mrf.mxu0
          %v3819 = vpop.f32.mrf.mxu0
          %3820 = vdwg.mxu0
          %v3821 = vmax.f32 %v3815, 0.0
          %v3822 = vmax.f32 %v3817, 0.0
          %v3823 = vpack.c.bf16 %v3821, %v3821
          %v3824 = vpack.c.bf16 %v3822, %v3822
          %v3825 = vld [vmem:[%s11] sm:$0xf]
          %v3826 = vld [vmem:[%s11 + $0x4] sm:$0xf]
          %v3827 = vld [vmem:[%s11 + $0x8] sm:$0xf]
          %v3828 = vld [vmem:[%s11 + $0xc] sm:$0xf]
          %v3829 = vld [vmem:[%s11 + $0x10] sm:$0xf]
          %v3830 = vld [vmem:[%s11 + $0x14] sm:$0xf]
          %v3831 = vld [vmem:[%s11 + $0x18] sm:$0xf]
          %v3832 = vld [vmem:[%s11 + $0x1c] sm:$0xf]
          %v3833 = vld [vmem:[%s11 + $0x20] sm:$0xf]
          %v3834 = vld [vmem:[%s11 + $0x24] sm:$0xf]
          %v3835 = vld [vmem:[%s11 + $0x28] sm:$0xf]
          %v3836 = vld [vmem:[%s11 + $0x2c] sm:$0xf]
          %v3837 = vld [vmem:[%s11 + $0x30] sm:$0xf]
          %v3838 = vld [vmem:[%s11 + $0x34] sm:$0xf]
          %v3839 = vld [vmem:[%s11 + $0x38] sm:$0xf]
          %v3840 = vld [vmem:[%s11 + $0x3c] sm:$0xf]
          %v3841 = vld [vmem:[%s11 + $0x40] sm:$0xf]
          %v3842 = vld [vmem:[%s11 + $0x44] sm:$0xf]
          %v3843 = vld [vmem:[%s11 + $0x48] sm:$0xf]
          %v3844 = vld [vmem:[%s11 + $0x4c] sm:$0xf]
          %v3845 = vld [vmem:[%s11 + $0x50] sm:$0xf]
          %v3846 = vld [vmem:[%s11 + $0x54] sm:$0xf]
          %v3847 = vld [vmem:[%s11 + $0x58] sm:$0xf]
          %v3848 = vld [vmem:[%s11 + $0x5c] sm:$0xf]
          %v3849 = vld [vmem:[%s11 + $0x60] sm:$0xf]
          %v3850 = vld [vmem:[%s11 + $0x64] sm:$0xf]
          %v3851 = vld [vmem:[%s11 + $0x68] sm:$0xf]
          %v3852 = vld [vmem:[%s11 + $0x6c] sm:$0xf]
          %v3853 = vld [vmem:[%s11 + $0x70] sm:$0xf]
          %v3854 = vld [vmem:[%s11 + $0x74] sm:$0xf]
          %v3855 = vld [vmem:[%s11 + $0x78] sm:$0xf]
          %v3856 = vld [vmem:[%s11 + $0x7c] sm:$0xf]
          %v3857 = vld [vmem:[%s12] sm:$0x1]
          %v3890 = vunpack.c.l.b16 %v3825
          %v3891 = vunpack.c.l.b16 %v3826
          %v3892 = vunpack.c.l.b16 %v3827
          %v3893 = vunpack.c.l.b16 %v3828
          %v3894 = vunpack.c.l.b16 %v3829
          %v3895 = vunpack.c.l.b16 %v3830
          %v3896 = vunpack.c.l.b16 %v3831
          %v3897 = vunpack.c.l.b16 %v3832
          %v3898 = vunpack.c.l.b16 %v3833
          %v3899 = vunpack.c.l.b16 %v3834
          %v3900 = vunpack.c.l.b16 %v3835
          %v3901 = vunpack.c.l.b16 %v3836
          %v3902 = vunpack.c.l.b16 %v3837
          %v3903 = vunpack.c.l.b16 %v3838
          %v3904 = vunpack.c.l.b16 %v3839
          %v3905 = vunpack.c.l.b16 %v3840
          %v3906 = vunpack.c.l.b16 %v3841
          %v3907 = vunpack.c.l.b16 %v3842
          %v3908 = vunpack.c.l.b16 %v3843
          %v3909 = vunpack.c.l.b16 %v3844
          %v3910 = vunpack.c.l.b16 %v3845
          %v3911 = vunpack.c.l.b16 %v3846
          %v3912 = vunpack.c.l.b16 %v3847
          %v3913 = vunpack.c.l.b16 %v3848
          %v3914 = vunpack.c.l.b16 %v3849
          %v3915 = vunpack.c.l.b16 %v3850
          %v3916 = vunpack.c.l.b16 %v3851
          %v3917 = vunpack.c.l.b16 %v3852
          %v3918 = vunpack.c.l.b16 %v3853
          %v3919 = vunpack.c.l.b16 %v3854
          %v3920 = vunpack.c.l.b16 %v3855
          %v3921 = vunpack.c.l.b16 %v3856
          %v3922 = vpack.c.b16 %v3891, %v3890
          %v3923 = vpack.c.b16 %v3893, %v3892
          %v3924 = vpack.c.b16 %v3895, %v3894
          %v3925 = vpack.c.b16 %v3897, %v3896
          %v3926 = vpack.c.b16 %v3899, %v3898
          %v3927 = vpack.c.b16 %v3901, %v3900
          %v3928 = vpack.c.b16 %v3903, %v3902
          %v3929 = vpack.c.b16 %v3905, %v3904
          %v3930 = vpack.c.b16 %v3907, %v3906
          %v3931 = vpack.c.b16 %v3909, %v3908
          %v3932 = vpack.c.b16 %v3911, %v3910
          %v3933 = vpack.c.b16 %v3913, %v3912
          %v3934 = vpack.c.b16 %v3915, %v3914
          %v3935 = vpack.c.b16 %v3917, %v3916
          %v3936 = vpack.c.b16 %v3919, %v3918
          %v3937 = vpack.c.b16 %v3921, %v3920
          %3954 = vmatprep.subr.bf16.mxu0 0
          %3955 = vmatpush1.bf16.msra.mxu0 %v3929
          %3956 = vmatprep.subr.bf16.mxu0 0
          %3957 = vmatpush1.bf16.msra.mxu0 %v3928
          %3958 = vmatprep.subr.bf16.mxu0 0
          %3959 = vmatpush1.bf16.msra.mxu0 %v3927
          %3960 = vmatprep.subr.bf16.mxu0 0
          %3961 = vmatpush1.bf16.msra.mxu0 %v3926
          %3962 = vmatprep.subr.bf16.mxu0 0
          %3963 = vmatpush1.bf16.msra.mxu0 %v3925
          %3964 = vmatprep.subr.bf16.mxu0 0
          %3965 = vmatpush1.bf16.msra.mxu0 %v3924
          %3966 = vmatprep.subr.bf16.mxu0 0
          %3967 = vmatpush1.bf16.msra.mxu0 %v3923
          %3968 = vmatprep.subr.bf16.mxu0 0
          %3969 = vmatpush1.bf16.msra.mxu0 %v3922
          %3970 = vmatprep.subr.bf16.mxu0 0
          %3971 = vmatpush2.bf16.msra.mxu0 %v3937
          %3972 = vmatprep.subr.bf16.mxu0 0
          %3973 = vmatpush2.bf16.msra.mxu0 %v3936
          %3974 = vmatprep.subr.bf16.mxu0 0
          %3975 = vmatpush2.bf16.msra.mxu0 %v3935
          %3976 = vmatprep.subr.bf16.mxu0 0
          %3977 = vmatpush2.bf16.msra.mxu0 %v3934
          %3978 = vmatprep.subr.bf16.mxu0 0
          %3979 = vmatpush2.bf16.msra.mxu0 %v3933
          %3980 = vmatprep.subr.bf16.mxu0 0
          %3981 = vmatpush2.bf16.msra.mxu0 %v3932
          %3982 = vmatprep.subr.bf16.mxu0 0
          %3983 = vmatpush2.bf16.msra.mxu0 %v3931
          %3984 = vmatprep.subr.bf16.mxu0 0
          %3985 = vmatpush2.bf16.msra.mxu0 %v3930
          %3986 = vmatprep.mubr.bf16.mxu0 %v3824
          %3987 = vmatmul.mubr.bf16.gmra.mxu0 %v3823
          %v3988 = vpop.f32.mrf.mxu0
          %v3989 = vadd.f32 %v3857, %v3988
          %v3990 = vpop.f32.mrf.mxu0
          %v3991 = vpop.f32.mrf.mxu0
          %v3992 = vpop.f32.mrf.mxu0
          %3993 = vdwg.mxu0
          %vm3994 = vcmask 65536
          %3995 = vst.msk [vmem:[%s508] sm:$0x1] %vm3994, %v3989
        $region92: #{pointnet_densecls_forward.3} parent=71 // pred_fallthru
          _
        %p3996 = scmp.lt.s32.totalorder %s30, 1
        %s3997 = scalar_select %p3996, %s30, 1
        %s3998 = scalar_lea.vmem %s13, %s3997
        // Predicated region
        $region93: #{pointnet_densecls_forward.3} parent=71 // pred_check
          %p3999 = pneg %p336
        $region94: #{pointnet_densecls_forward.3} parent=71 // pred_check_branch
          %4001 = sbr.rel (%p3999) target = $region96
        $region95: #{pointnet_densecls_forward.3} parent=71 // pred_region
          _
        $region96: #{pointnet_densecls_forward.3} parent=71 // pred_fallthru
          _
      $region72: #{pointnet_densecls_forward.3} parent=5 // pred_fallthru
        _
      %p4002 = scmp.le.s32.totalorder 2, %s21
      // Predicated region
      $region97: #{pointnet_densecls_forward.3} parent=5 // pred_check
        %p4003 = pneg %p4002
      $region98: #{pointnet_densecls_forward.3} parent=5 // pred_check_branch
        %4005 = sbr.rel (%p4003) target = $region100
      $region99: #{pointnet_densecls_forward.3} parent=5 // pred_region
        %s4006 = ssub.s32 %s21, 2
        // Predicated region
        $region101: #{pointnet_densecls_forward.3} parent=99 // pred_check
          %p4007 = pneg %p342
        $region102: #{pointnet_densecls_forward.3} parent=99 // pred_check_branch
          %4009 = sbr.rel (%p4007) target = $region104
        $region103: #{pointnet_densecls_forward.3} parent=99 // pred_region
          %p4010 = scmp.lt.s32.totalorder %s32, 1
          %s4011 = scalar_select %p4010, %s32, 1
          %s4012 = scalar_lea.vmem %s13, %s4011
        $region104: #{pointnet_densecls_forward.3} parent=99 // pred_fallthru
          _
      $region100: #{pointnet_densecls_forward.3} parent=5 // pred_fallthru
        _
    $region6: #{pointnet_densecls_forward.3} parent=1 // loop_footer
      %s25 = sadd.s32 1, %s21
    $region7: #{pointnet_densecls_forward.3} parent=1 // loop_footer_branch
      %20 = sbr.rel target = $region3
    $region8: #{pointnet_densecls_forward.3} parent=1 // loop_exit
      _
    %4013 = vsyncpa [#allocation4], 1
    %s4014 = scalar_lea.sflag [#allocation4], 1
    %4015 = vsyncpa %s4014, 1
    %4016 = vsyncpa [#allocation6], 1

// kernel: pointnet_densecls_forward.4
$region0: #{pointnet_densecls_forward.4}
  #allocation0 [shape = 'u32[]', space=smem, size = 0x4, offset = 0x4, fixed_abs, tag = 'smem constant byte address 0x4 - core index']
  #allocation1 [shape = 'u32[144,128]{1,0:T(1,128)}', space=vmem, size = 0x12000, scoped, tag = 'internal scratch']
  #allocation2 [shape = 'f32[1,1024]{1,0:T(1,128)}', space=vmem, size = 0x1000, scoped, tag = 'scratch operand']
  %s0 = inlined_call_operand.vmem [shape: f32[2,16,3], index: 0, kind: input, shape index: {}]
  %s1 = inlined_call_operand.vmem [shape: f32[2,3,3], index: 1, kind: input, shape index: {}]
  %s2 = inlined_call_operand.vmem [shape: f32[3,64], index: 2, kind: input, shape index: {}]
  %s3 = inlined_call_operand.vmem [shape: f32[1,64], index: 3, kind: input, shape index: {}]
  %s4 = inlined_call_operand.vmem [shape: bf16[64,128], index: 4, kind: input, shape index: {}]
  %s5 = inlined_call_operand.vmem [shape: f32[1,128], index: 5, kind: input, shape index: {}]
  %s6 = inlined_call_operand.vmem [shape: bf16[128,1024], index: 6, kind: input, shape index: {}]
  %s7 = inlined_call_operand.vmem [shape: f32[1,1024], index: 7, kind: input, shape index: {}]
  %s8 = inlined_call_operand.vmem [shape: bf16[1024,512], index: 8, kind: input, shape index: {}]
  %s9 = inlined_call_operand.vmem [shape: f32[1,512], index: 9, kind: input, shape index: {}]
  %s10 = inlined_call_operand.vmem [shape: f32[2,16,3], index: 10, kind: output, shape index: {0}]
  %s11 = inlined_call_operand.vmem [shape: f32[2,1,512], index: 11, kind: output, shape index: {1}]
  %12 = xla_tuple %s10, %s11
  %s13 = sld [smem:[#allocation0]]
  $region89: #{pointnet_densecls_forward.4} parent=0
    _
  %s15 = ssub.s32 1, %s13
  %s16 = scalar_select 0, %s15, %s13
  loop: start=0, step=1, limit=4
  $region2: #{pointnet_densecls_forward.4} parent=0 // loop_pre_header
    _
  $region3: #{pointnet_densecls_forward.4} parent=0 // loop_header
    %s18 = sphi 0, %s22
    %p19 = scmp.ge.s32.totalorder %s18, 4
    %s25 = sphi 0, %s37
    %s26 = sphi 0, %s33
    %s27 = sphi 0, %s25
    %s28 = sphi 0, %s26
    %s29 = sphi 0, %s27
    %s30 = sphi 0, %s28
    %s42 = sphi 0, %s44
    %s45 = sphi 0, %s42
    %s46 = sphi 0, %s45
    %s62 = sphi 0, %s46
    %s68 = sphi 0, %s70
    %s71 = sphi 0, %s68
    %s72 = sphi 0, %s71
    %s88 = sphi 0, %s72
    %s92 = sphi 0, %s92
    %s94 = sphi 0, %s92
    %s95 = sphi 0, %s94
    %s109 = sphi 0, %s95
    %s113 = sphi 0, %s113
    %s115 = sphi 0, %s113
    %s116 = sphi 0, %s115
    %s130 = sphi 0, %s116
    %s134 = sphi 0, %s134
    %s136 = sphi 0, %s134
    %s137 = sphi 0, %s136
    %s151 = sphi 0, %s137
    %s155 = sphi 0, %s155
    %s157 = sphi 0, %s155
    %s158 = sphi 0, %s157
    %s172 = sphi 0, %s158
    %s176 = sphi 0, %s176
    %s178 = sphi 0, %s176
    %s179 = sphi 0, %s178
    %s193 = sphi 0, %s179
    %s197 = sphi 0, %s197
    %s199 = sphi 0, %s197
    %s200 = sphi 0, %s199
    %s214 = sphi 0, %s200
    %s218 = sphi 0, %s218
    %s220 = sphi 0, %s218
    %s221 = sphi 0, %s220
    %s235 = sphi 0, %s221
    %s239 = sphi 0, %s239
    %s241 = sphi 0, %s239
    %s242 = sphi 0, %s241
    %s256 = sphi 0, %s242
    %s264 = sphi 0, %s266
    %s267 = sphi 0, %s264
    %s268 = sphi 0, %s267
    %s284 = sphi 0, %s268
    %s290 = sphi 0, %s292
    %s293 = sphi 0, %s290
    %s294 = sphi 0, %s293
    %s310 = sphi 0, %s294
  $region4: #{pointnet_densecls_forward.4} parent=0 // loop_header_branch
    %21 = sbr.rel (%p19) target = $region8
  $region5: #{pointnet_densecls_forward.4} parent=0 // loop_body
    %s23 = ssub.s32 %s18, 1
    %s24 = ssub.s32 %s18, 2
    %s31 = sadd.s32 1, %s26
    %p32 = scmp.ge.s32.totalorder %s31, 1
    %s33 = scalar_select %p32, 0, %s31
    %s34 = sadd.s32 1, %s25
    %s35 = scalar_select %p32, %s34, %s25
    %p36 = scmp.ge.s32.totalorder %s35, 2
    %s37 = scalar_select %p36, 0, %s35
    %s38 = ssub.s32 %s25, %s37
    %s39 = ssub.s32 %s26, %s33
    %s40 = sor.u32 %s38, %s39
    %p41 = scmp.eq.s32.totalorder %s40, 0
    %s43 = sadd.s32 %s42, 1
    %s44 = scalar_select %p41, %s42, %s43
    %p47 = pneg %p41
    %p48 = scmp.eq.s32.totalorder %s18, 1
    %p49 = por %p47, %p48
    %p50 = scmp.ne.s32.totalorder %s42, %s45
    %p51 = scmp.eq.s32.totalorder %s18, 0
    %p52 = por %p50, %p51
    %p53 = scmp.ne.s32.totalorder %s42, %s45
    %p54 = scmp.eq.s32.totalorder %s23, 1
    %p55 = por %p53, %p54
    %p56 = scmp.ne.s32.totalorder %s45, %s46
    %p57 = scmp.eq.s32.totalorder %s23, 0
    %p58 = por %p56, %p57
    %p59 = scmp.ne.s32.totalorder %s45, %s46
    %p60 = scmp.eq.s32.totalorder %s24, 1
    %p61 = por %p59, %p60
    %p63 = scmp.ne.s32.totalorder %s46, %s62
    %p64 = scmp.eq.s32.totalorder %s24, 0
    %p65 = por %p63, %p64
    %s66 = ssub.s32 %s25, %s37
    %p67 = scmp.eq.s32.totalorder %s66, 0
    %s69 = sadd.s32 %s68, 1
    %s70 = scalar_select %p67, %s68, %s69
    %p73 = pneg %p67
    %p74 = scmp.eq.s32.totalorder %s18, 1
    %p75 = por %p73, %p74
    %p76 = scmp.ne.s32.totalorder %s68, %s71
    %p77 = scmp.eq.s32.totalorder %s18, 0
    %p78 = por %p76, %p77
    %p79 = scmp.ne.s32.totalorder %s68, %s71
    %p80 = scmp.eq.s32.totalorder %s23, 1
    %p81 = por %p79, %p80
    %p82 = scmp.ne.s32.totalorder %s71, %s72
    %p83 = scmp.eq.s32.totalorder %s23, 0
    %p84 = por %p82, %p83
    %p85 = scmp.ne.s32.totalorder %s71, %s72
    %p86 = scmp.eq.s32.totalorder %s24, 1
    %p87 = por %p85, %p86
    %p89 = scmp.ne.s32.totalorder %s72, %s88
    %p90 = scmp.eq.s32.totalorder %s24, 0
    %p91 = por %p89, %p90
    %s93 = sadd.s32 %s92, 1
    %p96 = scmp.eq.s32.totalorder %s18, 1
    %p97 = scmp.ne.s32.totalorder %s92, %s94
    %p98 = scmp.eq.s32.totalorder %s18, 0
    %p99 = por %p97, %p98
    %p100 = scmp.ne.s32.totalorder %s92, %s94
    %p101 = scmp.eq.s32.totalorder %s23, 1
    %p102 = por %p100, %p101
    %p103 = scmp.ne.s32.totalorder %s94, %s95
    %p104 = scmp.eq.s32.totalorder %s23, 0
    %p105 = por %p103, %p104
    %p106 = scmp.ne.s32.totalorder %s94, %s95
    %p107 = scmp.eq.s32.totalorder %s24, 1
    %p108 = por %p106, %p107
    %p110 = scmp.ne.s32.totalorder %s95, %s109
    %p111 = scmp.eq.s32.totalorder %s24, 0
    %p112 = por %p110, %p111
    %s114 = sadd.s32 %s113, 1
    %p117 = scmp.eq.s32.totalorder %s18, 1
    %p118 = scmp.ne.s32.totalorder %s113, %s115
    %p119 = scmp.eq.s32.totalorder %s18, 0
    %p120 = por %p118, %p119
    %p121 = scmp.ne.s32.totalorder %s113, %s115
    %p122 = scmp.eq.s32.totalorder %s23, 1
    %p123 = por %p121, %p122
    %p124 = scmp.ne.s32.totalorder %s115, %s116
    %p125 = scmp.eq.s32.totalorder %s23, 0
    %p126 = por %p124, %p125
    %p127 = scmp.ne.s32.totalorder %s115, %s116
    %p128 = scmp.eq.s32.totalorder %s24, 1
    %p129 = por %p127, %p128
    %p131 = scmp.ne.s32.totalorder %s116, %s130
    %p132 = scmp.eq.s32.totalorder %s24, 0
    %p133 = por %p131, %p132
    %s135 = sadd.s32 %s134, 1
    %p138 = scmp.eq.s32.totalorder %s18, 1
    %p139 = scmp.ne.s32.totalorder %s134, %s136
    %p140 = scmp.eq.s32.totalorder %s18, 0
    %p141 = por %p139, %p140
    %p142 = scmp.ne.s32.totalorder %s134, %s136
    %p143 = scmp.eq.s32.totalorder %s23, 1
    %p144 = por %p142, %p143
    %p145 = scmp.ne.s32.totalorder %s136, %s137
    %p146 = scmp.eq.s32.totalorder %s23, 0
    %p147 = por %p145, %p146
    %p148 = scmp.ne.s32.totalorder %s136, %s137
    %p149 = scmp.eq.s32.totalorder %s24, 1
    %p150 = por %p148, %p149
    %p152 = scmp.ne.s32.totalorder %s137, %s151
    %p153 = scmp.eq.s32.totalorder %s24, 0
    %p154 = por %p152, %p153
    %s156 = sadd.s32 %s155, 1
    %p159 = scmp.eq.s32.totalorder %s18, 1
    %p160 = scmp.ne.s32.totalorder %s155, %s157
    %p161 = scmp.eq.s32.totalorder %s18, 0
    %p162 = por %p160, %p161
    %p163 = scmp.ne.s32.totalorder %s155, %s157
    %p164 = scmp.eq.s32.totalorder %s23, 1
    %p165 = por %p163, %p164
    %p166 = scmp.ne.s32.totalorder %s157, %s158
    %p167 = scmp.eq.s32.totalorder %s23, 0
    %p168 = por %p166, %p167
    %p169 = scmp.ne.s32.totalorder %s157, %s158
    %p170 = scmp.eq.s32.totalorder %s24, 1
    %p171 = por %p169, %p170
    %p173 = scmp.ne.s32.totalorder %s158, %s172
    %p174 = scmp.eq.s32.totalorder %s24, 0
    %p175 = por %p173, %p174
    %s177 = sadd.s32 %s176, 1
    %p180 = scmp.eq.s32.totalorder %s18, 1
    %p181 = scmp.ne.s32.totalorder %s176, %s178
    %p182 = scmp.eq.s32.totalorder %s18, 0
    %p183 = por %p181, %p182
    %p184 = scmp.ne.s32.totalorder %s176, %s178
    %p185 = scmp.eq.s32.totalorder %s23, 1
    %p186 = por %p184, %p185
    %p187 = scmp.ne.s32.totalorder %s178, %s179
    %p188 = scmp.eq.s32.totalorder %s23, 0
    %p189 = por %p187, %p188
    %p190 = scmp.ne.s32.totalorder %s178, %s179
    %p191 = scmp.eq.s32.totalorder %s24, 1
    %p192 = por %p190, %p191
    %p194 = scmp.ne.s32.totalorder %s179, %s193
    %p195 = scmp.eq.s32.totalorder %s24, 0
    %p196 = por %p194, %p195
    %s198 = sadd.s32 %s197, 1
    %p201 = scmp.eq.s32.totalorder %s18, 1
    %p202 = scmp.ne.s32.totalorder %s197, %s199
    %p203 = scmp.eq.s32.totalorder %s18, 0
    %p204 = por %p202, %p203
    %p205 = scmp.ne.s32.totalorder %s197, %s199
    %p206 = scmp.eq.s32.totalorder %s23, 1
    %p207 = por %p205, %p206
    %p208 = scmp.ne.s32.totalorder %s199, %s200
    %p209 = scmp.eq.s32.totalorder %s23, 0
    %p210 = por %p208, %p209
    %p211 = scmp.ne.s32.totalorder %s199, %s200
    %p212 = scmp.eq.s32.totalorder %s24, 1
    %p213 = por %p211, %p212
    %p215 = scmp.ne.s32.totalorder %s200, %s214
    %p216 = scmp.eq.s32.totalorder %s24, 0
    %p217 = por %p215, %p216
    %s219 = sadd.s32 %s218, 1
    %p222 = scmp.eq.s32.totalorder %s18, 1
    %p223 = scmp.ne.s32.totalorder %s218, %s220
    %p224 = scmp.eq.s32.totalorder %s18, 0
    %p225 = por %p223, %p224
    %p226 = scmp.ne.s32.totalorder %s218, %s220
    %p227 = scmp.eq.s32.totalorder %s23, 1
    %p228 = por %p226, %p227
    %p229 = scmp.ne.s32.totalorder %s220, %s221
    %p230 = scmp.eq.s32.totalorder %s23, 0
    %p231 = por %p229, %p230
    %p232 = scmp.ne.s32.totalorder %s220, %s221
    %p233 = scmp.eq.s32.totalorder %s24, 1
    %p234 = por %p232, %p233
    %p236 = scmp.ne.s32.totalorder %s221, %s235
    %p237 = scmp.eq.s32.totalorder %s24, 0
    %p238 = por %p236, %p237
    %s240 = sadd.s32 %s239, 1
    %p243 = scmp.eq.s32.totalorder %s18, 1
    %p244 = scmp.ne.s32.totalorder %s239, %s241
    %p245 = scmp.eq.s32.totalorder %s18, 0
    %p246 = por %p244, %p245
    %p247 = scmp.ne.s32.totalorder %s239, %s241
    %p248 = scmp.eq.s32.totalorder %s23, 1
    %p249 = por %p247, %p248
    %p250 = scmp.ne.s32.totalorder %s241, %s242
    %p251 = scmp.eq.s32.totalorder %s23, 0
    %p252 = por %p250, %p251
    %p253 = scmp.ne.s32.totalorder %s241, %s242
    %p254 = scmp.eq.s32.totalorder %s24, 1
    %p255 = por %p253, %p254
    %p257 = scmp.ne.s32.totalorder %s242, %s256
    %p258 = scmp.eq.s32.totalorder %s24, 0
    %p259 = por %p257, %p258
    %s260 = ssub.s32 %s25, %s37
    %s261 = ssub.s32 %s26, %s33
    %s262 = sor.u32 %s260, %s261
    %p263 = scmp.eq.s32.totalorder %s262, 0
    %s265 = sadd.s32 %s264, 1
    %s266 = scalar_select %p263, %s264, %s265
    %p269 = pneg %p263
    %p270 = scmp.eq.s32.totalorder %s18, 1
    %p271 = por %p269, %p270
    %p272 = scmp.ne.s32.totalorder %s264, %s267
    %p273 = scmp.eq.s32.totalorder %s18, 0
    %p274 = por %p272, %p273
    %p275 = scmp.ne.s32.totalorder %s264, %s267
    %p276 = scmp.eq.s32.totalorder %s23, 1
    %p277 = por %p275, %p276
    %p278 = scmp.ne.s32.totalorder %s267, %s268
    %p279 = scmp.eq.s32.totalorder %s23, 0
    %p280 = por %p278, %p279
    %p281 = scmp.ne.s32.totalorder %s267, %s268
    %p282 = scmp.eq.s32.totalorder %s24, 1
    %p283 = por %p281, %p282
    %p285 = scmp.ne.s32.totalorder %s268, %s284
    %p286 = scmp.eq.s32.totalorder %s24, 0
    %p287 = por %p285, %p286
    %s288 = ssub.s32 %s25, %s37
    %p289 = scmp.eq.s32.totalorder %s288, 0
    %s291 = sadd.s32 %s290, 1
    %s292 = scalar_select %p289, %s290, %s291
    %p295 = pneg %p289
    %p296 = scmp.eq.s32.totalorder %s18, 1
    %p297 = por %p295, %p296
    %p298 = scmp.ne.s32.totalorder %s290, %s293
    %p299 = scmp.eq.s32.totalorder %s18, 0
    %p300 = por %p298, %p299
    %p301 = scmp.ne.s32.totalorder %s290, %s293
    %p302 = scmp.eq.s32.totalorder %s23, 1
    %p303 = por %p301, %p302
    %p304 = scmp.ne.s32.totalorder %s293, %s294
    %p305 = scmp.eq.s32.totalorder %s23, 0
    %p306 = por %p304, %p305
    %p307 = scmp.ne.s32.totalorder %s293, %s294
    %p308 = scmp.eq.s32.totalorder %s24, 1
    %p309 = por %p307, %p308
    %p311 = scmp.ne.s32.totalorder %s294, %s310
    %p312 = scmp.eq.s32.totalorder %s24, 0
    %p313 = por %p311, %p312
    %p314 = scmp.le.s32.totalorder 1, %s18
    %p315 = scmp.lt.s32.totalorder %s18, 3
    %p316 = pnand %p314, %p315
    %p317 = pneg %p316
    // Predicated region
    $region9: #{pointnet_densecls_forward.4} parent=5 // pred_check
      _
    $region10: #{pointnet_densecls_forward.4} parent=5 // pred_check_branch
      %319 = sbr.rel (%p316) target = $region12
    $region11: #{pointnet_densecls_forward.4} parent=5 // pred_region
      %s320 = ssub.s32 %s18, 1
      // Predicated region
      $region13: #{pointnet_densecls_forward.4} parent=11 // pred_check
        %p321 = pneg %p105
      $region14: #{pointnet_densecls_forward.4} parent=11 // pred_check_branch
        %323 = sbr.rel (%p321) target = $region16
      $region15: #{pointnet_densecls_forward.4} parent=11 // pred_region
        _
      $region16: #{pointnet_densecls_forward.4} parent=11 // pred_fallthru
        _
      // Predicated region
      $region17: #{pointnet_densecls_forward.4} parent=11 // pred_check
        %p324 = pneg %p126
      $region18: #{pointnet_densecls_forward.4} parent=11 // pred_check_branch
        %326 = sbr.rel (%p324) target = $region20
      $region19: #{pointnet_densecls_forward.4} parent=11 // pred_region
        _
      $region20: #{pointnet_densecls_forward.4} parent=11 // pred_fallthru
        _
      // Predicated region
      $region21: #{pointnet_densecls_forward.4} parent=11 // pred_check
        %p327 = pneg %p147
      $region22: #{pointnet_densecls_forward.4} parent=11 // pred_check_branch
        %329 = sbr.rel (%p327) target = $region24
      $region23: #{pointnet_densecls_forward.4} parent=11 // pred_region
        _
      $region24: #{pointnet_densecls_forward.4} parent=11 // pred_fallthru
        _
      // Predicated region
      $region25: #{pointnet_densecls_forward.4} parent=11 // pred_check
        %p330 = pneg %p168
      $region26: #{pointnet_densecls_forward.4} parent=11 // pred_check_branch
        %332 = sbr.rel (%p330) target = $region28
      $region27: #{pointnet_densecls_forward.4} parent=11 // pred_region
        _
      $region28: #{pointnet_densecls_forward.4} parent=11 // pred_fallthru
        _
      // Predicated region
      $region29: #{pointnet_densecls_forward.4} parent=11 // pred_check
        %p333 = pneg %p189
      $region30: #{pointnet_densecls_forward.4} parent=11 // pred_check_branch
        %335 = sbr.rel (%p333) target = $region32
      $region31: #{pointnet_densecls_forward.4} parent=11 // pred_region
        _
      $region32: #{pointnet_densecls_forward.4} parent=11 // pred_fallthru
        _
      // Predicated region
      $region33: #{pointnet_densecls_forward.4} parent=11 // pred_check
        %p336 = pneg %p210
      $region34: #{pointnet_densecls_forward.4} parent=11 // pred_check_branch
        %338 = sbr.rel (%p336) target = $region36
      $region35: #{pointnet_densecls_forward.4} parent=11 // pred_region
        _
      $region36: #{pointnet_densecls_forward.4} parent=11 // pred_fallthru
        _
      // Predicated region
      $region37: #{pointnet_densecls_forward.4} parent=11 // pred_check
        %p339 = pneg %p231
      $region38: #{pointnet_densecls_forward.4} parent=11 // pred_check_branch
        %341 = sbr.rel (%p339) target = $region40
      $region39: #{pointnet_densecls_forward.4} parent=11 // pred_region
        _
      $region40: #{pointnet_densecls_forward.4} parent=11 // pred_fallthru
        _
      // Predicated region
      $region41: #{pointnet_densecls_forward.4} parent=11 // pred_check
        %p342 = pneg %p252
      $region42: #{pointnet_densecls_forward.4} parent=11 // pred_check_branch
        %344 = sbr.rel (%p342) target = $region44
      $region43: #{pointnet_densecls_forward.4} parent=11 // pred_region
        _
      $region44: #{pointnet_densecls_forward.4} parent=11 // pred_fallthru
        _
    $region12: #{pointnet_densecls_forward.4} parent=5 // pred_fallthru
      _
    %p345 = scmp.lt.s32.totalorder %s18, 2
    // Predicated region
    $region45: #{pointnet_densecls_forward.4} parent=5 // pred_check
      %p346 = pneg %p345
    $region46: #{pointnet_densecls_forward.4} parent=5 // pred_check_branch
      %348 = sbr.rel (%p346) target = $region48
    $region47: #{pointnet_densecls_forward.4} parent=5 // pred_region
      // Predicated region
      $region49: #{pointnet_densecls_forward.4} parent=47 // pred_check
        %p349 = pneg %p52
      $region50: #{pointnet_densecls_forward.4} parent=47 // pred_check_branch
        %351 = sbr.rel (%p349) target = $region52
      $region51: #{pointnet_densecls_forward.4} parent=47 // pred_region
        %s352 = smul.u32 2, %s26
        %p353 = scmp.lt.s32.totalorder %s25, 1
        %s354 = scalar_select %p353, %s25, 1
        %p355 = scmp.lt.s32.totalorder %s352, 1
        %s356 = scalar_select %p355, %s352, 1
        %s357 = smul.addr %s354, 2
        %s358 = sadd.s32 %s356, %s357
        %s359 = smul.addr %s358, 8
        %s360 = scalar_lea.vmem %s0, %s359
        %s361 = smul.u32 2, %s26
      $region52: #{pointnet_densecls_forward.4} parent=47 // pred_fallthru
        _
      // Predicated region
      $region53: #{pointnet_densecls_forward.4} parent=47 // pred_check
        %p362 = pneg %p78
      $region54: #{pointnet_densecls_forward.4} parent=47 // pred_check_branch
        %364 = sbr.rel (%p362) target = $region56
      $region55: #{pointnet_densecls_forward.4} parent=47 // pred_region
        %p365 = scmp.lt.s32.totalorder %s25, 1
        %s366 = scalar_select %p365, %s25, 1
        %s367 = smul.addr %s366, 4
        %s368 = scalar_lea.vmem %s1, %s367
      $region56: #{pointnet_densecls_forward.4} parent=47 // pred_fallthru
        _
    $region48: #{pointnet_densecls_forward.4} parent=5 // pred_fallthru
      _
    %p369 = scmp.le.s32.totalorder 1, %s18
    %p370 = scmp.lt.s32.totalorder %s18, 3
    %p371 = pnand %p369, %p370
    %p372 = pneg %p371
    // Predicated region
    $region57: #{pointnet_densecls_forward.4} parent=5 // pred_check
      _
    $region58: #{pointnet_densecls_forward.4} parent=5 // pred_check_branch
      %374 = sbr.rel (%p371) target = $region60
    $region59: #{pointnet_densecls_forward.4} parent=5 // pred_region
      %s375 = ssub.s32 %s18, 1
      %s376 = smul.u32 2, %s28
      %p377 = scmp.lt.s32.totalorder %s27, 1
      %s378 = scalar_select %p377, %s27, 1
      %p379 = scmp.lt.s32.totalorder %s376, 1
      %s380 = scalar_select %p379, %s376, 1
      %s381 = smul.addr %s378, 2
      %s382 = sadd.s32 %s380, %s381
      %s383 = smul.addr %s382, 8
      %s384 = scalar_lea.vmem %s0, %s383
      %p385 = pneg %p58
      %p386 = pneg %p55
      %p387 = scmp.lt.s32.totalorder %s27, 1
      %s388 = scalar_select %p387, %s27, 1
      %s389 = smul.addr %s388, 4
      %s390 = scalar_lea.vmem %s1, %s389
      %p391 = pneg %p84
      %p392 = pneg %p81
      %p393 = pneg %p105
      %p394 = pneg %p102
      %p395 = pneg %p126
      %p396 = pneg %p123
      %p397 = pneg %p147
      %p398 = pneg %p144
      %p399 = pneg %p168
      %p400 = pneg %p165
      %p401 = pneg %p189
      %p402 = pneg %p186
      %p403 = pneg %p210
      %p404 = pneg %p207
      %p405 = pneg %p231
      %p406 = pneg %p228
      %p407 = pneg %p252
      %p408 = pneg %p249
      %p409 = pneg %p280
      %p410 = pneg %p277
      %s411 = smul.u32 2, %s28
      %p412 = scmp.lt.s32.totalorder %s27, 1
      %s413 = scalar_select %p412, %s27, 1
      %p414 = scmp.lt.s32.totalorder %s411, 1
      %s415 = scalar_select %p414, %s411, 1
      %s416 = smul.addr %s413, 2
      %s417 = sadd.s32 %s415, %s416
      %s418 = smul.addr %s417, 8
      %s419 = scalar_lea.vmem %s10, %s418
      %p420 = pneg %p306
      %p421 = pneg %p303
      %p422 = scmp.lt.s32.totalorder %s27, 1
      %s423 = scalar_select %p422, %s27, 1
      %s424 = smul.addr %s423, 4
      %s425 = scalar_lea.vmem %s11, %s424
      %s426 = smul.u32 2, %s28
      %p427 = scmp.lt.s32.totalorder %s27, 1
      %s428 = scalar_select %p427, %s27, 1
      %p429 = scmp.lt.s32.totalorder %s426, 1
      %s430 = scalar_select %p429, %s426, 1
      %s431 = smul.addr %s428, 2
      %s432 = sadd.s32 %s430, %s431
      %s433 = smul.addr %s432, 8
      %s434 = scalar_lea.vmem %s0, %s433
      %s435 = smul.u32 2, %s28
      %p436 = scmp.lt.s32.totalorder %s27, 1
      %s437 = scalar_select %p436, %s27, 1
      %s438 = smul.addr %s437, 4
      %s439 = scalar_lea.vmem %s1, %s438
      %s440 = smul.u32 2, %s28
      %p441 = scmp.lt.s32.totalorder %s27, 1
      %s442 = scalar_select %p441, %s27, 1
      %p443 = scmp.lt.s32.totalorder %s440, 1
      %s444 = scalar_select %p443, %s440, 1
      %s445 = smul.addr %s442, 2
      %s446 = sadd.s32 %s444, %s445
      %s447 = smul.addr %s446, 8
      %s448 = scalar_lea.vmem %s10, %s447
      %s449 = smul.u32 2, %s28
      %p450 = scmp.lt.s32.totalorder %s27, 1
      %s451 = scalar_select %p450, %s27, 1
      %s452 = smul.addr %s451, 4
      %s453 = scalar_lea.vmem %s11, %s452
      %p455 = scmp.eq.s32.totalorder %s28, 0
      // Predicated region
      $region61: #{pointnet_densecls_forward.4} parent=59 // pred_check
        %p456 = pneg %p455
      $region62: #{pointnet_densecls_forward.4} parent=59 // pred_check_branch
        %458 = sbr.rel (%p456) target = $region64
      $region63: #{pointnet_densecls_forward.4} parent=59 // pred_region
        %459 = vst [vmem:[#allocation2] sm:$0xff] -inf
      $region64: #{pointnet_densecls_forward.4} parent=59 // pred_fallthru
        _
      %v460 = vld [vmem:[%s434] sm:$0xff]
      %v461 = vld [vmem:[%s434 + $0x8] sm:$0xff]
      %v462 = vld [vmem:[%s439] sm:$0x7]
      %464 = vset.pattern.permute.xlu0 0
      %465 = vperm.xlu0 %464, %v460
      %v466 = vpop.permute.xlu0 %465
      %469 = vset.pattern.permute.xlu0 0
      %470 = vperm.xlu0 %469, %v461
      %v471 = vpop.permute.xlu0 %470
      %v473 = vlaneseq
      %v474 = vshrl.u32 %v473, 7
      %v475 = vsub.s32 0, %v474
      %v476 = vrot.slane %v462, %v475
      %v477 = vmul.f32 %v466, %v476
      %v478 = vmul.f32 %v471, %v476
      %479 = vset.pattern.permute.xlu0 1
      %480 = vperm.xlu0 %479, %v460
      %v481 = vpop.permute.xlu0 %480
      %483 = vset.pattern.permute.xlu0 1
      %484 = vperm.xlu0 %483, %v461
      %v485 = vpop.permute.xlu0 %484
      %v487 = vlaneseq
      %v488 = vshrl.u32 %v487, 7
      %v489 = vsub.s32 1, %v488
      %v490 = vrot.slane %v462, %v489
      %v491 = vmul.f32 %v481, %v490
      %v492 = vmul.f32 %v485, %v490
      %v493 = vadd.f32 %v477, %v491
      %v494 = vadd.f32 %v478, %v492
      %495 = vset.pattern.permute.xlu0 2
      %496 = vperm.xlu0 %495, %v460
      %v497 = vpop.permute.xlu0 %496
      %499 = vset.pattern.permute.xlu0 2
      %500 = vperm.xlu0 %499, %v461
      %v501 = vpop.permute.xlu0 %500
      %v503 = vlaneseq
      %v504 = vshrl.u32 %v503, 7
      %v505 = vsub.s32 2, %v504
      %v506 = vrot.slane %v462, %v505
      %v507 = vmul.f32 %v497, %v506
      %v508 = vmul.f32 %v501, %v506
      %v509 = vadd.f32 %v493, %v507
      %v510 = vadd.f32 %v494, %v508
      %vm511 = vcmask 23552
      %512 = vst.msk [vmem:[%s448] sm:$0xff] %vm511, %v509
      %513 = vst.msk [vmem:[%s448 + $0x8] sm:$0xff] %vm511, %v510
      %v514 = vld [vmem:[%s2] sm:$0x7]
      %516 = vset.pattern.permute.xlu0 0
      %517 = vperm.xlu0 %516, %v509
      %v518 = vpop.permute.xlu0 %517
      %521 = vset.pattern.permute.xlu0 0
      %522 = vperm.xlu0 %521, %v510
      %v523 = vpop.permute.xlu0 %522
      %v525 = vlaneseq
      %v526 = vshrl.u32 %v525, 7
      %v527 = vsub.s32 0, %v526
      %v528 = vrot.slane %v514, %v527
      %v529 = vmul.f32 %v518, %v528
      %v530 = vmul.f32 %v523, %v528
      %531 = vset.pattern.permute.xlu0 1
      %532 = vperm.xlu0 %531, %v509
      %v533 = vpop.permute.xlu0 %532
      %535 = vset.pattern.permute.xlu0 1
      %536 = vperm.xlu0 %535, %v510
      %v537 = vpop.permute.xlu0 %536
      %v539 = vlaneseq
      %v540 = vshrl.u32 %v539, 7
      %v541 = vsub.s32 1, %v540
      %v542 = vrot.slane %v514, %v541
      %v543 = vmul.f32 %v533, %v542
      %v544 = vmul.f32 %v537, %v542
      %v545 = vadd.f32 %v529, %v543
      %v546 = vadd.f32 %v530, %v544
      %547 = vset.pattern.permute.xlu0 2
      %548 = vperm.xlu0 %547, %v509
      %v549 = vpop.permute.xlu0 %548
      %551 = vset.pattern.permute.xlu0 2
      %552 = vperm.xlu0 %551, %v510
      %v553 = vpop.permute.xlu0 %552
      %v555 = vlaneseq
      %v556 = vshrl.u32 %v555, 7
      %v557 = vsub.s32 2, %v556
      %v558 = vrot.slane %v514, %v557
      %v559 = vmul.f32 %v549, %v558
      %v560 = vmul.f32 %v553, %v558
      %v561 = vadd.f32 %v545, %v559
      %v562 = vadd.f32 %v546, %v560
      %v563 = vld [vmem:[%s3] sm:$0x1]
      %v565 = vlaneseq
      %v566 = vshrl.u32 %v565, 7
      %v567 = vsub.s32 0, %v566
      %v568 = vrot.slane %v563, %v567
      %v570 = vadd.f32 %v561, %v568
      %v571 = vadd.f32 %v562, %v568
      %v572 = vmax.f32 %v570, 0.0
      %v573 = vmax.f32 %v571, 0.0
      %v574 = vpack.c.bf16 %v573, %v572
      %v575 = vld [vmem:[%s4] sm:$0xf]
      %v576 = vld [vmem:[%s4 + $0x4] sm:$0xf]
      %v577 = vld [vmem:[%s4 + $0x8] sm:$0xf]
      %v578 = vld [vmem:[%s4 + $0xc] sm:$0xf]
      %v579 = vld [vmem:[%s4 + $0x10] sm:$0xf]
      %v580 = vld [vmem:[%s4 + $0x14] sm:$0xf]
      %v581 = vld [vmem:[%s4 + $0x18] sm:$0xf]
      %v582 = vld [vmem:[%s4 + $0x1c] sm:$0xf]
      %v583 = vld [vmem:[%s5] sm:$0x1]
      %v585 = vlaneseq
      %v586 = vshrl.u32 %v585, 7
      %v587 = vsub.s32 0, %v586
      %v588 = vrot.slane %v583, %v587
      %v598 = vunpack.c.l.b16 %v575
      %v599 = vunpack.c.l.b16 %v576
      %v600 = vunpack.c.l.b16 %v577
      %v601 = vunpack.c.l.b16 %v578
      %v602 = vunpack.c.l.b16 %v579
      %v603 = vunpack.c.l.b16 %v580
      %v604 = vunpack.c.l.b16 %v581
      %v605 = vunpack.c.l.b16 %v582
      %v606 = vpack.c.b16 %v599, %v598
      %v607 = vpack.c.b16 %v601, %v600
      %v608 = vpack.c.b16 %v603, %v602
      %v609 = vpack.c.b16 %v605, %v604
      %vm614 = vcmask 523264
      %v616 = vsel %vm614, %v574, 0
      %618 = vmatprep.subr.bf16.mxu0 0
      %619 = vmatpush1.bf16.msra.mxu0 0
      %620 = vmatprep.subr.bf16.mxu0 0
      %621 = vmatpush1.bf16.msra.mxu0 0
      %622 = vmatprep.subr.bf16.mxu0 0
      %623 = vmatpush1.bf16.msra.mxu0 0
      %624 = vmatprep.subr.bf16.mxu0 0
      %625 = vmatpush1.bf16.msra.mxu0 0
      %626 = vmatprep.subr.bf16.mxu0 0
      %627 = vmatpush1.bf16.msra.mxu0 %v609
      %628 = vmatprep.subr.bf16.mxu0 0
      %629 = vmatpush1.bf16.msra.mxu0 %v608
      %630 = vmatprep.subr.bf16.mxu0 0
      %631 = vmatpush1.bf16.msra.mxu0 %v607
      %632 = vmatprep.subr.bf16.mxu0 0
      %633 = vmatpush1.bf16.msra.mxu0 %v606
      %634 = vmatprep.subr.bf16.mxu0 0
      %635 = vmatpush2.bf16.msra.mxu0 0
      %636 = vmatprep.subr.bf16.mxu0 0
      %637 = vmatpush2.bf16.msra.mxu0 0
      %638 = vmatprep.subr.bf16.mxu0 0
      %639 = vmatpush2.bf16.msra.mxu0 0
      %640 = vmatprep.subr.bf16.mxu0 0
      %641 = vmatpush2.bf16.msra.mxu0 0
      %642 = vmatprep.subr.bf16.mxu0 0
      %643 = vmatpush2.bf16.msra.mxu0 0
      %644 = vmatprep.subr.bf16.mxu0 0
      %645 = vmatpush2.bf16.msra.mxu0 0
      %646 = vmatprep.subr.bf16.mxu0 0
      %647 = vmatpush2.bf16.msra.mxu0 0
      %648 = vmatprep.subr.bf16.mxu0 0
      %649 = vmatpush2.bf16.msra.mxu0 0
      %650 = vmatprep.mubr.bf16.mxu0 0
      %651 = vmatmul.mubr.bf16.gmra.mxu0 %v616
      %v652 = vpop.f32.mrf.mxu0
      %v653 = vadd.f32 %v588, %v652
      %v654 = vpop.f32.mrf.mxu0
      %v655 = vpop.f32.mrf.mxu0
      %v656 = vadd.f32 %v588, %v655
      %v657 = vpop.f32.mrf.mxu0
      %658 = vdwg.mxu0
      %v659 = vmax.f32 %v653, 0.0
      %v660 = vmax.f32 %v656, 0.0
      %v661 = vpack.c.bf16 %v660, %v659
      %v662 = vld [vmem:[%s6] sm:$0xff]
      %v663 = vld [vmem:[%s6 + $0x8] sm:$0xff]
      %v664 = vld [vmem:[%s6 + $0x10] sm:$0xff]
      %v665 = vld [vmem:[%s6 + $0x18] sm:$0xff]
      %v666 = vld [vmem:[%s6 + $0x20] sm:$0xff]
      %v667 = vld [vmem:[%s6 + $0x28] sm:$0xff]
      %v668 = vld [vmem:[%s6 + $0x30] sm:$0xff]
      %v669 = vld [vmem:[%s6 + $0x38] sm:$0xff]
      %v670 = vld [vmem:[%s6 + $0x40] sm:$0xff]
      %v671 = vld [vmem:[%s6 + $0x48] sm:$0xff]
      %v672 = vld [vmem:[%s6 + $0x50] sm:$0xff]
      %v673 = vld [vmem:[%s6 + $0x58] sm:$0xff]
      %v674 = vld [vmem:[%s6 + $0x60] sm:$0xff]
      %v675 = vld [vmem:[%s6 + $0x68] sm:$0xff]
      %v676 = vld [vmem:[%s6 + $0x70] sm:$0xff]
      %v677 = vld [vmem:[%s6 + $0x78] sm:$0xff]
      %v678 = vld [vmem:[%s6 + $0x80] sm:$0xff]
      %v679 = vld [vmem:[%s6 + $0x88] sm:$0xff]
      %v680 = vld [vmem:[%s6 + $0x90] sm:$0xff]
      %v681 = vld [vmem:[%s6 + $0x98] sm:$0xff]
      %v682 = vld [vmem:[%s6 + $0xa0] sm:$0xff]
      %v683 = vld [vmem:[%s6 + $0xa8] sm:$0xff]
      %v684 = vld [vmem:[%s6 + $0xb0] sm:$0xff]
      %v685 = vld [vmem:[%s6 + $0xb8] sm:$0xff]
      %v686 = vld [vmem:[%s6 + $0xc0] sm:$0xff]
      %v687 = vld [vmem:[%s6 + $0xc8] sm:$0xff]
      %v688 = vld [vmem:[%s6 + $0xd0] sm:$0xff]
      %v689 = vld [vmem:[%s6 + $0xd8] sm:$0xff]
      %v690 = vld [vmem:[%s6 + $0xe0] sm:$0xff]
      %v691 = vld [vmem:[%s6 + $0xe8] sm:$0xff]
      %v692 = vld [vmem:[%s6 + $0xf0] sm:$0xff]
      %v693 = vld [vmem:[%s6 + $0xf8] sm:$0xff]
      %v694 = vld [vmem:[%s6 + $0x100] sm:$0xff]
      %v695 = vld [vmem:[%s6 + $0x108] sm:$0xff]
      %v696 = vld [vmem:[%s6 + $0x110] sm:$0xff]
      %v697 = vld [vmem:[%s6 + $0x118] sm:$0xff]
      %v698 = vld [vmem:[%s6 + $0x120] sm:$0xff]
      %v699 = vld [vmem:[%s6 + $0x128] sm:$0xff]
      %v700 = vld [vmem:[%s6 + $0x130] sm:$0xff]
      %v701 = vld [vmem:[%s6 + $0x138] sm:$0xff]
      %v702 = vld [vmem:[%s6 + $0x140] sm:$0xff]
      %v703 = vld [vmem:[%s6 + $0x148] sm:$0xff]
      %v704 = vld [vmem:[%s6 + $0x150] sm:$0xff]
      %v705 = vld [vmem:[%s6 + $0x158] sm:$0xff]
      %v706 = vld [vmem:[%s6 + $0x160] sm:$0xff]
      %v707 = vld [vmem:[%s6 + $0x168] sm:$0xff]
      %v708 = vld [vmem:[%s6 + $0x170] sm:$0xff]
      %v709 = vld [vmem:[%s6 + $0x178] sm:$0xff]
      %v710 = vld [vmem:[%s6 + $0x180] sm:$0xff]
      %v711 = vld [vmem:[%s6 + $0x188] sm:$0xff]
      %v712 = vld [vmem:[%s6 + $0x190] sm:$0xff]
      %v713 = vld [vmem:[%s6 + $0x198] sm:$0xff]
      %v714 = vld [vmem:[%s6 + $0x1a0] sm:$0xff]
      %v715 = vld [vmem:[%s6 + $0x1a8] sm:$0xff]
      %v716 = vld [vmem:[%s6 + $0x1b0] sm:$0xff]
      %v717 = vld [vmem:[%s6 + $0x1b8] sm:$0xff]
      %v718 = vld [vmem:[%s6 + $0x1c0] sm:$0xff]
      %v719 = vld [vmem:[%s6 + $0x1c8] sm:$0xff]
      %v720 = vld [vmem:[%s6 + $0x1d0] sm:$0xff]
      %v721 = vld [vmem:[%s6 + $0x1d8] sm:$0xff]
      %v722 = vld [vmem:[%s6 + $0x1e0] sm:$0xff]
      %v723 = vld [vmem:[%s6 + $0x1e8] sm:$0xff]
      %v724 = vld [vmem:[%s6 + $0x1f0] sm:$0xff]
      %v725 = vld [vmem:[%s6 + $0x1f8] sm:$0xff]
      %v726 = vld [vmem:[%s7] sm:$0xff]
      %v728 = vlaneseq
      %v729 = vshrl.u32 %v728, 7
      %v730 = vsub.s32 0, %v729
      %v731 = vrot.slane %v726, %v730
      %v732 = vlaneseq
      %v733 = vshrl.u32 %v732, 7
      %v734 = vsub.s32 1, %v733
      %v735 = vrot.slane %v726, %v734
      %v736 = vlaneseq
      %v737 = vshrl.u32 %v736, 7
      %v738 = vsub.s32 2, %v737
      %v739 = vrot.slane %v726, %v738
      %v740 = vlaneseq
      %v741 = vshrl.u32 %v740, 7
      %v742 = vsub.s32 3, %v741
      %v743 = vrot.slane %v726, %v742
      %v744 = vlaneseq
      %v745 = vshrl.u32 %v744, 7
      %v746 = vsub.s32 4, %v745
      %v747 = vrot.slane %v726, %v746
      %v748 = vlaneseq
      %v749 = vshrl.u32 %v748, 7
      %v750 = vsub.s32 5, %v749
      %v751 = vrot.slane %v726, %v750
      %v752 = vlaneseq
      %v753 = vshrl.u32 %v752, 7
      %v754 = vsub.s32 6, %v753
      %v755 = vrot.slane %v726, %v754
      %v756 = vlaneseq
      %v757 = vshrl.u32 %v756, 7
      %v758 = vsub.s32 7, %v757
      %v759 = vrot.slane %v726, %v758
      %v832 = vunpack.c.l.b16 %v662
      %v833 = vunpack.c.h.b16 %v662
      %v834 = vunpack.c.l.b16 %v663
      %v835 = vunpack.c.h.b16 %v663
      %v836 = vunpack.c.l.b16 %v664
      %v837 = vunpack.c.h.b16 %v664
      %v838 = vunpack.c.l.b16 %v665
      %v839 = vunpack.c.h.b16 %v665
      %v840 = vunpack.c.l.b16 %v666
      %v841 = vunpack.c.h.b16 %v666
      %v842 = vunpack.c.l.b16 %v667
      %v843 = vunpack.c.h.b16 %v667
      %v844 = vunpack.c.l.b16 %v668
      %v845 = vunpack.c.h.b16 %v668
      %v846 = vunpack.c.l.b16 %v669
      %v847 = vunpack.c.h.b16 %v669
      %v848 = vunpack.c.l.b16 %v670
      %v849 = vunpack.c.h.b16 %v670
      %v850 = vunpack.c.l.b16 %v671
      %v851 = vunpack.c.h.b16 %v671
      %v852 = vunpack.c.l.b16 %v672
      %v853 = vunpack.c.h.b16 %v672
      %v854 = vunpack.c.l.b16 %v673
      %v855 = vunpack.c.h.b16 %v673
      %v856 = vunpack.c.l.b16 %v674
      %v857 = vunpack.c.h.b16 %v674
      %v858 = vunpack.c.l.b16 %v675
      %v859 = vunpack.c.h.b16 %v675
      %v860 = vunpack.c.l.b16 %v676
      %v861 = vunpack.c.h.b16 %v676
      %v862 = vunpack.c.l.b16 %v677
      %v863 = vunpack.c.h.b16 %v677
      %v864 = vunpack.c.l.b16 %v678
      %v865 = vunpack.c.h.b16 %v678
      %v866 = vunpack.c.l.b16 %v679
      %v867 = vunpack.c.h.b16 %v679
      %v868 = vunpack.c.l.b16 %v680
      %v869 = vunpack.c.h.b16 %v680
      %v870 = vunpack.c.l.b16 %v681
      %v871 = vunpack.c.h.b16 %v681
      %v872 = vunpack.c.l.b16 %v682
      %v873 = vunpack.c.h.b16 %v682
      %v874 = vunpack.c.l.b16 %v683
      %v875 = vunpack.c.h.b16 %v683
      %v876 = vunpack.c.l.b16 %v684
      %v877 = vunpack.c.h.b16 %v684
      %v878 = vunpack.c.l.b16 %v685
      %v879 = vunpack.c.h.b16 %v685
      %v880 = vunpack.c.l.b16 %v686
      %v881 = vunpack.c.h.b16 %v686
      %v882 = vunpack.c.l.b16 %v687
      %v883 = vunpack.c.h.b16 %v687
      %v884 = vunpack.c.l.b16 %v688
      %v885 = vunpack.c.h.b16 %v688
      %v886 = vunpack.c.l.b16 %v689
      %v887 = vunpack.c.h.b16 %v689
      %v888 = vunpack.c.l.b16 %v690
      %v889 = vunpack.c.h.b16 %v690
      %v890 = vunpack.c.l.b16 %v691
      %v891 = vunpack.c.h.b16 %v691
      %v892 = vunpack.c.l.b16 %v692
      %v893 = vunpack.c.h.b16 %v692
      %v894 = vunpack.c.l.b16 %v693
      %v895 = vunpack.c.h.b16 %v693
      %v896 = vunpack.c.l.b16 %v694
      %v897 = vunpack.c.h.b16 %v694
      %v898 = vunpack.c.l.b16 %v695
      %v899 = vunpack.c.h.b16 %v695
      %v900 = vunpack.c.l.b16 %v696
      %v901 = vunpack.c.h.b16 %v696
      %v902 = vunpack.c.l.b16 %v697
      %v903 = vunpack.c.h.b16 %v697
      %v904 = vunpack.c.l.b16 %v698
      %v905 = vunpack.c.h.b16 %v698
      %v906 = vunpack.c.l.b16 %v699
      %v907 = vunpack.c.h.b16 %v699
      %v908 = vunpack.c.l.b16 %v700
      %v909 = vunpack.c.h.b16 %v700
      %v910 = vunpack.c.l.b16 %v701
      %v911 = vunpack.c.h.b16 %v701
      %v912 = vunpack.c.l.b16 %v702
      %v913 = vunpack.c.h.b16 %v702
      %v914 = vunpack.c.l.b16 %v703
      %v915 = vunpack.c.h.b16 %v703
      %v916 = vunpack.c.l.b16 %v704
      %v917 = vunpack.c.h.b16 %v704
      %v918 = vunpack.c.l.b16 %v705
      %v919 = vunpack.c.h.b16 %v705
      %v920 = vunpack.c.l.b16 %v706
      %v921 = vunpack.c.h.b16 %v706
      %v922 = vunpack.c.l.b16 %v707
      %v923 = vunpack.c.h.b16 %v707
      %v924 = vunpack.c.l.b16 %v708
      %v925 = vunpack.c.h.b16 %v708
      %v926 = vunpack.c.l.b16 %v709
      %v927 = vunpack.c.h.b16 %v709
      %v928 = vunpack.c.l.b16 %v710
      %v929 = vunpack.c.h.b16 %v710
      %v930 = vunpack.c.l.b16 %v711
      %v931 = vunpack.c.h.b16 %v711
      %v932 = vunpack.c.l.b16 %v712
      %v933 = vunpack.c.h.b16 %v712
      %v934 = vunpack.c.l.b16 %v713
      %v935 = vunpack.c.h.b16 %v713
      %v936 = vunpack.c.l.b16 %v714
      %v937 = vunpack.c.h.b16 %v714
      %v938 = vunpack.c.l.b16 %v715
      %v939 = vunpack.c.h.b16 %v715
      %v940 = vunpack.c.l.b16 %v716
      %v941 = vunpack.c.h.b16 %v716
      %v942 = vunpack.c.l.b16 %v717
      %v943 = vunpack.c.h.b16 %v717
      %v944 = vunpack.c.l.b16 %v718
      %v945 = vunpack.c.h.b16 %v718
      %v946 = vunpack.c.l.b16 %v719
      %v947 = vunpack.c.h.b16 %v719
      %v948 = vunpack.c.l.b16 %v720
      %v949 = vunpack.c.h.b16 %v720
      %v950 = vunpack.c.l.b16 %v721
      %v951 = vunpack.c.h.b16 %v721
      %v952 = vunpack.c.l.b16 %v722
      %v953 = vunpack.c.h.b16 %v722
      %v954 = vunpack.c.l.b16 %v723
      %v955 = vunpack.c.h.b16 %v723
      %v956 = vunpack.c.l.b16 %v724
      %v957 = vunpack.c.h.b16 %v724
      %v958 = vunpack.c.l.b16 %v725
      %v959 = vunpack.c.h.b16 %v725
      %v960 = vpack.c.b16 %v840, %v832
      %v961 = vpack.c.b16 %v841, %v833
      %v962 = vpack.c.b16 %v842, %v834
      %v963 = vpack.c.b16 %v843, %v835
      %v964 = vpack.c.b16 %v844, %v836
      %v965 = vpack.c.b16 %v845, %v837
      %v966 = vpack.c.b16 %v846, %v838
      %v967 = vpack.c.b16 %v847, %v839
      %v968 = vpack.c.b16 %v856, %v848
      %v969 = vpack.c.b16 %v857, %v849
      %v970 = vpack.c.b16 %v858, %v850
      %v971 = vpack.c.b16 %v859, %v851
      %v972 = vpack.c.b16 %v860, %v852
      %v973 = vpack.c.b16 %v861, %v853
      %v974 = vpack.c.b16 %v862, %v854
      %v975 = vpack.c.b16 %v863, %v855
      %v976 = vpack.c.b16 %v872, %v864
      %v977 = vpack.c.b16 %v873, %v865
      %v978 = vpack.c.b16 %v874, %v866
      %v979 = vpack.c.b16 %v875, %v867
      %v980 = vpack.c.b16 %v876, %v868
      %v981 = vpack.c.b16 %v877, %v869
      %v982 = vpack.c.b16 %v878, %v870
      %v983 = vpack.c.b16 %v879, %v871
      %v984 = vpack.c.b16 %v888, %v880
      %v985 = vpack.c.b16 %v889, %v881
      %v986 = vpack.c.b16 %v890, %v882
      %v987 = vpack.c.b16 %v891, %v883
      %v988 = vpack.c.b16 %v892, %v884
      %v989 = vpack.c.b16 %v893, %v885
      %v990 = vpack.c.b16 %v894, %v886
      %v991 = vpack.c.b16 %v895, %v887
      %v992 = vpack.c.b16 %v904, %v896
      %v993 = vpack.c.b16 %v905, %v897
      %v994 = vpack.c.b16 %v906, %v898
      %v995 = vpack.c.b16 %v907, %v899
      %v996 = vpack.c.b16 %v908, %v900
      %v997 = vpack.c.b16 %v909, %v901
      %v998 = vpack.c.b16 %v910, %v902
      %v999 = vpack.c.b16 %v911, %v903
      %v1000 = vpack.c.b16 %v920, %v912
      %v1001 = vpack.c.b16 %v921, %v913
      %v1002 = vpack.c.b16 %v922, %v914
      %v1003 = vpack.c.b16 %v923, %v915
      %v1004 = vpack.c.b16 %v924, %v916
      %v1005 = vpack.c.b16 %v925, %v917
      %v1006 = vpack.c.b16 %v926, %v918
      %v1007 = vpack.c.b16 %v927, %v919
      %v1008 = vpack.c.b16 %v936, %v928
      %v1009 = vpack.c.b16 %v937, %v929
      %v1010 = vpack.c.b16 %v938, %v930
      %v1011 = vpack.c.b16 %v939, %v931
      %v1012 = vpack.c.b16 %v940, %v932
      %v1013 = vpack.c.b16 %v941, %v933
      %v1014 = vpack.c.b16 %v942, %v934
      %v1015 = vpack.c.b16 %v943, %v935
      %v1016 = vpack.c.b16 %v952, %v944
      %v1017 = vpack.c.b16 %v953, %v945
      %v1018 = vpack.c.b16 %v954, %v946
      %v1019 = vpack.c.b16 %v955, %v947
      %v1020 = vpack.c.b16 %v956, %v948
      %v1021 = vpack.c.b16 %v957, %v949
      %v1022 = vpack.c.b16 %v958, %v950
      %v1023 = vpack.c.b16 %v959, %v951
      %1088 = vmatprep.subr.bf16.mxu0 %v1017
      %1089 = vmatpush1.bf16.msra.mxu0 %v1016
      %1090 = vmatprep.subr.bf16.mxu0 %v1009
      %1091 = vmatpush1.bf16.msra.mxu0 %v1008
      %1092 = vmatprep.subr.bf16.mxu0 %v1001
      %1093 = vmatpush1.bf16.msra.mxu0 %v1000
      %1094 = vmatprep.subr.bf16.mxu0 %v993
      %1095 = vmatpush1.bf16.msra.mxu0 %v992
      %1096 = vmatprep.subr.bf16.mxu0 %v985
      %1097 = vmatpush1.bf16.msra.mxu0 %v984
      %1098 = vmatprep.subr.bf16.mxu0 %v977
      %1099 = vmatpush1.bf16.msra.mxu0 %v976
      %1100 = vmatprep.subr.bf16.mxu0 %v969
      %1101 = vmatpush1.bf16.msra.mxu0 %v968
      %1102 = vmatprep.subr.bf16.mxu0 %v961
      %1103 = vmatpush1.bf16.msra.mxu0 %v960
      %1104 = vmatprep.subr.bf16.mxu0 0
      %1105 = vmatpush2.bf16.msra.mxu0 0
      %1106 = vmatprep.subr.bf16.mxu0 0
      %1107 = vmatpush2.bf16.msra.mxu0 0
      %1108 = vmatprep.subr.bf16.mxu0 0
      %1109 = vmatpush2.bf16.msra.mxu0 0
      %1110 = vmatprep.subr.bf16.mxu0 0
      %1111 = vmatpush2.bf16.msra.mxu0 0
      %1112 = vmatprep.subr.bf16.mxu0 0
      %1113 = vmatpush2.bf16.msra.mxu0 0
      %1114 = vmatprep.subr.bf16.mxu0 0
      %1115 = vmatpush2.bf16.msra.mxu0 0
      %1116 = vmatprep.subr.bf16.mxu0 0
      %1117 = vmatpush2.bf16.msra.mxu0 0
      %1118 = vmatprep.subr.bf16.mxu0 0
      %1119 = vmatpush2.bf16.msra.mxu0 0
      %1120 = vmatprep.mubr.bf16.mxu0 0
      %1121 = vmatmul.mubr.bf16.gmra.mxu0 %v661
      %v1122 = vpop.f32.mrf.mxu0
      %v1123 = vadd.f32 %v731, %v1122
      %v1124 = vpop.f32.mrf.mxu0
      %v1125 = vadd.f32 %v735, %v1124
      %v1126 = vpop.f32.mrf.mxu0
      %v1127 = vadd.f32 %v731, %v1126
      %v1128 = vpop.f32.mrf.mxu0
      %v1129 = vadd.f32 %v735, %v1128
      %1130 = vdwg.mxu0
      %1131 = vmatprep.subr.bf16.mxu0 %v1019
      %1132 = vmatpush1.bf16.msra.mxu0 %v1018
      %1133 = vmatprep.subr.bf16.mxu0 %v1011
      %1134 = vmatpush1.bf16.msra.mxu0 %v1010
      %1135 = vmatprep.subr.bf16.mxu0 %v1003
      %1136 = vmatpush1.bf16.msra.mxu0 %v1002
      %1137 = vmatprep.subr.bf16.mxu0 %v995
      %1138 = vmatpush1.bf16.msra.mxu0 %v994
      %1139 = vmatprep.subr.bf16.mxu0 %v987
      %1140 = vmatpush1.bf16.msra.mxu0 %v986
      %1141 = vmatprep.subr.bf16.mxu0 %v979
      %1142 = vmatpush1.bf16.msra.mxu0 %v978
      %1143 = vmatprep.subr.bf16.mxu0 %v971
      %1144 = vmatpush1.bf16.msra.mxu0 %v970
      %1145 = vmatprep.subr.bf16.mxu0 %v963
      %1146 = vmatpush1.bf16.msra.mxu0 %v962
      %1147 = vmatprep.subr.bf16.mxu0 0
      %1148 = vmatpush2.bf16.msra.mxu0 0
      %1149 = vmatprep.subr.bf16.mxu0 0
      %1150 = vmatpush2.bf16.msra.mxu0 0
      %1151 = vmatprep.subr.bf16.mxu0 0
      %1152 = vmatpush2.bf16.msra.mxu0 0
      %1153 = vmatprep.subr.bf16.mxu0 0
      %1154 = vmatpush2.bf16.msra.mxu0 0
      %1155 = vmatprep.subr.bf16.mxu0 0
      %1156 = vmatpush2.bf16.msra.mxu0 0
      %1157 = vmatprep.subr.bf16.mxu0 0
      %1158 = vmatpush2.bf16.msra.mxu0 0
      %1159 = vmatprep.subr.bf16.mxu0 0
      %1160 = vmatpush2.bf16.msra.mxu0 0
      %1161 = vmatprep.subr.bf16.mxu0 0
      %1162 = vmatpush2.bf16.msra.mxu0 0
      %1163 = vmatprep.mubr.bf16.mxu0 0
      %1164 = vmatmul.mubr.bf16.gmra.mxu0 %v661
      %v1165 = vpop.f32.mrf.mxu0
      %v1166 = vadd.f32 %v739, %v1165
      %v1167 = vpop.f32.mrf.mxu0
      %v1168 = vadd.f32 %v743, %v1167
      %v1169 = vpop.f32.mrf.mxu0
      %v1170 = vadd.f32 %v739, %v1169
      %v1171 = vpop.f32.mrf.mxu0
      %v1172 = vadd.f32 %v743, %v1171
      %1173 = vdwg.mxu0
      %1174 = vmatprep.subr.bf16.mxu0 %v1021
      %1175 = vmatpush1.bf16.msra.mxu0 %v1020
      %1176 = vmatprep.subr.bf16.mxu0 %v1013
      %1177 = vmatpush1.bf16.msra.mxu0 %v1012
      %1178 = vmatprep.subr.bf16.mxu0 %v1005
      %1179 = vmatpush1.bf16.msra.mxu0 %v1004
      %1180 = vmatprep.subr.bf16.mxu0 %v997
      %1181 = vmatpush1.bf16.msra.mxu0 %v996
      %1182 = vmatprep.subr.bf16.mxu0 %v989
      %1183 = vmatpush1.bf16.msra.mxu0 %v988
      %1184 = vmatprep.subr.bf16.mxu0 %v981
      %1185 = vmatpush1.bf16.msra.mxu0 %v980
      %1186 = vmatprep.subr.bf16.mxu0 %v973
      %1187 = vmatpush1.bf16.msra.mxu0 %v972
      %1188 = vmatprep.subr.bf16.mxu0 %v965
      %1189 = vmatpush1.bf16.msra.mxu0 %v964
      %1190 = vmatprep.subr.bf16.mxu0 0
      %1191 = vmatpush2.bf16.msra.mxu0 0
      %1192 = vmatprep.subr.bf16.mxu0 0
      %1193 = vmatpush2.bf16.msra.mxu0 0
      %1194 = vmatprep.subr.bf16.mxu0 0
      %1195 = vmatpush2.bf16.msra.mxu0 0
      %1196 = vmatprep.subr.bf16.mxu0 0
      %1197 = vmatpush2.bf16.msra.mxu0 0
      %1198 = vmatprep.subr.bf16.mxu0 0
      %1199 = vmatpush2.bf16.msra.mxu0 0
      %1200 = vmatprep.subr.bf16.mxu0 0
      %1201 = vmatpush2.bf16.msra.mxu0 0
      %1202 = vmatprep.subr.bf16.mxu0 0
      %1203 = vmatpush2.bf16.msra.mxu0 0
      %1204 = vmatprep.subr.bf16.mxu0 0
      %1205 = vmatpush2.bf16.msra.mxu0 0
      %1206 = vmatprep.mubr.bf16.mxu0 0
      %1207 = vmatmul.mubr.bf16.gmra.mxu0 %v661
      %v1208 = vpop.f32.mrf.mxu0
      %v1209 = vadd.f32 %v747, %v1208
      %v1210 = vpop.f32.mrf.mxu0
      %v1211 = vadd.f32 %v751, %v1210
      %v1212 = vpop.f32.mrf.mxu0
      %v1213 = vadd.f32 %v747, %v1212
      %v1214 = vpop.f32.mrf.mxu0
      %v1215 = vadd.f32 %v751, %v1214
      %1216 = vdwg.mxu0
      %1217 = vmatprep.subr.bf16.mxu0 %v1023
      %1218 = vmatpush1.bf16.msra.mxu0 %v1022
      %1219 = vmatprep.subr.bf16.mxu0 %v1015
      %1220 = vmatpush1.bf16.msra.mxu0 %v1014
      %1221 = vmatprep.subr.bf16.mxu0 %v1007
      %1222 = vmatpush1.bf16.msra.mxu0 %v1006
      %1223 = vmatprep.subr.bf16.mxu0 %v999
      %1224 = vmatpush1.bf16.msra.mxu0 %v998
      %1225 = vmatprep.subr.bf16.mxu0 %v991
      %1226 = vmatpush1.bf16.msra.mxu0 %v990
      %1227 = vmatprep.subr.bf16.mxu0 %v983
      %1228 = vmatpush1.bf16.msra.mxu0 %v982
      %1229 = vmatprep.subr.bf16.mxu0 %v975
      %1230 = vmatpush1.bf16.msra.mxu0 %v974
      %1231 = vmatprep.subr.bf16.mxu0 %v967
      %1232 = vmatpush1.bf16.msra.mxu0 %v966
      %1233 = vmatprep.subr.bf16.mxu0 0
      %1234 = vmatpush2.bf16.msra.mxu0 0
      %1235 = vmatprep.subr.bf16.mxu0 0
      %1236 = vmatpush2.bf16.msra.mxu0 0
      %1237 = vmatprep.subr.bf16.mxu0 0
      %1238 = vmatpush2.bf16.msra.mxu0 0
      %1239 = vmatprep.subr.bf16.mxu0 0
      %1240 = vmatpush2.bf16.msra.mxu0 0
      %1241 = vmatprep.subr.bf16.mxu0 0
      %1242 = vmatpush2.bf16.msra.mxu0 0
      %1243 = vmatprep.subr.bf16.mxu0 0
      %1244 = vmatpush2.bf16.msra.mxu0 0
      %1245 = vmatprep.subr.bf16.mxu0 0
      %1246 = vmatpush2.bf16.msra.mxu0 0
      %1247 = vmatprep.subr.bf16.mxu0 0
      %1248 = vmatpush2.bf16.msra.mxu0 0
      %1249 = vmatprep.mubr.bf16.mxu0 0
      %1250 = vmatmul.mubr.bf16.gmra.mxu0 %v661
      %v1251 = vpop.f32.mrf.mxu0
      %v1252 = vadd.f32 %v755, %v1251
      %v1253 = vpop.f32.mrf.mxu0
      %v1254 = vadd.f32 %v759, %v1253
      %v1255 = vpop.f32.mrf.mxu0
      %v1256 = vadd.f32 %v755, %v1255
      %v1257 = vpop.f32.mrf.mxu0
      %v1258 = vadd.f32 %v759, %v1257
      %1259 = vdwg.mxu0
      %v1260 = vld [vmem:[#allocation2] sm:$0xff]
      %v1261 = vmax.f32 %v1123, %v1127
      %v1262 = vrot.slane %v1261, 4
      %v1263 = vmax.f32 %v1261, %v1262
      %v1264 = vrot.slane %v1263, 2
      %v1265 = vmax.f32 %v1263, %v1264
      %v1266 = vrot.slane %v1265, 1
      %v1267 = vmax.f32 %v1265, %v1266
      %v1268 = vmax.f32 %v1125, %v1129
      %v1269 = vrot.slane %v1268, 4
      %v1270 = vmax.f32 %v1268, %v1269
      %v1271 = vrot.slane %v1270, 2
      %v1272 = vmax.f32 %v1270, %v1271
      %v1273 = vrot.slane %v1272, 1
      %v1274 = vmax.f32 %v1272, %v1273
      %v1275 = vmax.f32 %v1166, %v1170
      %v1276 = vrot.slane %v1275, 4
      %v1277 = vmax.f32 %v1275, %v1276
      %v1278 = vrot.slane %v1277, 2
      %v1279 = vmax.f32 %v1277, %v1278
      %v1280 = vrot.slane %v1279, 1
      %v1281 = vmax.f32 %v1279, %v1280
      %v1282 = vmax.f32 %v1168, %v1172
      %v1283 = vrot.slane %v1282, 4
      %v1284 = vmax.f32 %v1282, %v1283
      %v1285 = vrot.slane %v1284, 2
      %v1286 = vmax.f32 %v1284, %v1285
      %v1287 = vrot.slane %v1286, 1
      %v1288 = vmax.f32 %v1286, %v1287
      %v1289 = vmax.f32 %v1209, %v1213
      %v1290 = vrot.slane %v1289, 4
      %v1291 = vmax.f32 %v1289, %v1290
      %v1292 = vrot.slane %v1291, 2
      %v1293 = vmax.f32 %v1291, %v1292
      %v1294 = vrot.slane %v1293, 1
      %v1295 = vmax.f32 %v1293, %v1294
      %v1296 = vmax.f32 %v1211, %v1215
      %v1297 = vrot.slane %v1296, 4
      %v1298 = vmax.f32 %v1296, %v1297
      %v1299 = vrot.slane %v1298, 2
      %v1300 = vmax.f32 %v1298, %v1299
      %v1301 = vrot.slane %v1300, 1
      %v1302 = vmax.f32 %v1300, %v1301
      %v1303 = vmax.f32 %v1252, %v1256
      %v1304 = vrot.slane %v1303, 4
      %v1305 = vmax.f32 %v1303, %v1304
      %v1306 = vrot.slane %v1305, 2
      %v1307 = vmax.f32 %v1305, %v1306
      %v1308 = vrot.slane %v1307, 1
      %v1309 = vmax.f32 %v1307, %v1308
      %v1310 = vmax.f32 %v1254, %v1258
      %v1311 = vrot.slane %v1310, 4
      %v1312 = vmax.f32 %v1310, %v1311
      %v1313 = vrot.slane %v1312, 2
      %v1314 = vmax.f32 %v1312, %v1313
      %v1315 = vrot.slane %v1314, 1
      %v1316 = vmax.f32 %v1314, %v1315
      %v1325 = vcombine.low %v1267, %v1274
      %v1326 = vcombine.low %v1281, %v1288
      %v1327 = vcombine.low %v1295, %v1302
      %v1328 = vcombine.low %v1309, %v1316
      %v1330 = vunpack.c.l.s4 1966171168
      %v1331 = vunpack.c.0.s8 %v1330
      %v1332 = vlaneseq
      %v1333 = vshrl.u32 %v1332, 7
      %v1334 = vsub.s32 %v1331, %v1333
      %v1335 = vrot.slane %v1325, %v1334
      %v1337 = vunpack.c.l.s4 1966171168
      %v1338 = vunpack.c.0.s8 %v1337
      %v1339 = vlaneseq
      %v1340 = vshrl.u32 %v1339, 7
      %v1341 = vsub.s32 %v1338, %v1340
      %v1342 = vrot.slane %v1326, %v1341
      %v1344 = vunpack.c.l.s4 1966171168
      %v1345 = vunpack.c.0.s8 %v1344
      %v1346 = vlaneseq
      %v1347 = vshrl.u32 %v1346, 7
      %v1348 = vsub.s32 %v1345, %v1347
      %v1349 = vrot.slane %v1327, %v1348
      %v1351 = vunpack.c.l.s4 1966171168
      %v1352 = vunpack.c.0.s8 %v1351
      %v1353 = vlaneseq
      %v1354 = vshrl.u32 %v1353, 7
      %v1355 = vsub.s32 %v1352, %v1354
      %v1356 = vrot.slane %v1328, %v1355
      %v1357 = vcombine.low %v1335, %v1342
      %v1358 = vcombine.low %v1349, %v1356
      %v1360 = vunpack.c.l.s4 1966171168
      %v1361 = vunpack.c.0.s8 %v1360
      %v1362 = vlaneseq
      %v1363 = vshrl.u32 %v1362, 7
      %v1364 = vsub.s32 %v1361, %v1363
      %v1365 = vrot.slane %v1357, %v1364
      %v1367 = vunpack.c.l.s4 1966171168
      %v1368 = vunpack.c.0.s8 %v1367
      %v1369 = vlaneseq
      %v1370 = vshrl.u32 %v1369, 7
      %v1371 = vsub.s32 %v1368, %v1370
      %v1372 = vrot.slane %v1358, %v1371
      %v1373 = vcombine.low %v1365, %v1372
      %v1375 = vmax.f32 %v1260, %v1373
      %1376 = vst [vmem:[#allocation2] sm:$0xff] %v1375
      // Predicated region
      $region65: #{pointnet_densecls_forward.4} parent=59 // pred_check
        %p1377 = pneg %p455
      $region66: #{pointnet_densecls_forward.4} parent=59 // pred_check_branch
        %1379 = sbr.rel (%p1377) target = $region68
      $region67: #{pointnet_densecls_forward.4} parent=59 // pred_region
        %v1380 = vld [vmem:[#allocation2] sm:$0xff]
        %v1382 = vlaneseq
        %v1383 = vshrl.u32 %v1382, 7
        %v1384 = vsub.s32 0, %v1383
        %v1385 = vrot.slane %v1380, %v1384
        %v1386 = vlaneseq
        %v1387 = vshrl.u32 %v1386, 7
        %v1388 = vsub.s32 1, %v1387
        %v1389 = vrot.slane %v1380, %v1388
        %v1390 = vlaneseq
        %v1391 = vshrl.u32 %v1390, 7
        %v1392 = vsub.s32 2, %v1391
        %v1393 = vrot.slane %v1380, %v1392
        %v1394 = vlaneseq
        %v1395 = vshrl.u32 %v1394, 7
        %v1396 = vsub.s32 3, %v1395
        %v1397 = vrot.slane %v1380, %v1396
        %v1398 = vlaneseq
        %v1399 = vshrl.u32 %v1398, 7
        %v1400 = vsub.s32 4, %v1399
        %v1401 = vrot.slane %v1380, %v1400
        %v1402 = vlaneseq
        %v1403 = vshrl.u32 %v1402, 7
        %v1404 = vsub.s32 5, %v1403
        %v1405 = vrot.slane %v1380, %v1404
        %v1406 = vlaneseq
        %v1407 = vshrl.u32 %v1406, 7
        %v1408 = vsub.s32 6, %v1407
        %v1409 = vrot.slane %v1380, %v1408
        %v1410 = vlaneseq
        %v1411 = vshrl.u32 %v1410, 7
        %v1412 = vsub.s32 7, %v1411
        %v1413 = vrot.slane %v1380, %v1412
        %v1422 = vpack.c.bf16 %v1385, %v1385
        %v1423 = vpack.c.bf16 %v1389, %v1389
        %v1424 = vpack.c.bf16 %v1393, %v1393
        %v1425 = vpack.c.bf16 %v1397, %v1397
        %v1426 = vpack.c.bf16 %v1401, %v1401
        %v1427 = vpack.c.bf16 %v1405, %v1405
        %v1428 = vpack.c.bf16 %v1409, %v1409
        %v1429 = vpack.c.bf16 %v1413, %v1413
        %v1430 = vld [vmem:[%s8] sm:$0xff]
        %v1431 = vld [vmem:[%s8 + $0x8] sm:$0xff]
        %v1432 = vld [vmem:[%s8 + $0x10] sm:$0xff]
        %v1433 = vld [vmem:[%s8 + $0x18] sm:$0xff]
        %v1434 = vld [vmem:[%s8 + $0x20] sm:$0xff]
        %v1435 = vld [vmem:[%s8 + $0x28] sm:$0xff]
        %v1436 = vld [vmem:[%s8 + $0x30] sm:$0xff]
        %v1437 = vld [vmem:[%s8 + $0x38] sm:$0xff]
        %v1438 = vld [vmem:[%s8 + $0x40] sm:$0xff]
        %v1439 = vld [vmem:[%s8 + $0x48] sm:$0xff]
        %v1440 = vld [vmem:[%s8 + $0x50] sm:$0xff]
        %v1441 = vld [vmem:[%s8 + $0x58] sm:$0xff]
        %v1442 = vld [vmem:[%s8 + $0x60] sm:$0xff]
        %v1443 = vld [vmem:[%s8 + $0x68] sm:$0xff]
        %v1444 = vld [vmem:[%s8 + $0x70] sm:$0xff]
        %v1445 = vld [vmem:[%s8 + $0x78] sm:$0xff]
        %v1446 = vld [vmem:[%s8 + $0x80] sm:$0xff]
        %v1447 = vld [vmem:[%s8 + $0x88] sm:$0xff]
        %v1448 = vld [vmem:[%s8 + $0x90] sm:$0xff]
        %v1449 = vld [vmem:[%s8 + $0x98] sm:$0xff]
        %v1450 = vld [vmem:[%s8 + $0xa0] sm:$0xff]
        %v1451 = vld [vmem:[%s8 + $0xa8] sm:$0xff]
        %v1452 = vld [vmem:[%s8 + $0xb0] sm:$0xff]
        %v1453 = vld [vmem:[%s8 + $0xb8] sm:$0xff]
        %v1454 = vld [vmem:[%s8 + $0xc0] sm:$0xff]
        %v1455 = vld [vmem:[%s8 + $0xc8] sm:$0xff]
        %v1456 = vld [vmem:[%s8 + $0xd0] sm:$0xff]
        %v1457 = vld [vmem:[%s8 + $0xd8] sm:$0xff]
        %v1458 = vld [vmem:[%s8 + $0xe0] sm:$0xff]
        %v1459 = vld [vmem:[%s8 + $0xe8] sm:$0xff]
        %v1460 = vld [vmem:[%s8 + $0xf0] sm:$0xff]
        %v1461 = vld [vmem:[%s8 + $0xf8] sm:$0xff]
        %v1462 = vld [vmem:[%s8 + $0x100] sm:$0xff]
        %v1463 = vld [vmem:[%s8 + $0x108] sm:$0xff]
        %v1464 = vld [vmem:[%s8 + $0x110] sm:$0xff]
        %v1465 = vld [vmem:[%s8 + $0x118] sm:$0xff]
        %v1466 = vld [vmem:[%s8 + $0x120] sm:$0xff]
        %v1467 = vld [vmem:[%s8 + $0x128] sm:$0xff]
        %v1468 = vld [vmem:[%s8 + $0x130] sm:$0xff]
        %v1469 = vld [vmem:[%s8 + $0x138] sm:$0xff]
        %v1470 = vld [vmem:[%s8 + $0x140] sm:$0xff]
        %v1471 = vld [vmem:[%s8 + $0x148] sm:$0xff]
        %v1472 = vld [vmem:[%s8 + $0x150] sm:$0xff]
        %v1473 = vld [vmem:[%s8 + $0x158] sm:$0xff]
        %v1474 = vld [vmem:[%s8 + $0x160] sm:$0xff]
        %v1475 = vld [vmem:[%s8 + $0x168] sm:$0xff]
        %v1476 = vld [vmem:[%s8 + $0x170] sm:$0xff]
        %v1477 = vld [vmem:[%s8 + $0x178] sm:$0xff]
        %v1478 = vld [vmem:[%s8 + $0x180] sm:$0xff]
        %v1479 = vld [vmem:[%s8 + $0x188] sm:$0xff]
        %v1480 = vld [vmem:[%s8 + $0x190] sm:$0xff]
        %v1481 = vld [vmem:[%s8 + $0x198] sm:$0xff]
        %v1482 = vld [vmem:[%s8 + $0x1a0] sm:$0xff]
        %v1483 = vld [vmem:[%s8 + $0x1a8] sm:$0xff]
        %v1484 = vld [vmem:[%s8 + $0x1b0] sm:$0xff]
        %v1485 = vld [vmem:[%s8 + $0x1b8] sm:$0xff]
        %v1486 = vld [vmem:[%s8 + $0x1c0] sm:$0xff]
        %v1487 = vld [vmem:[%s8 + $0x1c8] sm:$0xff]
        %v1488 = vld [vmem:[%s8 + $0x1d0] sm:$0xff]
        %v1489 = vld [vmem:[%s8 + $0x1d8] sm:$0xff]
        %v1490 = vld [vmem:[%s8 + $0x1e0] sm:$0xff]
        %v1491 = vld [vmem:[%s8 + $0x1e8] sm:$0xff]
        %v1492 = vld [vmem:[%s8 + $0x1f0] sm:$0xff]
        %v1493 = vld [vmem:[%s8 + $0x1f8] sm:$0xff]
        %v1494 = vld [vmem:[%s8 + $0x200] sm:$0xff]
        %v1495 = vld [vmem:[%s8 + $0x208] sm:$0xff]
        %v1496 = vld [vmem:[%s8 + $0x210] sm:$0xff]
        %v1497 = vld [vmem:[%s8 + $0x218] sm:$0xff]
        %v1498 = vld [vmem:[%s8 + $0x220] sm:$0xff]
        %v1499 = vld [vmem:[%s8 + $0x228] sm:$0xff]
        %v1500 = vld [vmem:[%s8 + $0x230] sm:$0xff]
        %v1501 = vld [vmem:[%s8 + $0x238] sm:$0xff]
        %v1502 = vld [vmem:[%s8 + $0x240] sm:$0xff]
        %v1503 = vld [vmem:[%s8 + $0x248] sm:$0xff]
        %v1504 = vld [vmem:[%s8 + $0x250] sm:$0xff]
        %v1505 = vld [vmem:[%s8 + $0x258] sm:$0xff]
        %v1506 = vld [vmem:[%s8 + $0x260] sm:$0xff]
        %v1507 = vld [vmem:[%s8 + $0x268] sm:$0xff]
        %v1508 = vld [vmem:[%s8 + $0x270] sm:$0xff]
        %v1509 = vld [vmem:[%s8 + $0x278] sm:$0xff]
        %v1510 = vld [vmem:[%s8 + $0x280] sm:$0xff]
        %v1511 = vld [vmem:[%s8 + $0x288] sm:$0xff]
        %v1512 = vld [vmem:[%s8 + $0x290] sm:$0xff]
        %v1513 = vld [vmem:[%s8 + $0x298] sm:$0xff]
        %v1514 = vld [vmem:[%s8 + $0x2a0] sm:$0xff]
        %v1515 = vld [vmem:[%s8 + $0x2a8] sm:$0xff]
        %v1516 = vld [vmem:[%s8 + $0x2b0] sm:$0xff]
        %v1517 = vld [vmem:[%s8 + $0x2b8] sm:$0xff]
        %v1518 = vld [vmem:[%s8 + $0x2c0] sm:$0xff]
        %v1519 = vld [vmem:[%s8 + $0x2c8] sm:$0xff]
        %v1520 = vld [vmem:[%s8 + $0x2d0] sm:$0xff]
        %v1521 = vld [vmem:[%s8 + $0x2d8] sm:$0xff]
        %v1522 = vld [vmem:[%s8 + $0x2e0] sm:$0xff]
        %v1523 = vld [vmem:[%s8 + $0x2e8] sm:$0xff]
        %v1524 = vld [vmem:[%s8 + $0x2f0] sm:$0xff]
        %v1525 = vld [vmem:[%s8 + $0x2f8] sm:$0xff]
        %v1526 = vld [vmem:[%s8 + $0x300] sm:$0xff]
        %v1527 = vld [vmem:[%s8 + $0x308] sm:$0xff]
        %v1528 = vld [vmem:[%s8 + $0x310] sm:$0xff]
        %v1529 = vld [vmem:[%s8 + $0x318] sm:$0xff]
        %v1530 = vld [vmem:[%s8 + $0x320] sm:$0xff]
        %v1531 = vld [vmem:[%s8 + $0x328] sm:$0xff]
        %v1532 = vld [vmem:[%s8 + $0x330] sm:$0xff]
        %v1533 = vld [vmem:[%s8 + $0x338] sm:$0xff]
        %v1534 = vld [vmem:[%s8 + $0x340] sm:$0xff]
        %v1535 = vld [vmem:[%s8 + $0x348] sm:$0xff]
        %v1536 = vld [vmem:[%s8 + $0x350] sm:$0xff]
        %v1537 = vld [vmem:[%s8 + $0x358] sm:$0xff]
        %v1538 = vld [vmem:[%s8 + $0x360] sm:$0xff]
        %v1539 = vld [vmem:[%s8 + $0x368] sm:$0xff]
        %v1540 = vld [vmem:[%s8 + $0x370] sm:$0xff]
        %v1541 = vld [vmem:[%s8 + $0x378] sm:$0xff]
        %v1542 = vld [vmem:[%s8 + $0x380] sm:$0xff]
        %v1543 = vld [vmem:[%s8 + $0x388] sm:$0xff]
        %v1544 = vld [vmem:[%s8 + $0x390] sm:$0xff]
        %v1545 = vld [vmem:[%s8 + $0x398] sm:$0xff]
        %v1546 = vld [vmem:[%s8 + $0x3a0] sm:$0xff]
        %v1547 = vld [vmem:[%s8 + $0x3a8] sm:$0xff]
        %v1548 = vld [vmem:[%s8 + $0x3b0] sm:$0xff]
        %v1549 = vld [vmem:[%s8 + $0x3b8] sm:$0xff]
        %v1550 = vld [vmem:[%s8 + $0x3c0] sm:$0xff]
        %v1551 = vld [vmem:[%s8 + $0x3c8] sm:$0xff]
        %v1552 = vld [vmem:[%s8 + $0x3d0] sm:$0xff]
        %v1553 = vld [vmem:[%s8 + $0x3d8] sm:$0xff]
        %v1554 = vld [vmem:[%s8 + $0x3e0] sm:$0xff]
        %v1555 = vld [vmem:[%s8 + $0x3e8] sm:$0xff]
        %v1556 = vld [vmem:[%s8 + $0x3f0] sm:$0xff]
        %v1557 = vld [vmem:[%s8 + $0x3f8] sm:$0xff]
        %v1558 = vld [vmem:[%s8 + $0x400] sm:$0xff]
        %v1559 = vld [vmem:[%s8 + $0x408] sm:$0xff]
        %v1560 = vld [vmem:[%s8 + $0x410] sm:$0xff]
        %v1561 = vld [vmem:[%s8 + $0x418] sm:$0xff]
        %v1562 = vld [vmem:[%s8 + $0x420] sm:$0xff]
        %v1563 = vld [vmem:[%s8 + $0x428] sm:$0xff]
        %v1564 = vld [vmem:[%s8 + $0x430] sm:$0xff]
        %v1565 = vld [vmem:[%s8 + $0x438] sm:$0xff]
        %v1566 = vld [vmem:[%s8 + $0x440] sm:$0xff]
        %v1567 = vld [vmem:[%s8 + $0x448] sm:$0xff]
        %v1568 = vld [vmem:[%s8 + $0x450] sm:$0xff]
        %v1569 = vld [vmem:[%s8 + $0x458] sm:$0xff]
        %v1570 = vld [vmem:[%s8 + $0x460] sm:$0xff]
        %v1571 = vld [vmem:[%s8 + $0x468] sm:$0xff]
        %v1572 = vld [vmem:[%s8 + $0x470] sm:$0xff]
        %v1573 = vld [vmem:[%s8 + $0x478] sm:$0xff]
        %v1574 = vld [vmem:[%s8 + $0x480] sm:$0xff]
        %v1575 = vld [vmem:[%s8 + $0x488] sm:$0xff]
        %v1576 = vld [vmem:[%s8 + $0x490] sm:$0xff]
        %v1577 = vld [vmem:[%s8 + $0x498] sm:$0xff]
        %v1578 = vld [vmem:[%s8 + $0x4a0] sm:$0xff]
        %v1579 = vld [vmem:[%s8 + $0x4a8] sm:$0xff]
        %v1580 = vld [vmem:[%s8 + $0x4b0] sm:$0xff]
        %v1581 = vld [vmem:[%s8 + $0x4b8] sm:$0xff]
        %v1582 = vld [vmem:[%s8 + $0x4c0] sm:$0xff]
        %v1583 = vld [vmem:[%s8 + $0x4c8] sm:$0xff]
        %v1584 = vld [vmem:[%s8 + $0x4d0] sm:$0xff]
        %v1585 = vld [vmem:[%s8 + $0x4d8] sm:$0xff]
        %v1586 = vld [vmem:[%s8 + $0x4e0] sm:$0xff]
        %v1587 = vld [vmem:[%s8 + $0x4e8] sm:$0xff]
        %v1588 = vld [vmem:[%s8 + $0x4f0] sm:$0xff]
        %v1589 = vld [vmem:[%s8 + $0x4f8] sm:$0xff]
        %v1590 = vld [vmem:[%s8 + $0x500] sm:$0xff]
        %v1591 = vld [vmem:[%s8 + $0x508] sm:$0xff]
        %v1592 = vld [vmem:[%s8 + $0x510] sm:$0xff]
        %v1593 = vld [vmem:[%s8 + $0x518] sm:$0xff]
        %v1594 = vld [vmem:[%s8 + $0x520] sm:$0xff]
        %v1595 = vld [vmem:[%s8 + $0x528] sm:$0xff]
        %v1596 = vld [vmem:[%s8 + $0x530] sm:$0xff]
        %v1597 = vld [vmem:[%s8 + $0x538] sm:$0xff]
        %v1598 = vld [vmem:[%s8 + $0x540] sm:$0xff]
        %v1599 = vld [vmem:[%s8 + $0x548] sm:$0xff]
        %v1600 = vld [vmem:[%s8 + $0x550] sm:$0xff]
        %v1601 = vld [vmem:[%s8 + $0x558] sm:$0xff]
        %v1602 = vld [vmem:[%s8 + $0x560] sm:$0xff]
        %v1603 = vld [vmem:[%s8 + $0x568] sm:$0xff]
        %v1604 = vld [vmem:[%s8 + $0x570] sm:$0xff]
        %v1605 = vld [vmem:[%s8 + $0x578] sm:$0xff]
        %v1606 = vld [vmem:[%s8 + $0x580] sm:$0xff]
        %v1607 = vld [vmem:[%s8 + $0x588] sm:$0xff]
        %v1608 = vld [vmem:[%s8 + $0x590] sm:$0xff]
        %v1609 = vld [vmem:[%s8 + $0x598] sm:$0xff]
        %v1610 = vld [vmem:[%s8 + $0x5a0] sm:$0xff]
        %v1611 = vld [vmem:[%s8 + $0x5a8] sm:$0xff]
        %v1612 = vld [vmem:[%s8 + $0x5b0] sm:$0xff]
        %v1613 = vld [vmem:[%s8 + $0x5b8] sm:$0xff]
        %v1614 = vld [vmem:[%s8 + $0x5c0] sm:$0xff]
        %v1615 = vld [vmem:[%s8 + $0x5c8] sm:$0xff]
        %v1616 = vld [vmem:[%s8 + $0x5d0] sm:$0xff]
        %v1617 = vld [vmem:[%s8 + $0x5d8] sm:$0xff]
        %v1618 = vld [vmem:[%s8 + $0x5e0] sm:$0xff]
        %v1619 = vld [vmem:[%s8 + $0x5e8] sm:$0xff]
        %v1620 = vld [vmem:[%s8 + $0x5f0] sm:$0xff]
        %v1621 = vld [vmem:[%s8 + $0x5f8] sm:$0xff]
        %v1622 = vld [vmem:[%s8 + $0x600] sm:$0xff]
        %v1623 = vld [vmem:[%s8 + $0x608] sm:$0xff]
        %v1624 = vld [vmem:[%s8 + $0x610] sm:$0xff]
        %v1625 = vld [vmem:[%s8 + $0x618] sm:$0xff]
        %v1626 = vld [vmem:[%s8 + $0x620] sm:$0xff]
        %v1627 = vld [vmem:[%s8 + $0x628] sm:$0xff]
        %v1628 = vld [vmem:[%s8 + $0x630] sm:$0xff]
        %v1629 = vld [vmem:[%s8 + $0x638] sm:$0xff]
        %v1630 = vld [vmem:[%s8 + $0x640] sm:$0xff]
        %v1631 = vld [vmem:[%s8 + $0x648] sm:$0xff]
        %v1632 = vld [vmem:[%s8 + $0x650] sm:$0xff]
        %v1633 = vld [vmem:[%s8 + $0x658] sm:$0xff]
        %v1634 = vld [vmem:[%s8 + $0x660] sm:$0xff]
        %v1635 = vld [vmem:[%s8 + $0x668] sm:$0xff]
        %v1636 = vld [vmem:[%s8 + $0x670] sm:$0xff]
        %v1637 = vld [vmem:[%s8 + $0x678] sm:$0xff]
        %v1638 = vld [vmem:[%s8 + $0x680] sm:$0xff]
        %v1639 = vld [vmem:[%s8 + $0x688] sm:$0xff]
        %v1640 = vld [vmem:[%s8 + $0x690] sm:$0xff]
        %v1641 = vld [vmem:[%s8 + $0x698] sm:$0xff]
        %v1642 = vld [vmem:[%s8 + $0x6a0] sm:$0xff]
        %v1643 = vld [vmem:[%s8 + $0x6a8] sm:$0xff]
        %v1644 = vld [vmem:[%s8 + $0x6b0] sm:$0xff]
        %v1645 = vld [vmem:[%s8 + $0x6b8] sm:$0xff]
        %v1646 = vld [vmem:[%s8 + $0x6c0] sm:$0xff]
        %v1647 = vld [vmem:[%s8 + $0x6c8] sm:$0xff]
        %v1648 = vld [vmem:[%s8 + $0x6d0] sm:$0xff]
        %v1649 = vld [vmem:[%s8 + $0x6d8] sm:$0xff]
        %v1650 = vld [vmem:[%s8 + $0x6e0] sm:$0xff]
        %v1651 = vld [vmem:[%s8 + $0x6e8] sm:$0xff]
        %v1652 = vld [vmem:[%s8 + $0x6f0] sm:$0xff]
        %v1653 = vld [vmem:[%s8 + $0x6f8] sm:$0xff]
        %v1654 = vld [vmem:[%s8 + $0x700] sm:$0xff]
        %v1655 = vld [vmem:[%s8 + $0x708] sm:$0xff]
        %v1656 = vld [vmem:[%s8 + $0x710] sm:$0xff]
        %v1657 = vld [vmem:[%s8 + $0x718] sm:$0xff]
        %v1658 = vld [vmem:[%s8 + $0x720] sm:$0xff]
        %v1659 = vld [vmem:[%s8 + $0x728] sm:$0xff]
        %v1660 = vld [vmem:[%s8 + $0x730] sm:$0xff]
        %v1661 = vld [vmem:[%s8 + $0x738] sm:$0xff]
        %v1662 = vld [vmem:[%s8 + $0x740] sm:$0xff]
        %v1663 = vld [vmem:[%s8 + $0x748] sm:$0xff]
        %v1664 = vld [vmem:[%s8 + $0x750] sm:$0xff]
        %v1665 = vld [vmem:[%s8 + $0x758] sm:$0xff]
        %v1666 = vld [vmem:[%s8 + $0x760] sm:$0xff]
        %v1667 = vld [vmem:[%s8 + $0x768] sm:$0xff]
        %v1668 = vld [vmem:[%s8 + $0x770] sm:$0xff]
        %v1669 = vld [vmem:[%s8 + $0x778] sm:$0xff]
        %v1670 = vld [vmem:[%s8 + $0x780] sm:$0xff]
        %v1671 = vld [vmem:[%s8 + $0x788] sm:$0xff]
        %v1672 = vld [vmem:[%s8 + $0x790] sm:$0xff]
        %v1673 = vld [vmem:[%s8 + $0x798] sm:$0xff]
        %v1674 = vld [vmem:[%s8 + $0x7a0] sm:$0xff]
        %v1675 = vld [vmem:[%s8 + $0x7a8] sm:$0xff]
        %v1676 = vld [vmem:[%s8 + $0x7b0] sm:$0xff]
        %v1677 = vld [vmem:[%s8 + $0x7b8] sm:$0xff]
        %v1678 = vld [vmem:[%s8 + $0x7c0] sm:$0xff]
        %v1679 = vld [vmem:[%s8 + $0x7c8] sm:$0xff]
        %v1680 = vld [vmem:[%s8 + $0x7d0] sm:$0xff]
        %v1681 = vld [vmem:[%s8 + $0x7d8] sm:$0xff]
        %v1682 = vld [vmem:[%s8 + $0x7e0] sm:$0xff]
        %v1683 = vld [vmem:[%s8 + $0x7e8] sm:$0xff]
        %v1684 = vld [vmem:[%s8 + $0x7f0] sm:$0xff]
        %v1685 = vld [vmem:[%s8 + $0x7f8] sm:$0xff]
        %v1686 = vld [vmem:[%s9] sm:$0xf]
        %v1943 = vunpack.c.l.b16 %v1430
        %v1944 = vunpack.c.h.b16 %v1430
        %v1945 = vunpack.c.l.b16 %v1431
        %v1946 = vunpack.c.h.b16 %v1431
        %v1947 = vunpack.c.l.b16 %v1432
        %v1948 = vunpack.c.h.b16 %v1432
        %v1949 = vunpack.c.l.b16 %v1433
        %v1950 = vunpack.c.h.b16 %v1433
        %v1951 = vunpack.c.l.b16 %v1434
        %v1952 = vunpack.c.h.b16 %v1434
        %v1953 = vunpack.c.l.b16 %v1435
        %v1954 = vunpack.c.h.b16 %v1435
        %v1955 = vunpack.c.l.b16 %v1436
        %v1956 = vunpack.c.h.b16 %v1436
        %v1957 = vunpack.c.l.b16 %v1437
        %v1958 = vunpack.c.h.b16 %v1437
        %v1959 = vunpack.c.l.b16 %v1438
        %v1960 = vunpack.c.h.b16 %v1438
        %v1961 = vunpack.c.l.b16 %v1439
        %v1962 = vunpack.c.h.b16 %v1439
        %v1963 = vunpack.c.l.b16 %v1440
        %v1964 = vunpack.c.h.b16 %v1440
        %v1965 = vunpack.c.l.b16 %v1441
        %v1966 = vunpack.c.h.b16 %v1441
        %v1967 = vunpack.c.l.b16 %v1442
        %v1968 = vunpack.c.h.b16 %v1442
        %v1969 = vunpack.c.l.b16 %v1443
        %v1970 = vunpack.c.h.b16 %v1443
        %v1971 = vunpack.c.l.b16 %v1444
        %v1972 = vunpack.c.h.b16 %v1444
        %v1973 = vunpack.c.l.b16 %v1445
        %v1974 = vunpack.c.h.b16 %v1445
        %v1975 = vunpack.c.l.b16 %v1446
        %v1976 = vunpack.c.h.b16 %v1446
        %v1977 = vunpack.c.l.b16 %v1447
        %v1978 = vunpack.c.h.b16 %v1447
        %v1979 = vunpack.c.l.b16 %v1448
        %v1980 = vunpack.c.h.b16 %v1448
        %v1981 = vunpack.c.l.b16 %v1449
        %v1982 = vunpack.c.h.b16 %v1449
        %v1983 = vunpack.c.l.b16 %v1450
        %v1984 = vunpack.c.h.b16 %v1450
        %v1985 = vunpack.c.l.b16 %v1451
        %v1986 = vunpack.c.h.b16 %v1451
        %v1987 = vunpack.c.l.b16 %v1452
        %v1988 = vunpack.c.h.b16 %v1452
        %v1989 = vunpack.c.l.b16 %v1453
        %v1990 = vunpack.c.h.b16 %v1453
        %v1991 = vunpack.c.l.b16 %v1454
        %v1992 = vunpack.c.h.b16 %v1454
        %v1993 = vunpack.c.l.b16 %v1455
        %v1994 = vunpack.c.h.b16 %v1455
        %v1995 = vunpack.c.l.b16 %v1456
        %v1996 = vunpack.c.h.b16 %v1456
        %v1997 = vunpack.c.l.b16 %v1457
        %v1998 = vunpack.c.h.b16 %v1457
        %v1999 = vunpack.c.l.b16 %v1458
        %v2000 = vunpack.c.h.b16 %v1458
        %v2001 = vunpack.c.l.b16 %v1459
        %v2002 = vunpack.c.h.b16 %v1459
        %v2003 = vunpack.c.l.b16 %v1460
        %v2004 = vunpack.c.h.b16 %v1460
        %v2005 = vunpack.c.l.b16 %v1461
        %v2006 = vunpack.c.h.b16 %v1461
        %v2007 = vunpack.c.l.b16 %v1462
        %v2008 = vunpack.c.h.b16 %v1462
        %v2009 = vunpack.c.l.b16 %v1463
        %v2010 = vunpack.c.h.b16 %v1463
        %v2011 = vunpack.c.l.b16 %v1464
        %v2012 = vunpack.c.h.b16 %v1464
        %v2013 = vunpack.c.l.b16 %v1465
        %v2014 = vunpack.c.h.b16 %v1465
        %v2015 = vunpack.c.l.b16 %v1466
        %v2016 = vunpack.c.h.b16 %v1466
        %v2017 = vunpack.c.l.b16 %v1467
        %v2018 = vunpack.c.h.b16 %v1467
        %v2019 = vunpack.c.l.b16 %v1468
        %v2020 = vunpack.c.h.b16 %v1468
        %v2021 = vunpack.c.l.b16 %v1469
        %v2022 = vunpack.c.h.b16 %v1469
        %v2023 = vunpack.c.l.b16 %v1470
        %v2024 = vunpack.c.h.b16 %v1470
        %v2025 = vunpack.c.l.b16 %v1471
        %v2026 = vunpack.c.h.b16 %v1471
        %v2027 = vunpack.c.l.b16 %v1472
        %v2028 = vunpack.c.h.b16 %v1472
        %v2029 = vunpack.c.l.b16 %v1473
        %v2030 = vunpack.c.h.b16 %v1473
        %v2031 = vunpack.c.l.b16 %v1474
        %v2032 = vunpack.c.h.b16 %v1474
        %v2033 = vunpack.c.l.b16 %v1475
        %v2034 = vunpack.c.h.b16 %v1475
        %v2035 = vunpack.c.l.b16 %v1476
        %v2036 = vunpack.c.h.b16 %v1476
        %v2037 = vunpack.c.l.b16 %v1477
        %v2038 = vunpack.c.h.b16 %v1477
        %v2039 = vunpack.c.l.b16 %v1478
        %v2040 = vunpack.c.h.b16 %v1478
        %v2041 = vunpack.c.l.b16 %v1479
        %v2042 = vunpack.c.h.b16 %v1479
        %v2043 = vunpack.c.l.b16 %v1480
        %v2044 = vunpack.c.h.b16 %v1480
        %v2045 = vunpack.c.l.b16 %v1481
        %v2046 = vunpack.c.h.b16 %v1481
        %v2047 = vunpack.c.l.b16 %v1482
        %v2048 = vunpack.c.h.b16 %v1482
        %v2049 = vunpack.c.l.b16 %v1483
        %v2050 = vunpack.c.h.b16 %v1483
        %v2051 = vunpack.c.l.b16 %v1484
        %v2052 = vunpack.c.h.b16 %v1484
        %v2053 = vunpack.c.l.b16 %v1485
        %v2054 = vunpack.c.h.b16 %v1485
        %v2055 = vunpack.c.l.b16 %v1486
        %v2056 = vunpack.c.h.b16 %v1486
        %v2057 = vunpack.c.l.b16 %v1487
        %v2058 = vunpack.c.h.b16 %v1487
        %v2059 = vunpack.c.l.b16 %v1488
        %v2060 = vunpack.c.h.b16 %v1488
        %v2061 = vunpack.c.l.b16 %v1489
        %v2062 = vunpack.c.h.b16 %v1489
        %v2063 = vunpack.c.l.b16 %v1490
        %v2064 = vunpack.c.h.b16 %v1490
        %v2065 = vunpack.c.l.b16 %v1491
        %v2066 = vunpack.c.h.b16 %v1491
        %v2067 = vunpack.c.l.b16 %v1492
        %v2068 = vunpack.c.h.b16 %v1492
        %v2069 = vunpack.c.l.b16 %v1493
        %v2070 = vunpack.c.h.b16 %v1493
        %v2071 = vunpack.c.l.b16 %v1494
        %v2072 = vunpack.c.h.b16 %v1494
        %v2073 = vunpack.c.l.b16 %v1495
        %v2074 = vunpack.c.h.b16 %v1495
        %v2075 = vunpack.c.l.b16 %v1496
        %v2076 = vunpack.c.h.b16 %v1496
        %v2077 = vunpack.c.l.b16 %v1497
        %v2078 = vunpack.c.h.b16 %v1497
        %v2079 = vunpack.c.l.b16 %v1498
        %v2080 = vunpack.c.h.b16 %v1498
        %v2081 = vunpack.c.l.b16 %v1499
        %v2082 = vunpack.c.h.b16 %v1499
        %v2083 = vunpack.c.l.b16 %v1500
        %v2084 = vunpack.c.h.b16 %v1500
        %v2085 = vunpack.c.l.b16 %v1501
        %v2086 = vunpack.c.h.b16 %v1501
        %v2087 = vunpack.c.l.b16 %v1502
        %v2088 = vunpack.c.h.b16 %v1502
        %v2089 = vunpack.c.l.b16 %v1503
        %v2090 = vunpack.c.h.b16 %v1503
        %v2091 = vunpack.c.l.b16 %v1504
        %v2092 = vunpack.c.h.b16 %v1504
        %v2093 = vunpack.c.l.b16 %v1505
        %v2094 = vunpack.c.h.b16 %v1505
        %v2095 = vunpack.c.l.b16 %v1506
        %v2096 = vunpack.c.h.b16 %v1506
        %v2097 = vunpack.c.l.b16 %v1507
        %v2098 = vunpack.c.h.b16 %v1507
        %v2099 = vunpack.c.l.b16 %v1508
        %v2100 = vunpack.c.h.b16 %v1508
        %v2101 = vunpack.c.l.b16 %v1509
        %v2102 = vunpack.c.h.b16 %v1509
        %v2103 = vunpack.c.l.b16 %v1510
        %v2104 = vunpack.c.h.b16 %v1510
        %v2105 = vunpack.c.l.b16 %v1511
        %v2106 = vunpack.c.h.b16 %v1511
        %v2107 = vunpack.c.l.b16 %v1512
        %v2108 = vunpack.c.h.b16 %v1512
        %v2109 = vunpack.c.l.b16 %v1513
        %v2110 = vunpack.c.h.b16 %v1513
        %v2111 = vunpack.c.l.b16 %v1514
        %v2112 = vunpack.c.h.b16 %v1514
        %v2113 = vunpack.c.l.b16 %v1515
        %v2114 = vunpack.c.h.b16 %v1515
        %v2115 = vunpack.c.l.b16 %v1516
        %v2116 = vunpack.c.h.b16 %v1516
        %v2117 = vunpack.c.l.b16 %v1517
        %v2118 = vunpack.c.h.b16 %v1517
        %v2119 = vunpack.c.l.b16 %v1518
        %v2120 = vunpack.c.h.b16 %v1518
        %v2121 = vunpack.c.l.b16 %v1519
        %v2122 = vunpack.c.h.b16 %v1519
        %v2123 = vunpack.c.l.b16 %v1520
        %v2124 = vunpack.c.h.b16 %v1520
        %v2125 = vunpack.c.l.b16 %v1521
        %v2126 = vunpack.c.h.b16 %v1521
        %v2127 = vunpack.c.l.b16 %v1522
        %v2128 = vunpack.c.h.b16 %v1522
        %v2129 = vunpack.c.l.b16 %v1523
        %v2130 = vunpack.c.h.b16 %v1523
        %v2131 = vunpack.c.l.b16 %v1524
        %v2132 = vunpack.c.h.b16 %v1524
        %v2133 = vunpack.c.l.b16 %v1525
        %v2134 = vunpack.c.h.b16 %v1525
        %v2135 = vunpack.c.l.b16 %v1526
        %v2136 = vunpack.c.h.b16 %v1526
        %v2137 = vunpack.c.l.b16 %v1527
        %v2138 = vunpack.c.h.b16 %v1527
        %v2139 = vunpack.c.l.b16 %v1528
        %v2140 = vunpack.c.h.b16 %v1528
        %v2141 = vunpack.c.l.b16 %v1529
        %v2142 = vunpack.c.h.b16 %v1529
        %v2143 = vunpack.c.l.b16 %v1530
        %v2144 = vunpack.c.h.b16 %v1530
        %v2145 = vunpack.c.l.b16 %v1531
        %v2146 = vunpack.c.h.b16 %v1531
        %v2147 = vunpack.c.l.b16 %v1532
        %v2148 = vunpack.c.h.b16 %v1532
        %v2149 = vunpack.c.l.b16 %v1533
        %v2150 = vunpack.c.h.b16 %v1533
        %v2151 = vunpack.c.l.b16 %v1534
        %v2152 = vunpack.c.h.b16 %v1534
        %v2153 = vunpack.c.l.b16 %v1535
        %v2154 = vunpack.c.h.b16 %v1535
        %v2155 = vunpack.c.l.b16 %v1536
        %v2156 = vunpack.c.h.b16 %v1536
        %v2157 = vunpack.c.l.b16 %v1537
        %v2158 = vunpack.c.h.b16 %v1537
        %v2159 = vunpack.c.l.b16 %v1538
        %v2160 = vunpack.c.h.b16 %v1538
        %v2161 = vunpack.c.l.b16 %v1539
        %v2162 = vunpack.c.h.b16 %v1539
        %v2163 = vunpack.c.l.b16 %v1540
        %v2164 = vunpack.c.h.b16 %v1540
        %v2165 = vunpack.c.l.b16 %v1541
        %v2166 = vunpack.c.h.b16 %v1541
        %v2167 = vunpack.c.l.b16 %v1542
        %v2168 = vunpack.c.h.b16 %v1542
        %v2169 = vunpack.c.l.b16 %v1543
        %v2170 = vunpack.c.h.b16 %v1543
        %v2171 = vunpack.c.l.b16 %v1544
        %v2172 = vunpack.c.h.b16 %v1544
        %v2173 = vunpack.c.l.b16 %v1545
        %v2174 = vunpack.c.h.b16 %v1545
        %v2175 = vunpack.c.l.b16 %v1546
        %v2176 = vunpack.c.h.b16 %v1546
        %v2177 = vunpack.c.l.b16 %v1547
        %v2178 = vunpack.c.h.b16 %v1547
        %v2179 = vunpack.c.l.b16 %v1548
        %v2180 = vunpack.c.h.b16 %v1548
        %v2181 = vunpack.c.l.b16 %v1549
        %v2182 = vunpack.c.h.b16 %v1549
        %v2183 = vunpack.c.l.b16 %v1550
        %v2184 = vunpack.c.h.b16 %v1550
        %v2185 = vunpack.c.l.b16 %v1551
        %v2186 = vunpack.c.h.b16 %v1551
        %v2187 = vunpack.c.l.b16 %v1552
        %v2188 = vunpack.c.h.b16 %v1552
        %v2189 = vunpack.c.l.b16 %v1553
        %v2190 = vunpack.c.h.b16 %v1553
        %v2191 = vunpack.c.l.b16 %v1554
        %v2192 = vunpack.c.h.b16 %v1554
        %v2193 = vunpack.c.l.b16 %v1555
        %v2194 = vunpack.c.h.b16 %v1555
        %v2195 = vunpack.c.l.b16 %v1556
        %v2196 = vunpack.c.h.b16 %v1556
        %v2197 = vunpack.c.l.b16 %v1557
        %v2198 = vunpack.c.h.b16 %v1557
        %v2199 = vunpack.c.l.b16 %v1558
        %v2200 = vunpack.c.h.b16 %v1558
        %v2201 = vunpack.c.l.b16 %v1559
        %v2202 = vunpack.c.h.b16 %v1559
        %v2203 = vunpack.c.l.b16 %v1560
        %v2204 = vunpack.c.h.b16 %v1560
        %v2205 = vunpack.c.l.b16 %v1561
        %v2206 = vunpack.c.h.b16 %v1561
        %v2207 = vunpack.c.l.b16 %v1562
        %v2208 = vunpack.c.h.b16 %v1562
        %v2209 = vunpack.c.l.b16 %v1563
        %v2210 = vunpack.c.h.b16 %v1563
        %v2211 = vunpack.c.l.b16 %v1564
        %v2212 = vunpack.c.h.b16 %v1564
        %v2213 = vunpack.c.l.b16 %v1565
        %v2214 = vunpack.c.h.b16 %v1565
        %v2215 = vunpack.c.l.b16 %v1566
        %v2216 = vunpack.c.h.b16 %v1566
        %v2217 = vunpack.c.l.b16 %v1567
        %v2218 = vunpack.c.h.b16 %v1567
        %v2219 = vunpack.c.l.b16 %v1568
        %v2220 = vunpack.c.h.b16 %v1568
        %v2221 = vunpack.c.l.b16 %v1569
        %v2222 = vunpack.c.h.b16 %v1569
        %v2223 = vunpack.c.l.b16 %v1570
        %v2224 = vunpack.c.h.b16 %v1570
        %v2225 = vunpack.c.l.b16 %v1571
        %v2226 = vunpack.c.h.b16 %v1571
        %v2227 = vunpack.c.l.b16 %v1572
        %v2228 = vunpack.c.h.b16 %v1572
        %v2229 = vunpack.c.l.b16 %v1573
        %v2230 = vunpack.c.h.b16 %v1573
        %v2231 = vunpack.c.l.b16 %v1574
        %v2232 = vunpack.c.h.b16 %v1574
        %v2233 = vunpack.c.l.b16 %v1575
        %v2234 = vunpack.c.h.b16 %v1575
        %v2235 = vunpack.c.l.b16 %v1576
        %v2236 = vunpack.c.h.b16 %v1576
        %v2237 = vunpack.c.l.b16 %v1577
        %v2238 = vunpack.c.h.b16 %v1577
        %v2239 = vunpack.c.l.b16 %v1578
        %v2240 = vunpack.c.h.b16 %v1578
        %v2241 = vunpack.c.l.b16 %v1579
        %v2242 = vunpack.c.h.b16 %v1579
        %v2243 = vunpack.c.l.b16 %v1580
        %v2244 = vunpack.c.h.b16 %v1580
        %v2245 = vunpack.c.l.b16 %v1581
        %v2246 = vunpack.c.h.b16 %v1581
        %v2247 = vunpack.c.l.b16 %v1582
        %v2248 = vunpack.c.h.b16 %v1582
        %v2249 = vunpack.c.l.b16 %v1583
        %v2250 = vunpack.c.h.b16 %v1583
        %v2251 = vunpack.c.l.b16 %v1584
        %v2252 = vunpack.c.h.b16 %v1584
        %v2253 = vunpack.c.l.b16 %v1585
        %v2254 = vunpack.c.h.b16 %v1585
        %v2255 = vunpack.c.l.b16 %v1586
        %v2256 = vunpack.c.h.b16 %v1586
        %v2257 = vunpack.c.l.b16 %v1587
        %v2258 = vunpack.c.h.b16 %v1587
        %v2259 = vunpack.c.l.b16 %v1588
        %v2260 = vunpack.c.h.b16 %v1588
        %v2261 = vunpack.c.l.b16 %v1589
        %v2262 = vunpack.c.h.b16 %v1589
        %v2263 = vunpack.c.l.b16 %v1590
        %v2264 = vunpack.c.h.b16 %v1590
        %v2265 = vunpack.c.l.b16 %v1591
        %v2266 = vunpack.c.h.b16 %v1591
        %v2267 = vunpack.c.l.b16 %v1592
        %v2268 = vunpack.c.h.b16 %v1592
        %v2269 = vunpack.c.l.b16 %v1593
        %v2270 = vunpack.c.h.b16 %v1593
        %v2271 = vunpack.c.l.b16 %v1594
        %v2272 = vunpack.c.h.b16 %v1594
        %v2273 = vunpack.c.l.b16 %v1595
        %v2274 = vunpack.c.h.b16 %v1595
        %v2275 = vunpack.c.l.b16 %v1596
        %v2276 = vunpack.c.h.b16 %v1596
        %v2277 = vunpack.c.l.b16 %v1597
        %v2278 = vunpack.c.h.b16 %v1597
        %v2279 = vunpack.c.l.b16 %v1598
        %v2280 = vunpack.c.h.b16 %v1598
        %v2281 = vunpack.c.l.b16 %v1599
        %v2282 = vunpack.c.h.b16 %v1599
        %v2283 = vunpack.c.l.b16 %v1600
        %v2284 = vunpack.c.h.b16 %v1600
        %v2285 = vunpack.c.l.b16 %v1601
        %v2286 = vunpack.c.h.b16 %v1601
        %v2287 = vunpack.c.l.b16 %v1602
        %v2288 = vunpack.c.h.b16 %v1602
        %v2289 = vunpack.c.l.b16 %v1603
        %v2290 = vunpack.c.h.b16 %v1603
        %v2291 = vunpack.c.l.b16 %v1604
        %v2292 = vunpack.c.h.b16 %v1604
        %v2293 = vunpack.c.l.b16 %v1605
        %v2294 = vunpack.c.h.b16 %v1605
        %v2295 = vunpack.c.l.b16 %v1606
        %v2296 = vunpack.c.h.b16 %v1606
        %v2297 = vunpack.c.l.b16 %v1607
        %v2298 = vunpack.c.h.b16 %v1607
        %v2299 = vunpack.c.l.b16 %v1608
        %v2300 = vunpack.c.h.b16 %v1608
        %v2301 = vunpack.c.l.b16 %v1609
        %v2302 = vunpack.c.h.b16 %v1609
        %v2303 = vunpack.c.l.b16 %v1610
        %v2304 = vunpack.c.h.b16 %v1610
        %v2305 = vunpack.c.l.b16 %v1611
        %v2306 = vunpack.c.h.b16 %v1611
        %v2307 = vunpack.c.l.b16 %v1612
        %v2308 = vunpack.c.h.b16 %v1612
        %v2309 = vunpack.c.l.b16 %v1613
        %v2310 = vunpack.c.h.b16 %v1613
        %v2311 = vunpack.c.l.b16 %v1614
        %v2312 = vunpack.c.h.b16 %v1614
        %v2313 = vunpack.c.l.b16 %v1615
        %v2314 = vunpack.c.h.b16 %v1615
        %v2315 = vunpack.c.l.b16 %v1616
        %v2316 = vunpack.c.h.b16 %v1616
        %v2317 = vunpack.c.l.b16 %v1617
        %v2318 = vunpack.c.h.b16 %v1617
        %v2319 = vunpack.c.l.b16 %v1618
        %v2320 = vunpack.c.h.b16 %v1618
        %v2321 = vunpack.c.l.b16 %v1619
        %v2322 = vunpack.c.h.b16 %v1619
        %v2323 = vunpack.c.l.b16 %v1620
        %v2324 = vunpack.c.h.b16 %v1620
        %v2325 = vunpack.c.l.b16 %v1621
        %v2326 = vunpack.c.h.b16 %v1621
        %v2327 = vunpack.c.l.b16 %v1622
        %v2328 = vunpack.c.h.b16 %v1622
        %v2329 = vunpack.c.l.b16 %v1623
        %v2330 = vunpack.c.h.b16 %v1623
        %v2331 = vunpack.c.l.b16 %v1624
        %v2332 = vunpack.c.h.b16 %v1624
        %v2333 = vunpack.c.l.b16 %v1625
        %v2334 = vunpack.c.h.b16 %v1625
        %v2335 = vunpack.c.l.b16 %v1626
        %v2336 = vunpack.c.h.b16 %v1626
        %v2337 = vunpack.c.l.b16 %v1627
        %v2338 = vunpack.c.h.b16 %v1627
        %v2339 = vunpack.c.l.b16 %v1628
        %v2340 = vunpack.c.h.b16 %v1628
        %v2341 = vunpack.c.l.b16 %v1629
        %v2342 = vunpack.c.h.b16 %v1629
        %v2343 = vunpack.c.l.b16 %v1630
        %v2344 = vunpack.c.h.b16 %v1630
        %v2345 = vunpack.c.l.b16 %v1631
        %v2346 = vunpack.c.h.b16 %v1631
        %v2347 = vunpack.c.l.b16 %v1632
        %v2348 = vunpack.c.h.b16 %v1632
        %v2349 = vunpack.c.l.b16 %v1633
        %v2350 = vunpack.c.h.b16 %v1633
        %v2351 = vunpack.c.l.b16 %v1634
        %v2352 = vunpack.c.h.b16 %v1634
        %v2353 = vunpack.c.l.b16 %v1635
        %v2354 = vunpack.c.h.b16 %v1635
        %v2355 = vunpack.c.l.b16 %v1636
        %v2356 = vunpack.c.h.b16 %v1636
        %v2357 = vunpack.c.l.b16 %v1637
        %v2358 = vunpack.c.h.b16 %v1637
        %v2359 = vunpack.c.l.b16 %v1638
        %v2360 = vunpack.c.h.b16 %v1638
        %v2361 = vunpack.c.l.b16 %v1639
        %v2362 = vunpack.c.h.b16 %v1639
        %v2363 = vunpack.c.l.b16 %v1640
        %v2364 = vunpack.c.h.b16 %v1640
        %v2365 = vunpack.c.l.b16 %v1641
        %v2366 = vunpack.c.h.b16 %v1641
        %v2367 = vunpack.c.l.b16 %v1642
        %v2368 = vunpack.c.h.b16 %v1642
        %v2369 = vunpack.c.l.b16 %v1643
        %v2370 = vunpack.c.h.b16 %v1643
        %v2371 = vunpack.c.l.b16 %v1644
        %v2372 = vunpack.c.h.b16 %v1644
        %v2373 = vunpack.c.l.b16 %v1645
        %v2374 = vunpack.c.h.b16 %v1645
        %v2375 = vunpack.c.l.b16 %v1646
        %v2376 = vunpack.c.h.b16 %v1646
        %v2377 = vunpack.c.l.b16 %v1647
        %v2378 = vunpack.c.h.b16 %v1647
        %v2379 = vunpack.c.l.b16 %v1648
        %v2380 = vunpack.c.h.b16 %v1648
        %v2381 = vunpack.c.l.b16 %v1649
        %v2382 = vunpack.c.h.b16 %v1649
        %v2383 = vunpack.c.l.b16 %v1650
        %v2384 = vunpack.c.h.b16 %v1650
        %v2385 = vunpack.c.l.b16 %v1651
        %v2386 = vunpack.c.h.b16 %v1651
        %v2387 = vunpack.c.l.b16 %v1652
        %v2388 = vunpack.c.h.b16 %v1652
        %v2389 = vunpack.c.l.b16 %v1653
        %v2390 = vunpack.c.h.b16 %v1653
        %v2391 = vunpack.c.l.b16 %v1654
        %v2392 = vunpack.c.h.b16 %v1654
        %v2393 = vunpack.c.l.b16 %v1655
        %v2394 = vunpack.c.h.b16 %v1655
        %v2395 = vunpack.c.l.b16 %v1656
        %v2396 = vunpack.c.h.b16 %v1656
        %v2397 = vunpack.c.l.b16 %v1657
        %v2398 = vunpack.c.h.b16 %v1657
        %v2399 = vunpack.c.l.b16 %v1658
        %v2400 = vunpack.c.h.b16 %v1658
        %v2401 = vunpack.c.l.b16 %v1659
        %v2402 = vunpack.c.h.b16 %v1659
        %v2403 = vunpack.c.l.b16 %v1660
        %v2404 = vunpack.c.h.b16 %v1660
        %v2405 = vunpack.c.l.b16 %v1661
        %v2406 = vunpack.c.h.b16 %v1661
        %v2407 = vunpack.c.l.b16 %v1662
        %v2408 = vunpack.c.h.b16 %v1662
        %v2409 = vunpack.c.l.b16 %v1663
        %v2410 = vunpack.c.h.b16 %v1663
        %v2411 = vunpack.c.l.b16 %v1664
        %v2412 = vunpack.c.h.b16 %v1664
        %v2413 = vunpack.c.l.b16 %v1665
        %v2414 = vunpack.c.h.b16 %v1665
        %v2415 = vunpack.c.l.b16 %v1666
        %v2416 = vunpack.c.h.b16 %v1666
        %v2417 = vunpack.c.l.b16 %v1667
        %v2418 = vunpack.c.h.b16 %v1667
        %v2419 = vunpack.c.l.b16 %v1668
        %v2420 = vunpack.c.h.b16 %v1668
        %v2421 = vunpack.c.l.b16 %v1669
        %v2422 = vunpack.c.h.b16 %v1669
        %v2423 = vunpack.c.l.b16 %v1670
        %v2424 = vunpack.c.h.b16 %v1670
        %v2425 = vunpack.c.l.b16 %v1671
        %v2426 = vunpack.c.h.b16 %v1671
        %v2427 = vunpack.c.l.b16 %v1672
        %v2428 = vunpack.c.h.b16 %v1672
        %v2429 = vunpack.c.l.b16 %v1673
        %v2430 = vunpack.c.h.b16 %v1673
        %v2431 = vunpack.c.l.b16 %v1674
        %v2432 = vunpack.c.h.b16 %v1674
        %v2433 = vunpack.c.l.b16 %v1675
        %v2434 = vunpack.c.h.b16 %v1675
        %v2435 = vunpack.c.l.b16 %v1676
        %v2436 = vunpack.c.h.b16 %v1676
        %v2437 = vunpack.c.l.b16 %v1677
        %v2438 = vunpack.c.h.b16 %v1677
        %v2439 = vunpack.c.l.b16 %v1678
        %v2440 = vunpack.c.h.b16 %v1678
        %v2441 = vunpack.c.l.b16 %v1679
        %v2442 = vunpack.c.h.b16 %v1679
        %v2443 = vunpack.c.l.b16 %v1680
        %v2444 = vunpack.c.h.b16 %v1680
        %v2445 = vunpack.c.l.b16 %v1681
        %v2446 = vunpack.c.h.b16 %v1681
        %v2447 = vunpack.c.l.b16 %v1682
        %v2448 = vunpack.c.h.b16 %v1682
        %v2449 = vunpack.c.l.b16 %v1683
        %v2450 = vunpack.c.h.b16 %v1683
        %v2451 = vunpack.c.l.b16 %v1684
        %v2452 = vunpack.c.h.b16 %v1684
        %v2453 = vunpack.c.l.b16 %v1685
        %v2454 = vunpack.c.h.b16 %v1685
        %v2455 = vpack.c.b16 %v1947, %v1943
        %v2456 = vpack.c.b16 %v1948, %v1944
        %v2457 = vpack.c.b16 %v1949, %v1945
        %v2458 = vpack.c.b16 %v1950, %v1946
        %v2459 = vpack.c.b16 %v1955, %v1951
        %v2460 = vpack.c.b16 %v1956, %v1952
        %v2461 = vpack.c.b16 %v1957, %v1953
        %v2462 = vpack.c.b16 %v1958, %v1954
        %v2463 = vpack.c.b16 %v1963, %v1959
        %v2464 = vpack.c.b16 %v1964, %v1960
        %v2465 = vpack.c.b16 %v1965, %v1961
        %v2466 = vpack.c.b16 %v1966, %v1962
        %v2467 = vpack.c.b16 %v1971, %v1967
        %v2468 = vpack.c.b16 %v1972, %v1968
        %v2469 = vpack.c.b16 %v1973, %v1969
        %v2470 = vpack.c.b16 %v1974, %v1970
        %v2471 = vpack.c.b16 %v1979, %v1975
        %v2472 = vpack.c.b16 %v1980, %v1976
        %v2473 = vpack.c.b16 %v1981, %v1977
        %v2474 = vpack.c.b16 %v1982, %v1978
        %v2475 = vpack.c.b16 %v1987, %v1983
        %v2476 = vpack.c.b16 %v1988, %v1984
        %v2477 = vpack.c.b16 %v1989, %v1985
        %v2478 = vpack.c.b16 %v1990, %v1986
        %v2479 = vpack.c.b16 %v1995, %v1991
        %v2480 = vpack.c.b16 %v1996, %v1992
        %v2481 = vpack.c.b16 %v1997, %v1993
        %v2482 = vpack.c.b16 %v1998, %v1994
        %v2483 = vpack.c.b16 %v2003, %v1999
        %v2484 = vpack.c.b16 %v2004, %v2000
        %v2485 = vpack.c.b16 %v2005, %v2001
        %v2486 = vpack.c.b16 %v2006, %v2002
        %v2487 = vpack.c.b16 %v2011, %v2007
        %v2488 = vpack.c.b16 %v2012, %v2008
        %v2489 = vpack.c.b16 %v2013, %v2009
        %v2490 = vpack.c.b16 %v2014, %v2010
        %v2491 = vpack.c.b16 %v2019, %v2015
        %v2492 = vpack.c.b16 %v2020, %v2016
        %v2493 = vpack.c.b16 %v2021, %v2017
        %v2494 = vpack.c.b16 %v2022, %v2018
        %v2495 = vpack.c.b16 %v2027, %v2023
        %v2496 = vpack.c.b16 %v2028, %v2024
        %v2497 = vpack.c.b16 %v2029, %v2025
        %v2498 = vpack.c.b16 %v2030, %v2026
        %v2499 = vpack.c.b16 %v2035, %v2031
        %v2500 = vpack.c.b16 %v2036, %v2032
        %v2501 = vpack.c.b16 %v2037, %v2033
        %v2502 = vpack.c.b16 %v2038, %v2034
        %v2503 = vpack.c.b16 %v2043, %v2039
        %v2504 = vpack.c.b16 %v2044, %v2040
        %v2505 = vpack.c.b16 %v2045, %v2041
        %v2506 = vpack.c.b16 %v2046, %v2042
        %v2507 = vpack.c.b16 %v2051, %v2047
        %v2508 = vpack.c.b16 %v2052, %v2048
        %v2509 = vpack.c.b16 %v2053, %v2049
        %v2510 = vpack.c.b16 %v2054, %v2050
        %v2511 = vpack.c.b16 %v2059, %v2055
        %v2512 = vpack.c.b16 %v2060, %v2056
        %v2513 = vpack.c.b16 %v2061, %v2057
        %v2514 = vpack.c.b16 %v2062, %v2058
        %v2515 = vpack.c.b16 %v2067, %v2063
        %v2516 = vpack.c.b16 %v2068, %v2064
        %v2517 = vpack.c.b16 %v2069, %v2065
        %v2518 = vpack.c.b16 %v2070, %v2066
        %v2519 = vpack.c.b16 %v2075, %v2071
        %v2520 = vpack.c.b16 %v2076, %v2072
        %v2521 = vpack.c.b16 %v2077, %v2073
        %v2522 = vpack.c.b16 %v2078, %v2074
        %v2523 = vpack.c.b16 %v2083, %v2079
        %v2524 = vpack.c.b16 %v2084, %v2080
        %v2525 = vpack.c.b16 %v2085, %v2081
        %v2526 = vpack.c.b16 %v2086, %v2082
        %v2527 = vpack.c.b16 %v2091, %v2087
        %v2528 = vpack.c.b16 %v2092, %v2088
        %v2529 = vpack.c.b16 %v2093, %v2089
        %v2530 = vpack.c.b16 %v2094, %v2090
        %v2531 = vpack.c.b16 %v2099, %v2095
        %v2532 = vpack.c.b16 %v2100, %v2096
        %v2533 = vpack.c.b16 %v2101, %v2097
        %v2534 = vpack.c.b16 %v2102, %v2098
        %v2535 = vpack.c.b16 %v2107, %v2103
        %v2536 = vpack.c.b16 %v2108, %v2104
        %v2537 = vpack.c.b16 %v2109, %v2105
        %v2538 = vpack.c.b16 %v2110, %v2106
        %v2539 = vpack.c.b16 %v2115, %v2111
        %v2540 = vpack.c.b16 %v2116, %v2112
        %v2541 = vpack.c.b16 %v2117, %v2113
        %v2542 = vpack.c.b16 %v2118, %v2114
        %v2543 = vpack.c.b16 %v2123, %v2119
        %v2544 = vpack.c.b16 %v2124, %v2120
        %v2545 = vpack.c.b16 %v2125, %v2121
        %v2546 = vpack.c.b16 %v2126, %v2122
        %v2547 = vpack.c.b16 %v2131, %v2127
        %v2548 = vpack.c.b16 %v2132, %v2128
        %v2549 = vpack.c.b16 %v2133, %v2129
        %v2550 = vpack.c.b16 %v2134, %v2130
        %v2551 = vpack.c.b16 %v2139, %v2135
        %v2552 = vpack.c.b16 %v2140, %v2136
        %v2553 = vpack.c.b16 %v2141, %v2137
        %v2554 = vpack.c.b16 %v2142, %v2138
        %v2555 = vpack.c.b16 %v2147, %v2143
        %v2556 = vpack.c.b16 %v2148, %v2144
        %v2557 = vpack.c.b16 %v2149, %v2145
        %v2558 = vpack.c.b16 %v2150, %v2146
        %v2559 = vpack.c.b16 %v2155, %v2151
        %v2560 = vpack.c.b16 %v2156, %v2152
        %v2561 = vpack.c.b16 %v2157, %v2153
        %v2562 = vpack.c.b16 %v2158, %v2154
        %v2563 = vpack.c.b16 %v2163, %v2159
        %v2564 = vpack.c.b16 %v2164, %v2160
        %v2565 = vpack.c.b16 %v2165, %v2161
        %v2566 = vpack.c.b16 %v2166, %v2162
        %v2567 = vpack.c.b16 %v2171, %v2167
        %v2568 = vpack.c.b16 %v2172, %v2168
        %v2569 = vpack.c.b16 %v2173, %v2169
        %v2570 = vpack.c.b16 %v2174, %v2170
        %v2571 = vpack.c.b16 %v2179, %v2175
        %v2572 = vpack.c.b16 %v2180, %v2176
        %v2573 = vpack.c.b16 %v2181, %v2177
        %v2574 = vpack.c.b16 %v2182, %v2178
        %v2575 = vpack.c.b16 %v2187, %v2183
        %v2576 = vpack.c.b16 %v2188, %v2184
        %v2577 = vpack.c.b16 %v2189, %v2185
        %v2578 = vpack.c.b16 %v2190, %v2186
        %v2579 = vpack.c.b16 %v2195, %v2191
        %v2580 = vpack.c.b16 %v2196, %v2192
        %v2581 = vpack.c.b16 %v2197, %v2193
        %v2582 = vpack.c.b16 %v2198, %v2194
        %v2583 = vpack.c.b16 %v2203, %v2199
        %v2584 = vpack.c.b16 %v2204, %v2200
        %v2585 = vpack.c.b16 %v2205, %v2201
        %v2586 = vpack.c.b16 %v2206, %v2202
        %v2587 = vpack.c.b16 %v2211, %v2207
        %v2588 = vpack.c.b16 %v2212, %v2208
        %v2589 = vpack.c.b16 %v2213, %v2209
        %v2590 = vpack.c.b16 %v2214, %v2210
        %v2591 = vpack.c.b16 %v2219, %v2215
        %v2592 = vpack.c.b16 %v2220, %v2216
        %v2593 = vpack.c.b16 %v2221, %v2217
        %v2594 = vpack.c.b16 %v2222, %v2218
        %v2595 = vpack.c.b16 %v2227, %v2223
        %v2596 = vpack.c.b16 %v2228, %v2224
        %v2597 = vpack.c.b16 %v2229, %v2225
        %v2598 = vpack.c.b16 %v2230, %v2226
        %v2599 = vpack.c.b16 %v2235, %v2231
        %v2600 = vpack.c.b16 %v2236, %v2232
        %v2601 = vpack.c.b16 %v2237, %v2233
        %v2602 = vpack.c.b16 %v2238, %v2234
        %v2603 = vpack.c.b16 %v2243, %v2239
        %v2604 = vpack.c.b16 %v2244, %v2240
        %v2605 = vpack.c.b16 %v2245, %v2241
        %v2606 = vpack.c.b16 %v2246, %v2242
        %v2607 = vpack.c.b16 %v2251, %v2247
        %v2608 = vpack.c.b16 %v2252, %v2248
        %v2609 = vpack.c.b16 %v2253, %v2249
        %v2610 = vpack.c.b16 %v2254, %v2250
        %v2611 = vpack.c.b16 %v2259, %v2255
        %v2612 = vpack.c.b16 %v2260, %v2256
        %v2613 = vpack.c.b16 %v2261, %v2257
        %v2614 = vpack.c.b16 %v2262, %v2258
        %v2615 = vpack.c.b16 %v2267, %v2263
        %v2616 = vpack.c.b16 %v2268, %v2264
        %v2617 = vpack.c.b16 %v2269, %v2265
        %v2618 = vpack.c.b16 %v2270, %v2266
        %v2619 = vpack.c.b16 %v2275, %v2271
        %v2620 = vpack.c.b16 %v2276, %v2272
        %v2621 = vpack.c.b16 %v2277, %v2273
        %v2622 = vpack.c.b16 %v2278, %v2274
        %v2623 = vpack.c.b16 %v2283, %v2279
        %v2624 = vpack.c.b16 %v2284, %v2280
        %v2625 = vpack.c.b16 %v2285, %v2281
        %v2626 = vpack.c.b16 %v2286, %v2282
        %v2627 = vpack.c.b16 %v2291, %v2287
        %v2628 = vpack.c.b16 %v2292, %v2288
        %v2629 = vpack.c.b16 %v2293, %v2289
        %v2630 = vpack.c.b16 %v2294, %v2290
        %v2631 = vpack.c.b16 %v2299, %v2295
        %v2632 = vpack.c.b16 %v2300, %v2296
        %v2633 = vpack.c.b16 %v2301, %v2297
        %v2634 = vpack.c.b16 %v2302, %v2298
        %v2635 = vpack.c.b16 %v2307, %v2303
        %v2636 = vpack.c.b16 %v2308, %v2304
        %v2637 = vpack.c.b16 %v2309, %v2305
        %v2638 = vpack.c.b16 %v2310, %v2306
        %v2639 = vpack.c.b16 %v2315, %v2311
        %v2640 = vpack.c.b16 %v2316, %v2312
        %v2641 = vpack.c.b16 %v2317, %v2313
        %v2642 = vpack.c.b16 %v2318, %v2314
        %v2643 = vpack.c.b16 %v2323, %v2319
        %v2644 = vpack.c.b16 %v2324, %v2320
        %v2645 = vpack.c.b16 %v2325, %v2321
        %v2646 = vpack.c.b16 %v2326, %v2322
        %v2647 = vpack.c.b16 %v2331, %v2327
        %v2648 = vpack.c.b16 %v2332, %v2328
        %v2649 = vpack.c.b16 %v2333, %v2329
        %v2650 = vpack.c.b16 %v2334, %v2330
        %v2651 = vpack.c.b16 %v2339, %v2335
        %v2652 = vpack.c.b16 %v2340, %v2336
        %v2653 = vpack.c.b16 %v2341, %v2337
        %v2654 = vpack.c.b16 %v2342, %v2338
        %v2655 = vpack.c.b16 %v2347, %v2343
        %v2656 = vpack.c.b16 %v2348, %v2344
        %v2657 = vpack.c.b16 %v2349, %v2345
        %v2658 = vpack.c.b16 %v2350, %v2346
        %v2659 = vpack.c.b16 %v2355, %v2351
        %v2660 = vpack.c.b16 %v2356, %v2352
        %v2661 = vpack.c.b16 %v2357, %v2353
        %v2662 = vpack.c.b16 %v2358, %v2354
        %v2663 = vpack.c.b16 %v2363, %v2359
        %v2664 = vpack.c.b16 %v2364, %v2360
        %v2665 = vpack.c.b16 %v2365, %v2361
        %v2666 = vpack.c.b16 %v2366, %v2362
        %v2667 = vpack.c.b16 %v2371, %v2367
        %v2668 = vpack.c.b16 %v2372, %v2368
        %v2669 = vpack.c.b16 %v2373, %v2369
        %v2670 = vpack.c.b16 %v2374, %v2370
        %v2671 = vpack.c.b16 %v2379, %v2375
        %v2672 = vpack.c.b16 %v2380, %v2376
        %v2673 = vpack.c.b16 %v2381, %v2377
        %v2674 = vpack.c.b16 %v2382, %v2378
        %v2675 = vpack.c.b16 %v2387, %v2383
        %v2676 = vpack.c.b16 %v2388, %v2384
        %v2677 = vpack.c.b16 %v2389, %v2385
        %v2678 = vpack.c.b16 %v2390, %v2386
        %v2679 = vpack.c.b16 %v2395, %v2391
        %v2680 = vpack.c.b16 %v2396, %v2392
        %v2681 = vpack.c.b16 %v2397, %v2393
        %v2682 = vpack.c.b16 %v2398, %v2394
        %v2683 = vpack.c.b16 %v2403, %v2399
        %v2684 = vpack.c.b16 %v2404, %v2400
        %v2685 = vpack.c.b16 %v2405, %v2401
        %v2686 = vpack.c.b16 %v2406, %v2402
        %v2687 = vpack.c.b16 %v2411, %v2407
        %v2688 = vpack.c.b16 %v2412, %v2408
        %v2689 = vpack.c.b16 %v2413, %v2409
        %v2690 = vpack.c.b16 %v2414, %v2410
        %v2691 = vpack.c.b16 %v2419, %v2415
        %v2692 = vpack.c.b16 %v2420, %v2416
        %v2693 = vpack.c.b16 %v2421, %v2417
        %v2694 = vpack.c.b16 %v2422, %v2418
        %v2695 = vpack.c.b16 %v2427, %v2423
        %v2696 = vpack.c.b16 %v2428, %v2424
        %v2697 = vpack.c.b16 %v2429, %v2425
        %v2698 = vpack.c.b16 %v2430, %v2426
        %v2699 = vpack.c.b16 %v2435, %v2431
        %v2700 = vpack.c.b16 %v2436, %v2432
        %v2701 = vpack.c.b16 %v2437, %v2433
        %v2702 = vpack.c.b16 %v2438, %v2434
        %v2703 = vpack.c.b16 %v2443, %v2439
        %v2704 = vpack.c.b16 %v2444, %v2440
        %v2705 = vpack.c.b16 %v2445, %v2441
        %v2706 = vpack.c.b16 %v2446, %v2442
        %v2707 = vpack.c.b16 %v2451, %v2447
        %v2708 = vpack.c.b16 %v2452, %v2448
        %v2709 = vpack.c.b16 %v2453, %v2449
        %v2710 = vpack.c.b16 %v2454, %v2450
        %v2968 = vlaneseq
        %v2969 = vshrl.u32 %v2968, 7
        %v2970 = vsub.s32 0, %v2969
        %v2971 = vrot.slane %v1686, %v2970
        %v2972 = vlaneseq
        %v2973 = vshrl.u32 %v2972, 7
        %v2974 = vsub.s32 1, %v2973
        %v2975 = vrot.slane %v1686, %v2974
        %v2976 = vlaneseq
        %v2977 = vshrl.u32 %v2976, 7
        %v2978 = vsub.s32 2, %v2977
        %v2979 = vrot.slane %v1686, %v2978
        %v2980 = vlaneseq
        %v2981 = vshrl.u32 %v2980, 7
        %v2982 = vsub.s32 3, %v2981
        %v2983 = vrot.slane %v1686, %v2982
        %2988 = vmatprep.subr.bf16.mxu0 %v2484
        %2989 = vmatpush1.bf16.msra.mxu0 %v2483
        %2990 = vmatprep.subr.bf16.mxu0 %v2480
        %2991 = vmatpush1.bf16.msra.mxu0 %v2479
        %2992 = vmatprep.subr.bf16.mxu0 %v2476
        %2993 = vmatpush1.bf16.msra.mxu0 %v2475
        %2994 = vmatprep.subr.bf16.mxu0 %v2472
        %2995 = vmatpush1.bf16.msra.mxu0 %v2471
        %2996 = vmatprep.subr.bf16.mxu0 %v2468
        %2997 = vmatpush1.bf16.msra.mxu0 %v2467
        %2998 = vmatprep.subr.bf16.mxu0 %v2464
        %2999 = vmatpush1.bf16.msra.mxu0 %v2463
        %3000 = vmatprep.subr.bf16.mxu0 %v2460
        %3001 = vmatpush1.bf16.msra.mxu0 %v2459
        %3002 = vmatprep.subr.bf16.mxu0 %v2456
        %3003 = vmatpush1.bf16.msra.mxu0 %v2455
        %3004 = vmatprep.subr.bf16.mxu0 %v2516
        %3005 = vmatpush2.bf16.msra.mxu0 %v2515
        %3006 = vmatprep.subr.bf16.mxu0 %v2512
        %3007 = vmatpush2.bf16.msra.mxu0 %v2511
        %3008 = vmatprep.subr.bf16.mxu0 %v2508
        %3009 = vmatpush2.bf16.msra.mxu0 %v2507
        %3010 = vmatprep.subr.bf16.mxu0 %v2504
        %3011 = vmatpush2.bf16.msra.mxu0 %v2503
        %3012 = vmatprep.subr.bf16.mxu0 %v2500
        %3013 = vmatpush2.bf16.msra.mxu0 %v2499
        %3014 = vmatprep.subr.bf16.mxu0 %v2496
        %3015 = vmatpush2.bf16.msra.mxu0 %v2495
        %3016 = vmatprep.subr.bf16.mxu0 %v2492
        %3017 = vmatpush2.bf16.msra.mxu0 %v2491
        %3018 = vmatprep.subr.bf16.mxu0 %v2488
        %3019 = vmatpush2.bf16.msra.mxu0 %v2487
        %3020 = vmatprep.mubr.bf16.mxu0 %v1423
        %3021 = vmatmul.mubr.bf16.gmra.mxu0 %v1422
        %v3022 = vpop.f32.mrf.mxu0
        %v3023 = vadd.f32 %v2971, %v3022
        %v3024 = vpop.f32.mrf.mxu0
        %v3025 = vadd.f32 %v2975, %v3024
        %v3026 = vpop.f32.mrf.mxu0
        %v3027 = vpop.f32.mrf.mxu0
        %3028 = vdwg.mxu0
        %3029 = vmatprep.subr.bf16.mxu0 %v2548
        %3030 = vmatpush1.bf16.msra.mxu0 %v2547
        %3031 = vmatprep.subr.bf16.mxu0 %v2544
        %3032 = vmatpush1.bf16.msra.mxu0 %v2543
        %3033 = vmatprep.subr.bf16.mxu0 %v2540
        %3034 = vmatpush1.bf16.msra.mxu0 %v2539
        %3035 = vmatprep.subr.bf16.mxu0 %v2536
        %3036 = vmatpush1.bf16.msra.mxu0 %v2535
        %3037 = vmatprep.subr.bf16.mxu0 %v2532
        %3038 = vmatpush1.bf16.msra.mxu0 %v2531
        %3039 = vmatprep.subr.bf16.mxu0 %v2528
        %3040 = vmatpush1.bf16.msra.mxu0 %v2527
        %3041 = vmatprep.subr.bf16.mxu0 %v2524
        %3042 = vmatpush1.bf16.msra.mxu0 %v2523
        %3043 = vmatprep.subr.bf16.mxu0 %v2520
        %3044 = vmatpush1.bf16.msra.mxu0 %v2519
        %3045 = vmatprep.subr.bf16.mxu0 %v2580
        %3046 = vmatpush2.bf16.msra.mxu0 %v2579
        %3047 = vmatprep.subr.bf16.mxu0 %v2576
        %3048 = vmatpush2.bf16.msra.mxu0 %v2575
        %3049 = vmatprep.subr.bf16.mxu0 %v2572
        %3050 = vmatpush2.bf16.msra.mxu0 %v2571
        %3051 = vmatprep.subr.bf16.mxu0 %v2568
        %3052 = vmatpush2.bf16.msra.mxu0 %v2567
        %3053 = vmatprep.subr.bf16.mxu0 %v2564
        %3054 = vmatpush2.bf16.msra.mxu0 %v2563
        %3055 = vmatprep.subr.bf16.mxu0 %v2560
        %3056 = vmatpush2.bf16.msra.mxu0 %v2559
        %3057 = vmatprep.subr.bf16.mxu0 %v2556
        %3058 = vmatpush2.bf16.msra.mxu0 %v2555
        %3059 = vmatprep.subr.bf16.mxu0 %v2552
        %3060 = vmatpush2.bf16.msra.mxu0 %v2551
        %3061 = vmatprep.mubr.bf16.mxu0 %v1425
        %3062 = vmatmul.mubr.bf16.gmra.mxu0 %v1424
        %v3063 = vpop.f32.mrf.mxu0
        %v3064 = vadd.f32 %v3023, %v3063
        %v3065 = vpop.f32.mrf.mxu0
        %v3066 = vadd.f32 %v3025, %v3065
        %v3067 = vpop.f32.mrf.mxu0
        %v3068 = vpop.f32.mrf.mxu0
        %3069 = vdwg.mxu0
        %3070 = vmatprep.subr.bf16.mxu0 %v2612
        %3071 = vmatpush1.bf16.msra.mxu0 %v2611
        %3072 = vmatprep.subr.bf16.mxu0 %v2608
        %3073 = vmatpush1.bf16.msra.mxu0 %v2607
        %3074 = vmatprep.subr.bf16.mxu0 %v2604
        %3075 = vmatpush1.bf16.msra.mxu0 %v2603
        %3076 = vmatprep.subr.bf16.mxu0 %v2600
        %3077 = vmatpush1.bf16.msra.mxu0 %v2599
        %3078 = vmatprep.subr.bf16.mxu0 %v2596
        %3079 = vmatpush1.bf16.msra.mxu0 %v2595
        %3080 = vmatprep.subr.bf16.mxu0 %v2592
        %3081 = vmatpush1.bf16.msra.mxu0 %v2591
        %3082 = vmatprep.subr.bf16.mxu0 %v2588
        %3083 = vmatpush1.bf16.msra.mxu0 %v2587
        %3084 = vmatprep.subr.bf16.mxu0 %v2584
        %3085 = vmatpush1.bf16.msra.mxu0 %v2583
        %3086 = vmatprep.subr.bf16.mxu0 %v2644
        %3087 = vmatpush2.bf16.msra.mxu0 %v2643
        %3088 = vmatprep.subr.bf16.mxu0 %v2640
        %3089 = vmatpush2.bf16.msra.mxu0 %v2639
        %3090 = vmatprep.subr.bf16.mxu0 %v2636
        %3091 = vmatpush2.bf16.msra.mxu0 %v2635
        %3092 = vmatprep.subr.bf16.mxu0 %v2632
        %3093 = vmatpush2.bf16.msra.mxu0 %v2631
        %3094 = vmatprep.subr.bf16.mxu0 %v2628
        %3095 = vmatpush2.bf16.msra.mxu0 %v2627
        %3096 = vmatprep.subr.bf16.mxu0 %v2624
        %3097 = vmatpush2.bf16.msra.mxu0 %v2623
        %3098 = vmatprep.subr.bf16.mxu0 %v2620
        %3099 = vmatpush2.bf16.msra.mxu0 %v2619
        %3100 = vmatprep.subr.bf16.mxu0 %v2616
        %3101 = vmatpush2.bf16.msra.mxu0 %v2615
        %3102 = vmatprep.mubr.bf16.mxu0 %v1427
        %3103 = vmatmul.mubr.bf16.gmra.mxu0 %v1426
        %v3104 = vpop.f32.mrf.mxu0
        %v3105 = vadd.f32 %v3064, %v3104
        %v3106 = vpop.f32.mrf.mxu0
        %v3107 = vadd.f32 %v3066, %v3106
        %v3108 = vpop.f32.mrf.mxu0
        %v3109 = vpop.f32.mrf.mxu0
        %3110 = vdwg.mxu0
        %3111 = vmatprep.subr.bf16.mxu0 %v2676
        %3112 = vmatpush1.bf16.msra.mxu0 %v2675
        %3113 = vmatprep.subr.bf16.mxu0 %v2672
        %3114 = vmatpush1.bf16.msra.mxu0 %v2671
        %3115 = vmatprep.subr.bf16.mxu0 %v2668
        %3116 = vmatpush1.bf16.msra.mxu0 %v2667
        %3117 = vmatprep.subr.bf16.mxu0 %v2664
        %3118 = vmatpush1.bf16.msra.mxu0 %v2663
        %3119 = vmatprep.subr.bf16.mxu0 %v2660
        %3120 = vmatpush1.bf16.msra.mxu0 %v2659
        %3121 = vmatprep.subr.bf16.mxu0 %v2656
        %3122 = vmatpush1.bf16.msra.mxu0 %v2655
        %3123 = vmatprep.subr.bf16.mxu0 %v2652
        %3124 = vmatpush1.bf16.msra.mxu0 %v2651
        %3125 = vmatprep.subr.bf16.mxu0 %v2648
        %3126 = vmatpush1.bf16.msra.mxu0 %v2647
        %3127 = vmatprep.subr.bf16.mxu0 %v2708
        %3128 = vmatpush2.bf16.msra.mxu0 %v2707
        %3129 = vmatprep.subr.bf16.mxu0 %v2704
        %3130 = vmatpush2.bf16.msra.mxu0 %v2703
        %3131 = vmatprep.subr.bf16.mxu0 %v2700
        %3132 = vmatpush2.bf16.msra.mxu0 %v2699
        %3133 = vmatprep.subr.bf16.mxu0 %v2696
        %3134 = vmatpush2.bf16.msra.mxu0 %v2695
        %3135 = vmatprep.subr.bf16.mxu0 %v2692
        %3136 = vmatpush2.bf16.msra.mxu0 %v2691
        %3137 = vmatprep.subr.bf16.mxu0 %v2688
        %3138 = vmatpush2.bf16.msra.mxu0 %v2687
        %3139 = vmatprep.subr.bf16.mxu0 %v2684
        %3140 = vmatpush2.bf16.msra.mxu0 %v2683
        %3141 = vmatprep.subr.bf16.mxu0 %v2680
        %3142 = vmatpush2.bf16.msra.mxu0 %v2679
        %3143 = vmatprep.mubr.bf16.mxu0 %v1429
        %3144 = vmatmul.mubr.bf16.gmra.mxu0 %v1428
        %v3145 = vpop.f32.mrf.mxu0
        %v3146 = vadd.f32 %v3105, %v3145
        %v3147 = vpop.f32.mrf.mxu0
        %v3148 = vadd.f32 %v3107, %v3147
        %v3149 = vpop.f32.mrf.mxu0
        %v3150 = vpop.f32.mrf.mxu0
        %3151 = vdwg.mxu0
        %3152 = vmatprep.subr.bf16.mxu0 %v2486
        %3153 = vmatpush1.bf16.msra.mxu0 %v2485
        %3154 = vmatprep.subr.bf16.mxu0 %v2482
        %3155 = vmatpush1.bf16.msra.mxu0 %v2481
        %3156 = vmatprep.subr.bf16.mxu0 %v2478
        %3157 = vmatpush1.bf16.msra.mxu0 %v2477
        %3158 = vmatprep.subr.bf16.mxu0 %v2474
        %3159 = vmatpush1.bf16.msra.mxu0 %v2473
        %3160 = vmatprep.subr.bf16.mxu0 %v2470
        %3161 = vmatpush1.bf16.msra.mxu0 %v2469
        %3162 = vmatprep.subr.bf16.mxu0 %v2466
        %3163 = vmatpush1.bf16.msra.mxu0 %v2465
        %3164 = vmatprep.subr.bf16.mxu0 %v2462
        %3165 = vmatpush1.bf16.msra.mxu0 %v2461
        %3166 = vmatprep.subr.bf16.mxu0 %v2458
        %3167 = vmatpush1.bf16.msra.mxu0 %v2457
        %3168 = vmatprep.subr.bf16.mxu0 %v2518
        %3169 = vmatpush2.bf16.msra.mxu0 %v2517
        %3170 = vmatprep.subr.bf16.mxu0 %v2514
        %3171 = vmatpush2.bf16.msra.mxu0 %v2513
        %3172 = vmatprep.subr.bf16.mxu0 %v2510
        %3173 = vmatpush2.bf16.msra.mxu0 %v2509
        %3174 = vmatprep.subr.bf16.mxu0 %v2506
        %3175 = vmatpush2.bf16.msra.mxu0 %v2505
        %3176 = vmatprep.subr.bf16.mxu0 %v2502
        %3177 = vmatpush2.bf16.msra.mxu0 %v2501
        %3178 = vmatprep.subr.bf16.mxu0 %v2498
        %3179 = vmatpush2.bf16.msra.mxu0 %v2497
        %3180 = vmatprep.subr.bf16.mxu0 %v2494
        %3181 = vmatpush2.bf16.msra.mxu0 %v2493
        %3182 = vmatprep.subr.bf16.mxu0 %v2490
        %3183 = vmatpush2.bf16.msra.mxu0 %v2489
        %3184 = vmatprep.mubr.bf16.mxu0 %v1423
        %3185 = vmatmul.mubr.bf16.gmra.mxu0 %v1422
        %v3186 = vpop.f32.mrf.mxu0
        %v3187 = vadd.f32 %v2979, %v3186
        %v3188 = vpop.f32.mrf.mxu0
        %v3189 = vadd.f32 %v2983, %v3188
        %v3190 = vpop.f32.mrf.mxu0
        %v3191 = vpop.f32.mrf.mxu0
        %3192 = vdwg.mxu0
        %3193 = vmatprep.subr.bf16.mxu0 %v2550
        %3194 = vmatpush1.bf16.msra.mxu0 %v2549
        %3195 = vmatprep.subr.bf16.mxu0 %v2546
        %3196 = vmatpush1.bf16.msra.mxu0 %v2545
        %3197 = vmatprep.subr.bf16.mxu0 %v2542
        %3198 = vmatpush1.bf16.msra.mxu0 %v2541
        %3199 = vmatprep.subr.bf16.mxu0 %v2538
        %3200 = vmatpush1.bf16.msra.mxu0 %v2537
        %3201 = vmatprep.subr.bf16.mxu0 %v2534
        %3202 = vmatpush1.bf16.msra.mxu0 %v2533
        %3203 = vmatprep.subr.bf16.mxu0 %v2530
        %3204 = vmatpush1.bf16.msra.mxu0 %v2529
        %3205 = vmatprep.subr.bf16.mxu0 %v2526
        %3206 = vmatpush1.bf16.msra.mxu0 %v2525
        %3207 = vmatprep.subr.bf16.mxu0 %v2522
        %3208 = vmatpush1.bf16.msra.mxu0 %v2521
        %3209 = vmatprep.subr.bf16.mxu0 %v2582
        %3210 = vmatpush2.bf16.msra.mxu0 %v2581
        %3211 = vmatprep.subr.bf16.mxu0 %v2578
        %3212 = vmatpush2.bf16.msra.mxu0 %v2577
        %3213 = vmatprep.subr.bf16.mxu0 %v2574
        %3214 = vmatpush2.bf16.msra.mxu0 %v2573
        %3215 = vmatprep.subr.bf16.mxu0 %v2570
        %3216 = vmatpush2.bf16.msra.mxu0 %v2569
        %3217 = vmatprep.subr.bf16.mxu0 %v2566
        %3218 = vmatpush2.bf16.msra.mxu0 %v2565
        %3219 = vmatprep.subr.bf16.mxu0 %v2562
        %3220 = vmatpush2.bf16.msra.mxu0 %v2561
        %3221 = vmatprep.subr.bf16.mxu0 %v2558
        %3222 = vmatpush2.bf16.msra.mxu0 %v2557
        %3223 = vmatprep.subr.bf16.mxu0 %v2554
        %3224 = vmatpush2.bf16.msra.mxu0 %v2553
        %3225 = vmatprep.mubr.bf16.mxu0 %v1425
        %3226 = vmatmul.mubr.bf16.gmra.mxu0 %v1424
        %v3227 = vpop.f32.mrf.mxu0
        %v3228 = vadd.f32 %v3187, %v3227
        %v3229 = vpop.f32.mrf.mxu0
        %v3230 = vadd.f32 %v3189, %v3229
        %v3231 = vpop.f32.mrf.mxu0
        %v3232 = vpop.f32.mrf.mxu0
        %3233 = vdwg.mxu0
        %3234 = vmatprep.subr.bf16.mxu0 %v2614
        %3235 = vmatpush1.bf16.msra.mxu0 %v2613
        %3236 = vmatprep.subr.bf16.mxu0 %v2610
        %3237 = vmatpush1.bf16.msra.mxu0 %v2609
        %3238 = vmatprep.subr.bf16.mxu0 %v2606
        %3239 = vmatpush1.bf16.msra.mxu0 %v2605
        %3240 = vmatprep.subr.bf16.mxu0 %v2602
        %3241 = vmatpush1.bf16.msra.mxu0 %v2601
        %3242 = vmatprep.subr.bf16.mxu0 %v2598
        %3243 = vmatpush1.bf16.msra.mxu0 %v2597
        %3244 = vmatprep.subr.bf16.mxu0 %v2594
        %3245 = vmatpush1.bf16.msra.mxu0 %v2593
        %3246 = vmatprep.subr.bf16.mxu0 %v2590
        %3247 = vmatpush1.bf16.msra.mxu0 %v2589
        %3248 = vmatprep.subr.bf16.mxu0 %v2586
        %3249 = vmatpush1.bf16.msra.mxu0 %v2585
        %3250 = vmatprep.subr.bf16.mxu0 %v2646
        %3251 = vmatpush2.bf16.msra.mxu0 %v2645
        %3252 = vmatprep.subr.bf16.mxu0 %v2642
        %3253 = vmatpush2.bf16.msra.mxu0 %v2641
        %3254 = vmatprep.subr.bf16.mxu0 %v2638
        %3255 = vmatpush2.bf16.msra.mxu0 %v2637
        %3256 = vmatprep.subr.bf16.mxu0 %v2634
        %3257 = vmatpush2.bf16.msra.mxu0 %v2633
        %3258 = vmatprep.subr.bf16.mxu0 %v2630
        %3259 = vmatpush2.bf16.msra.mxu0 %v2629
        %3260 = vmatprep.subr.bf16.mxu0 %v2626
        %3261 = vmatpush2.bf16.msra.mxu0 %v2625
        %3262 = vmatprep.subr.bf16.mxu0 %v2622
        %3263 = vmatpush2.bf16.msra.mxu0 %v2621
        %3264 = vmatprep.subr.bf16.mxu0 %v2618
        %3265 = vmatpush2.bf16.msra.mxu0 %v2617
        %3266 = vmatprep.mubr.bf16.mxu0 %v1427
        %3267 = vmatmul.mubr.bf16.gmra.mxu0 %v1426
        %v3268 = vpop.f32.mrf.mxu0
        %v3269 = vadd.f32 %v3228, %v3268
        %v3270 = vpop.f32.mrf.mxu0
        %v3271 = vadd.f32 %v3230, %v3270
        %v3272 = vpop.f32.mrf.mxu0
        %v3273 = vpop.f32.mrf.mxu0
        %3274 = vdwg.mxu0
        %3275 = vmatprep.subr.bf16.mxu0 %v2678
        %3276 = vmatpush1.bf16.msra.mxu0 %v2677
        %3277 = vmatprep.subr.bf16.mxu0 %v2674
        %3278 = vmatpush1.bf16.msra.mxu0 %v2673
        %3279 = vmatprep.subr.bf16.mxu0 %v2670
        %3280 = vmatpush1.bf16.msra.mxu0 %v2669
        %3281 = vmatprep.subr.bf16.mxu0 %v2666
        %3282 = vmatpush1.bf16.msra.mxu0 %v2665
        %3283 = vmatprep.subr.bf16.mxu0 %v2662
        %3284 = vmatpush1.bf16.msra.mxu0 %v2661
        %3285 = vmatprep.subr.bf16.mxu0 %v2658
        %3286 = vmatpush1.bf16.msra.mxu0 %v2657
        %3287 = vmatprep.subr.bf16.mxu0 %v2654
        %3288 = vmatpush1.bf16.msra.mxu0 %v2653
        %3289 = vmatprep.subr.bf16.mxu0 %v2650
        %3290 = vmatpush1.bf16.msra.mxu0 %v2649
        %3291 = vmatprep.subr.bf16.mxu0 %v2710
        %3292 = vmatpush2.bf16.msra.mxu0 %v2709
        %3293 = vmatprep.subr.bf16.mxu0 %v2706
        %3294 = vmatpush2.bf16.msra.mxu0 %v2705
        %3295 = vmatprep.subr.bf16.mxu0 %v2702
        %3296 = vmatpush2.bf16.msra.mxu0 %v2701
        %3297 = vmatprep.subr.bf16.mxu0 %v2698
        %3298 = vmatpush2.bf16.msra.mxu0 %v2697
        %3299 = vmatprep.subr.bf16.mxu0 %v2694
        %3300 = vmatpush2.bf16.msra.mxu0 %v2693
        %3301 = vmatprep.subr.bf16.mxu0 %v2690
        %3302 = vmatpush2.bf16.msra.mxu0 %v2689
        %3303 = vmatprep.subr.bf16.mxu0 %v2686
        %3304 = vmatpush2.bf16.msra.mxu0 %v2685
        %3305 = vmatprep.subr.bf16.mxu0 %v2682
        %3306 = vmatpush2.bf16.msra.mxu0 %v2681
        %3307 = vmatprep.mubr.bf16.mxu0 %v1429
        %3308 = vmatmul.mubr.bf16.gmra.mxu0 %v1428
        %v3309 = vpop.f32.mrf.mxu0
        %v3310 = vadd.f32 %v3269, %v3309
        %v3311 = vpop.f32.mrf.mxu0
        %v3312 = vadd.f32 %v3271, %v3311
        %v3313 = vpop.f32.mrf.mxu0
        %v3314 = vpop.f32.mrf.mxu0
        %3315 = vdwg.mxu0
        %v3320 = vcombine.low %v3146, %v3148
        %v3321 = vcombine.low %v3310, %v3312
        %v3323 = vunpack.c.l.s4 1966171168
        %v3324 = vunpack.c.0.s8 %v3323
        %v3325 = vlaneseq
        %v3326 = vshrl.u32 %v3325, 7
        %v3327 = vsub.s32 %v3324, %v3326
        %v3328 = vrot.slane %v3320, %v3327
        %v3330 = vunpack.c.l.s4 1966171168
        %v3331 = vunpack.c.0.s8 %v3330
        %v3332 = vlaneseq
        %v3333 = vshrl.u32 %v3332, 7
        %v3334 = vsub.s32 %v3331, %v3333
        %v3335 = vrot.slane %v3321, %v3334
        %v3336 = vcombine.low %v3328, %v3335
        %v3338 = vunpack.c.l.s4 1966171168
        %v3339 = vunpack.c.0.s8 %v3338
        %v3340 = vlaneseq
        %v3341 = vshrl.u32 %v3340, 7
        %v3342 = vsub.s32 %v3339, %v3341
        %v3343 = vrot.slane %v3336, %v3342
        %v3345 = vlaneseq
        %vm3346 = vcmp.ge.s32.totalorder %v3345, 0
        %vm3347 = vcmp.lt.s32.totalorder %v3345, 512
        %vm3348 = vmand %vm3346, %vm3347
        %3349 = vst.msk [vmem:[%s453] sm:$0xf] %vm3348, %v3343
      $region68: #{pointnet_densecls_forward.4} parent=59 // pred_fallthru
        _
      %s3350 = smul.u32 2, %s28
      %p3351 = scmp.lt.s32.totalorder %s27, 1
      %s3352 = scalar_select %p3351, %s27, 1
      %p3353 = scmp.lt.s32.totalorder %s3350, 1
      %s3354 = scalar_select %p3353, %s3350, 1
      %s3355 = smul.addr %s3352, 2
      %s3356 = sadd.s32 %s3354, %s3355
      %s3357 = smul.addr %s3356, 8
      %s3358 = scalar_lea.vmem %s10, %s3357
      %p3359 = scmp.lt.s32.totalorder %s27, 1
      %s3360 = scalar_select %p3359, %s27, 1
      %s3361 = smul.addr %s3360, 4
      %s3362 = scalar_lea.vmem %s11, %s3361
      // Predicated region
      $region69: #{pointnet_densecls_forward.4} parent=59 // pred_check
        %p3363 = pneg %p277
      $region70: #{pointnet_densecls_forward.4} parent=59 // pred_check_branch
        %3365 = sbr.rel (%p3363) target = $region72
      $region71: #{pointnet_densecls_forward.4} parent=59 // pred_region
        %s3366 = smul.u32 2, %s28
      $region72: #{pointnet_densecls_forward.4} parent=59 // pred_fallthru
        _
      // Predicated region
      $region73: #{pointnet_densecls_forward.4} parent=59 // pred_check
        %p3367 = pneg %p303
      $region74: #{pointnet_densecls_forward.4} parent=59 // pred_check_branch
        %3369 = sbr.rel (%p3367) target = $region76
      $region75: #{pointnet_densecls_forward.4} parent=59 // pred_region
        _
      $region76: #{pointnet_densecls_forward.4} parent=59 // pred_fallthru
        _
    $region60: #{pointnet_densecls_forward.4} parent=5 // pred_fallthru
      _
    %p3370 = scmp.le.s32.totalorder 2, %s18
    // Predicated region
    $region77: #{pointnet_densecls_forward.4} parent=5 // pred_check
      %p3371 = pneg %p3370
    $region78: #{pointnet_densecls_forward.4} parent=5 // pred_check_branch
      %3373 = sbr.rel (%p3371) target = $region80
    $region79: #{pointnet_densecls_forward.4} parent=5 // pred_region
      %s3374 = ssub.s32 %s18, 2
      // Predicated region
      $region81: #{pointnet_densecls_forward.4} parent=79 // pred_check
        %p3375 = pneg %p283
      $region82: #{pointnet_densecls_forward.4} parent=79 // pred_check_branch
        %3377 = sbr.rel (%p3375) target = $region84
      $region83: #{pointnet_densecls_forward.4} parent=79 // pred_region
        %s3378 = smul.u32 2, %s30
        %p3379 = scmp.lt.s32.totalorder %s29, 1
        %s3380 = scalar_select %p3379, %s29, 1
        %p3381 = scmp.lt.s32.totalorder %s3378, 1
        %s3382 = scalar_select %p3381, %s3378, 1
        %s3383 = smul.addr %s3380, 2
        %s3384 = sadd.s32 %s3382, %s3383
        %s3385 = smul.addr %s3384, 8
        %s3386 = scalar_lea.vmem %s10, %s3385
      $region84: #{pointnet_densecls_forward.4} parent=79 // pred_fallthru
        _
      // Predicated region
      $region85: #{pointnet_densecls_forward.4} parent=79 // pred_check
        %p3387 = pneg %p309
      $region86: #{pointnet_densecls_forward.4} parent=79 // pred_check_branch
        %3389 = sbr.rel (%p3387) target = $region88
      $region87: #{pointnet_densecls_forward.4} parent=79 // pred_region
        %p3390 = scmp.lt.s32.totalorder %s29, 1
        %s3391 = scalar_select %p3390, %s29, 1
        %s3392 = smul.addr %s3391, 4
        %s3393 = scalar_lea.vmem %s11, %s3392
      $region88: #{pointnet_densecls_forward.4} parent=79 // pred_fallthru
        _
    $region80: #{pointnet_densecls_forward.4} parent=5 // pred_fallthru
      _
  $region6: #{pointnet_densecls_forward.4} parent=0 // loop_footer
    %s22 = sadd.s32 1, %s18
  $region7: #{pointnet_densecls_forward.4} parent=0 // loop_footer_branch
    %17 = sbr.rel target = $region3
  $region8: #{pointnet_densecls_forward.4} parent=0 // loop_exit
    _

</llo_original>
